<compile_context>
chip_gen: v5e
topology: v5e:2x2
jax: 0.10.0
libtpu: 0.0.40
codegen_flags: <defaults>
</compile_context>

<pallas_src>
import functools
import math

import jax
import jax.numpy as jnp
from jax.experimental import pallas as pl
from jax.experimental.pallas import tpu as pltpu

BN_EPS = 1e-5


def _round_up(x, m):
    return (x + m - 1) // m * m


def _pad2(a, rows, cols, value=0.0):
    return jnp.pad(a, ((0, rows - a.shape[0]), (0, cols - a.shape[1])),
                   constant_values=value)


# ----------------------------------------------------------------------------
# Pallas kernels: fused (bf16 GEMM) -> f32 (+bias [+residual] [+ReLU]) epilogue
# ----------------------------------------------------------------------------
def _conv_mm_kernel(relu, p_ref, w_ref, b_ref, o_ref):
    """out = maybe_relu(patches @ w + bias). Full-K block => single MXU pass."""
    y = jnp.dot(p_ref[...], w_ref[...], preferred_element_type=jnp.float32)
    y = y + b_ref[...]
    if relu:
        y = jnp.maximum(y, 0.0)
    o_ref[...] = y.astype(o_ref.dtype)


def _conv_mm_res_kernel(relu, p_ref, w_ref, b_ref, r_ref, o_ref):
    """out = maybe_relu(patches @ w + bias + residual)."""
    y = jnp.dot(p_ref[...], w_ref[...], preferred_element_type=jnp.float32)
    y = y + b_ref[...] + r_ref[...]
    if relu:
        y = jnp.maximum(y, 0.0)
    o_ref[...] = y.astype(o_ref.dtype)


def fused_conv_matmul(patches, wmat, bias, relu, residual=None):
    """(M,K) @ (K,N) on the MXU with fused bias/residual/ReLU epilogue.

    bf16 operands, f32 accumulation/epilogue/output.  Full-K / full-N blocks
    (K rounded to 16 only, N unpadded); tm sized to the real M (capped at 256),
    so each conv is one MXU pass per M-tile and the grid is 1-D over M.
    """
    M, K = patches.shape
    _, N = wmat.shape

    Kp = _round_up(K, 16)          # full-K block (legal: block == padded array dim)
    Np = N                         # N in {16, 64, 128, 256}: single full-N block
    if M <= 256:
        Mp = _round_up(M, 16)      # full-M single block
        tm = Mp
    else:
        tm = 256
        Mp = _round_up(M, tm)
    grid = (Mp // tm,)

    p_p = _pad2(patches.astype(jnp.bfloat16), Mp, Kp)
    w_p = _pad2(wmat.astype(jnp.bfloat16), Kp, Np)
    b_p = bias.reshape(1, N).astype(jnp.float32)

    in_specs = [
        pl.BlockSpec((tm, Kp), lambda i: (i, 0)),   # patches  (bf16)
        pl.BlockSpec((Kp, Np), lambda i: (0, 0)),   # weights  (bf16, BN scale pre-folded)
        pl.BlockSpec((1, Np), lambda i: (0, 0)),    # bias / BN shift (f32)
    ]
    operands = [p_p, w_p, b_p]
    if residual is not None:
        r_p = _pad2(residual.astype(jnp.float32), Mp, Np)
        in_specs.append(pl.BlockSpec((tm, Np), lambda i: (i, 0)))
        operands.append(r_p)
        kernel = functools.partial(_conv_mm_res_kernel, relu)
    else:
        kernel = functools.partial(_conv_mm_kernel, relu)

    out = pl.pallas_call(
        kernel,
        out_shape=jax.ShapeDtypeStruct((Mp, Np), jnp.float32),
        grid=grid,
        in_specs=in_specs,
        out_specs=pl.BlockSpec((tm, Np), lambda i: (i, 0)),
        compiler_params=pltpu.CompilerParams(
            dimension_semantics=("parallel",)),
    )(*operands)
    return out[:M, :N]


# ----------------------------------------------------------------------------
# Glue: im2col, conv wrapper, max-pool, BasicBlock
# ----------------------------------------------------------------------------
def im2col(x, kh, kw, stride, pad):
    """NHWC -> (N*Ho*Wo, kh*kw*C) patch matrix; K ordering is (dy, dx, cin)."""
    N, H, W, C = x.shape
    Ho = (H + 2 * pad - kh) // stride + 1
    Wo = (W + 2 * pad - kw) // stride + 1
    xp = jnp.pad(x, ((0, 0), (pad, pad), (pad, pad), (0, 0)))
    cols = []
    for dy in range(kh):
        for dx in range(kw):
            sl = jax.lax.slice(
                xp, (0, dy, dx, 0),
                (N, dy + (Ho - 1) * stride + 1, dx + (Wo - 1) * stride + 1, C),
                (1, stride, stride, 1))
            cols.append(sl)
    p = jnp.concatenate(cols, axis=-1)                 # (N, Ho, Wo, kh*kw*C)
    return p.reshape(N * Ho * Wo, kh * kw * C), Ho, Wo


def conv_bn_act(x, w, bias, stride, pad, relu, residual=None):
    """x: NHWC, w: (kh,kw,Cin,Cout) with the BN scale already folded in."""
    N = x.shape[0]
    kh, kw, Cin, Cout = w.shape
    patches, Ho, Wo = im2col(x.astype(jnp.bfloat16), kh, kw, stride, pad)
    wmat = w.reshape(kh * kw * Cin, Cout)
    res2d = None if residual is None else residual.reshape(N * Ho * Wo, Cout)
    out = fused_conv_matmul(patches, wmat, bias, relu, residual=res2d)
    return out.reshape(N, Ho, Wo, Cout)


def maxpool_3x3_s2_p1(x):
    """nn.MaxPool2d(kernel_size=3, stride=2, padding=1) on NHWC input.

    Per the performance review this is a plain XLA jnp.maximum tree over the 9
    strided taps (activation is tiny); the previous Pallas version paid a 9x
    HBM tap stack plus masked 64-lane stores for no benefit.
    """
    N, H, W, C = x.shape
    Ho = (H + 2 - 3) // 2 + 1
    Wo = (W + 2 - 3) // 2 + 1
    xp = jnp.pad(x, ((0, 0), (1, 1), (1, 1), (0, 0)),
                 constant_values=-jnp.inf)
    out = None
    for dy in range(3):
        for dx in range(3):
            sl = jax.lax.slice(
                xp, (0, dy, dx, 0),
                (N, dy + (Ho - 1) * 2 + 1, dx + (Wo - 1) * 2 + 1, C),
                (1, 2, 2, 1))
            out = sl if out is None else jnp.maximum(out, sl)
    return out


def basic_block_forward(x, p):
    stride = p["stride"]
    N, _, _, Cin = x.shape
    x_bf = x.astype(jnp.bfloat16)

    # conv1 (3x3, stride s) + folded BN + ReLU
    patches, Ho, Wo = im2col(x_bf, 3, 3, stride, 1)
    w1 = p["conv1_w"].reshape(9 * Cin, -1)
    planes = w1.shape[-1]
    out = fused_conv_matmul(patches, w1, p["conv1_b"], relu=True)
    out = out.reshape(N, Ho, Wo, planes)

    # identity / downsample.  The 1x1 stride-s downsample's LHS is exactly the
    # centre (dy=1, dx=1) tap of the 3x3 patch matrix -> reuse it (no 2nd im2col).
    if p["downsample"] is not None:
        dw, db = p["downsample"]
        ds_lhs = patches[:, 4 * Cin:5 * Cin]
        ident = fused_conv_matmul(ds_lhs, dw.reshape(Cin, -1), db, relu=False)
        ident = ident.reshape(N, Ho, Wo, planes)
    else:
        ident = x

    # conv2 (3x3, stride 1) + folded BN + residual add + final ReLU, fused in
    # the Pallas epilogue.
    out = conv_bn_act(out, p["conv2_w"], p["conv2_b"], stride=1, pad=1,
                      relu=True, residual=ident)
    return out


# ----------------------------------------------------------------------------
# Parameter init (matches the PyTorch __init__ semantics, deterministic)
# ----------------------------------------------------------------------------
def conv_init(key, kh, kw, cin, cout):
    n = kh * kw * cout
    std = math.sqrt(2.0 / n)
    return std * jax.random.normal(key, (kh, kw, cin, cout), jnp.float32)


def bn_fold(cout):
    # Inference-mode BN with freshly-initialised running stats / affine params.
    gamma = jnp.ones((cout,), jnp.float32)
    beta = jnp.zeros((cout,), jnp.float32)
    mean = jnp.zeros((cout,), jnp.float32)
    var = jnp.ones((cout,), jnp.float32)
    scale = gamma / jnp.sqrt(var + BN_EPS)
    shift = beta - mean * scale
    return scale, shift


def conv_bn_init(key, kh, kw, cin, cout):
    """Conv weight with the BN per-channel scale folded in; BN shift returned as bias."""
    w = conv_init(key, kh, kw, cin, cout)
    scale, shift = bn_fold(cout)
    return w * scale[None, None, None, :], shift


def make_basic_block_params(key, inplanes, planes, stride):
    k1, k2, k3 = jax.random.split(key, 3)
    w1, b1 = conv_bn_init(k1, 3, 3, inplanes, planes)
    w2, b2 = conv_bn_init(k2, 3, 3, planes, planes)
    p = {"conv1_w": w1, "conv1_b": b1,
         "conv2_w": w2, "conv2_b": b2,
         "downsample": None, "stride": stride}
    if stride != 1 or inplanes != planes:
        dw, db = conv_bn_init(k3, 1, 1, inplanes, planes)
        p["downsample"] = (dw, db)
    return p


def init_resnet_params(key, layers=(1, 1, 1, 1), num_classes=16,
                       num_channels=3):
    keys = jax.random.split(key, 6)
    w1, b1 = conv_bn_init(keys[0], 7, 7, num_channels, 64)
    params = {"conv1_w": w1, "conv1_b": b1}
    inplanes = 64
    plan = [(64, layers[0], 1), (128, layers[1], 2),
            (256, layers[2], 2), (256, layers[3], 1)]
    for li, (planes, nblocks, stride) in enumerate(plan):
        bkeys = jax.random.split(keys[1 + li], nblocks)
        blocks = []
        for bi in range(nblocks):
            s = stride if bi == 0 else 1
            blocks.append(make_basic_block_params(bkeys[bi], inplanes, planes, s))
            inplanes = planes
        params[f"layer{li + 1}"] = blocks
    params["conv_end_w"] = conv_init(keys[5], 1, 1, 256, num_classes) * 0.01
    params["conv_end_b"] = jnp.zeros((num_classes,), jnp.float32)
    return params


# ----------------------------------------------------------------------------
# Forward
# ----------------------------------------------------------------------------
def resnet_forward(params, x_nchw, output_key="3D"):
    x = jnp.transpose(x_nchw, (0, 2, 3, 1)).astype(jnp.float32)  # NCHW -> NHWC
    x = conv_bn_act(x, params["conv1_w"], params["conv1_b"],
                    stride=2, pad=3, relu=True)
    x = maxpool_3x3_s2_p1(x)
    for li in range(1, 5):
        for blk in params[f"layer{li}"]:
            x = basic_block_forward(x, blk)
    # conv_end: 1x1, bias=True, no BN; N=16 stays unpadded inside the kernel.
    x = conv_bn_act(x, params["conv_end_w"], params["conv_end_b"],
                    stride=1, pad=0, relu=False)
    return {output_key: jnp.transpose(x, (0, 3, 1, 2))}          # NHWC -> NCHW


if __name__ == "__main__":
    key = jax.random.PRNGKey(0)
    pkey, xkey = jax.random.split(key)
    params = init_resnet_params(pkey, layers=(1, 1, 1, 1),
                                num_classes=16, num_channels=3)
    x = jax.random.normal(xkey, (2, 3, 32, 32), jnp.float32)     # NCHW
    fwd = jax.jit(functools.partial(resnet_forward, params))
    out = fwd(x)
    jax.block_until_ready(out)
    assert out["3D"].shape == (2, 16, 2, 2), out["3D"].shape
    assert out["3D"].dtype == jnp.float32
    print("KERNEL_OK")
</pallas_src>

<mosaic_0001>
module attributes {stable_mosaic.version = 11 : i64} {
  func.func @_conv_mm_kernel(%arg0: i32, %arg1: memref<256x160xbf16, #tpu.memory_space<vmem>>, %arg2: memref<160x64xbf16, #tpu.memory_space<vmem>>, %arg3: memref<1x64xf32, #tpu.memory_space<vmem>>, %arg4: memref<256x64xf32, #tpu.memory_space<vmem>>) attributes {dimension_semantics = [#tpu.dimension_semantics<parallel>], iteration_bounds = array<i64: 2>, scalar_prefetch = 0 : i64, scratch_operands = 0 : i64, tpu.core_type = #tpu.core_type<tc>, window_params = [{transform_indices = @transform_0, window_bounds = array<i64: 256, 160>}, {pipeline_mode = #tpu.pipeline_mode<synchronous>, transform_indices = @transform_1, window_bounds = array<i64: 160, 64>}, {pipeline_mode = #tpu.pipeline_mode<synchronous>, transform_indices = @transform_2, window_bounds = array<i64: 1, 64>}, {transform_indices = @transform_3, window_bounds = array<i64: 256, 64>}]} {
    %c0 = arith.constant 0 : index
    %c0_0 = arith.constant 0 : index
    %0 = vector.load %arg1[%c0, %c0_0] : memref<256x160xbf16, #tpu.memory_space<vmem>>, vector<256x160xbf16>
    %c0_1 = arith.constant 0 : index
    %c0_2 = arith.constant 0 : index
    %1 = vector.load %arg2[%c0_1, %c0_2] : memref<160x64xbf16, #tpu.memory_space<vmem>>, vector<160x64xbf16>
    %cst = arith.constant dense<0.000000e+00> : vector<256x64xf32>
    %2 = tpu.matmul %0, %1, %cst {dimension_numbers = #tpu.dot_dimension_numbers<[1], [0], [0], [1], [0, 0, 1, 1], [], []>} : vector<256x160xbf16>, vector<160x64xbf16>, vector<256x64xf32> -> vector<256x64xf32>
    %c0_3 = arith.constant 0 : index
    %c0_4 = arith.constant 0 : index
    %3 = vector.load %arg3[%c0_3, %c0_4] : memref<1x64xf32, #tpu.memory_space<vmem>>, vector<1x64xf32>
    %4 = vector.broadcast %3 : vector<1x64xf32> to vector<256x64xf32>
    %5 = arith.addf %2, %4 : vector<256x64xf32>
    %cst_5 = arith.constant 0.000000e+00 : f32
    %6 = vector.broadcast %cst_5 : f32 to vector<256x64xf32>
    %7 = arith.maximumf %5, %6 : vector<256x64xf32>
    %c0_6 = arith.constant 0 : index
    %c0_7 = arith.constant 0 : index
    %8 = vector.load %arg4[%c0_6, %c0_7] : memref<256x64xf32, #tpu.memory_space<vmem>>, vector<256x64xf32>
    tpu.vector_store %arg4[%c0_6, %c0_7], %7 {strides = array<i32>} : memref<256x64xf32, #tpu.memory_space<vmem>>, vector<256x64xf32>,
    return
  }
  func.func @transform_0(%arg0: i32) -> (i32, i32) {
    %c0_i32 = arith.constant 0 : i32
    %c0_i32_0 = arith.constant 0 : i32
    return %arg0, %c0_i32 : i32, i32
  }
  func.func @transform_1(%arg0: i32) -> (i32, i32) {
    %c0_i32 = arith.constant 0 : i32
    %c0_i32_0 = arith.constant 0 : i32
    %c0_i32_1 = arith.constant 0 : i32
    return %c0_i32, %c0_i32_0 : i32, i32
  }
  func.func @transform_2(%arg0: i32) -> (i32, i32) {
    %c0_i32 = arith.constant 0 : i32
    %c0_i32_0 = arith.constant 0 : i32
    %c0_i32_1 = arith.constant 0 : i32
    return %c0_i32, %c0_i32_0 : i32, i32
  }
  func.func @transform_3(%arg0: i32) -> (i32, i32) {
    %c0_i32 = arith.constant 0 : i32
    %c0_i32_0 = arith.constant 0 : i32
    return %arg0, %c0_i32 : i32, i32
  }
}

module attributes {stable_mosaic.version = 11 : i64} {
  func.func @_conv_mm_kernel(%arg0: i32, %arg1: memref<128x576xbf16, #tpu.memory_space<vmem>>, %arg2: memref<576x64xbf16, #tpu.memory_space<vmem>>, %arg3: memref<1x64xf32, #tpu.memory_space<vmem>>, %arg4: memref<128x64xf32, #tpu.memory_space<vmem>>) attributes {dimension_semantics = [#tpu.dimension_semantics<parallel>], iteration_bounds = array<i64: 1>, scalar_prefetch = 0 : i64, scratch_operands = 0 : i64, tpu.core_type = #tpu.core_type<tc>, window_params = [{transform_indices = @transform_0, window_bounds = array<i64: 128, 576>}, {pipeline_mode = #tpu.pipeline_mode<synchronous>, transform_indices = @transform_1, window_bounds = array<i64: 576, 64>}, {pipeline_mode = #tpu.pipeline_mode<synchronous>, transform_indices = @transform_2, window_bounds = array<i64: 1, 64>}, {transform_indices = @transform_3, window_bounds = array<i64: 128, 64>}]} {
    %c0 = arith.constant 0 : index
    %c0_0 = arith.constant 0 : index
    %0 = vector.load %arg1[%c0, %c0_0] : memref<128x576xbf16, #tpu.memory_space<vmem>>, vector<128x576xbf16>
    %c0_1 = arith.constant 0 : index
    %c0_2 = arith.constant 0 : index
    %1 = vector.load %arg2[%c0_1, %c0_2] : memref<576x64xbf16, #tpu.memory_space<vmem>>, vector<576x64xbf16>
    %cst = arith.constant dense<0.000000e+00> : vector<128x64xf32>
    %2 = tpu.matmul %0, %1, %cst {dimension_numbers = #tpu.dot_dimension_numbers<[1], [0], [0], [1], [0, 0, 1, 1], [], []>} : vector<128x576xbf16>, vector<576x64xbf16>, vector<128x64xf32> -> vector<128x64xf32>
    %c0_3 = arith.constant 0 : index
    %c0_4 = arith.constant 0 : index
    %3 = vector.load %arg3[%c0_3, %c0_4] : memref<1x64xf32, #tpu.memory_space<vmem>>, vector<1x64xf32>
    %4 = vector.broadcast %3 : vector<1x64xf32> to vector<128x64xf32>
    %5 = arith.addf %2, %4 : vector<128x64xf32>
    %cst_5 = arith.constant 0.000000e+00 : f32
    %6 = vector.broadcast %cst_5 : f32 to vector<128x64xf32>
    %7 = arith.maximumf %5, %6 : vector<128x64xf32>
    %c0_6 = arith.constant 0 : index
    %c0_7 = arith.constant 0 : index
    %8 = vector.load %arg4[%c0_6, %c0_7] : memref<128x64xf32, #tpu.memory_space<vmem>>, vector<128x64xf32>
    tpu.vector_store %arg4[%c0_6, %c0_7], %7 {strides = array<i32>} : memref<128x64xf32, #tpu.memory_space<vmem>>, vector<128x64xf32>,
    return
  }
  func.func @transform_0(%arg0: i32) -> (i32, i32) {
    %c0_i32 = arith.constant 0 : i32
    %c0_i32_0 = arith.constant 0 : i32
    return %arg0, %c0_i32 : i32, i32
  }
  func.func @transform_1(%arg0: i32) -> (i32, i32) {
    %c0_i32 = arith.constant 0 : i32
    %c0_i32_0 = arith.constant 0 : i32
    %c0_i32_1 = arith.constant 0 : i32
    return %c0_i32, %c0_i32_0 : i32, i32
  }
  func.func @transform_2(%arg0: i32) -> (i32, i32) {
    %c0_i32 = arith.constant 0 : i32
    %c0_i32_0 = arith.constant 0 : i32
    %c0_i32_1 = arith.constant 0 : i32
    return %c0_i32, %c0_i32_0 : i32, i32
  }
  func.func @transform_3(%arg0: i32) -> (i32, i32) {
    %c0_i32 = arith.constant 0 : i32
    %c0_i32_0 = arith.constant 0 : i32
    return %arg0, %c0_i32 : i32, i32
  }
}

module attributes {stable_mosaic.version = 11 : i64} {
  func.func @_conv_mm_res_kernel(%arg0: i32, %arg1: memref<128x576xbf16, #tpu.memory_space<vmem>>, %arg2: memref<576x64xbf16, #tpu.memory_space<vmem>>, %arg3: memref<1x64xf32, #tpu.memory_space<vmem>>, %arg4: memref<128x64xf32, #tpu.memory_space<vmem>>, %arg5: memref<128x64xf32, #tpu.memory_space<vmem>>) attributes {dimension_semantics = [#tpu.dimension_semantics<parallel>], iteration_bounds = array<i64: 1>, scalar_prefetch = 0 : i64, scratch_operands = 0 : i64, tpu.core_type = #tpu.core_type<tc>, window_params = [{transform_indices = @transform_0, window_bounds = array<i64: 128, 576>}, {pipeline_mode = #tpu.pipeline_mode<synchronous>, transform_indices = @transform_1, window_bounds = array<i64: 576, 64>}, {pipeline_mode = #tpu.pipeline_mode<synchronous>, transform_indices = @transform_2, window_bounds = array<i64: 1, 64>}, {transform_indices = @transform_3, window_bounds = array<i64: 128, 64>}, {transform_indices = @transform_4, window_bounds = array<i64: 128, 64>}]} {
    %c0 = arith.constant 0 : index
    %c0_0 = arith.constant 0 : index
    %0 = vector.load %arg1[%c0, %c0_0] : memref<128x576xbf16, #tpu.memory_space<vmem>>, vector<128x576xbf16>
    %c0_1 = arith.constant 0 : index
    %c0_2 = arith.constant 0 : index
    %1 = vector.load %arg2[%c0_1, %c0_2] : memref<576x64xbf16, #tpu.memory_space<vmem>>, vector<576x64xbf16>
    %cst = arith.constant dense<0.000000e+00> : vector<128x64xf32>
    %2 = tpu.matmul %0, %1, %cst {dimension_numbers = #tpu.dot_dimension_numbers<[1], [0], [0], [1], [0, 0, 1, 1], [], []>} : vector<128x576xbf16>, vector<576x64xbf16>, vector<128x64xf32> -> vector<128x64xf32>
    %c0_3 = arith.constant 0 : index
    %c0_4 = arith.constant 0 : index
    %3 = vector.load %arg3[%c0_3, %c0_4] : memref<1x64xf32, #tpu.memory_space<vmem>>, vector<1x64xf32>
    %4 = vector.broadcast %3 : vector<1x64xf32> to vector<128x64xf32>
    %5 = arith.addf %2, %4 : vector<128x64xf32>
    %c0_5 = arith.constant 0 : index
    %c0_6 = arith.constant 0 : index
    %6 = vector.load %arg4[%c0_5, %c0_6] : memref<128x64xf32, #tpu.memory_space<vmem>>, vector<128x64xf32>
    %7 = arith.addf %5, %6 : vector<128x64xf32>
    %cst_7 = arith.constant 0.000000e+00 : f32
    %8 = vector.broadcast %cst_7 : f32 to vector<128x64xf32>
    %9 = arith.maximumf %7, %8 : vector<128x64xf32>
    %c0_8 = arith.constant 0 : index
    %c0_9 = arith.constant 0 : index
    %10 = vector.load %arg5[%c0_8, %c0_9] : memref<128x64xf32, #tpu.memory_space<vmem>>, vector<128x64xf32>
    tpu.vector_store %arg5[%c0_8, %c0_9], %9 {strides = array<i32>} : memref<128x64xf32, #tpu.memory_space<vmem>>, vector<128x64xf32>,
    return
  }
  func.func @transform_0(%arg0: i32) -> (i32, i32) {
    %c0_i32 = arith.constant 0 : i32
    %c0_i32_0 = arith.constant 0 : i32
    return %arg0, %c0_i32 : i32, i32
  }
  func.func @transform_1(%arg0: i32) -> (i32, i32) {
    %c0_i32 = arith.constant 0 : i32
    %c0_i32_0 = arith.constant 0 : i32
    %c0_i32_1 = arith.constant 0 : i32
    return %c0_i32, %c0_i32_0 : i32, i32
  }
  func.func @transform_2(%arg0: i32) -> (i32, i32) {
    %c0_i32 = arith.constant 0 : i32
    %c0_i32_0 = arith.constant 0 : i32
    %c0_i32_1 = arith.constant 0 : i32
    return %c0_i32, %c0_i32_0 : i32, i32
  }
  func.func @transform_3(%arg0: i32) -> (i32, i32) {
    %c0_i32 = arith.constant 0 : i32
    %c0_i32_0 = arith.constant 0 : i32
    return %arg0, %c0_i32 : i32, i32
  }
  func.func @transform_4(%arg0: i32) -> (i32, i32) {
    %c0_i32 = arith.constant 0 : i32
    %c0_i32_0 = arith.constant 0 : i32
    return %arg0, %c0_i32 : i32, i32
  }
}

module attributes {stable_mosaic.version = 11 : i64} {
  func.func @_conv_mm_kernel(%arg0: i32, %arg1: memref<32x576xbf16, #tpu.memory_space<vmem>>, %arg2: memref<576x128xbf16, #tpu.memory_space<vmem>>, %arg3: memref<1x128xf32, #tpu.memory_space<vmem>>, %arg4: memref<32x128xf32, #tpu.memory_space<vmem>>) attributes {dimension_semantics = [#tpu.dimension_semantics<parallel>], iteration_bounds = array<i64: 1>, scalar_prefetch = 0 : i64, scratch_operands = 0 : i64, tpu.core_type = #tpu.core_type<tc>, window_params = [{transform_indices = @transform_0, window_bounds = array<i64: 32, 576>}, {pipeline_mode = #tpu.pipeline_mode<synchronous>, transform_indices = @transform_1, window_bounds = array<i64: 576, 128>}, {pipeline_mode = #tpu.pipeline_mode<synchronous>, transform_indices = @transform_2, window_bounds = array<i64: 1, 128>}, {transform_indices = @transform_3, window_bounds = array<i64: 32, 128>}]} {
    %c0 = arith.constant 0 : index
    %c0_0 = arith.constant 0 : index
    %0 = vector.load %arg1[%c0, %c0_0] : memref<32x576xbf16, #tpu.memory_space<vmem>>, vector<32x576xbf16>
    %c0_1 = arith.constant 0 : index
    %c0_2 = arith.constant 0 : index
    %1 = vector.load %arg2[%c0_1, %c0_2] : memref<576x128xbf16, #tpu.memory_space<vmem>>, vector<576x128xbf16>
    %cst = arith.constant dense<0.000000e+00> : vector<32x128xf32>
    %2 = tpu.matmul %0, %1, %cst {dimension_numbers = #tpu.dot_dimension_numbers<[1], [0], [0], [1], [0, 0, 1, 1], [], []>} : vector<32x576xbf16>, vector<576x128xbf16>, vector<32x128xf32> -> vector<32x128xf32>
    %c0_3 = arith.constant 0 : index
    %c0_4 = arith.constant 0 : index
    %3 = vector.load %arg3[%c0_3, %c0_4] : memref<1x128xf32, #tpu.memory_space<vmem>>, vector<1x128xf32>
    %4 = vector.broadcast %3 : vector<1x128xf32> to vector<32x128xf32>
    %5 = arith.addf %2, %4 : vector<32x128xf32>
    %cst_5 = arith.constant 0.000000e+00 : f32
    %6 = vector.broadcast %cst_5 : f32 to vector<32x128xf32>
    %7 = arith.maximumf %5, %6 : vector<32x128xf32>
    %c0_6 = arith.constant 0 : index
    %c0_7 = arith.constant 0 : index
    %8 = vector.load %arg4[%c0_6, %c0_7] : memref<32x128xf32, #tpu.memory_space<vmem>>, vector<32x128xf32>
    tpu.vector_store %arg4[%c0_6, %c0_7], %7 {strides = array<i32>} : memref<32x128xf32, #tpu.memory_space<vmem>>, vector<32x128xf32>,
    return
  }
  func.func @transform_0(%arg0: i32) -> (i32, i32) {
    %c0_i32 = arith.constant 0 : i32
    %c0_i32_0 = arith.constant 0 : i32
    return %arg0, %c0_i32 : i32, i32
  }
  func.func @transform_1(%arg0: i32) -> (i32, i32) {
    %c0_i32 = arith.constant 0 : i32
    %c0_i32_0 = arith.constant 0 : i32
    %c0_i32_1 = arith.constant 0 : i32
    return %c0_i32, %c0_i32_0 : i32, i32
  }
  func.func @transform_2(%arg0: i32) -> (i32, i32) {
    %c0_i32 = arith.constant 0 : i32
    %c0_i32_0 = arith.constant 0 : i32
    %c0_i32_1 = arith.constant 0 : i32
    return %c0_i32, %c0_i32_0 : i32, i32
  }
  func.func @transform_3(%arg0: i32) -> (i32, i32) {
    %c0_i32 = arith.constant 0 : i32
    %c0_i32_0 = arith.constant 0 : i32
    return %arg0, %c0_i32 : i32, i32
  }
}

module attributes {stable_mosaic.version = 11 : i64} {
  func.func @_conv_mm_res_kernel(%arg0: i32, %arg1: memref<32x1152xbf16, #tpu.memory_space<vmem>>, %arg2: memref<1152x128xbf16, #tpu.memory_space<vmem>>, %arg3: memref<1x128xf32, #tpu.memory_space<vmem>>, %arg4: memref<32x128xf32, #tpu.memory_space<vmem>>, %arg5: memref<32x128xf32, #tpu.memory_space<vmem>>) attributes {dimension_semantics = [#tpu.dimension_semantics<parallel>], iteration_bounds = array<i64: 1>, scalar_prefetch = 0 : i64, scratch_operands = 0 : i64, tpu.core_type = #tpu.core_type<tc>, window_params = [{transform_indices = @transform_0, window_bounds = array<i64: 32, 1152>}, {pipeline_mode = #tpu.pipeline_mode<synchronous>, transform_indices = @transform_1, window_bounds = array<i64: 1152, 128>}, {pipeline_mode = #tpu.pipeline_mode<synchronous>, transform_indices = @transform_2, window_bounds = array<i64: 1, 128>}, {transform_indices = @transform_3, window_bounds = array<i64: 32, 128>}, {transform_indices = @transform_4, window_bounds = array<i64: 32, 128>}]} {
    %c0 = arith.constant 0 : index
    %c0_0 = arith.constant 0 : index
    %0 = vector.load %arg1[%c0, %c0_0] : memref<32x1152xbf16, #tpu.memory_space<vmem>>, vector<32x1152xbf16>
    %c0_1 = arith.constant 0 : index
    %c0_2 = arith.constant 0 : index
    %1 = vector.load %arg2[%c0_1, %c0_2] : memref<1152x128xbf16, #tpu.memory_space<vmem>>, vector<1152x128xbf16>
    %cst = arith.constant dense<0.000000e+00> : vector<32x128xf32>
    %2 = tpu.matmul %0, %1, %cst {dimension_numbers = #tpu.dot_dimension_numbers<[1], [0], [0], [1], [0, 0, 1, 1], [], []>} : vector<32x1152xbf16>, vector<1152x128xbf16>, vector<32x128xf32> -> vector<32x128xf32>
    %c0_3 = arith.constant 0 : index
    %c0_4 = arith.constant 0 : index
    %3 = vector.load %arg3[%c0_3, %c0_4] : memref<1x128xf32, #tpu.memory_space<vmem>>, vector<1x128xf32>
    %4 = vector.broadcast %3 : vector<1x128xf32> to vector<32x128xf32>
    %5 = arith.addf %2, %4 : vector<32x128xf32>
    %c0_5 = arith.constant 0 : index
    %c0_6 = arith.constant 0 : index
    %6 = vector.load %arg4[%c0_5, %c0_6] : memref<32x128xf32, #tpu.memory_space<vmem>>, vector<32x128xf32>
    %7 = arith.addf %5, %6 : vector<32x128xf32>
    %cst_7 = arith.constant 0.000000e+00 : f32
    %8 = vector.broadcast %cst_7 : f32 to vector<32x128xf32>
    %9 = arith.maximumf %7, %8 : vector<32x128xf32>
    %c0_8 = arith.constant 0 : index
    %c0_9 = arith.constant 0 : index
    %10 = vector.load %arg5[%c0_8, %c0_9] : memref<32x128xf32, #tpu.memory_space<vmem>>, vector<32x128xf32>
    tpu.vector_store %arg5[%c0_8, %c0_9], %9 {strides = array<i32>} : memref<32x128xf32, #tpu.memory_space<vmem>>, vector<32x128xf32>,
    return
  }
  func.func @transform_0(%arg0: i32) -> (i32, i32) {
    %c0_i32 = arith.constant 0 : i32
    %c0_i32_0 = arith.constant 0 : i32
    return %arg0, %c0_i32 : i32, i32
  }
  func.func @transform_1(%arg0: i32) -> (i32, i32) {
    %c0_i32 = arith.constant 0 : i32
    %c0_i32_0 = arith.constant 0 : i32
    %c0_i32_1 = arith.constant 0 : i32
    return %c0_i32, %c0_i32_0 : i32, i32
  }
  func.func @transform_2(%arg0: i32) -> (i32, i32) {
    %c0_i32 = arith.constant 0 : i32
    %c0_i32_0 = arith.constant 0 : i32
    %c0_i32_1 = arith.constant 0 : i32
    return %c0_i32, %c0_i32_0 : i32, i32
  }
  func.func @transform_3(%arg0: i32) -> (i32, i32) {
    %c0_i32 = arith.constant 0 : i32
    %c0_i32_0 = arith.constant 0 : i32
    return %arg0, %c0_i32 : i32, i32
  }
  func.func @transform_4(%arg0: i32) -> (i32, i32) {
    %c0_i32 = arith.constant 0 : i32
    %c0_i32_0 = arith.constant 0 : i32
    return %arg0, %c0_i32 : i32, i32
  }
}

module attributes {stable_mosaic.version = 11 : i64} {
  func.func @_conv_mm_kernel(%arg0: i32, %arg1: memref<32x64xbf16, #tpu.memory_space<vmem>>, %arg2: memref<64x128xbf16, #tpu.memory_space<vmem>>, %arg3: memref<1x128xf32, #tpu.memory_space<vmem>>, %arg4: memref<32x128xf32, #tpu.memory_space<vmem>>) attributes {dimension_semantics = [#tpu.dimension_semantics<parallel>], iteration_bounds = array<i64: 1>, scalar_prefetch = 0 : i64, scratch_operands = 0 : i64, tpu.core_type = #tpu.core_type<tc>, window_params = [{transform_indices = @transform_0, window_bounds = array<i64: 32, 64>}, {pipeline_mode = #tpu.pipeline_mode<synchronous>, transform_indices = @transform_1, window_bounds = array<i64: 64, 128>}, {pipeline_mode = #tpu.pipeline_mode<synchronous>, transform_indices = @transform_2, window_bounds = array<i64: 1, 128>}, {transform_indices = @transform_3, window_bounds = array<i64: 32, 128>}]} {
    %c0 = arith.constant 0 : index
    %c0_0 = arith.constant 0 : index
    %0 = vector.load %arg1[%c0, %c0_0] : memref<32x64xbf16, #tpu.memory_space<vmem>>, vector<32x64xbf16>
    %c0_1 = arith.constant 0 : index
    %c0_2 = arith.constant 0 : index
    %1 = vector.load %arg2[%c0_1, %c0_2] : memref<64x128xbf16, #tpu.memory_space<vmem>>, vector<64x128xbf16>
    %cst = arith.constant dense<0.000000e+00> : vector<32x128xf32>
    %2 = tpu.matmul %0, %1, %cst {dimension_numbers = #tpu.dot_dimension_numbers<[1], [0], [0], [1], [0, 0, 1, 1], [], []>} : vector<32x64xbf16>, vector<64x128xbf16>, vector<32x128xf32> -> vector<32x128xf32>
    %c0_3 = arith.constant 0 : index
    %c0_4 = arith.constant 0 : index
    %3 = vector.load %arg3[%c0_3, %c0_4] : memref<1x128xf32, #tpu.memory_space<vmem>>, vector<1x128xf32>
    %4 = vector.broadcast %3 : vector<1x128xf32> to vector<32x128xf32>
    %5 = arith.addf %2, %4 : vector<32x128xf32>
    %c0_5 = arith.constant 0 : index
    %c0_6 = arith.constant 0 : index
    %6 = vector.load %arg4[%c0_5, %c0_6] : memref<32x128xf32, #tpu.memory_space<vmem>>, vector<32x128xf32>
    tpu.vector_store %arg4[%c0_5, %c0_6], %5 {strides = array<i32>} : memref<32x128xf32, #tpu.memory_space<vmem>>, vector<32x128xf32>,
    return
  }
  func.func @transform_0(%arg0: i32) -> (i32, i32) {
    %c0_i32 = arith.constant 0 : i32
    %c0_i32_0 = arith.constant 0 : i32
    return %arg0, %c0_i32 : i32, i32
  }
  func.func @transform_1(%arg0: i32) -> (i32, i32) {
    %c0_i32 = arith.constant 0 : i32
    %c0_i32_0 = arith.constant 0 : i32
    %c0_i32_1 = arith.constant 0 : i32
    return %c0_i32, %c0_i32_0 : i32, i32
  }
  func.func @transform_2(%arg0: i32) -> (i32, i32) {
    %c0_i32 = arith.constant 0 : i32
    %c0_i32_0 = arith.constant 0 : i32
    %c0_i32_1 = arith.constant 0 : i32
    return %c0_i32, %c0_i32_0 : i32, i32
  }
  func.func @transform_3(%arg0: i32) -> (i32, i32) {
    %c0_i32 = arith.constant 0 : i32
    %c0_i32_0 = arith.constant 0 : i32
    return %arg0, %c0_i32 : i32, i32
  }
}

module attributes {stable_mosaic.version = 11 : i64} {
  func.func @_conv_mm_kernel(%arg0: i32, %arg1: memref<16x1152xbf16, #tpu.memory_space<vmem>>, %arg2: memref<1152x256xbf16, #tpu.memory_space<vmem>>, %arg3: memref<1x256xf32, #tpu.memory_space<vmem>>, %arg4: memref<16x256xf32, #tpu.memory_space<vmem>>) attributes {dimension_semantics = [#tpu.dimension_semantics<parallel>], iteration_bounds = array<i64: 1>, scalar_prefetch = 0 : i64, scratch_operands = 0 : i64, tpu.core_type = #tpu.core_type<tc>, window_params = [{transform_indices = @transform_0, window_bounds = array<i64: 16, 1152>}, {pipeline_mode = #tpu.pipeline_mode<synchronous>, transform_indices = @transform_1, window_bounds = array<i64: 1152, 256>}, {pipeline_mode = #tpu.pipeline_mode<synchronous>, transform_indices = @transform_2, window_bounds = array<i64: 1, 256>}, {transform_indices = @transform_3, window_bounds = array<i64: 16, 256>}]} {
    %c0 = arith.constant 0 : index
    %c0_0 = arith.constant 0 : index
    %0 = vector.load %arg1[%c0, %c0_0] : memref<16x1152xbf16, #tpu.memory_space<vmem>>, vector<16x1152xbf16>
    %c0_1 = arith.constant 0 : index
    %c0_2 = arith.constant 0 : index
    %1 = vector.load %arg2[%c0_1, %c0_2] : memref<1152x256xbf16, #tpu.memory_space<vmem>>, vector<1152x256xbf16>
    %cst = arith.constant dense<0.000000e+00> : vector<16x256xf32>
    %2 = tpu.matmul %0, %1, %cst {dimension_numbers = #tpu.dot_dimension_numbers<[1], [0], [0], [1], [0, 0, 1, 1], [], []>} : vector<16x1152xbf16>, vector<1152x256xbf16>, vector<16x256xf32> -> vector<16x256xf32>
    %c0_3 = arith.constant 0 : index
    %c0_4 = arith.constant 0 : index
    %3 = vector.load %arg3[%c0_3, %c0_4] : memref<1x256xf32, #tpu.memory_space<vmem>>, vector<1x256xf32>
    %4 = vector.broadcast %3 : vector<1x256xf32> to vector<16x256xf32>
    %5 = arith.addf %2, %4 : vector<16x256xf32>
    %cst_5 = arith.constant 0.000000e+00 : f32
    %6 = vector.broadcast %cst_5 : f32 to vector<16x256xf32>
    %7 = arith.maximumf %5, %6 : vector<16x256xf32>
    %c0_6 = arith.constant 0 : index
    %c0_7 = arith.constant 0 : index
    %8 = vector.load %arg4[%c0_6, %c0_7] : memref<16x256xf32, #tpu.memory_space<vmem>>, vector<16x256xf32>
    tpu.vector_store %arg4[%c0_6, %c0_7], %7 {strides = array<i32>} : memref<16x256xf32, #tpu.memory_space<vmem>>, vector<16x256xf32>,
    return
  }
  func.func @transform_0(%arg0: i32) -> (i32, i32) {
    %c0_i32 = arith.constant 0 : i32
    %c0_i32_0 = arith.constant 0 : i32
    return %arg0, %c0_i32 : i32, i32
  }
  func.func @transform_1(%arg0: i32) -> (i32, i32) {
    %c0_i32 = arith.constant 0 : i32
    %c0_i32_0 = arith.constant 0 : i32
    %c0_i32_1 = arith.constant 0 : i32
    return %c0_i32, %c0_i32_0 : i32, i32
  }
  func.func @transform_2(%arg0: i32) -> (i32, i32) {
    %c0_i32 = arith.constant 0 : i32
    %c0_i32_0 = arith.constant 0 : i32
    %c0_i32_1 = arith.constant 0 : i32
    return %c0_i32, %c0_i32_0 : i32, i32
  }
  func.func @transform_3(%arg0: i32) -> (i32, i32) {
    %c0_i32 = arith.constant 0 : i32
    %c0_i32_0 = arith.constant 0 : i32
    return %arg0, %c0_i32 : i32, i32
  }
}

module attributes {stable_mosaic.version = 11 : i64} {
  func.func @_conv_mm_kernel(%arg0: i32, %arg1: memref<16x2304xbf16, #tpu.memory_space<vmem>>, %arg2: memref<2304x256xbf16, #tpu.memory_space<vmem>>, %arg3: memref<1x256xf32, #tpu.memory_space<vmem>>, %arg4: memref<16x256xf32, #tpu.memory_space<vmem>>) attributes {dimension_semantics = [#tpu.dimension_semantics<parallel>], iteration_bounds = array<i64: 1>, scalar_prefetch = 0 : i64, scratch_operands = 0 : i64, tpu.core_type = #tpu.core_type<tc>, window_params = [{transform_indices = @transform_0, window_bounds = array<i64: 16, 2304>}, {pipeline_mode = #tpu.pipeline_mode<synchronous>, transform_indices = @transform_1, window_bounds = array<i64: 2304, 256>}, {pipeline_mode = #tpu.pipeline_mode<synchronous>, transform_indices = @transform_2, window_bounds = array<i64: 1, 256>}, {transform_indices = @transform_3, window_bounds = array<i64: 16, 256>}]} {
    %c0 = arith.constant 0 : index
    %c0_0 = arith.constant 0 : index
    %0 = vector.load %arg1[%c0, %c0_0] : memref<16x2304xbf16, #tpu.memory_space<vmem>>, vector<16x2304xbf16>
    %c0_1 = arith.constant 0 : index
    %c0_2 = arith.constant 0 : index
    %1 = vector.load %arg2[%c0_1, %c0_2] : memref<2304x256xbf16, #tpu.memory_space<vmem>>, vector<2304x256xbf16>
    %cst = arith.constant dense<0.000000e+00> : vector<16x256xf32>
    %2 = tpu.matmul %0, %1, %cst {dimension_numbers = #tpu.dot_dimension_numbers<[1], [0], [0], [1], [0, 0, 1, 1], [], []>} : vector<16x2304xbf16>, vector<2304x256xbf16>, vector<16x256xf32> -> vector<16x256xf32>
    %c0_3 = arith.constant 0 : index
    %c0_4 = arith.constant 0 : index
    %3 = vector.load %arg3[%c0_3, %c0_4] : memref<1x256xf32, #tpu.memory_space<vmem>>, vector<1x256xf32>
    %4 = vector.broadcast %3 : vector<1x256xf32> to vector<16x256xf32>
    %5 = arith.addf %2, %4 : vector<16x256xf32>
    %cst_5 = arith.constant 0.000000e+00 : f32
    %6 = vector.broadcast %cst_5 : f32 to vector<16x256xf32>
    %7 = arith.maximumf %5, %6 : vector<16x256xf32>
    %c0_6 = arith.constant 0 : index
    %c0_7 = arith.constant 0 : index
    %8 = vector.load %arg4[%c0_6, %c0_7] : memref<16x256xf32, #tpu.memory_space<vmem>>, vector<16x256xf32>
    tpu.vector_store %arg4[%c0_6, %c0_7], %7 {strides = array<i32>} : memref<16x256xf32, #tpu.memory_space<vmem>>, vector<16x256xf32>,
    return
  }
  func.func @transform_0(%arg0: i32) -> (i32, i32) {
    %c0_i32 = arith.constant 0 : i32
    %c0_i32_0 = arith.constant 0 : i32
    return %arg0, %c0_i32 : i32, i32
  }
  func.func @transform_1(%arg0: i32) -> (i32, i32) {
    %c0_i32 = arith.constant 0 : i32
    %c0_i32_0 = arith.constant 0 : i32
    %c0_i32_1 = arith.constant 0 : i32
    return %c0_i32, %c0_i32_0 : i32, i32
  }
  func.func @transform_2(%arg0: i32) -> (i32, i32) {
    %c0_i32 = arith.constant 0 : i32
    %c0_i32_0 = arith.constant 0 : i32
    %c0_i32_1 = arith.constant 0 : i32
    return %c0_i32, %c0_i32_0 : i32, i32
  }
  func.func @transform_3(%arg0: i32) -> (i32, i32) {
    %c0_i32 = arith.constant 0 : i32
    %c0_i32_0 = arith.constant 0 : i32
    return %arg0, %c0_i32 : i32, i32
  }
}

module attributes {stable_mosaic.version = 11 : i64} {
  func.func @_conv_mm_kernel(%arg0: i32, %arg1: memref<16x128xbf16, #tpu.memory_space<vmem>>, %arg2: memref<128x256xbf16, #tpu.memory_space<vmem>>, %arg3: memref<1x256xf32, #tpu.memory_space<vmem>>, %arg4: memref<16x256xf32, #tpu.memory_space<vmem>>) attributes {dimension_semantics = [#tpu.dimension_semantics<parallel>], iteration_bounds = array<i64: 1>, scalar_prefetch = 0 : i64, scratch_operands = 0 : i64, tpu.core_type = #tpu.core_type<tc>, window_params = [{transform_indices = @transform_0, window_bounds = array<i64: 16, 128>}, {pipeline_mode = #tpu.pipeline_mode<synchronous>, transform_indices = @transform_1, window_bounds = array<i64: 128, 256>}, {pipeline_mode = #tpu.pipeline_mode<synchronous>, transform_indices = @transform_2, window_bounds = array<i64: 1, 256>}, {transform_indices = @transform_3, window_bounds = array<i64: 16, 256>}]} {
    %c0 = arith.constant 0 : index
    %c0_0 = arith.constant 0 : index
    %0 = vector.load %arg1[%c0, %c0_0] : memref<16x128xbf16, #tpu.memory_space<vmem>>, vector<16x128xbf16>
    %c0_1 = arith.constant 0 : index
    %c0_2 = arith.constant 0 : index
    %1 = vector.load %arg2[%c0_1, %c0_2] : memref<128x256xbf16, #tpu.memory_space<vmem>>, vector<128x256xbf16>
    %cst = arith.constant dense<0.000000e+00> : vector<16x256xf32>
    %2 = tpu.matmul %0, %1, %cst {dimension_numbers = #tpu.dot_dimension_numbers<[1], [0], [0], [1], [0, 0, 1, 1], [], []>} : vector<16x128xbf16>, vector<128x256xbf16>, vector<16x256xf32> -> vector<16x256xf32>
    %c0_3 = arith.constant 0 : index
    %c0_4 = arith.constant 0 : index
    %3 = vector.load %arg3[%c0_3, %c0_4] : memref<1x256xf32, #tpu.memory_space<vmem>>, vector<1x256xf32>
    %4 = vector.broadcast %3 : vector<1x256xf32> to vector<16x256xf32>
    %5 = arith.addf %2, %4 : vector<16x256xf32>
    %c0_5 = arith.constant 0 : index
    %c0_6 = arith.constant 0 : index
    %6 = vector.load %arg4[%c0_5, %c0_6] : memref<16x256xf32, #tpu.memory_space<vmem>>, vector<16x256xf32>
    tpu.vector_store %arg4[%c0_5, %c0_6], %5 {strides = array<i32>} : memref<16x256xf32, #tpu.memory_space<vmem>>, vector<16x256xf32>,
    return
  }
  func.func @transform_0(%arg0: i32) -> (i32, i32) {
    %c0_i32 = arith.constant 0 : i32
    %c0_i32_0 = arith.constant 0 : i32
    return %arg0, %c0_i32 : i32, i32
  }
  func.func @transform_1(%arg0: i32) -> (i32, i32) {
    %c0_i32 = arith.constant 0 : i32
    %c0_i32_0 = arith.constant 0 : i32
    %c0_i32_1 = arith.constant 0 : i32
    return %c0_i32, %c0_i32_0 : i32, i32
  }
  func.func @transform_2(%arg0: i32) -> (i32, i32) {
    %c0_i32 = arith.constant 0 : i32
    %c0_i32_0 = arith.constant 0 : i32
    %c0_i32_1 = arith.constant 0 : i32
    return %c0_i32, %c0_i32_0 : i32, i32
  }
  func.func @transform_3(%arg0: i32) -> (i32, i32) {
    %c0_i32 = arith.constant 0 : i32
    %c0_i32_0 = arith.constant 0 : i32
    return %arg0, %c0_i32 : i32, i32
  }
}

module attributes {stable_mosaic.version = 11 : i64} {
  func.func @_conv_mm_res_kernel(%arg0: i32, %arg1: memref<16x2304xbf16, #tpu.memory_space<vmem>>, %arg2: memref<2304x256xbf16, #tpu.memory_space<vmem>>, %arg3: memref<1x256xf32, #tpu.memory_space<vmem>>, %arg4: memref<16x256xf32, #tpu.memory_space<vmem>>, %arg5: memref<16x256xf32, #tpu.memory_space<vmem>>) attributes {dimension_semantics = [#tpu.dimension_semantics<parallel>], iteration_bounds = array<i64: 1>, scalar_prefetch = 0 : i64, scratch_operands = 0 : i64, tpu.core_type = #tpu.core_type<tc>, window_params = [{transform_indices = @transform_0, window_bounds = array<i64: 16, 2304>}, {pipeline_mode = #tpu.pipeline_mode<synchronous>, transform_indices = @transform_1, window_bounds = array<i64: 2304, 256>}, {pipeline_mode = #tpu.pipeline_mode<synchronous>, transform_indices = @transform_2, window_bounds = array<i64: 1, 256>}, {transform_indices = @transform_3, window_bounds = array<i64: 16, 256>}, {transform_indices = @transform_4, window_bounds = array<i64: 16, 256>}]} {
    %c0 = arith.constant 0 : index
    %c0_0 = arith.constant 0 : index
    %0 = vector.load %arg1[%c0, %c0_0] : memref<16x2304xbf16, #tpu.memory_space<vmem>>, vector<16x2304xbf16>
    %c0_1 = arith.constant 0 : index
    %c0_2 = arith.constant 0 : index
    %1 = vector.load %arg2[%c0_1, %c0_2] : memref<2304x256xbf16, #tpu.memory_space<vmem>>, vector<2304x256xbf16>
    %cst = arith.constant dense<0.000000e+00> : vector<16x256xf32>
    %2 = tpu.matmul %0, %1, %cst {dimension_numbers = #tpu.dot_dimension_numbers<[1], [0], [0], [1], [0, 0, 1, 1], [], []>} : vector<16x2304xbf16>, vector<2304x256xbf16>, vector<16x256xf32> -> vector<16x256xf32>
    %c0_3 = arith.constant 0 : index
    %c0_4 = arith.constant 0 : index
    %3 = vector.load %arg3[%c0_3, %c0_4] : memref<1x256xf32, #tpu.memory_space<vmem>>, vector<1x256xf32>
    %4 = vector.broadcast %3 : vector<1x256xf32> to vector<16x256xf32>
    %5 = arith.addf %2, %4 : vector<16x256xf32>
    %c0_5 = arith.constant 0 : index
    %c0_6 = arith.constant 0 : index
    %6 = vector.load %arg4[%c0_5, %c0_6] : memref<16x256xf32, #tpu.memory_space<vmem>>, vector<16x256xf32>
    %7 = arith.addf %5, %6 : vector<16x256xf32>
    %cst_7 = arith.constant 0.000000e+00 : f32
    %8 = vector.broadcast %cst_7 : f32 to vector<16x256xf32>
    %9 = arith.maximumf %7, %8 : vector<16x256xf32>
    %c0_8 = arith.constant 0 : index
    %c0_9 = arith.constant 0 : index
    %10 = vector.load %arg5[%c0_8, %c0_9] : memref<16x256xf32, #tpu.memory_space<vmem>>, vector<16x256xf32>
    tpu.vector_store %arg5[%c0_8, %c0_9], %9 {strides = array<i32>} : memref<16x256xf32, #tpu.memory_space<vmem>>, vector<16x256xf32>,
    return
  }
  func.func @transform_0(%arg0: i32) -> (i32, i32) {
    %c0_i32 = arith.constant 0 : i32
    %c0_i32_0 = arith.constant 0 : i32
    return %arg0, %c0_i32 : i32, i32
  }
  func.func @transform_1(%arg0: i32) -> (i32, i32) {
    %c0_i32 = arith.constant 0 : i32
    %c0_i32_0 = arith.constant 0 : i32
    %c0_i32_1 = arith.constant 0 : i32
    return %c0_i32, %c0_i32_0 : i32, i32
  }
  func.func @transform_2(%arg0: i32) -> (i32, i32) {
    %c0_i32 = arith.constant 0 : i32
    %c0_i32_0 = arith.constant 0 : i32
    %c0_i32_1 = arith.constant 0 : i32
    return %c0_i32, %c0_i32_0 : i32, i32
  }
  func.func @transform_3(%arg0: i32) -> (i32, i32) {
    %c0_i32 = arith.constant 0 : i32
    %c0_i32_0 = arith.constant 0 : i32
    return %arg0, %c0_i32 : i32, i32
  }
  func.func @transform_4(%arg0: i32) -> (i32, i32) {
    %c0_i32 = arith.constant 0 : i32
    %c0_i32_0 = arith.constant 0 : i32
    return %arg0, %c0_i32 : i32, i32
  }
}

module attributes {stable_mosaic.version = 11 : i64} {
  func.func @_conv_mm_kernel(%arg0: i32, %arg1: memref<16x256xbf16, #tpu.memory_space<vmem>>, %arg2: memref<256x16xbf16, #tpu.memory_space<vmem>>, %arg3: memref<1x16xf32, #tpu.memory_space<vmem>>, %arg4: memref<16x16xf32, #tpu.memory_space<vmem>>) attributes {dimension_semantics = [#tpu.dimension_semantics<parallel>], iteration_bounds = array<i64: 1>, scalar_prefetch = 0 : i64, scratch_operands = 0 : i64, tpu.core_type = #tpu.core_type<tc>, window_params = [{transform_indices = @transform_0, window_bounds = array<i64: 16, 256>}, {pipeline_mode = #tpu.pipeline_mode<synchronous>, transform_indices = @transform_1, window_bounds = array<i64: 256, 16>}, {pipeline_mode = #tpu.pipeline_mode<synchronous>, transform_indices = @transform_2, window_bounds = array<i64: 1, 16>}, {transform_indices = @transform_3, window_bounds = array<i64: 16, 16>}]} {
    %c0 = arith.constant 0 : index
    %c0_0 = arith.constant 0 : index
    %0 = vector.load %arg1[%c0, %c0_0] : memref<16x256xbf16, #tpu.memory_space<vmem>>, vector<16x256xbf16>
    %c0_1 = arith.constant 0 : index
    %c0_2 = arith.constant 0 : index
    %1 = vector.load %arg2[%c0_1, %c0_2] : memref<256x16xbf16, #tpu.memory_space<vmem>>, vector<256x16xbf16>
    %cst = arith.constant dense<0.000000e+00> : vector<16x16xf32>
    %2 = tpu.matmul %0, %1, %cst {dimension_numbers = #tpu.dot_dimension_numbers<[1], [0], [0], [1], [0, 0, 1, 1], [], []>} : vector<16x256xbf16>, vector<256x16xbf16>, vector<16x16xf32> -> vector<16x16xf32>
    %c0_3 = arith.constant 0 : index
    %c0_4 = arith.constant 0 : index
    %3 = vector.load %arg3[%c0_3, %c0_4] : memref<1x16xf32, #tpu.memory_space<vmem>>, vector<1x16xf32>
    %4 = vector.broadcast %3 : vector<1x16xf32> to vector<16x16xf32>
    %5 = arith.addf %2, %4 : vector<16x16xf32>
    %c0_5 = arith.constant 0 : index
    %c0_6 = arith.constant 0 : index
    %6 = vector.load %arg4[%c0_5, %c0_6] : memref<16x16xf32, #tpu.memory_space<vmem>>, vector<16x16xf32>
    tpu.vector_store %arg4[%c0_5, %c0_6], %5 {strides = array<i32>} : memref<16x16xf32, #tpu.memory_space<vmem>>, vector<16x16xf32>,
    return
  }
  func.func @transform_0(%arg0: i32) -> (i32, i32) {
    %c0_i32 = arith.constant 0 : i32
    %c0_i32_0 = arith.constant 0 : i32
    return %arg0, %c0_i32 : i32, i32
  }
  func.func @transform_1(%arg0: i32) -> (i32, i32) {
    %c0_i32 = arith.constant 0 : i32
    %c0_i32_0 = arith.constant 0 : i32
    %c0_i32_1 = arith.constant 0 : i32
    return %c0_i32, %c0_i32_0 : i32, i32
  }
  func.func @transform_2(%arg0: i32) -> (i32, i32) {
    %c0_i32 = arith.constant 0 : i32
    %c0_i32_0 = arith.constant 0 : i32
    %c0_i32_1 = arith.constant 0 : i32
    return %c0_i32, %c0_i32_0 : i32, i32
  }
  func.func @transform_3(%arg0: i32) -> (i32, i32) {
    %c0_i32 = arith.constant 0 : i32
    %c0_i32_0 = arith.constant 0 : i32
    return %arg0, %c0_i32 : i32, i32
  }
}

</mosaic_0001>

<llo_original>
// kernel: resnet_forward.12
$region0: #{resnet_forward.12}
  #allocation0 [shape = 'u32[]', space=smem, size = 0x4, offset = 0x4, fixed_abs, tag = 'smem constant byte address 0x4 - core index']
  #allocation1 [shape = 'u32[72,128]{1,0:T(1,128)}', space=vmem, size = 0x9000, scoped, tag = 'internal scratch']
  %s0 = inlined_call_operand.vmem [shape: bf16[512,160], index: 0, kind: input, shape index: {}]
  %s1 = inlined_call_operand.vmem [shape: bf16[160,64], index: 1, kind: input, shape index: {}]
  %s2 = inlined_call_operand.vmem [shape: f32[1,64], index: 2, kind: input, shape index: {}]
  %s3 = inlined_call_operand.vmem [shape: f32[512,64], index: 3, kind: output, shape index: {}]
  %s4 = sld [smem:[#allocation0]]
  $region45: #{resnet_forward.12} parent=0
    _
  %s6 = ssub.s32 1, %s4
  %s7 = scalar_select 0, %s6, %s4
  loop: start=0, step=1, limit=4
  $region2: #{resnet_forward.12} parent=0 // loop_pre_header
    _
  $region3: #{resnet_forward.12} parent=0 // loop_header
    %s9 = sphi 0, %s13
    %p10 = scmp.ge.s32.totalorder %s9, 4
    %s19 = sphi 0, %s21
    %s22 = sphi 0, %s19
    %s23 = sphi 0, %s22
    %s39 = sphi 0, %s23
    %s43 = sphi 0, %s43
    %s45 = sphi 0, %s43
    %s46 = sphi 0, %s45
    %s60 = sphi 0, %s46
    %s64 = sphi 0, %s64
    %s66 = sphi 0, %s64
    %s67 = sphi 0, %s66
    %s81 = sphi 0, %s67
    %s87 = sphi 0, %s89
    %s90 = sphi 0, %s87
    %s91 = sphi 0, %s90
    %s107 = sphi 0, %s91
  $region4: #{resnet_forward.12} parent=0 // loop_header_branch
    %12 = sbr.rel (%p10) target = $region8
  $region5: #{resnet_forward.12} parent=0 // loop_body
    %s14 = ssub.s32 %s9, 1
    %s15 = ssub.s32 %s9, 2
    %s16 = sadd.s32 %s9, 1
    %s17 = ssub.s32 %s9, %s16
    %p18 = scmp.eq.s32.totalorder %s17, 0
    %s20 = sadd.s32 %s19, 1
    %s21 = scalar_select %p18, %s19, %s20
    %p24 = pneg %p18
    %p25 = scmp.eq.s32.totalorder %s9, 1
    %p26 = por %p24, %p25
    %p27 = scmp.ne.s32.totalorder %s19, %s22
    %p28 = scmp.eq.s32.totalorder %s9, 0
    %p29 = por %p27, %p28
    %p30 = scmp.ne.s32.totalorder %s19, %s22
    %p31 = scmp.eq.s32.totalorder %s14, 1
    %p32 = por %p30, %p31
    %p33 = scmp.ne.s32.totalorder %s22, %s23
    %p34 = scmp.eq.s32.totalorder %s14, 0
    %p35 = por %p33, %p34
    %p36 = scmp.ne.s32.totalorder %s22, %s23
    %p37 = scmp.eq.s32.totalorder %s15, 1
    %p38 = por %p36, %p37
    %p40 = scmp.ne.s32.totalorder %s23, %s39
    %p41 = scmp.eq.s32.totalorder %s15, 0
    %p42 = por %p40, %p41
    %s44 = sadd.s32 %s43, 1
    %p47 = scmp.eq.s32.totalorder %s9, 1
    %p48 = scmp.ne.s32.totalorder %s43, %s45
    %p49 = scmp.eq.s32.totalorder %s9, 0
    %p50 = por %p48, %p49
    %p51 = scmp.ne.s32.totalorder %s43, %s45
    %p52 = scmp.eq.s32.totalorder %s14, 1
    %p53 = por %p51, %p52
    %p54 = scmp.ne.s32.totalorder %s45, %s46
    %p55 = scmp.eq.s32.totalorder %s14, 0
    %p56 = por %p54, %p55
    %p57 = scmp.ne.s32.totalorder %s45, %s46
    %p58 = scmp.eq.s32.totalorder %s15, 1
    %p59 = por %p57, %p58
    %p61 = scmp.ne.s32.totalorder %s46, %s60
    %p62 = scmp.eq.s32.totalorder %s15, 0
    %p63 = por %p61, %p62
    %s65 = sadd.s32 %s64, 1
    %p68 = scmp.eq.s32.totalorder %s9, 1
    %p69 = scmp.ne.s32.totalorder %s64, %s66
    %p70 = scmp.eq.s32.totalorder %s9, 0
    %p71 = por %p69, %p70
    %p72 = scmp.ne.s32.totalorder %s64, %s66
    %p73 = scmp.eq.s32.totalorder %s14, 1
    %p74 = por %p72, %p73
    %p75 = scmp.ne.s32.totalorder %s66, %s67
    %p76 = scmp.eq.s32.totalorder %s14, 0
    %p77 = por %p75, %p76
    %p78 = scmp.ne.s32.totalorder %s66, %s67
    %p79 = scmp.eq.s32.totalorder %s15, 1
    %p80 = por %p78, %p79
    %p82 = scmp.ne.s32.totalorder %s67, %s81
    %p83 = scmp.eq.s32.totalorder %s15, 0
    %p84 = por %p82, %p83
    %s85 = ssub.s32 %s9, %s16
    %p86 = scmp.eq.s32.totalorder %s85, 0
    %s88 = sadd.s32 %s87, 1
    %s89 = scalar_select %p86, %s87, %s88
    %p92 = pneg %p86
    %p93 = scmp.eq.s32.totalorder %s9, 1
    %p94 = por %p92, %p93
    %p95 = scmp.ne.s32.totalorder %s87, %s90
    %p96 = scmp.eq.s32.totalorder %s9, 0
    %p97 = por %p95, %p96
    %p98 = scmp.ne.s32.totalorder %s87, %s90
    %p99 = scmp.eq.s32.totalorder %s14, 1
    %p100 = por %p98, %p99
    %p101 = scmp.ne.s32.totalorder %s90, %s91
    %p102 = scmp.eq.s32.totalorder %s14, 0
    %p103 = por %p101, %p102
    %p104 = scmp.ne.s32.totalorder %s90, %s91
    %p105 = scmp.eq.s32.totalorder %s15, 1
    %p106 = por %p104, %p105
    %p108 = scmp.ne.s32.totalorder %s91, %s107
    %p109 = scmp.eq.s32.totalorder %s15, 0
    %p110 = por %p108, %p109
    %p111 = scmp.le.s32.totalorder 1, %s9
    %p112 = scmp.lt.s32.totalorder %s9, 3
    %p113 = pnand %p111, %p112
    %p114 = pneg %p113
    // Predicated region
    $region9: #{resnet_forward.12} parent=5 // pred_check
      _
    $region10: #{resnet_forward.12} parent=5 // pred_check_branch
      %116 = sbr.rel (%p113) target = $region12
    $region11: #{resnet_forward.12} parent=5 // pred_region
      %s117 = ssub.s32 %s9, 1
      // Predicated region
      $region13: #{resnet_forward.12} parent=11 // pred_check
        %p118 = pneg %p56
      $region14: #{resnet_forward.12} parent=11 // pred_check_branch
        %120 = sbr.rel (%p118) target = $region16
      $region15: #{resnet_forward.12} parent=11 // pred_region
        _
      $region16: #{resnet_forward.12} parent=11 // pred_fallthru
        _
      // Predicated region
      $region17: #{resnet_forward.12} parent=11 // pred_check
        %p121 = pneg %p77
      $region18: #{resnet_forward.12} parent=11 // pred_check_branch
        %123 = sbr.rel (%p121) target = $region20
      $region19: #{resnet_forward.12} parent=11 // pred_region
        _
      $region20: #{resnet_forward.12} parent=11 // pred_fallthru
        _
    $region12: #{resnet_forward.12} parent=5 // pred_fallthru
      _
    %p124 = scmp.lt.s32.totalorder %s9, 2
    // Predicated region
    $region21: #{resnet_forward.12} parent=5 // pred_check
      %p125 = pneg %p124
    $region22: #{resnet_forward.12} parent=5 // pred_check_branch
      %127 = sbr.rel (%p125) target = $region24
    $region23: #{resnet_forward.12} parent=5 // pred_region
      // Predicated region
      $region25: #{resnet_forward.12} parent=23 // pred_check
        %p128 = pneg %p29
      $region26: #{resnet_forward.12} parent=23 // pred_check_branch
        %130 = sbr.rel (%p128) target = $region28
      $region27: #{resnet_forward.12} parent=23 // pred_region
        %s131 = smul.u32 32, %s9
        %p132 = scmp.lt.s32.totalorder %s131, 63
        %s133 = scalar_select %p132, %s131, 63
        %s134 = smul.addr %s133, 2
        %s135 = smul.addr %s134, 4
        %s136 = scalar_lea.vmem %s0, %s135
        %s137 = smul.u32 32, %s9
      $region28: #{resnet_forward.12} parent=23 // pred_fallthru
        _
    $region24: #{resnet_forward.12} parent=5 // pred_fallthru
      _
    %p138 = scmp.le.s32.totalorder 1, %s9
    %p139 = scmp.lt.s32.totalorder %s9, 3
    %p140 = pnand %p138, %p139
    %p141 = pneg %p140
    // Predicated region
    $region29: #{resnet_forward.12} parent=5 // pred_check
      _
    $region30: #{resnet_forward.12} parent=5 // pred_check_branch
      %143 = sbr.rel (%p140) target = $region32
    $region31: #{resnet_forward.12} parent=5 // pred_region
      %s144 = ssub.s32 %s9, 1
      %s145 = smul.u32 32, %s14
      %p146 = scmp.lt.s32.totalorder %s145, 63
      %s147 = scalar_select %p146, %s145, 63
      %s148 = smul.addr %s147, 2
      %s149 = smul.addr %s148, 4
      %s150 = scalar_lea.vmem %s0, %s149
      %p151 = pneg %p35
      %p152 = pneg %p32
      %p153 = pneg %p56
      %p154 = pneg %p53
      %p155 = pneg %p77
      %p156 = pneg %p74
      %p157 = pneg %p103
      %p158 = pneg %p100
      %s159 = smul.u32 32, %s14
      %p160 = scmp.lt.s32.totalorder %s159, 63
      %s161 = scalar_select %p160, %s159, 63
      %s162 = smul.addr %s161, 8
      %s163 = scalar_lea.vmem %s3, %s162
      %s164 = smul.u32 32, %s14
      %p165 = scmp.lt.s32.totalorder %s164, 63
      %s166 = scalar_select %p165, %s164, 63
      %s167 = smul.addr %s166, 2
      %s168 = smul.addr %s167, 4
      %s169 = scalar_lea.vmem %s0, %s168
      %s170 = smul.u32 32, %s14
      %s171 = smul.u32 32, %s14
      %p172 = scmp.lt.s32.totalorder %s171, 63
      %s173 = scalar_select %p172, %s171, 63
      %s174 = smul.addr %s173, 8
      %s175 = scalar_lea.vmem %s3, %s174
      %s176 = smul.u32 32, %s14
      %v178 = vld [vmem:[%s169] sm:$0xff]
      %v179 = vld [vmem:[%s169 + $0x8] sm:$0xff]
      %v180 = vld [vmem:[%s169 + $0x10] sm:$0xff]
      %v181 = vld [vmem:[%s169 + $0x18] sm:$0xff]
      %v182 = vld [vmem:[%s169 + $0x20] sm:$0xff]
      %v183 = vld [vmem:[%s169 + $0x28] sm:$0xff]
      %v184 = vld [vmem:[%s169 + $0x30] sm:$0xff]
      %v185 = vld [vmem:[%s169 + $0x38] sm:$0xff]
      %v186 = vld [vmem:[%s169 + $0x40] sm:$0xff]
      %v187 = vld [vmem:[%s169 + $0x48] sm:$0xff]
      %v188 = vld [vmem:[%s169 + $0x50] sm:$0xff]
      %v189 = vld [vmem:[%s169 + $0x58] sm:$0xff]
      %v190 = vld [vmem:[%s169 + $0x60] sm:$0xff]
      %v191 = vld [vmem:[%s169 + $0x68] sm:$0xff]
      %v192 = vld [vmem:[%s169 + $0x70] sm:$0xff]
      %v193 = vld [vmem:[%s169 + $0x78] sm:$0xff]
      %v194 = vld [vmem:[%s169 + $0x80] sm:$0xff]
      %v195 = vld [vmem:[%s169 + $0x88] sm:$0xff]
      %v196 = vld [vmem:[%s169 + $0x90] sm:$0xff]
      %v197 = vld [vmem:[%s169 + $0x98] sm:$0xff]
      %v198 = vld [vmem:[%s169 + $0xa0] sm:$0xff]
      %v199 = vld [vmem:[%s169 + $0xa8] sm:$0xff]
      %v200 = vld [vmem:[%s169 + $0xb0] sm:$0xff]
      %v201 = vld [vmem:[%s169 + $0xb8] sm:$0xff]
      %v202 = vld [vmem:[%s169 + $0xc0] sm:$0xff]
      %v203 = vld [vmem:[%s169 + $0xc8] sm:$0xff]
      %v204 = vld [vmem:[%s169 + $0xd0] sm:$0xff]
      %v205 = vld [vmem:[%s169 + $0xd8] sm:$0xff]
      %v206 = vld [vmem:[%s169 + $0xe0] sm:$0xff]
      %v207 = vld [vmem:[%s169 + $0xe8] sm:$0xff]
      %v208 = vld [vmem:[%s169 + $0xf0] sm:$0xff]
      %v209 = vld [vmem:[%s169 + $0xf8] sm:$0xff]
      %v210 = vld [vmem:[%s1] sm:$0xf]
      %v211 = vld [vmem:[%s1 + $0x4] sm:$0xf]
      %v212 = vld [vmem:[%s1 + $0x8] sm:$0xf]
      %v213 = vld [vmem:[%s1 + $0xc] sm:$0xf]
      %v214 = vld [vmem:[%s1 + $0x10] sm:$0xf]
      %v215 = vld [vmem:[%s1 + $0x14] sm:$0xf]
      %v216 = vld [vmem:[%s1 + $0x18] sm:$0xf]
      %v217 = vld [vmem:[%s1 + $0x1c] sm:$0xf]
      %v218 = vld [vmem:[%s1 + $0x20] sm:$0xf]
      %v219 = vld [vmem:[%s1 + $0x24] sm:$0xf]
      %v220 = vld [vmem:[%s1 + $0x28] sm:$0xf]
      %v221 = vld [vmem:[%s1 + $0x2c] sm:$0xf]
      %v222 = vld [vmem:[%s1 + $0x30] sm:$0xf]
      %v223 = vld [vmem:[%s1 + $0x34] sm:$0xf]
      %v224 = vld [vmem:[%s1 + $0x38] sm:$0xf]
      %v225 = vld [vmem:[%s1 + $0x3c] sm:$0xf]
      %v226 = vld [vmem:[%s1 + $0x40] sm:$0xf]
      %v227 = vld [vmem:[%s1 + $0x44] sm:$0xf]
      %v228 = vld [vmem:[%s1 + $0x48] sm:$0xf]
      %v229 = vld [vmem:[%s1 + $0x4c] sm:$0xf]
      %v230 = vld [vmem:[%s2] sm:$0x1]
      %v232 = vperm.slane %v230, 0
      %v266 = vunpack.c.l.b16 %v178
      %v267 = vunpack.c.h.b16 %v178
      %v268 = vunpack.c.l.b16 %v179
      %v269 = vunpack.c.h.b16 %v179
      %v270 = vunpack.c.l.b16 %v180
      %v271 = vunpack.c.h.b16 %v180
      %v272 = vunpack.c.l.b16 %v181
      %v273 = vunpack.c.h.b16 %v181
      %v274 = vunpack.c.l.b16 %v182
      %v275 = vunpack.c.h.b16 %v182
      %v276 = vunpack.c.l.b16 %v183
      %v277 = vunpack.c.h.b16 %v183
      %v278 = vunpack.c.l.b16 %v184
      %v279 = vunpack.c.h.b16 %v184
      %v280 = vunpack.c.l.b16 %v185
      %v281 = vunpack.c.h.b16 %v185
      %v282 = vunpack.c.l.b16 %v186
      %v283 = vunpack.c.h.b16 %v186
      %v284 = vunpack.c.l.b16 %v187
      %v285 = vunpack.c.h.b16 %v187
      %v286 = vunpack.c.l.b16 %v188
      %v287 = vunpack.c.h.b16 %v188
      %v288 = vunpack.c.l.b16 %v189
      %v289 = vunpack.c.h.b16 %v189
      %v290 = vunpack.c.l.b16 %v190
      %v291 = vunpack.c.h.b16 %v190
      %v292 = vunpack.c.l.b16 %v191
      %v293 = vunpack.c.h.b16 %v191
      %v294 = vunpack.c.l.b16 %v192
      %v295 = vunpack.c.h.b16 %v192
      %v296 = vunpack.c.l.b16 %v193
      %v297 = vunpack.c.h.b16 %v193
      %v298 = vunpack.c.l.b16 %v194
      %v299 = vunpack.c.h.b16 %v194
      %v300 = vunpack.c.l.b16 %v195
      %v301 = vunpack.c.h.b16 %v195
      %v302 = vunpack.c.l.b16 %v196
      %v303 = vunpack.c.h.b16 %v196
      %v304 = vunpack.c.l.b16 %v197
      %v305 = vunpack.c.h.b16 %v197
      %v306 = vunpack.c.l.b16 %v198
      %v307 = vunpack.c.h.b16 %v198
      %v308 = vunpack.c.l.b16 %v199
      %v309 = vunpack.c.h.b16 %v199
      %v310 = vunpack.c.l.b16 %v200
      %v311 = vunpack.c.h.b16 %v200
      %v312 = vunpack.c.l.b16 %v201
      %v313 = vunpack.c.h.b16 %v201
      %v314 = vunpack.c.l.b16 %v202
      %v315 = vunpack.c.h.b16 %v202
      %v316 = vunpack.c.l.b16 %v203
      %v317 = vunpack.c.h.b16 %v203
      %v318 = vunpack.c.l.b16 %v204
      %v319 = vunpack.c.h.b16 %v204
      %v320 = vunpack.c.l.b16 %v205
      %v321 = vunpack.c.h.b16 %v205
      %v322 = vunpack.c.l.b16 %v206
      %v323 = vunpack.c.h.b16 %v206
      %v324 = vunpack.c.l.b16 %v207
      %v325 = vunpack.c.h.b16 %v207
      %v326 = vunpack.c.l.b16 %v208
      %v327 = vunpack.c.h.b16 %v208
      %v328 = vunpack.c.l.b16 %v209
      %v329 = vunpack.c.h.b16 %v209
      %v330 = vpack.c.b16 %v268, %v266
      %v331 = vpack.c.b16 %v269, %v267
      %v332 = vpack.c.b16 %v272, %v270
      %v333 = vpack.c.b16 %v273, %v271
      %v334 = vpack.c.b16 %v276, %v274
      %v335 = vpack.c.b16 %v277, %v275
      %v336 = vpack.c.b16 %v280, %v278
      %v337 = vpack.c.b16 %v281, %v279
      %v338 = vpack.c.b16 %v284, %v282
      %v339 = vpack.c.b16 %v285, %v283
      %v340 = vpack.c.b16 %v288, %v286
      %v341 = vpack.c.b16 %v289, %v287
      %v342 = vpack.c.b16 %v292, %v290
      %v343 = vpack.c.b16 %v293, %v291
      %v344 = vpack.c.b16 %v296, %v294
      %v345 = vpack.c.b16 %v297, %v295
      %v346 = vpack.c.b16 %v300, %v298
      %v347 = vpack.c.b16 %v301, %v299
      %v348 = vpack.c.b16 %v304, %v302
      %v349 = vpack.c.b16 %v305, %v303
      %v350 = vpack.c.b16 %v308, %v306
      %v351 = vpack.c.b16 %v309, %v307
      %v352 = vpack.c.b16 %v312, %v310
      %v353 = vpack.c.b16 %v313, %v311
      %v354 = vpack.c.b16 %v316, %v314
      %v355 = vpack.c.b16 %v317, %v315
      %v356 = vpack.c.b16 %v320, %v318
      %v357 = vpack.c.b16 %v321, %v319
      %v358 = vpack.c.b16 %v324, %v322
      %v359 = vpack.c.b16 %v325, %v323
      %v360 = vpack.c.b16 %v328, %v326
      %v361 = vpack.c.b16 %v329, %v327
      %v398 = vunpack.c.l.b16 %v210
      %v399 = vunpack.c.l.b16 %v211
      %v400 = vunpack.c.l.b16 %v212
      %v401 = vunpack.c.l.b16 %v213
      %v402 = vunpack.c.l.b16 %v214
      %v403 = vunpack.c.l.b16 %v215
      %v404 = vunpack.c.l.b16 %v216
      %v405 = vunpack.c.l.b16 %v217
      %v406 = vunpack.c.l.b16 %v218
      %v407 = vunpack.c.l.b16 %v219
      %v408 = vunpack.c.l.b16 %v220
      %v409 = vunpack.c.l.b16 %v221
      %v410 = vunpack.c.l.b16 %v222
      %v411 = vunpack.c.l.b16 %v223
      %v412 = vunpack.c.l.b16 %v224
      %v413 = vunpack.c.l.b16 %v225
      %v414 = vunpack.c.l.b16 %v226
      %v415 = vunpack.c.l.b16 %v227
      %v416 = vunpack.c.l.b16 %v228
      %v417 = vunpack.c.l.b16 %v229
      %v418 = vpack.c.b16 %v399, %v398
      %v419 = vpack.c.b16 %v401, %v400
      %v420 = vpack.c.b16 %v403, %v402
      %v421 = vpack.c.b16 %v405, %v404
      %v422 = vpack.c.b16 %v407, %v406
      %v423 = vpack.c.b16 %v409, %v408
      %v424 = vpack.c.b16 %v411, %v410
      %v425 = vpack.c.b16 %v413, %v412
      %v426 = vpack.c.b16 %v415, %v414
      %v427 = vpack.c.b16 %v417, %v416
      %vm438 = vcmask 261120
      %v440 = vsel %vm438, %v331, 0
      %v443 = vsel %vm438, %v333, 0
      %v446 = vsel %vm438, %v335, 0
      %v449 = vsel %vm438, %v337, 0
      %v452 = vsel %vm438, %v339, 0
      %v455 = vsel %vm438, %v341, 0
      %v458 = vsel %vm438, %v343, 0
      %v461 = vsel %vm438, %v345, 0
      %v464 = vsel %vm438, %v347, 0
      %v467 = vsel %vm438, %v349, 0
      %v470 = vsel %vm438, %v351, 0
      %v473 = vsel %vm438, %v353, 0
      %v476 = vsel %vm438, %v355, 0
      %v479 = vsel %vm438, %v357, 0
      %v482 = vsel %vm438, %v359, 0
      %v485 = vsel %vm438, %v361, 0
      %487 = vmatpush.bf16.msra.mxu0 %v425
      %488 = vmatpush.bf16.msra.mxu0 %v424
      %489 = vmatpush.bf16.msra.mxu0 %v423
      %490 = vmatpush.bf16.msra.mxu0 %v422
      %491 = vmatpush.bf16.msra.mxu0 %v421
      %492 = vmatpush.bf16.msra.mxu0 %v420
      %493 = vmatpush.bf16.msra.mxu0 %v419
      %494 = vmatpush.bf16.msra.mxu0 %v418
      %495 = vmatmul.bf16.gmra.mxu0 %v330
      %v496 = vpop.f32.mrf.mxu0
      %v497 = vadd.f32 %v232, %v496
      %v498 = vpop.f32.mrf.mxu0
      %v499 = vadd.f32 %v232, %v498
      %500 = vmatmul.bf16.gmra.mxu0 %v332
      %v501 = vpop.f32.mrf.mxu0
      %v502 = vadd.f32 %v232, %v501
      %v503 = vpop.f32.mrf.mxu0
      %v504 = vadd.f32 %v232, %v503
      %505 = vmatmul.bf16.gmra.mxu0 %v334
      %v506 = vpop.f32.mrf.mxu0
      %v507 = vadd.f32 %v232, %v506
      %v508 = vpop.f32.mrf.mxu0
      %v509 = vadd.f32 %v232, %v508
      %510 = vmatmul.bf16.gmra.mxu0 %v336
      %v511 = vpop.f32.mrf.mxu0
      %v512 = vadd.f32 %v232, %v511
      %v513 = vpop.f32.mrf.mxu0
      %v514 = vadd.f32 %v232, %v513
      %515 = vmatmul.bf16.gmra.mxu0 %v338
      %v516 = vpop.f32.mrf.mxu0
      %v517 = vadd.f32 %v232, %v516
      %v518 = vpop.f32.mrf.mxu0
      %v519 = vadd.f32 %v232, %v518
      %520 = vmatmul.bf16.gmra.mxu0 %v340
      %v521 = vpop.f32.mrf.mxu0
      %v522 = vadd.f32 %v232, %v521
      %v523 = vpop.f32.mrf.mxu0
      %v524 = vadd.f32 %v232, %v523
      %525 = vmatmul.bf16.gmra.mxu0 %v342
      %v526 = vpop.f32.mrf.mxu0
      %v527 = vadd.f32 %v232, %v526
      %v528 = vpop.f32.mrf.mxu0
      %v529 = vadd.f32 %v232, %v528
      %530 = vmatmul.bf16.gmra.mxu0 %v344
      %v531 = vpop.f32.mrf.mxu0
      %v532 = vadd.f32 %v232, %v531
      %v533 = vpop.f32.mrf.mxu0
      %v534 = vadd.f32 %v232, %v533
      %535 = vmatmul.bf16.gmra.mxu0 %v346
      %v536 = vpop.f32.mrf.mxu0
      %v537 = vadd.f32 %v232, %v536
      %v538 = vpop.f32.mrf.mxu0
      %v539 = vadd.f32 %v232, %v538
      %540 = vmatmul.bf16.gmra.mxu0 %v348
      %v541 = vpop.f32.mrf.mxu0
      %v542 = vadd.f32 %v232, %v541
      %v543 = vpop.f32.mrf.mxu0
      %v544 = vadd.f32 %v232, %v543
      %545 = vmatmul.bf16.gmra.mxu0 %v350
      %v546 = vpop.f32.mrf.mxu0
      %v547 = vadd.f32 %v232, %v546
      %v548 = vpop.f32.mrf.mxu0
      %v549 = vadd.f32 %v232, %v548
      %550 = vmatmul.bf16.gmra.mxu0 %v352
      %v551 = vpop.f32.mrf.mxu0
      %v552 = vadd.f32 %v232, %v551
      %v553 = vpop.f32.mrf.mxu0
      %v554 = vadd.f32 %v232, %v553
      %555 = vmatmul.bf16.gmra.mxu0 %v354
      %v556 = vpop.f32.mrf.mxu0
      %v557 = vadd.f32 %v232, %v556
      %v558 = vpop.f32.mrf.mxu0
      %v559 = vadd.f32 %v232, %v558
      %560 = vmatmul.bf16.gmra.mxu0 %v356
      %v561 = vpop.f32.mrf.mxu0
      %v562 = vadd.f32 %v232, %v561
      %v563 = vpop.f32.mrf.mxu0
      %v564 = vadd.f32 %v232, %v563
      %565 = vmatmul.bf16.gmra.mxu0 %v358
      %v566 = vpop.f32.mrf.mxu0
      %v567 = vadd.f32 %v232, %v566
      %v568 = vpop.f32.mrf.mxu0
      %v569 = vadd.f32 %v232, %v568
      %570 = vmatmul.bf16.gmra.mxu0 %v360
      %v571 = vpop.f32.mrf.mxu0
      %v572 = vadd.f32 %v232, %v571
      %v573 = vpop.f32.mrf.mxu0
      %v574 = vadd.f32 %v232, %v573
      %575 = vdwg.mxu0
      %576 = vmatpush.bf16.msra.mxu0 0
      %577 = vmatpush.bf16.msra.mxu0 0
      %578 = vmatpush.bf16.msra.mxu0 0
      %579 = vmatpush.bf16.msra.mxu0 0
      %580 = vmatpush.bf16.msra.mxu0 0
      %581 = vmatpush.bf16.msra.mxu0 0
      %582 = vmatpush.bf16.msra.mxu0 %v427
      %583 = vmatpush.bf16.msra.mxu0 %v426
      %584 = vmatmul.bf16.gmra.mxu0 %v440
      %v585 = vpop.f32.mrf.mxu0
      %v586 = vadd.f32 %v497, %v585
      %v587 = vpop.f32.mrf.mxu0
      %v588 = vadd.f32 %v499, %v587
      %589 = vmatmul.bf16.gmra.mxu0 %v443
      %v590 = vpop.f32.mrf.mxu0
      %v591 = vadd.f32 %v502, %v590
      %v592 = vpop.f32.mrf.mxu0
      %v593 = vadd.f32 %v504, %v592
      %594 = vmatmul.bf16.gmra.mxu0 %v446
      %v595 = vpop.f32.mrf.mxu0
      %v596 = vadd.f32 %v507, %v595
      %v597 = vpop.f32.mrf.mxu0
      %v598 = vadd.f32 %v509, %v597
      %599 = vmatmul.bf16.gmra.mxu0 %v449
      %v600 = vpop.f32.mrf.mxu0
      %v601 = vadd.f32 %v512, %v600
      %v602 = vpop.f32.mrf.mxu0
      %v603 = vadd.f32 %v514, %v602
      %604 = vmatmul.bf16.gmra.mxu0 %v452
      %v605 = vpop.f32.mrf.mxu0
      %v606 = vadd.f32 %v517, %v605
      %v607 = vpop.f32.mrf.mxu0
      %v608 = vadd.f32 %v519, %v607
      %609 = vmatmul.bf16.gmra.mxu0 %v455
      %v610 = vpop.f32.mrf.mxu0
      %v611 = vadd.f32 %v522, %v610
      %v612 = vpop.f32.mrf.mxu0
      %v613 = vadd.f32 %v524, %v612
      %614 = vmatmul.bf16.gmra.mxu0 %v458
      %v615 = vpop.f32.mrf.mxu0
      %v616 = vadd.f32 %v527, %v615
      %v617 = vpop.f32.mrf.mxu0
      %v618 = vadd.f32 %v529, %v617
      %619 = vmatmul.bf16.gmra.mxu0 %v461
      %v620 = vpop.f32.mrf.mxu0
      %v621 = vadd.f32 %v532, %v620
      %v622 = vpop.f32.mrf.mxu0
      %v623 = vadd.f32 %v534, %v622
      %624 = vmatmul.bf16.gmra.mxu0 %v464
      %v625 = vpop.f32.mrf.mxu0
      %v626 = vadd.f32 %v537, %v625
      %v627 = vpop.f32.mrf.mxu0
      %v628 = vadd.f32 %v539, %v627
      %629 = vmatmul.bf16.gmra.mxu0 %v467
      %v630 = vpop.f32.mrf.mxu0
      %v631 = vadd.f32 %v542, %v630
      %v632 = vpop.f32.mrf.mxu0
      %v633 = vadd.f32 %v544, %v632
      %634 = vmatmul.bf16.gmra.mxu0 %v470
      %v635 = vpop.f32.mrf.mxu0
      %v636 = vadd.f32 %v547, %v635
      %v637 = vpop.f32.mrf.mxu0
      %v638 = vadd.f32 %v549, %v637
      %639 = vmatmul.bf16.gmra.mxu0 %v473
      %v640 = vpop.f32.mrf.mxu0
      %v641 = vadd.f32 %v552, %v640
      %v642 = vpop.f32.mrf.mxu0
      %v643 = vadd.f32 %v554, %v642
      %644 = vmatmul.bf16.gmra.mxu0 %v476
      %v645 = vpop.f32.mrf.mxu0
      %v646 = vadd.f32 %v557, %v645
      %v647 = vpop.f32.mrf.mxu0
      %v648 = vadd.f32 %v559, %v647
      %649 = vmatmul.bf16.gmra.mxu0 %v479
      %v650 = vpop.f32.mrf.mxu0
      %v651 = vadd.f32 %v562, %v650
      %v652 = vpop.f32.mrf.mxu0
      %v653 = vadd.f32 %v564, %v652
      %654 = vmatmul.bf16.gmra.mxu0 %v482
      %v655 = vpop.f32.mrf.mxu0
      %v656 = vadd.f32 %v567, %v655
      %v657 = vpop.f32.mrf.mxu0
      %v658 = vadd.f32 %v569, %v657
      %659 = vmatmul.bf16.gmra.mxu0 %v485
      %v660 = vpop.f32.mrf.mxu0
      %v661 = vadd.f32 %v572, %v660
      %v662 = vpop.f32.mrf.mxu0
      %v663 = vadd.f32 %v574, %v662
      %664 = vdwg.mxu0
      %v665 = vmax.f32 %v586, 0.0
      %v666 = vmax.f32 %v588, 0.0
      %v667 = vmax.f32 %v591, 0.0
      %v668 = vmax.f32 %v593, 0.0
      %v669 = vmax.f32 %v596, 0.0
      %v670 = vmax.f32 %v598, 0.0
      %v671 = vmax.f32 %v601, 0.0
      %v672 = vmax.f32 %v603, 0.0
      %v673 = vmax.f32 %v606, 0.0
      %v674 = vmax.f32 %v608, 0.0
      %v675 = vmax.f32 %v611, 0.0
      %v676 = vmax.f32 %v613, 0.0
      %v677 = vmax.f32 %v616, 0.0
      %v678 = vmax.f32 %v618, 0.0
      %v679 = vmax.f32 %v621, 0.0
      %v680 = vmax.f32 %v623, 0.0
      %v681 = vmax.f32 %v626, 0.0
      %v682 = vmax.f32 %v628, 0.0
      %v683 = vmax.f32 %v631, 0.0
      %v684 = vmax.f32 %v633, 0.0
      %v685 = vmax.f32 %v636, 0.0
      %v686 = vmax.f32 %v638, 0.0
      %v687 = vmax.f32 %v641, 0.0
      %v688 = vmax.f32 %v643, 0.0
      %v689 = vmax.f32 %v646, 0.0
      %v690 = vmax.f32 %v648, 0.0
      %v691 = vmax.f32 %v651, 0.0
      %v692 = vmax.f32 %v653, 0.0
      %v693 = vmax.f32 %v656, 0.0
      %v694 = vmax.f32 %v658, 0.0
      %v695 = vmax.f32 %v661, 0.0
      %v696 = vmax.f32 %v663, 0.0
      %vm697 = vcmask 523264
      %698 = vst.msk [vmem:[%s175] sm:$0xff] %vm697, %v665
      %699 = vst.msk [vmem:[%s175 + $0x8] sm:$0xff] %vm697, %v666
      %700 = vst.msk [vmem:[%s175 + $0x10] sm:$0xff] %vm697, %v667
      %701 = vst.msk [vmem:[%s175 + $0x18] sm:$0xff] %vm697, %v668
      %702 = vst.msk [vmem:[%s175 + $0x20] sm:$0xff] %vm697, %v669
      %703 = vst.msk [vmem:[%s175 + $0x28] sm:$0xff] %vm697, %v670
      %704 = vst.msk [vmem:[%s175 + $0x30] sm:$0xff] %vm697, %v671
      %705 = vst.msk [vmem:[%s175 + $0x38] sm:$0xff] %vm697, %v672
      %706 = vst.msk [vmem:[%s175 + $0x40] sm:$0xff] %vm697, %v673
      %707 = vst.msk [vmem:[%s175 + $0x48] sm:$0xff] %vm697, %v674
      %708 = vst.msk [vmem:[%s175 + $0x50] sm:$0xff] %vm697, %v675
      %709 = vst.msk [vmem:[%s175 + $0x58] sm:$0xff] %vm697, %v676
      %710 = vst.msk [vmem:[%s175 + $0x60] sm:$0xff] %vm697, %v677
      %711 = vst.msk [vmem:[%s175 + $0x68] sm:$0xff] %vm697, %v678
      %712 = vst.msk [vmem:[%s175 + $0x70] sm:$0xff] %vm697, %v679
      %713 = vst.msk [vmem:[%s175 + $0x78] sm:$0xff] %vm697, %v680
      %714 = vst.msk [vmem:[%s175 + $0x80] sm:$0xff] %vm697, %v681
      %715 = vst.msk [vmem:[%s175 + $0x88] sm:$0xff] %vm697, %v682
      %716 = vst.msk [vmem:[%s175 + $0x90] sm:$0xff] %vm697, %v683
      %717 = vst.msk [vmem:[%s175 + $0x98] sm:$0xff] %vm697, %v684
      %718 = vst.msk [vmem:[%s175 + $0xa0] sm:$0xff] %vm697, %v685
      %719 = vst.msk [vmem:[%s175 + $0xa8] sm:$0xff] %vm697, %v686
      %720 = vst.msk [vmem:[%s175 + $0xb0] sm:$0xff] %vm697, %v687
      %721 = vst.msk [vmem:[%s175 + $0xb8] sm:$0xff] %vm697, %v688
      %722 = vst.msk [vmem:[%s175 + $0xc0] sm:$0xff] %vm697, %v689
      %723 = vst.msk [vmem:[%s175 + $0xc8] sm:$0xff] %vm697, %v690
      %724 = vst.msk [vmem:[%s175 + $0xd0] sm:$0xff] %vm697, %v691
      %725 = vst.msk [vmem:[%s175 + $0xd8] sm:$0xff] %vm697, %v692
      %726 = vst.msk [vmem:[%s175 + $0xe0] sm:$0xff] %vm697, %v693
      %727 = vst.msk [vmem:[%s175 + $0xe8] sm:$0xff] %vm697, %v694
      %728 = vst.msk [vmem:[%s175 + $0xf0] sm:$0xff] %vm697, %v695
      %729 = vst.msk [vmem:[%s175 + $0xf8] sm:$0xff] %vm697, %v696
      %s730 = smul.u32 32, %s14
      %p731 = scmp.lt.s32.totalorder %s730, 63
      %s732 = scalar_select %p731, %s730, 63
      %s733 = smul.addr %s732, 8
      %s734 = scalar_lea.vmem %s3, %s733
      // Predicated region
      $region33: #{resnet_forward.12} parent=31 // pred_check
        %p735 = pneg %p100
      $region34: #{resnet_forward.12} parent=31 // pred_check_branch
        %737 = sbr.rel (%p735) target = $region36
      $region35: #{resnet_forward.12} parent=31 // pred_region
        %s738 = smul.u32 32, %s14
      $region36: #{resnet_forward.12} parent=31 // pred_fallthru
        _
    $region32: #{resnet_forward.12} parent=5 // pred_fallthru
      _
    %p739 = scmp.le.s32.totalorder 2, %s9
    // Predicated region
    $region37: #{resnet_forward.12} parent=5 // pred_check
      %p740 = pneg %p739
    $region38: #{resnet_forward.12} parent=5 // pred_check_branch
      %742 = sbr.rel (%p740) target = $region40
    $region39: #{resnet_forward.12} parent=5 // pred_region
      %s743 = ssub.s32 %s9, 2
      // Predicated region
      $region41: #{resnet_forward.12} parent=39 // pred_check
        %p744 = pneg %p106
      $region42: #{resnet_forward.12} parent=39 // pred_check_branch
        %746 = sbr.rel (%p744) target = $region44
      $region43: #{resnet_forward.12} parent=39 // pred_region
        %s747 = smul.u32 32, %s15
        %p748 = scmp.lt.s32.totalorder %s747, 63
        %s749 = scalar_select %p748, %s747, 63
        %s750 = smul.addr %s749, 8
        %s751 = scalar_lea.vmem %s3, %s750
      $region44: #{resnet_forward.12} parent=39 // pred_fallthru
        _
    $region40: #{resnet_forward.12} parent=5 // pred_fallthru
      _
  $region6: #{resnet_forward.12} parent=0 // loop_footer
    %s13 = sadd.s32 1, %s9
  $region7: #{resnet_forward.12} parent=0 // loop_footer_branch
    %8 = sbr.rel target = $region3
  $region8: #{resnet_forward.12} parent=0 // loop_exit
    _

// kernel: resnet_forward.13
$region0: #{resnet_forward.13}
  #allocation0 [shape = 'u32[]', space=smem, size = 0x4, offset = 0x4, fixed_abs, tag = 'smem constant byte address 0x4 - core index']
  #allocation1 [shape = 'u32[72,128]{1,0:T(1,128)}', space=vmem, size = 0x9000, scoped, tag = 'internal scratch']
  %s0 = inlined_call_operand.vmem [shape: bf16[128,576], index: 0, kind: input, shape index: {}]
  %s1 = inlined_call_operand.vmem [shape: bf16[576,64], index: 1, kind: input, shape index: {}]
  %s2 = inlined_call_operand.vmem [shape: f32[1,64], index: 2, kind: input, shape index: {}]
  %s3 = inlined_call_operand.vmem [shape: f32[128,64], index: 3, kind: output, shape index: {}]
  %s4 = sld [smem:[#allocation0]]
  $region22: #{resnet_forward.13} parent=0
    _
  %s6 = ssub.s32 1, %s4
  %s7 = scalar_select 0, %s6, %s4
  // Predicated region
  $region2: #{resnet_forward.13} parent=0 // pred_check
    _
  $region3: #{resnet_forward.13} parent=0 // pred_check_branch
    %9 = sbr.rel (0) target = $region5
  $region4: #{resnet_forward.13} parent=0 // pred_region
    _
  $region5: #{resnet_forward.13} parent=0 // pred_fallthru
    _
  // Predicated region
  $region6: #{resnet_forward.13} parent=0 // pred_check
    _
  $region7: #{resnet_forward.13} parent=0 // pred_check_branch
    %11 = sbr.rel (0) target = $region9
  $region8: #{resnet_forward.13} parent=0 // pred_region
    _
  $region9: #{resnet_forward.13} parent=0 // pred_fallthru
    _
  // Predicated region
  $region10: #{resnet_forward.13} parent=0 // pred_check
    _
  $region11: #{resnet_forward.13} parent=0 // pred_check_branch
    %13 = sbr.rel (0) target = $region13
  $region12: #{resnet_forward.13} parent=0 // pred_region
    _
  $region13: #{resnet_forward.13} parent=0 // pred_fallthru
    _
  %v15 = vld [vmem:[%s0] sm:$0xff]
  %v16 = vld [vmem:[%s0 + $0x8] sm:$0xff]
  %v17 = vld [vmem:[%s0 + $0x10] sm:$0xf]
  %v18 = vld [vmem:[%s0 + $0x14] sm:$0xff]
  %v19 = vld [vmem:[%s0 + $0x1c] sm:$0xff]
  %v20 = vld [vmem:[%s0 + $0x24] sm:$0xf]
  %v21 = vld [vmem:[%s0 + $0x28] sm:$0xff]
  %v22 = vld [vmem:[%s0 + $0x30] sm:$0xff]
  %v23 = vld [vmem:[%s0 + $0x38] sm:$0xf]
  %v24 = vld [vmem:[%s0 + $0x3c] sm:$0xff]
  %v25 = vld [vmem:[%s0 + $0x44] sm:$0xff]
  %v26 = vld [vmem:[%s0 + $0x4c] sm:$0xf]
  %v27 = vld [vmem:[%s0 + $0x50] sm:$0xff]
  %v28 = vld [vmem:[%s0 + $0x58] sm:$0xff]
  %v29 = vld [vmem:[%s0 + $0x60] sm:$0xf]
  %v30 = vld [vmem:[%s0 + $0x64] sm:$0xff]
  %v31 = vld [vmem:[%s0 + $0x6c] sm:$0xff]
  %v32 = vld [vmem:[%s0 + $0x74] sm:$0xf]
  %v33 = vld [vmem:[%s0 + $0x78] sm:$0xff]
  %v34 = vld [vmem:[%s0 + $0x80] sm:$0xff]
  %v35 = vld [vmem:[%s0 + $0x88] sm:$0xf]
  %v36 = vld [vmem:[%s0 + $0x8c] sm:$0xff]
  %v37 = vld [vmem:[%s0 + $0x94] sm:$0xff]
  %v38 = vld [vmem:[%s0 + $0x9c] sm:$0xf]
  %v39 = vld [vmem:[%s0 + $0xa0] sm:$0xff]
  %v40 = vld [vmem:[%s0 + $0xa8] sm:$0xff]
  %v41 = vld [vmem:[%s0 + $0xb0] sm:$0xf]
  %v42 = vld [vmem:[%s0 + $0xb4] sm:$0xff]
  %v43 = vld [vmem:[%s0 + $0xbc] sm:$0xff]
  %v44 = vld [vmem:[%s0 + $0xc4] sm:$0xf]
  %v45 = vld [vmem:[%s0 + $0xc8] sm:$0xff]
  %v46 = vld [vmem:[%s0 + $0xd0] sm:$0xff]
  %v47 = vld [vmem:[%s0 + $0xd8] sm:$0xf]
  %v48 = vld [vmem:[%s0 + $0xdc] sm:$0xff]
  %v49 = vld [vmem:[%s0 + $0xe4] sm:$0xff]
  %v50 = vld [vmem:[%s0 + $0xec] sm:$0xf]
  %v51 = vld [vmem:[%s0 + $0xf0] sm:$0xff]
  %v52 = vld [vmem:[%s0 + $0xf8] sm:$0xff]
  %v53 = vld [vmem:[%s0 + $0x100] sm:$0xf]
  %v54 = vld [vmem:[%s0 + $0x104] sm:$0xff]
  %v55 = vld [vmem:[%s0 + $0x10c] sm:$0xff]
  %v56 = vld [vmem:[%s0 + $0x114] sm:$0xf]
  %v57 = vld [vmem:[%s0 + $0x118] sm:$0xff]
  %v58 = vld [vmem:[%s0 + $0x120] sm:$0xff]
  %v59 = vld [vmem:[%s0 + $0x128] sm:$0xf]
  %v60 = vld [vmem:[%s0 + $0x12c] sm:$0xff]
  %v61 = vld [vmem:[%s0 + $0x134] sm:$0xff]
  %v62 = vld [vmem:[%s0 + $0x13c] sm:$0xf]
  %v63 = vld [vmem:[%s1] sm:$0xf]
  %v64 = vld [vmem:[%s1 + $0x4] sm:$0xf]
  %v65 = vld [vmem:[%s1 + $0x8] sm:$0xf]
  %v66 = vld [vmem:[%s1 + $0xc] sm:$0xf]
  %v67 = vld [vmem:[%s1 + $0x10] sm:$0xf]
  %v68 = vld [vmem:[%s1 + $0x14] sm:$0xf]
  %v69 = vld [vmem:[%s1 + $0x18] sm:$0xf]
  %v70 = vld [vmem:[%s1 + $0x1c] sm:$0xf]
  %v71 = vld [vmem:[%s1 + $0x20] sm:$0xf]
  %v72 = vld [vmem:[%s1 + $0x24] sm:$0xf]
  %v73 = vld [vmem:[%s1 + $0x28] sm:$0xf]
  %v74 = vld [vmem:[%s1 + $0x2c] sm:$0xf]
  %v75 = vld [vmem:[%s1 + $0x30] sm:$0xf]
  %v76 = vld [vmem:[%s1 + $0x34] sm:$0xf]
  %v77 = vld [vmem:[%s1 + $0x38] sm:$0xf]
  %v78 = vld [vmem:[%s1 + $0x3c] sm:$0xf]
  %v79 = vld [vmem:[%s1 + $0x40] sm:$0xf]
  %v80 = vld [vmem:[%s1 + $0x44] sm:$0xf]
  %v81 = vld [vmem:[%s1 + $0x48] sm:$0xf]
  %v82 = vld [vmem:[%s1 + $0x4c] sm:$0xf]
  %v83 = vld [vmem:[%s1 + $0x50] sm:$0xf]
  %v84 = vld [vmem:[%s1 + $0x54] sm:$0xf]
  %v85 = vld [vmem:[%s1 + $0x58] sm:$0xf]
  %v86 = vld [vmem:[%s1 + $0x5c] sm:$0xf]
  %v87 = vld [vmem:[%s1 + $0x60] sm:$0xf]
  %v88 = vld [vmem:[%s1 + $0x64] sm:$0xf]
  %v89 = vld [vmem:[%s1 + $0x68] sm:$0xf]
  %v90 = vld [vmem:[%s1 + $0x6c] sm:$0xf]
  %v91 = vld [vmem:[%s1 + $0x70] sm:$0xf]
  %v92 = vld [vmem:[%s1 + $0x74] sm:$0xf]
  %v93 = vld [vmem:[%s1 + $0x78] sm:$0xf]
  %v94 = vld [vmem:[%s1 + $0x7c] sm:$0xf]
  %v95 = vld [vmem:[%s1 + $0x80] sm:$0xf]
  %v96 = vld [vmem:[%s1 + $0x84] sm:$0xf]
  %v97 = vld [vmem:[%s1 + $0x88] sm:$0xf]
  %v98 = vld [vmem:[%s1 + $0x8c] sm:$0xf]
  %v99 = vld [vmem:[%s1 + $0x90] sm:$0xf]
  %v100 = vld [vmem:[%s1 + $0x94] sm:$0xf]
  %v101 = vld [vmem:[%s1 + $0x98] sm:$0xf]
  %v102 = vld [vmem:[%s1 + $0x9c] sm:$0xf]
  %v103 = vld [vmem:[%s1 + $0xa0] sm:$0xf]
  %v104 = vld [vmem:[%s1 + $0xa4] sm:$0xf]
  %v105 = vld [vmem:[%s1 + $0xa8] sm:$0xf]
  %v106 = vld [vmem:[%s1 + $0xac] sm:$0xf]
  %v107 = vld [vmem:[%s1 + $0xb0] sm:$0xf]
  %v108 = vld [vmem:[%s1 + $0xb4] sm:$0xf]
  %v109 = vld [vmem:[%s1 + $0xb8] sm:$0xf]
  %v110 = vld [vmem:[%s1 + $0xbc] sm:$0xf]
  %v111 = vld [vmem:[%s1 + $0xc0] sm:$0xf]
  %v112 = vld [vmem:[%s1 + $0xc4] sm:$0xf]
  %v113 = vld [vmem:[%s1 + $0xc8] sm:$0xf]
  %v114 = vld [vmem:[%s1 + $0xcc] sm:$0xf]
  %v115 = vld [vmem:[%s1 + $0xd0] sm:$0xf]
  %v116 = vld [vmem:[%s1 + $0xd4] sm:$0xf]
  %v117 = vld [vmem:[%s1 + $0xd8] sm:$0xf]
  %v118 = vld [vmem:[%s1 + $0xdc] sm:$0xf]
  %v119 = vld [vmem:[%s1 + $0xe0] sm:$0xf]
  %v120 = vld [vmem:[%s1 + $0xe4] sm:$0xf]
  %v121 = vld [vmem:[%s1 + $0xe8] sm:$0xf]
  %v122 = vld [vmem:[%s1 + $0xec] sm:$0xf]
  %v123 = vld [vmem:[%s1 + $0xf0] sm:$0xf]
  %v124 = vld [vmem:[%s1 + $0xf4] sm:$0xf]
  %v125 = vld [vmem:[%s1 + $0xf8] sm:$0xf]
  %v126 = vld [vmem:[%s1 + $0xfc] sm:$0xf]
  %v127 = vld [vmem:[%s1 + $0x100] sm:$0xf]
  %v128 = vld [vmem:[%s1 + $0x104] sm:$0xf]
  %v129 = vld [vmem:[%s1 + $0x108] sm:$0xf]
  %v130 = vld [vmem:[%s1 + $0x10c] sm:$0xf]
  %v131 = vld [vmem:[%s1 + $0x110] sm:$0xf]
  %v132 = vld [vmem:[%s1 + $0x114] sm:$0xf]
  %v133 = vld [vmem:[%s1 + $0x118] sm:$0xf]
  %v134 = vld [vmem:[%s1 + $0x11c] sm:$0xf]
  %v135 = vld [vmem:[%s2] sm:$0x1]
  %v137 = vperm.slane %v135, 0
  %v187 = vunpack.c.l.b16 %v15
  %v188 = vunpack.c.h.b16 %v15
  %v189 = vunpack.c.l.b16 %v16
  %v190 = vunpack.c.h.b16 %v16
  %v191 = vunpack.c.l.b16 %v17
  %v192 = vunpack.c.l.b16 %v18
  %v193 = vunpack.c.h.b16 %v18
  %v194 = vunpack.c.l.b16 %v19
  %v195 = vunpack.c.h.b16 %v19
  %v196 = vunpack.c.l.b16 %v20
  %v197 = vunpack.c.l.b16 %v21
  %v198 = vunpack.c.h.b16 %v21
  %v199 = vunpack.c.l.b16 %v22
  %v200 = vunpack.c.h.b16 %v22
  %v201 = vunpack.c.l.b16 %v23
  %v202 = vunpack.c.l.b16 %v24
  %v203 = vunpack.c.h.b16 %v24
  %v204 = vunpack.c.l.b16 %v25
  %v205 = vunpack.c.h.b16 %v25
  %v206 = vunpack.c.l.b16 %v26
  %v207 = vunpack.c.l.b16 %v27
  %v208 = vunpack.c.h.b16 %v27
  %v209 = vunpack.c.l.b16 %v28
  %v210 = vunpack.c.h.b16 %v28
  %v211 = vunpack.c.l.b16 %v29
  %v212 = vunpack.c.l.b16 %v30
  %v213 = vunpack.c.h.b16 %v30
  %v214 = vunpack.c.l.b16 %v31
  %v215 = vunpack.c.h.b16 %v31
  %v216 = vunpack.c.l.b16 %v32
  %v217 = vunpack.c.l.b16 %v33
  %v218 = vunpack.c.h.b16 %v33
  %v219 = vunpack.c.l.b16 %v34
  %v220 = vunpack.c.h.b16 %v34
  %v221 = vunpack.c.l.b16 %v35
  %v222 = vunpack.c.l.b16 %v36
  %v223 = vunpack.c.h.b16 %v36
  %v224 = vunpack.c.l.b16 %v37
  %v225 = vunpack.c.h.b16 %v37
  %v226 = vunpack.c.l.b16 %v38
  %v227 = vunpack.c.l.b16 %v39
  %v228 = vunpack.c.h.b16 %v39
  %v229 = vunpack.c.l.b16 %v40
  %v230 = vunpack.c.h.b16 %v40
  %v231 = vunpack.c.l.b16 %v41
  %v232 = vunpack.c.l.b16 %v42
  %v233 = vunpack.c.h.b16 %v42
  %v234 = vunpack.c.l.b16 %v43
  %v235 = vunpack.c.h.b16 %v43
  %v236 = vunpack.c.l.b16 %v44
  %v237 = vunpack.c.l.b16 %v45
  %v238 = vunpack.c.h.b16 %v45
  %v239 = vunpack.c.l.b16 %v46
  %v240 = vunpack.c.h.b16 %v46
  %v241 = vunpack.c.l.b16 %v47
  %v242 = vunpack.c.l.b16 %v48
  %v243 = vunpack.c.h.b16 %v48
  %v244 = vunpack.c.l.b16 %v49
  %v245 = vunpack.c.h.b16 %v49
  %v246 = vunpack.c.l.b16 %v50
  %v247 = vunpack.c.l.b16 %v51
  %v248 = vunpack.c.h.b16 %v51
  %v249 = vunpack.c.l.b16 %v52
  %v250 = vunpack.c.h.b16 %v52
  %v251 = vunpack.c.l.b16 %v53
  %v252 = vunpack.c.l.b16 %v54
  %v253 = vunpack.c.h.b16 %v54
  %v254 = vunpack.c.l.b16 %v55
  %v255 = vunpack.c.h.b16 %v55
  %v256 = vunpack.c.l.b16 %v56
  %v257 = vunpack.c.l.b16 %v57
  %v258 = vunpack.c.h.b16 %v57
  %v259 = vunpack.c.l.b16 %v58
  %v260 = vunpack.c.h.b16 %v58
  %v261 = vunpack.c.l.b16 %v59
  %v262 = vunpack.c.l.b16 %v60
  %v263 = vunpack.c.h.b16 %v60
  %v264 = vunpack.c.l.b16 %v61
  %v265 = vunpack.c.h.b16 %v61
  %v266 = vunpack.c.l.b16 %v62
  %v267 = vpack.c.b16 %v192, %v187
  %v268 = vpack.c.b16 %v193, %v188
  %v269 = vpack.c.b16 %v194, %v189
  %v270 = vpack.c.b16 %v195, %v190
  %v271 = vpack.c.b16 %v196, %v191
  %v272 = vpack.c.b16 %v202, %v197
  %v273 = vpack.c.b16 %v203, %v198
  %v274 = vpack.c.b16 %v204, %v199
  %v275 = vpack.c.b16 %v205, %v200
  %v276 = vpack.c.b16 %v206, %v201
  %v277 = vpack.c.b16 %v212, %v207
  %v278 = vpack.c.b16 %v213, %v208
  %v279 = vpack.c.b16 %v214, %v209
  %v280 = vpack.c.b16 %v215, %v210
  %v281 = vpack.c.b16 %v216, %v211
  %v282 = vpack.c.b16 %v222, %v217
  %v283 = vpack.c.b16 %v223, %v218
  %v284 = vpack.c.b16 %v224, %v219
  %v285 = vpack.c.b16 %v225, %v220
  %v286 = vpack.c.b16 %v226, %v221
  %v287 = vpack.c.b16 %v232, %v227
  %v288 = vpack.c.b16 %v233, %v228
  %v289 = vpack.c.b16 %v234, %v229
  %v290 = vpack.c.b16 %v235, %v230
  %v291 = vpack.c.b16 %v236, %v231
  %v292 = vpack.c.b16 %v242, %v237
  %v293 = vpack.c.b16 %v243, %v238
  %v294 = vpack.c.b16 %v244, %v239
  %v295 = vpack.c.b16 %v245, %v240
  %v296 = vpack.c.b16 %v246, %v241
  %v297 = vpack.c.b16 %v252, %v247
  %v298 = vpack.c.b16 %v253, %v248
  %v299 = vpack.c.b16 %v254, %v249
  %v300 = vpack.c.b16 %v255, %v250
  %v301 = vpack.c.b16 %v256, %v251
  %v302 = vpack.c.b16 %v262, %v257
  %v303 = vpack.c.b16 %v263, %v258
  %v304 = vpack.c.b16 %v264, %v259
  %v305 = vpack.c.b16 %v265, %v260
  %v306 = vpack.c.b16 %v266, %v261
  %v411 = vunpack.c.l.b16 %v63
  %v412 = vunpack.c.l.b16 %v64
  %v413 = vunpack.c.l.b16 %v65
  %v414 = vunpack.c.l.b16 %v66
  %v415 = vunpack.c.l.b16 %v67
  %v416 = vunpack.c.l.b16 %v68
  %v417 = vunpack.c.l.b16 %v69
  %v418 = vunpack.c.l.b16 %v70
  %v419 = vunpack.c.l.b16 %v71
  %v420 = vunpack.c.l.b16 %v72
  %v421 = vunpack.c.l.b16 %v73
  %v422 = vunpack.c.l.b16 %v74
  %v423 = vunpack.c.l.b16 %v75
  %v424 = vunpack.c.l.b16 %v76
  %v425 = vunpack.c.l.b16 %v77
  %v426 = vunpack.c.l.b16 %v78
  %v427 = vunpack.c.l.b16 %v79
  %v428 = vunpack.c.l.b16 %v80
  %v429 = vunpack.c.l.b16 %v81
  %v430 = vunpack.c.l.b16 %v82
  %v431 = vunpack.c.l.b16 %v83
  %v432 = vunpack.c.l.b16 %v84
  %v433 = vunpack.c.l.b16 %v85
  %v434 = vunpack.c.l.b16 %v86
  %v435 = vunpack.c.l.b16 %v87
  %v436 = vunpack.c.l.b16 %v88
  %v437 = vunpack.c.l.b16 %v89
  %v438 = vunpack.c.l.b16 %v90
  %v439 = vunpack.c.l.b16 %v91
  %v440 = vunpack.c.l.b16 %v92
  %v441 = vunpack.c.l.b16 %v93
  %v442 = vunpack.c.l.b16 %v94
  %v443 = vunpack.c.l.b16 %v95
  %v444 = vunpack.c.l.b16 %v96
  %v445 = vunpack.c.l.b16 %v97
  %v446 = vunpack.c.l.b16 %v98
  %v447 = vunpack.c.l.b16 %v99
  %v448 = vunpack.c.l.b16 %v100
  %v449 = vunpack.c.l.b16 %v101
  %v450 = vunpack.c.l.b16 %v102
  %v451 = vunpack.c.l.b16 %v103
  %v452 = vunpack.c.l.b16 %v104
  %v453 = vunpack.c.l.b16 %v105
  %v454 = vunpack.c.l.b16 %v106
  %v455 = vunpack.c.l.b16 %v107
  %v456 = vunpack.c.l.b16 %v108
  %v457 = vunpack.c.l.b16 %v109
  %v458 = vunpack.c.l.b16 %v110
  %v459 = vunpack.c.l.b16 %v111
  %v460 = vunpack.c.l.b16 %v112
  %v461 = vunpack.c.l.b16 %v113
  %v462 = vunpack.c.l.b16 %v114
  %v463 = vunpack.c.l.b16 %v115
  %v464 = vunpack.c.l.b16 %v116
  %v465 = vunpack.c.l.b16 %v117
  %v466 = vunpack.c.l.b16 %v118
  %v467 = vunpack.c.l.b16 %v119
  %v468 = vunpack.c.l.b16 %v120
  %v469 = vunpack.c.l.b16 %v121
  %v470 = vunpack.c.l.b16 %v122
  %v471 = vunpack.c.l.b16 %v123
  %v472 = vunpack.c.l.b16 %v124
  %v473 = vunpack.c.l.b16 %v125
  %v474 = vunpack.c.l.b16 %v126
  %v475 = vunpack.c.l.b16 %v127
  %v476 = vunpack.c.l.b16 %v128
  %v477 = vunpack.c.l.b16 %v129
  %v478 = vunpack.c.l.b16 %v130
  %v479 = vunpack.c.l.b16 %v131
  %v480 = vunpack.c.l.b16 %v132
  %v481 = vunpack.c.l.b16 %v133
  %v482 = vunpack.c.l.b16 %v134
  %v483 = vpack.c.b16 %v412, %v411
  %v484 = vpack.c.b16 %v414, %v413
  %v485 = vpack.c.b16 %v416, %v415
  %v486 = vpack.c.b16 %v418, %v417
  %v487 = vpack.c.b16 %v420, %v419
  %v488 = vpack.c.b16 %v422, %v421
  %v489 = vpack.c.b16 %v424, %v423
  %v490 = vpack.c.b16 %v426, %v425
  %v491 = vpack.c.b16 %v428, %v427
  %v492 = vpack.c.b16 %v430, %v429
  %v493 = vpack.c.b16 %v432, %v431
  %v494 = vpack.c.b16 %v434, %v433
  %v495 = vpack.c.b16 %v436, %v435
  %v496 = vpack.c.b16 %v438, %v437
  %v497 = vpack.c.b16 %v440, %v439
  %v498 = vpack.c.b16 %v442, %v441
  %v499 = vpack.c.b16 %v444, %v443
  %v500 = vpack.c.b16 %v446, %v445
  %v501 = vpack.c.b16 %v448, %v447
  %v502 = vpack.c.b16 %v450, %v449
  %v503 = vpack.c.b16 %v452, %v451
  %v504 = vpack.c.b16 %v454, %v453
  %v505 = vpack.c.b16 %v456, %v455
  %v506 = vpack.c.b16 %v458, %v457
  %v507 = vpack.c.b16 %v460, %v459
  %v508 = vpack.c.b16 %v462, %v461
  %v509 = vpack.c.b16 %v464, %v463
  %v510 = vpack.c.b16 %v466, %v465
  %v511 = vpack.c.b16 %v468, %v467
  %v512 = vpack.c.b16 %v470, %v469
  %v513 = vpack.c.b16 %v472, %v471
  %v514 = vpack.c.b16 %v474, %v473
  %v515 = vpack.c.b16 %v476, %v475
  %v516 = vpack.c.b16 %v478, %v477
  %v517 = vpack.c.b16 %v480, %v479
  %v518 = vpack.c.b16 %v482, %v481
  %vm555 = vcmask 523264
  %v557 = vsel %vm555, %v271, 0
  %v560 = vsel %vm555, %v276, 0
  %v563 = vsel %vm555, %v281, 0
  %v566 = vsel %vm555, %v286, 0
  %v569 = vsel %vm555, %v291, 0
  %v572 = vsel %vm555, %v296, 0
  %v575 = vsel %vm555, %v301, 0
  %v578 = vsel %vm555, %v306, 0
  %580 = vmatpush.bf16.msra.mxu0 %v490
  %581 = vmatpush.bf16.msra.mxu0 %v489
  %582 = vmatpush.bf16.msra.mxu0 %v488
  %583 = vmatpush.bf16.msra.mxu0 %v487
  %584 = vmatpush.bf16.msra.mxu0 %v486
  %585 = vmatpush.bf16.msra.mxu0 %v485
  %586 = vmatpush.bf16.msra.mxu0 %v484
  %587 = vmatpush.bf16.msra.mxu0 %v483
  %588 = vmatmul.bf16.gmra.mxu0 %v267
  %v589 = vpop.f32.mrf.mxu0
  %v590 = vadd.f32 %v137, %v589
  %v591 = vpop.f32.mrf.mxu0
  %v592 = vadd.f32 %v137, %v591
  %593 = vmatmul.bf16.gmra.mxu0 %v272
  %v594 = vpop.f32.mrf.mxu0
  %v595 = vadd.f32 %v137, %v594
  %v596 = vpop.f32.mrf.mxu0
  %v597 = vadd.f32 %v137, %v596
  %598 = vmatmul.bf16.gmra.mxu0 %v277
  %v599 = vpop.f32.mrf.mxu0
  %v600 = vadd.f32 %v137, %v599
  %v601 = vpop.f32.mrf.mxu0
  %v602 = vadd.f32 %v137, %v601
  %603 = vmatmul.bf16.gmra.mxu0 %v282
  %v604 = vpop.f32.mrf.mxu0
  %v605 = vadd.f32 %v137, %v604
  %v606 = vpop.f32.mrf.mxu0
  %v607 = vadd.f32 %v137, %v606
  %608 = vmatmul.bf16.gmra.mxu0 %v287
  %v609 = vpop.f32.mrf.mxu0
  %v610 = vadd.f32 %v137, %v609
  %v611 = vpop.f32.mrf.mxu0
  %v612 = vadd.f32 %v137, %v611
  %613 = vmatmul.bf16.gmra.mxu0 %v292
  %v614 = vpop.f32.mrf.mxu0
  %v615 = vadd.f32 %v137, %v614
  %v616 = vpop.f32.mrf.mxu0
  %v617 = vadd.f32 %v137, %v616
  %618 = vmatmul.bf16.gmra.mxu0 %v297
  %v619 = vpop.f32.mrf.mxu0
  %v620 = vadd.f32 %v137, %v619
  %v621 = vpop.f32.mrf.mxu0
  %v622 = vadd.f32 %v137, %v621
  %623 = vmatmul.bf16.gmra.mxu0 %v302
  %v624 = vpop.f32.mrf.mxu0
  %v625 = vadd.f32 %v137, %v624
  %v626 = vpop.f32.mrf.mxu0
  %v627 = vadd.f32 %v137, %v626
  %628 = vdwg.mxu0
  %629 = vmatpush.bf16.msra.mxu0 %v498
  %630 = vmatpush.bf16.msra.mxu0 %v497
  %631 = vmatpush.bf16.msra.mxu0 %v496
  %632 = vmatpush.bf16.msra.mxu0 %v495
  %633 = vmatpush.bf16.msra.mxu0 %v494
  %634 = vmatpush.bf16.msra.mxu0 %v493
  %635 = vmatpush.bf16.msra.mxu0 %v492
  %636 = vmatpush.bf16.msra.mxu0 %v491
  %637 = vmatmul.bf16.gmra.mxu0 %v268
  %v638 = vpop.f32.mrf.mxu0
  %v639 = vadd.f32 %v590, %v638
  %v640 = vpop.f32.mrf.mxu0
  %v641 = vadd.f32 %v592, %v640
  %642 = vmatmul.bf16.gmra.mxu0 %v273
  %v643 = vpop.f32.mrf.mxu0
  %v644 = vadd.f32 %v595, %v643
  %v645 = vpop.f32.mrf.mxu0
  %v646 = vadd.f32 %v597, %v645
  %647 = vmatmul.bf16.gmra.mxu0 %v278
  %v648 = vpop.f32.mrf.mxu0
  %v649 = vadd.f32 %v600, %v648
  %v650 = vpop.f32.mrf.mxu0
  %v651 = vadd.f32 %v602, %v650
  %652 = vmatmul.bf16.gmra.mxu0 %v283
  %v653 = vpop.f32.mrf.mxu0
  %v654 = vadd.f32 %v605, %v653
  %v655 = vpop.f32.mrf.mxu0
  %v656 = vadd.f32 %v607, %v655
  %657 = vmatmul.bf16.gmra.mxu0 %v288
  %v658 = vpop.f32.mrf.mxu0
  %v659 = vadd.f32 %v610, %v658
  %v660 = vpop.f32.mrf.mxu0
  %v661 = vadd.f32 %v612, %v660
  %662 = vmatmul.bf16.gmra.mxu0 %v293
  %v663 = vpop.f32.mrf.mxu0
  %v664 = vadd.f32 %v615, %v663
  %v665 = vpop.f32.mrf.mxu0
  %v666 = vadd.f32 %v617, %v665
  %667 = vmatmul.bf16.gmra.mxu0 %v298
  %v668 = vpop.f32.mrf.mxu0
  %v669 = vadd.f32 %v620, %v668
  %v670 = vpop.f32.mrf.mxu0
  %v671 = vadd.f32 %v622, %v670
  %672 = vmatmul.bf16.gmra.mxu0 %v303
  %v673 = vpop.f32.mrf.mxu0
  %v674 = vadd.f32 %v625, %v673
  %v675 = vpop.f32.mrf.mxu0
  %v676 = vadd.f32 %v627, %v675
  %677 = vdwg.mxu0
  %678 = vmatpush.bf16.msra.mxu0 %v506
  %679 = vmatpush.bf16.msra.mxu0 %v505
  %680 = vmatpush.bf16.msra.mxu0 %v504
  %681 = vmatpush.bf16.msra.mxu0 %v503
  %682 = vmatpush.bf16.msra.mxu0 %v502
  %683 = vmatpush.bf16.msra.mxu0 %v501
  %684 = vmatpush.bf16.msra.mxu0 %v500
  %685 = vmatpush.bf16.msra.mxu0 %v499
  %686 = vmatmul.bf16.gmra.mxu0 %v269
  %v687 = vpop.f32.mrf.mxu0
  %v688 = vadd.f32 %v639, %v687
  %v689 = vpop.f32.mrf.mxu0
  %v690 = vadd.f32 %v641, %v689
  %691 = vmatmul.bf16.gmra.mxu0 %v274
  %v692 = vpop.f32.mrf.mxu0
  %v693 = vadd.f32 %v644, %v692
  %v694 = vpop.f32.mrf.mxu0
  %v695 = vadd.f32 %v646, %v694
  %696 = vmatmul.bf16.gmra.mxu0 %v279
  %v697 = vpop.f32.mrf.mxu0
  %v698 = vadd.f32 %v649, %v697
  %v699 = vpop.f32.mrf.mxu0
  %v700 = vadd.f32 %v651, %v699
  %701 = vmatmul.bf16.gmra.mxu0 %v284
  %v702 = vpop.f32.mrf.mxu0
  %v703 = vadd.f32 %v654, %v702
  %v704 = vpop.f32.mrf.mxu0
  %v705 = vadd.f32 %v656, %v704
  %706 = vmatmul.bf16.gmra.mxu0 %v289
  %v707 = vpop.f32.mrf.mxu0
  %v708 = vadd.f32 %v659, %v707
  %v709 = vpop.f32.mrf.mxu0
  %v710 = vadd.f32 %v661, %v709
  %711 = vmatmul.bf16.gmra.mxu0 %v294
  %v712 = vpop.f32.mrf.mxu0
  %v713 = vadd.f32 %v664, %v712
  %v714 = vpop.f32.mrf.mxu0
  %v715 = vadd.f32 %v666, %v714
  %716 = vmatmul.bf16.gmra.mxu0 %v299
  %v717 = vpop.f32.mrf.mxu0
  %v718 = vadd.f32 %v669, %v717
  %v719 = vpop.f32.mrf.mxu0
  %v720 = vadd.f32 %v671, %v719
  %721 = vmatmul.bf16.gmra.mxu0 %v304
  %v722 = vpop.f32.mrf.mxu0
  %v723 = vadd.f32 %v674, %v722
  %v724 = vpop.f32.mrf.mxu0
  %v725 = vadd.f32 %v676, %v724
  %726 = vdwg.mxu0
  %727 = vmatpush.bf16.msra.mxu0 %v514
  %728 = vmatpush.bf16.msra.mxu0 %v513
  %729 = vmatpush.bf16.msra.mxu0 %v512
  %730 = vmatpush.bf16.msra.mxu0 %v511
  %731 = vmatpush.bf16.msra.mxu0 %v510
  %732 = vmatpush.bf16.msra.mxu0 %v509
  %733 = vmatpush.bf16.msra.mxu0 %v508
  %734 = vmatpush.bf16.msra.mxu0 %v507
  %735 = vmatmul.bf16.gmra.mxu0 %v270
  %v736 = vpop.f32.mrf.mxu0
  %v737 = vadd.f32 %v688, %v736
  %v738 = vpop.f32.mrf.mxu0
  %v739 = vadd.f32 %v690, %v738
  %740 = vmatmul.bf16.gmra.mxu0 %v275
  %v741 = vpop.f32.mrf.mxu0
  %v742 = vadd.f32 %v693, %v741
  %v743 = vpop.f32.mrf.mxu0
  %v744 = vadd.f32 %v695, %v743
  %745 = vmatmul.bf16.gmra.mxu0 %v280
  %v746 = vpop.f32.mrf.mxu0
  %v747 = vadd.f32 %v698, %v746
  %v748 = vpop.f32.mrf.mxu0
  %v749 = vadd.f32 %v700, %v748
  %750 = vmatmul.bf16.gmra.mxu0 %v285
  %v751 = vpop.f32.mrf.mxu0
  %v752 = vadd.f32 %v703, %v751
  %v753 = vpop.f32.mrf.mxu0
  %v754 = vadd.f32 %v705, %v753
  %755 = vmatmul.bf16.gmra.mxu0 %v290
  %v756 = vpop.f32.mrf.mxu0
  %v757 = vadd.f32 %v708, %v756
  %v758 = vpop.f32.mrf.mxu0
  %v759 = vadd.f32 %v710, %v758
  %760 = vmatmul.bf16.gmra.mxu0 %v295
  %v761 = vpop.f32.mrf.mxu0
  %v762 = vadd.f32 %v713, %v761
  %v763 = vpop.f32.mrf.mxu0
  %v764 = vadd.f32 %v715, %v763
  %765 = vmatmul.bf16.gmra.mxu0 %v300
  %v766 = vpop.f32.mrf.mxu0
  %v767 = vadd.f32 %v718, %v766
  %v768 = vpop.f32.mrf.mxu0
  %v769 = vadd.f32 %v720, %v768
  %770 = vmatmul.bf16.gmra.mxu0 %v305
  %v771 = vpop.f32.mrf.mxu0
  %v772 = vadd.f32 %v723, %v771
  %v773 = vpop.f32.mrf.mxu0
  %v774 = vadd.f32 %v725, %v773
  %775 = vdwg.mxu0
  %776 = vmatpush.bf16.msra.mxu0 0
  %777 = vmatpush.bf16.msra.mxu0 0
  %778 = vmatpush.bf16.msra.mxu0 0
  %779 = vmatpush.bf16.msra.mxu0 0
  %780 = vmatpush.bf16.msra.mxu0 %v518
  %781 = vmatpush.bf16.msra.mxu0 %v517
  %782 = vmatpush.bf16.msra.mxu0 %v516
  %783 = vmatpush.bf16.msra.mxu0 %v515
  %784 = vmatmul.bf16.gmra.mxu0 %v557
  %v785 = vpop.f32.mrf.mxu0
  %v786 = vadd.f32 %v737, %v785
  %v787 = vpop.f32.mrf.mxu0
  %v788 = vadd.f32 %v739, %v787
  %789 = vmatmul.bf16.gmra.mxu0 %v560
  %v790 = vpop.f32.mrf.mxu0
  %v791 = vadd.f32 %v742, %v790
  %v792 = vpop.f32.mrf.mxu0
  %v793 = vadd.f32 %v744, %v792
  %794 = vmatmul.bf16.gmra.mxu0 %v563
  %v795 = vpop.f32.mrf.mxu0
  %v796 = vadd.f32 %v747, %v795
  %v797 = vpop.f32.mrf.mxu0
  %v798 = vadd.f32 %v749, %v797
  %799 = vmatmul.bf16.gmra.mxu0 %v566
  %v800 = vpop.f32.mrf.mxu0
  %v801 = vadd.f32 %v752, %v800
  %v802 = vpop.f32.mrf.mxu0
  %v803 = vadd.f32 %v754, %v802
  %804 = vmatmul.bf16.gmra.mxu0 %v569
  %v805 = vpop.f32.mrf.mxu0
  %v806 = vadd.f32 %v757, %v805
  %v807 = vpop.f32.mrf.mxu0
  %v808 = vadd.f32 %v759, %v807
  %809 = vmatmul.bf16.gmra.mxu0 %v572
  %v810 = vpop.f32.mrf.mxu0
  %v811 = vadd.f32 %v762, %v810
  %v812 = vpop.f32.mrf.mxu0
  %v813 = vadd.f32 %v764, %v812
  %814 = vmatmul.bf16.gmra.mxu0 %v575
  %v815 = vpop.f32.mrf.mxu0
  %v816 = vadd.f32 %v767, %v815
  %v817 = vpop.f32.mrf.mxu0
  %v818 = vadd.f32 %v769, %v817
  %819 = vmatmul.bf16.gmra.mxu0 %v578
  %v820 = vpop.f32.mrf.mxu0
  %v821 = vadd.f32 %v772, %v820
  %v822 = vpop.f32.mrf.mxu0
  %v823 = vadd.f32 %v774, %v822
  %824 = vdwg.mxu0
  %v825 = vmax.f32 %v786, 0.0
  %v826 = vmax.f32 %v788, 0.0
  %v827 = vmax.f32 %v791, 0.0
  %v828 = vmax.f32 %v793, 0.0
  %v829 = vmax.f32 %v796, 0.0
  %v830 = vmax.f32 %v798, 0.0
  %v831 = vmax.f32 %v801, 0.0
  %v832 = vmax.f32 %v803, 0.0
  %v833 = vmax.f32 %v806, 0.0
  %v834 = vmax.f32 %v808, 0.0
  %v835 = vmax.f32 %v811, 0.0
  %v836 = vmax.f32 %v813, 0.0
  %v837 = vmax.f32 %v816, 0.0
  %v838 = vmax.f32 %v818, 0.0
  %v839 = vmax.f32 %v821, 0.0
  %v840 = vmax.f32 %v823, 0.0
  %841 = vst.msk [vmem:[%s3] sm:$0xff] %vm555, %v825
  %842 = vst.msk [vmem:[%s3 + $0x8] sm:$0xff] %vm555, %v826
  %843 = vst.msk [vmem:[%s3 + $0x10] sm:$0xff] %vm555, %v827
  %844 = vst.msk [vmem:[%s3 + $0x18] sm:$0xff] %vm555, %v828
  %845 = vst.msk [vmem:[%s3 + $0x20] sm:$0xff] %vm555, %v829
  %846 = vst.msk [vmem:[%s3 + $0x28] sm:$0xff] %vm555, %v830
  %847 = vst.msk [vmem:[%s3 + $0x30] sm:$0xff] %vm555, %v831
  %848 = vst.msk [vmem:[%s3 + $0x38] sm:$0xff] %vm555, %v832
  %849 = vst.msk [vmem:[%s3 + $0x40] sm:$0xff] %vm555, %v833
  %850 = vst.msk [vmem:[%s3 + $0x48] sm:$0xff] %vm555, %v834
  %851 = vst.msk [vmem:[%s3 + $0x50] sm:$0xff] %vm555, %v835
  %852 = vst.msk [vmem:[%s3 + $0x58] sm:$0xff] %vm555, %v836
  %853 = vst.msk [vmem:[%s3 + $0x60] sm:$0xff] %vm555, %v837
  %854 = vst.msk [vmem:[%s3 + $0x68] sm:$0xff] %vm555, %v838
  %855 = vst.msk [vmem:[%s3 + $0x70] sm:$0xff] %vm555, %v839
  %856 = vst.msk [vmem:[%s3 + $0x78] sm:$0xff] %vm555, %v840
  // Predicated region
  $region14: #{resnet_forward.13} parent=0 // pred_check
    _
  $region15: #{resnet_forward.13} parent=0 // pred_check_branch
    %858 = sbr.rel (0) target = $region17
  $region16: #{resnet_forward.13} parent=0 // pred_region
    _
  $region17: #{resnet_forward.13} parent=0 // pred_fallthru
    _
  // Predicated region
  $region18: #{resnet_forward.13} parent=0 // pred_check
    _
  $region19: #{resnet_forward.13} parent=0 // pred_check_branch
    %860 = sbr.rel (0) target = $region21
  $region20: #{resnet_forward.13} parent=0 // pred_region
    _
  $region21: #{resnet_forward.13} parent=0 // pred_fallthru
    _

// kernel: resnet_forward.14
$region0: #{resnet_forward.14}
  #allocation0 [shape = 'u32[]', space=smem, size = 0x4, offset = 0x4, fixed_abs, tag = 'smem constant byte address 0x4 - core index']
  #allocation1 [shape = 'u32[72,128]{1,0:T(1,128)}', space=vmem, size = 0x9000, scoped, tag = 'internal scratch']
  %s0 = inlined_call_operand.vmem [shape: bf16[128,576], index: 0, kind: input, shape index: {}]
  %s1 = inlined_call_operand.vmem [shape: bf16[576,64], index: 1, kind: input, shape index: {}]
  %s2 = inlined_call_operand.vmem [shape: f32[1,64], index: 2, kind: input, shape index: {}]
  %s3 = inlined_call_operand.vmem [shape: f32[128,64], index: 3, kind: input, shape index: {}]
  %s4 = inlined_call_operand.vmem [shape: f32[128,64], index: 4, kind: output, shape index: {}]
  %s5 = sld [smem:[#allocation0]]
  $region26: #{resnet_forward.14} parent=0
    _
  %s7 = ssub.s32 1, %s5
  %s8 = scalar_select 0, %s7, %s5
  // Predicated region
  $region2: #{resnet_forward.14} parent=0 // pred_check
    _
  $region3: #{resnet_forward.14} parent=0 // pred_check_branch
    %10 = sbr.rel (0) target = $region5
  $region4: #{resnet_forward.14} parent=0 // pred_region
    _
  $region5: #{resnet_forward.14} parent=0 // pred_fallthru
    _
  // Predicated region
  $region6: #{resnet_forward.14} parent=0 // pred_check
    _
  $region7: #{resnet_forward.14} parent=0 // pred_check_branch
    %12 = sbr.rel (0) target = $region9
  $region8: #{resnet_forward.14} parent=0 // pred_region
    _
  $region9: #{resnet_forward.14} parent=0 // pred_fallthru
    _
  // Predicated region
  $region10: #{resnet_forward.14} parent=0 // pred_check
    _
  $region11: #{resnet_forward.14} parent=0 // pred_check_branch
    %14 = sbr.rel (0) target = $region13
  $region12: #{resnet_forward.14} parent=0 // pred_region
    _
  $region13: #{resnet_forward.14} parent=0 // pred_fallthru
    _
  // Predicated region
  $region14: #{resnet_forward.14} parent=0 // pred_check
    _
  $region15: #{resnet_forward.14} parent=0 // pred_check_branch
    %16 = sbr.rel (0) target = $region17
  $region16: #{resnet_forward.14} parent=0 // pred_region
    _
  $region17: #{resnet_forward.14} parent=0 // pred_fallthru
    _
  %v18 = vld [vmem:[%s0] sm:$0xff]
  %v19 = vld [vmem:[%s0 + $0x8] sm:$0xff]
  %v20 = vld [vmem:[%s0 + $0x10] sm:$0xf]
  %v21 = vld [vmem:[%s0 + $0x14] sm:$0xff]
  %v22 = vld [vmem:[%s0 + $0x1c] sm:$0xff]
  %v23 = vld [vmem:[%s0 + $0x24] sm:$0xf]
  %v24 = vld [vmem:[%s0 + $0x28] sm:$0xff]
  %v25 = vld [vmem:[%s0 + $0x30] sm:$0xff]
  %v26 = vld [vmem:[%s0 + $0x38] sm:$0xf]
  %v27 = vld [vmem:[%s0 + $0x3c] sm:$0xff]
  %v28 = vld [vmem:[%s0 + $0x44] sm:$0xff]
  %v29 = vld [vmem:[%s0 + $0x4c] sm:$0xf]
  %v30 = vld [vmem:[%s0 + $0x50] sm:$0xff]
  %v31 = vld [vmem:[%s0 + $0x58] sm:$0xff]
  %v32 = vld [vmem:[%s0 + $0x60] sm:$0xf]
  %v33 = vld [vmem:[%s0 + $0x64] sm:$0xff]
  %v34 = vld [vmem:[%s0 + $0x6c] sm:$0xff]
  %v35 = vld [vmem:[%s0 + $0x74] sm:$0xf]
  %v36 = vld [vmem:[%s0 + $0x78] sm:$0xff]
  %v37 = vld [vmem:[%s0 + $0x80] sm:$0xff]
  %v38 = vld [vmem:[%s0 + $0x88] sm:$0xf]
  %v39 = vld [vmem:[%s0 + $0x8c] sm:$0xff]
  %v40 = vld [vmem:[%s0 + $0x94] sm:$0xff]
  %v41 = vld [vmem:[%s0 + $0x9c] sm:$0xf]
  %v42 = vld [vmem:[%s0 + $0xa0] sm:$0xff]
  %v43 = vld [vmem:[%s0 + $0xa8] sm:$0xff]
  %v44 = vld [vmem:[%s0 + $0xb0] sm:$0xf]
  %v45 = vld [vmem:[%s0 + $0xb4] sm:$0xff]
  %v46 = vld [vmem:[%s0 + $0xbc] sm:$0xff]
  %v47 = vld [vmem:[%s0 + $0xc4] sm:$0xf]
  %v48 = vld [vmem:[%s0 + $0xc8] sm:$0xff]
  %v49 = vld [vmem:[%s0 + $0xd0] sm:$0xff]
  %v50 = vld [vmem:[%s0 + $0xd8] sm:$0xf]
  %v51 = vld [vmem:[%s0 + $0xdc] sm:$0xff]
  %v52 = vld [vmem:[%s0 + $0xe4] sm:$0xff]
  %v53 = vld [vmem:[%s0 + $0xec] sm:$0xf]
  %v54 = vld [vmem:[%s0 + $0xf0] sm:$0xff]
  %v55 = vld [vmem:[%s0 + $0xf8] sm:$0xff]
  %v56 = vld [vmem:[%s0 + $0x100] sm:$0xf]
  %v57 = vld [vmem:[%s0 + $0x104] sm:$0xff]
  %v58 = vld [vmem:[%s0 + $0x10c] sm:$0xff]
  %v59 = vld [vmem:[%s0 + $0x114] sm:$0xf]
  %v60 = vld [vmem:[%s0 + $0x118] sm:$0xff]
  %v61 = vld [vmem:[%s0 + $0x120] sm:$0xff]
  %v62 = vld [vmem:[%s0 + $0x128] sm:$0xf]
  %v63 = vld [vmem:[%s0 + $0x12c] sm:$0xff]
  %v64 = vld [vmem:[%s0 + $0x134] sm:$0xff]
  %v65 = vld [vmem:[%s0 + $0x13c] sm:$0xf]
  %v66 = vld [vmem:[%s1] sm:$0xf]
  %v67 = vld [vmem:[%s1 + $0x4] sm:$0xf]
  %v68 = vld [vmem:[%s1 + $0x8] sm:$0xf]
  %v69 = vld [vmem:[%s1 + $0xc] sm:$0xf]
  %v70 = vld [vmem:[%s1 + $0x10] sm:$0xf]
  %v71 = vld [vmem:[%s1 + $0x14] sm:$0xf]
  %v72 = vld [vmem:[%s1 + $0x18] sm:$0xf]
  %v73 = vld [vmem:[%s1 + $0x1c] sm:$0xf]
  %v74 = vld [vmem:[%s1 + $0x20] sm:$0xf]
  %v75 = vld [vmem:[%s1 + $0x24] sm:$0xf]
  %v76 = vld [vmem:[%s1 + $0x28] sm:$0xf]
  %v77 = vld [vmem:[%s1 + $0x2c] sm:$0xf]
  %v78 = vld [vmem:[%s1 + $0x30] sm:$0xf]
  %v79 = vld [vmem:[%s1 + $0x34] sm:$0xf]
  %v80 = vld [vmem:[%s1 + $0x38] sm:$0xf]
  %v81 = vld [vmem:[%s1 + $0x3c] sm:$0xf]
  %v82 = vld [vmem:[%s1 + $0x40] sm:$0xf]
  %v83 = vld [vmem:[%s1 + $0x44] sm:$0xf]
  %v84 = vld [vmem:[%s1 + $0x48] sm:$0xf]
  %v85 = vld [vmem:[%s1 + $0x4c] sm:$0xf]
  %v86 = vld [vmem:[%s1 + $0x50] sm:$0xf]
  %v87 = vld [vmem:[%s1 + $0x54] sm:$0xf]
  %v88 = vld [vmem:[%s1 + $0x58] sm:$0xf]
  %v89 = vld [vmem:[%s1 + $0x5c] sm:$0xf]
  %v90 = vld [vmem:[%s1 + $0x60] sm:$0xf]
  %v91 = vld [vmem:[%s1 + $0x64] sm:$0xf]
  %v92 = vld [vmem:[%s1 + $0x68] sm:$0xf]
  %v93 = vld [vmem:[%s1 + $0x6c] sm:$0xf]
  %v94 = vld [vmem:[%s1 + $0x70] sm:$0xf]
  %v95 = vld [vmem:[%s1 + $0x74] sm:$0xf]
  %v96 = vld [vmem:[%s1 + $0x78] sm:$0xf]
  %v97 = vld [vmem:[%s1 + $0x7c] sm:$0xf]
  %v98 = vld [vmem:[%s1 + $0x80] sm:$0xf]
  %v99 = vld [vmem:[%s1 + $0x84] sm:$0xf]
  %v100 = vld [vmem:[%s1 + $0x88] sm:$0xf]
  %v101 = vld [vmem:[%s1 + $0x8c] sm:$0xf]
  %v102 = vld [vmem:[%s1 + $0x90] sm:$0xf]
  %v103 = vld [vmem:[%s1 + $0x94] sm:$0xf]
  %v104 = vld [vmem:[%s1 + $0x98] sm:$0xf]
  %v105 = vld [vmem:[%s1 + $0x9c] sm:$0xf]
  %v106 = vld [vmem:[%s1 + $0xa0] sm:$0xf]
  %v107 = vld [vmem:[%s1 + $0xa4] sm:$0xf]
  %v108 = vld [vmem:[%s1 + $0xa8] sm:$0xf]
  %v109 = vld [vmem:[%s1 + $0xac] sm:$0xf]
  %v110 = vld [vmem:[%s1 + $0xb0] sm:$0xf]
  %v111 = vld [vmem:[%s1 + $0xb4] sm:$0xf]
  %v112 = vld [vmem:[%s1 + $0xb8] sm:$0xf]
  %v113 = vld [vmem:[%s1 + $0xbc] sm:$0xf]
  %v114 = vld [vmem:[%s1 + $0xc0] sm:$0xf]
  %v115 = vld [vmem:[%s1 + $0xc4] sm:$0xf]
  %v116 = vld [vmem:[%s1 + $0xc8] sm:$0xf]
  %v117 = vld [vmem:[%s1 + $0xcc] sm:$0xf]
  %v118 = vld [vmem:[%s1 + $0xd0] sm:$0xf]
  %v119 = vld [vmem:[%s1 + $0xd4] sm:$0xf]
  %v120 = vld [vmem:[%s1 + $0xd8] sm:$0xf]
  %v121 = vld [vmem:[%s1 + $0xdc] sm:$0xf]
  %v122 = vld [vmem:[%s1 + $0xe0] sm:$0xf]
  %v123 = vld [vmem:[%s1 + $0xe4] sm:$0xf]
  %v124 = vld [vmem:[%s1 + $0xe8] sm:$0xf]
  %v125 = vld [vmem:[%s1 + $0xec] sm:$0xf]
  %v126 = vld [vmem:[%s1 + $0xf0] sm:$0xf]
  %v127 = vld [vmem:[%s1 + $0xf4] sm:$0xf]
  %v128 = vld [vmem:[%s1 + $0xf8] sm:$0xf]
  %v129 = vld [vmem:[%s1 + $0xfc] sm:$0xf]
  %v130 = vld [vmem:[%s1 + $0x100] sm:$0xf]
  %v131 = vld [vmem:[%s1 + $0x104] sm:$0xf]
  %v132 = vld [vmem:[%s1 + $0x108] sm:$0xf]
  %v133 = vld [vmem:[%s1 + $0x10c] sm:$0xf]
  %v134 = vld [vmem:[%s1 + $0x110] sm:$0xf]
  %v135 = vld [vmem:[%s1 + $0x114] sm:$0xf]
  %v136 = vld [vmem:[%s1 + $0x118] sm:$0xf]
  %v137 = vld [vmem:[%s1 + $0x11c] sm:$0xf]
  %v138 = vld [vmem:[%s2] sm:$0x1]
  %v140 = vperm.slane %v138, 0
  %v190 = vunpack.c.l.b16 %v18
  %v191 = vunpack.c.h.b16 %v18
  %v192 = vunpack.c.l.b16 %v19
  %v193 = vunpack.c.h.b16 %v19
  %v194 = vunpack.c.l.b16 %v20
  %v195 = vunpack.c.l.b16 %v21
  %v196 = vunpack.c.h.b16 %v21
  %v197 = vunpack.c.l.b16 %v22
  %v198 = vunpack.c.h.b16 %v22
  %v199 = vunpack.c.l.b16 %v23
  %v200 = vunpack.c.l.b16 %v24
  %v201 = vunpack.c.h.b16 %v24
  %v202 = vunpack.c.l.b16 %v25
  %v203 = vunpack.c.h.b16 %v25
  %v204 = vunpack.c.l.b16 %v26
  %v205 = vunpack.c.l.b16 %v27
  %v206 = vunpack.c.h.b16 %v27
  %v207 = vunpack.c.l.b16 %v28
  %v208 = vunpack.c.h.b16 %v28
  %v209 = vunpack.c.l.b16 %v29
  %v210 = vunpack.c.l.b16 %v30
  %v211 = vunpack.c.h.b16 %v30
  %v212 = vunpack.c.l.b16 %v31
  %v213 = vunpack.c.h.b16 %v31
  %v214 = vunpack.c.l.b16 %v32
  %v215 = vunpack.c.l.b16 %v33
  %v216 = vunpack.c.h.b16 %v33
  %v217 = vunpack.c.l.b16 %v34
  %v218 = vunpack.c.h.b16 %v34
  %v219 = vunpack.c.l.b16 %v35
  %v220 = vunpack.c.l.b16 %v36
  %v221 = vunpack.c.h.b16 %v36
  %v222 = vunpack.c.l.b16 %v37
  %v223 = vunpack.c.h.b16 %v37
  %v224 = vunpack.c.l.b16 %v38
  %v225 = vunpack.c.l.b16 %v39
  %v226 = vunpack.c.h.b16 %v39
  %v227 = vunpack.c.l.b16 %v40
  %v228 = vunpack.c.h.b16 %v40
  %v229 = vunpack.c.l.b16 %v41
  %v230 = vunpack.c.l.b16 %v42
  %v231 = vunpack.c.h.b16 %v42
  %v232 = vunpack.c.l.b16 %v43
  %v233 = vunpack.c.h.b16 %v43
  %v234 = vunpack.c.l.b16 %v44
  %v235 = vunpack.c.l.b16 %v45
  %v236 = vunpack.c.h.b16 %v45
  %v237 = vunpack.c.l.b16 %v46
  %v238 = vunpack.c.h.b16 %v46
  %v239 = vunpack.c.l.b16 %v47
  %v240 = vunpack.c.l.b16 %v48
  %v241 = vunpack.c.h.b16 %v48
  %v242 = vunpack.c.l.b16 %v49
  %v243 = vunpack.c.h.b16 %v49
  %v244 = vunpack.c.l.b16 %v50
  %v245 = vunpack.c.l.b16 %v51
  %v246 = vunpack.c.h.b16 %v51
  %v247 = vunpack.c.l.b16 %v52
  %v248 = vunpack.c.h.b16 %v52
  %v249 = vunpack.c.l.b16 %v53
  %v250 = vunpack.c.l.b16 %v54
  %v251 = vunpack.c.h.b16 %v54
  %v252 = vunpack.c.l.b16 %v55
  %v253 = vunpack.c.h.b16 %v55
  %v254 = vunpack.c.l.b16 %v56
  %v255 = vunpack.c.l.b16 %v57
  %v256 = vunpack.c.h.b16 %v57
  %v257 = vunpack.c.l.b16 %v58
  %v258 = vunpack.c.h.b16 %v58
  %v259 = vunpack.c.l.b16 %v59
  %v260 = vunpack.c.l.b16 %v60
  %v261 = vunpack.c.h.b16 %v60
  %v262 = vunpack.c.l.b16 %v61
  %v263 = vunpack.c.h.b16 %v61
  %v264 = vunpack.c.l.b16 %v62
  %v265 = vunpack.c.l.b16 %v63
  %v266 = vunpack.c.h.b16 %v63
  %v267 = vunpack.c.l.b16 %v64
  %v268 = vunpack.c.h.b16 %v64
  %v269 = vunpack.c.l.b16 %v65
  %v270 = vpack.c.b16 %v195, %v190
  %v271 = vpack.c.b16 %v196, %v191
  %v272 = vpack.c.b16 %v197, %v192
  %v273 = vpack.c.b16 %v198, %v193
  %v274 = vpack.c.b16 %v199, %v194
  %v275 = vpack.c.b16 %v205, %v200
  %v276 = vpack.c.b16 %v206, %v201
  %v277 = vpack.c.b16 %v207, %v202
  %v278 = vpack.c.b16 %v208, %v203
  %v279 = vpack.c.b16 %v209, %v204
  %v280 = vpack.c.b16 %v215, %v210
  %v281 = vpack.c.b16 %v216, %v211
  %v282 = vpack.c.b16 %v217, %v212
  %v283 = vpack.c.b16 %v218, %v213
  %v284 = vpack.c.b16 %v219, %v214
  %v285 = vpack.c.b16 %v225, %v220
  %v286 = vpack.c.b16 %v226, %v221
  %v287 = vpack.c.b16 %v227, %v222
  %v288 = vpack.c.b16 %v228, %v223
  %v289 = vpack.c.b16 %v229, %v224
  %v290 = vpack.c.b16 %v235, %v230
  %v291 = vpack.c.b16 %v236, %v231
  %v292 = vpack.c.b16 %v237, %v232
  %v293 = vpack.c.b16 %v238, %v233
  %v294 = vpack.c.b16 %v239, %v234
  %v295 = vpack.c.b16 %v245, %v240
  %v296 = vpack.c.b16 %v246, %v241
  %v297 = vpack.c.b16 %v247, %v242
  %v298 = vpack.c.b16 %v248, %v243
  %v299 = vpack.c.b16 %v249, %v244
  %v300 = vpack.c.b16 %v255, %v250
  %v301 = vpack.c.b16 %v256, %v251
  %v302 = vpack.c.b16 %v257, %v252
  %v303 = vpack.c.b16 %v258, %v253
  %v304 = vpack.c.b16 %v259, %v254
  %v305 = vpack.c.b16 %v265, %v260
  %v306 = vpack.c.b16 %v266, %v261
  %v307 = vpack.c.b16 %v267, %v262
  %v308 = vpack.c.b16 %v268, %v263
  %v309 = vpack.c.b16 %v269, %v264
  %v414 = vunpack.c.l.b16 %v66
  %v415 = vunpack.c.l.b16 %v67
  %v416 = vunpack.c.l.b16 %v68
  %v417 = vunpack.c.l.b16 %v69
  %v418 = vunpack.c.l.b16 %v70
  %v419 = vunpack.c.l.b16 %v71
  %v420 = vunpack.c.l.b16 %v72
  %v421 = vunpack.c.l.b16 %v73
  %v422 = vunpack.c.l.b16 %v74
  %v423 = vunpack.c.l.b16 %v75
  %v424 = vunpack.c.l.b16 %v76
  %v425 = vunpack.c.l.b16 %v77
  %v426 = vunpack.c.l.b16 %v78
  %v427 = vunpack.c.l.b16 %v79
  %v428 = vunpack.c.l.b16 %v80
  %v429 = vunpack.c.l.b16 %v81
  %v430 = vunpack.c.l.b16 %v82
  %v431 = vunpack.c.l.b16 %v83
  %v432 = vunpack.c.l.b16 %v84
  %v433 = vunpack.c.l.b16 %v85
  %v434 = vunpack.c.l.b16 %v86
  %v435 = vunpack.c.l.b16 %v87
  %v436 = vunpack.c.l.b16 %v88
  %v437 = vunpack.c.l.b16 %v89
  %v438 = vunpack.c.l.b16 %v90
  %v439 = vunpack.c.l.b16 %v91
  %v440 = vunpack.c.l.b16 %v92
  %v441 = vunpack.c.l.b16 %v93
  %v442 = vunpack.c.l.b16 %v94
  %v443 = vunpack.c.l.b16 %v95
  %v444 = vunpack.c.l.b16 %v96
  %v445 = vunpack.c.l.b16 %v97
  %v446 = vunpack.c.l.b16 %v98
  %v447 = vunpack.c.l.b16 %v99
  %v448 = vunpack.c.l.b16 %v100
  %v449 = vunpack.c.l.b16 %v101
  %v450 = vunpack.c.l.b16 %v102
  %v451 = vunpack.c.l.b16 %v103
  %v452 = vunpack.c.l.b16 %v104
  %v453 = vunpack.c.l.b16 %v105
  %v454 = vunpack.c.l.b16 %v106
  %v455 = vunpack.c.l.b16 %v107
  %v456 = vunpack.c.l.b16 %v108
  %v457 = vunpack.c.l.b16 %v109
  %v458 = vunpack.c.l.b16 %v110
  %v459 = vunpack.c.l.b16 %v111
  %v460 = vunpack.c.l.b16 %v112
  %v461 = vunpack.c.l.b16 %v113
  %v462 = vunpack.c.l.b16 %v114
  %v463 = vunpack.c.l.b16 %v115
  %v464 = vunpack.c.l.b16 %v116
  %v465 = vunpack.c.l.b16 %v117
  %v466 = vunpack.c.l.b16 %v118
  %v467 = vunpack.c.l.b16 %v119
  %v468 = vunpack.c.l.b16 %v120
  %v469 = vunpack.c.l.b16 %v121
  %v470 = vunpack.c.l.b16 %v122
  %v471 = vunpack.c.l.b16 %v123
  %v472 = vunpack.c.l.b16 %v124
  %v473 = vunpack.c.l.b16 %v125
  %v474 = vunpack.c.l.b16 %v126
  %v475 = vunpack.c.l.b16 %v127
  %v476 = vunpack.c.l.b16 %v128
  %v477 = vunpack.c.l.b16 %v129
  %v478 = vunpack.c.l.b16 %v130
  %v479 = vunpack.c.l.b16 %v131
  %v480 = vunpack.c.l.b16 %v132
  %v481 = vunpack.c.l.b16 %v133
  %v482 = vunpack.c.l.b16 %v134
  %v483 = vunpack.c.l.b16 %v135
  %v484 = vunpack.c.l.b16 %v136
  %v485 = vunpack.c.l.b16 %v137
  %v486 = vpack.c.b16 %v415, %v414
  %v487 = vpack.c.b16 %v417, %v416
  %v488 = vpack.c.b16 %v419, %v418
  %v489 = vpack.c.b16 %v421, %v420
  %v490 = vpack.c.b16 %v423, %v422
  %v491 = vpack.c.b16 %v425, %v424
  %v492 = vpack.c.b16 %v427, %v426
  %v493 = vpack.c.b16 %v429, %v428
  %v494 = vpack.c.b16 %v431, %v430
  %v495 = vpack.c.b16 %v433, %v432
  %v496 = vpack.c.b16 %v435, %v434
  %v497 = vpack.c.b16 %v437, %v436
  %v498 = vpack.c.b16 %v439, %v438
  %v499 = vpack.c.b16 %v441, %v440
  %v500 = vpack.c.b16 %v443, %v442
  %v501 = vpack.c.b16 %v445, %v444
  %v502 = vpack.c.b16 %v447, %v446
  %v503 = vpack.c.b16 %v449, %v448
  %v504 = vpack.c.b16 %v451, %v450
  %v505 = vpack.c.b16 %v453, %v452
  %v506 = vpack.c.b16 %v455, %v454
  %v507 = vpack.c.b16 %v457, %v456
  %v508 = vpack.c.b16 %v459, %v458
  %v509 = vpack.c.b16 %v461, %v460
  %v510 = vpack.c.b16 %v463, %v462
  %v511 = vpack.c.b16 %v465, %v464
  %v512 = vpack.c.b16 %v467, %v466
  %v513 = vpack.c.b16 %v469, %v468
  %v514 = vpack.c.b16 %v471, %v470
  %v515 = vpack.c.b16 %v473, %v472
  %v516 = vpack.c.b16 %v475, %v474
  %v517 = vpack.c.b16 %v477, %v476
  %v518 = vpack.c.b16 %v479, %v478
  %v519 = vpack.c.b16 %v481, %v480
  %v520 = vpack.c.b16 %v483, %v482
  %v521 = vpack.c.b16 %v485, %v484
  %vm558 = vcmask 523264
  %v560 = vsel %vm558, %v274, 0
  %v563 = vsel %vm558, %v279, 0
  %v566 = vsel %vm558, %v284, 0
  %v569 = vsel %vm558, %v289, 0
  %v572 = vsel %vm558, %v294, 0
  %v575 = vsel %vm558, %v299, 0
  %v578 = vsel %vm558, %v304, 0
  %v581 = vsel %vm558, %v309, 0
  %583 = vmatpush.bf16.msra.mxu0 %v493
  %584 = vmatpush.bf16.msra.mxu0 %v492
  %585 = vmatpush.bf16.msra.mxu0 %v491
  %586 = vmatpush.bf16.msra.mxu0 %v490
  %587 = vmatpush.bf16.msra.mxu0 %v489
  %588 = vmatpush.bf16.msra.mxu0 %v488
  %589 = vmatpush.bf16.msra.mxu0 %v487
  %590 = vmatpush.bf16.msra.mxu0 %v486
  %591 = vmatmul.bf16.gmra.mxu0 %v270
  %v592 = vpop.f32.mrf.mxu0
  %v593 = vadd.f32 %v140, %v592
  %v594 = vpop.f32.mrf.mxu0
  %v595 = vadd.f32 %v140, %v594
  %596 = vmatmul.bf16.gmra.mxu0 %v275
  %v597 = vpop.f32.mrf.mxu0
  %v598 = vadd.f32 %v140, %v597
  %v599 = vpop.f32.mrf.mxu0
  %v600 = vadd.f32 %v140, %v599
  %601 = vmatmul.bf16.gmra.mxu0 %v280
  %v602 = vpop.f32.mrf.mxu0
  %v603 = vadd.f32 %v140, %v602
  %v604 = vpop.f32.mrf.mxu0
  %v605 = vadd.f32 %v140, %v604
  %606 = vmatmul.bf16.gmra.mxu0 %v285
  %v607 = vpop.f32.mrf.mxu0
  %v608 = vadd.f32 %v140, %v607
  %v609 = vpop.f32.mrf.mxu0
  %v610 = vadd.f32 %v140, %v609
  %611 = vmatmul.bf16.gmra.mxu0 %v290
  %v612 = vpop.f32.mrf.mxu0
  %v613 = vadd.f32 %v140, %v612
  %v614 = vpop.f32.mrf.mxu0
  %v615 = vadd.f32 %v140, %v614
  %616 = vmatmul.bf16.gmra.mxu0 %v295
  %v617 = vpop.f32.mrf.mxu0
  %v618 = vadd.f32 %v140, %v617
  %v619 = vpop.f32.mrf.mxu0
  %v620 = vadd.f32 %v140, %v619
  %621 = vmatmul.bf16.gmra.mxu0 %v300
  %v622 = vpop.f32.mrf.mxu0
  %v623 = vadd.f32 %v140, %v622
  %v624 = vpop.f32.mrf.mxu0
  %v625 = vadd.f32 %v140, %v624
  %626 = vmatmul.bf16.gmra.mxu0 %v305
  %v627 = vpop.f32.mrf.mxu0
  %v628 = vadd.f32 %v140, %v627
  %v629 = vpop.f32.mrf.mxu0
  %v630 = vadd.f32 %v140, %v629
  %631 = vdwg.mxu0
  %632 = vmatpush.bf16.msra.mxu0 %v501
  %633 = vmatpush.bf16.msra.mxu0 %v500
  %634 = vmatpush.bf16.msra.mxu0 %v499
  %635 = vmatpush.bf16.msra.mxu0 %v498
  %636 = vmatpush.bf16.msra.mxu0 %v497
  %637 = vmatpush.bf16.msra.mxu0 %v496
  %638 = vmatpush.bf16.msra.mxu0 %v495
  %639 = vmatpush.bf16.msra.mxu0 %v494
  %640 = vmatmul.bf16.gmra.mxu0 %v271
  %v641 = vpop.f32.mrf.mxu0
  %v642 = vadd.f32 %v593, %v641
  %v643 = vpop.f32.mrf.mxu0
  %v644 = vadd.f32 %v595, %v643
  %645 = vmatmul.bf16.gmra.mxu0 %v276
  %v646 = vpop.f32.mrf.mxu0
  %v647 = vadd.f32 %v598, %v646
  %v648 = vpop.f32.mrf.mxu0
  %v649 = vadd.f32 %v600, %v648
  %650 = vmatmul.bf16.gmra.mxu0 %v281
  %v651 = vpop.f32.mrf.mxu0
  %v652 = vadd.f32 %v603, %v651
  %v653 = vpop.f32.mrf.mxu0
  %v654 = vadd.f32 %v605, %v653
  %655 = vmatmul.bf16.gmra.mxu0 %v286
  %v656 = vpop.f32.mrf.mxu0
  %v657 = vadd.f32 %v608, %v656
  %v658 = vpop.f32.mrf.mxu0
  %v659 = vadd.f32 %v610, %v658
  %660 = vmatmul.bf16.gmra.mxu0 %v291
  %v661 = vpop.f32.mrf.mxu0
  %v662 = vadd.f32 %v613, %v661
  %v663 = vpop.f32.mrf.mxu0
  %v664 = vadd.f32 %v615, %v663
  %665 = vmatmul.bf16.gmra.mxu0 %v296
  %v666 = vpop.f32.mrf.mxu0
  %v667 = vadd.f32 %v618, %v666
  %v668 = vpop.f32.mrf.mxu0
  %v669 = vadd.f32 %v620, %v668
  %670 = vmatmul.bf16.gmra.mxu0 %v301
  %v671 = vpop.f32.mrf.mxu0
  %v672 = vadd.f32 %v623, %v671
  %v673 = vpop.f32.mrf.mxu0
  %v674 = vadd.f32 %v625, %v673
  %675 = vmatmul.bf16.gmra.mxu0 %v306
  %v676 = vpop.f32.mrf.mxu0
  %v677 = vadd.f32 %v628, %v676
  %v678 = vpop.f32.mrf.mxu0
  %v679 = vadd.f32 %v630, %v678
  %680 = vdwg.mxu0
  %681 = vmatpush.bf16.msra.mxu0 %v509
  %682 = vmatpush.bf16.msra.mxu0 %v508
  %683 = vmatpush.bf16.msra.mxu0 %v507
  %684 = vmatpush.bf16.msra.mxu0 %v506
  %685 = vmatpush.bf16.msra.mxu0 %v505
  %686 = vmatpush.bf16.msra.mxu0 %v504
  %687 = vmatpush.bf16.msra.mxu0 %v503
  %688 = vmatpush.bf16.msra.mxu0 %v502
  %689 = vmatmul.bf16.gmra.mxu0 %v272
  %v690 = vpop.f32.mrf.mxu0
  %v691 = vadd.f32 %v642, %v690
  %v692 = vpop.f32.mrf.mxu0
  %v693 = vadd.f32 %v644, %v692
  %694 = vmatmul.bf16.gmra.mxu0 %v277
  %v695 = vpop.f32.mrf.mxu0
  %v696 = vadd.f32 %v647, %v695
  %v697 = vpop.f32.mrf.mxu0
  %v698 = vadd.f32 %v649, %v697
  %699 = vmatmul.bf16.gmra.mxu0 %v282
  %v700 = vpop.f32.mrf.mxu0
  %v701 = vadd.f32 %v652, %v700
  %v702 = vpop.f32.mrf.mxu0
  %v703 = vadd.f32 %v654, %v702
  %704 = vmatmul.bf16.gmra.mxu0 %v287
  %v705 = vpop.f32.mrf.mxu0
  %v706 = vadd.f32 %v657, %v705
  %v707 = vpop.f32.mrf.mxu0
  %v708 = vadd.f32 %v659, %v707
  %709 = vmatmul.bf16.gmra.mxu0 %v292
  %v710 = vpop.f32.mrf.mxu0
  %v711 = vadd.f32 %v662, %v710
  %v712 = vpop.f32.mrf.mxu0
  %v713 = vadd.f32 %v664, %v712
  %714 = vmatmul.bf16.gmra.mxu0 %v297
  %v715 = vpop.f32.mrf.mxu0
  %v716 = vadd.f32 %v667, %v715
  %v717 = vpop.f32.mrf.mxu0
  %v718 = vadd.f32 %v669, %v717
  %719 = vmatmul.bf16.gmra.mxu0 %v302
  %v720 = vpop.f32.mrf.mxu0
  %v721 = vadd.f32 %v672, %v720
  %v722 = vpop.f32.mrf.mxu0
  %v723 = vadd.f32 %v674, %v722
  %724 = vmatmul.bf16.gmra.mxu0 %v307
  %v725 = vpop.f32.mrf.mxu0
  %v726 = vadd.f32 %v677, %v725
  %v727 = vpop.f32.mrf.mxu0
  %v728 = vadd.f32 %v679, %v727
  %729 = vdwg.mxu0
  %730 = vmatpush.bf16.msra.mxu0 %v517
  %731 = vmatpush.bf16.msra.mxu0 %v516
  %732 = vmatpush.bf16.msra.mxu0 %v515
  %733 = vmatpush.bf16.msra.mxu0 %v514
  %734 = vmatpush.bf16.msra.mxu0 %v513
  %735 = vmatpush.bf16.msra.mxu0 %v512
  %736 = vmatpush.bf16.msra.mxu0 %v511
  %737 = vmatpush.bf16.msra.mxu0 %v510
  %738 = vmatmul.bf16.gmra.mxu0 %v273
  %v739 = vpop.f32.mrf.mxu0
  %v740 = vadd.f32 %v691, %v739
  %v741 = vpop.f32.mrf.mxu0
  %v742 = vadd.f32 %v693, %v741
  %743 = vmatmul.bf16.gmra.mxu0 %v278
  %v744 = vpop.f32.mrf.mxu0
  %v745 = vadd.f32 %v696, %v744
  %v746 = vpop.f32.mrf.mxu0
  %v747 = vadd.f32 %v698, %v746
  %748 = vmatmul.bf16.gmra.mxu0 %v283
  %v749 = vpop.f32.mrf.mxu0
  %v750 = vadd.f32 %v701, %v749
  %v751 = vpop.f32.mrf.mxu0
  %v752 = vadd.f32 %v703, %v751
  %753 = vmatmul.bf16.gmra.mxu0 %v288
  %v754 = vpop.f32.mrf.mxu0
  %v755 = vadd.f32 %v706, %v754
  %v756 = vpop.f32.mrf.mxu0
  %v757 = vadd.f32 %v708, %v756
  %758 = vmatmul.bf16.gmra.mxu0 %v293
  %v759 = vpop.f32.mrf.mxu0
  %v760 = vadd.f32 %v711, %v759
  %v761 = vpop.f32.mrf.mxu0
  %v762 = vadd.f32 %v713, %v761
  %763 = vmatmul.bf16.gmra.mxu0 %v298
  %v764 = vpop.f32.mrf.mxu0
  %v765 = vadd.f32 %v716, %v764
  %v766 = vpop.f32.mrf.mxu0
  %v767 = vadd.f32 %v718, %v766
  %768 = vmatmul.bf16.gmra.mxu0 %v303
  %v769 = vpop.f32.mrf.mxu0
  %v770 = vadd.f32 %v721, %v769
  %v771 = vpop.f32.mrf.mxu0
  %v772 = vadd.f32 %v723, %v771
  %773 = vmatmul.bf16.gmra.mxu0 %v308
  %v774 = vpop.f32.mrf.mxu0
  %v775 = vadd.f32 %v726, %v774
  %v776 = vpop.f32.mrf.mxu0
  %v777 = vadd.f32 %v728, %v776
  %778 = vdwg.mxu0
  %779 = vmatpush.bf16.msra.mxu0 0
  %780 = vmatpush.bf16.msra.mxu0 0
  %781 = vmatpush.bf16.msra.mxu0 0
  %782 = vmatpush.bf16.msra.mxu0 0
  %783 = vmatpush.bf16.msra.mxu0 %v521
  %784 = vmatpush.bf16.msra.mxu0 %v520
  %785 = vmatpush.bf16.msra.mxu0 %v519
  %786 = vmatpush.bf16.msra.mxu0 %v518
  %787 = vmatmul.bf16.gmra.mxu0 %v560
  %v788 = vpop.f32.mrf.mxu0
  %v789 = vadd.f32 %v740, %v788
  %v790 = vpop.f32.mrf.mxu0
  %v791 = vadd.f32 %v742, %v790
  %792 = vmatmul.bf16.gmra.mxu0 %v563
  %v793 = vpop.f32.mrf.mxu0
  %v794 = vadd.f32 %v745, %v793
  %v795 = vpop.f32.mrf.mxu0
  %v796 = vadd.f32 %v747, %v795
  %797 = vmatmul.bf16.gmra.mxu0 %v566
  %v798 = vpop.f32.mrf.mxu0
  %v799 = vadd.f32 %v750, %v798
  %v800 = vpop.f32.mrf.mxu0
  %v801 = vadd.f32 %v752, %v800
  %802 = vmatmul.bf16.gmra.mxu0 %v569
  %v803 = vpop.f32.mrf.mxu0
  %v804 = vadd.f32 %v755, %v803
  %v805 = vpop.f32.mrf.mxu0
  %v806 = vadd.f32 %v757, %v805
  %807 = vmatmul.bf16.gmra.mxu0 %v572
  %v808 = vpop.f32.mrf.mxu0
  %v809 = vadd.f32 %v760, %v808
  %v810 = vpop.f32.mrf.mxu0
  %v811 = vadd.f32 %v762, %v810
  %812 = vmatmul.bf16.gmra.mxu0 %v575
  %v813 = vpop.f32.mrf.mxu0
  %v814 = vadd.f32 %v765, %v813
  %v815 = vpop.f32.mrf.mxu0
  %v816 = vadd.f32 %v767, %v815
  %817 = vmatmul.bf16.gmra.mxu0 %v578
  %v818 = vpop.f32.mrf.mxu0
  %v819 = vadd.f32 %v770, %v818
  %v820 = vpop.f32.mrf.mxu0
  %v821 = vadd.f32 %v772, %v820
  %822 = vmatmul.bf16.gmra.mxu0 %v581
  %v823 = vpop.f32.mrf.mxu0
  %v824 = vadd.f32 %v775, %v823
  %v825 = vpop.f32.mrf.mxu0
  %v826 = vadd.f32 %v777, %v825
  %827 = vdwg.mxu0
  %v828 = vld [vmem:[%s3] sm:$0xff]
  %v829 = vld [vmem:[%s3 + $0x8] sm:$0xff]
  %v830 = vld [vmem:[%s3 + $0x10] sm:$0xff]
  %v831 = vld [vmem:[%s3 + $0x18] sm:$0xff]
  %v832 = vld [vmem:[%s3 + $0x20] sm:$0xff]
  %v833 = vld [vmem:[%s3 + $0x28] sm:$0xff]
  %v834 = vld [vmem:[%s3 + $0x30] sm:$0xff]
  %v835 = vld [vmem:[%s3 + $0x38] sm:$0xff]
  %v836 = vld [vmem:[%s3 + $0x40] sm:$0xff]
  %v837 = vld [vmem:[%s3 + $0x48] sm:$0xff]
  %v838 = vld [vmem:[%s3 + $0x50] sm:$0xff]
  %v839 = vld [vmem:[%s3 + $0x58] sm:$0xff]
  %v840 = vld [vmem:[%s3 + $0x60] sm:$0xff]
  %v841 = vld [vmem:[%s3 + $0x68] sm:$0xff]
  %v842 = vld [vmem:[%s3 + $0x70] sm:$0xff]
  %v843 = vld [vmem:[%s3 + $0x78] sm:$0xff]
  %v844 = vadd.f32 %v789, %v828
  %v845 = vadd.f32 %v791, %v829
  %v846 = vadd.f32 %v794, %v830
  %v847 = vadd.f32 %v796, %v831
  %v848 = vadd.f32 %v799, %v832
  %v849 = vadd.f32 %v801, %v833
  %v850 = vadd.f32 %v804, %v834
  %v851 = vadd.f32 %v806, %v835
  %v852 = vadd.f32 %v809, %v836
  %v853 = vadd.f32 %v811, %v837
  %v854 = vadd.f32 %v814, %v838
  %v855 = vadd.f32 %v816, %v839
  %v856 = vadd.f32 %v819, %v840
  %v857 = vadd.f32 %v821, %v841
  %v858 = vadd.f32 %v824, %v842
  %v859 = vadd.f32 %v826, %v843
  %v860 = vmax.f32 %v844, 0.0
  %v861 = vmax.f32 %v845, 0.0
  %v862 = vmax.f32 %v846, 0.0
  %v863 = vmax.f32 %v847, 0.0
  %v864 = vmax.f32 %v848, 0.0
  %v865 = vmax.f32 %v849, 0.0
  %v866 = vmax.f32 %v850, 0.0
  %v867 = vmax.f32 %v851, 0.0
  %v868 = vmax.f32 %v852, 0.0
  %v869 = vmax.f32 %v853, 0.0
  %v870 = vmax.f32 %v854, 0.0
  %v871 = vmax.f32 %v855, 0.0
  %v872 = vmax.f32 %v856, 0.0
  %v873 = vmax.f32 %v857, 0.0
  %v874 = vmax.f32 %v858, 0.0
  %v875 = vmax.f32 %v859, 0.0
  %876 = vst.msk [vmem:[%s4] sm:$0xff] %vm558, %v860
  %877 = vst.msk [vmem:[%s4 + $0x8] sm:$0xff] %vm558, %v861
  %878 = vst.msk [vmem:[%s4 + $0x10] sm:$0xff] %vm558, %v862
  %879 = vst.msk [vmem:[%s4 + $0x18] sm:$0xff] %vm558, %v863
  %880 = vst.msk [vmem:[%s4 + $0x20] sm:$0xff] %vm558, %v864
  %881 = vst.msk [vmem:[%s4 + $0x28] sm:$0xff] %vm558, %v865
  %882 = vst.msk [vmem:[%s4 + $0x30] sm:$0xff] %vm558, %v866
  %883 = vst.msk [vmem:[%s4 + $0x38] sm:$0xff] %vm558, %v867
  %884 = vst.msk [vmem:[%s4 + $0x40] sm:$0xff] %vm558, %v868
  %885 = vst.msk [vmem:[%s4 + $0x48] sm:$0xff] %vm558, %v869
  %886 = vst.msk [vmem:[%s4 + $0x50] sm:$0xff] %vm558, %v870
  %887 = vst.msk [vmem:[%s4 + $0x58] sm:$0xff] %vm558, %v871
  %888 = vst.msk [vmem:[%s4 + $0x60] sm:$0xff] %vm558, %v872
  %889 = vst.msk [vmem:[%s4 + $0x68] sm:$0xff] %vm558, %v873
  %890 = vst.msk [vmem:[%s4 + $0x70] sm:$0xff] %vm558, %v874
  %891 = vst.msk [vmem:[%s4 + $0x78] sm:$0xff] %vm558, %v875
  // Predicated region
  $region18: #{resnet_forward.14} parent=0 // pred_check
    _
  $region19: #{resnet_forward.14} parent=0 // pred_check_branch
    %893 = sbr.rel (0) target = $region21
  $region20: #{resnet_forward.14} parent=0 // pred_region
    _
  $region21: #{resnet_forward.14} parent=0 // pred_fallthru
    _
  // Predicated region
  $region22: #{resnet_forward.14} parent=0 // pred_check
    _
  $region23: #{resnet_forward.14} parent=0 // pred_check_branch
    %895 = sbr.rel (0) target = $region25
  $region24: #{resnet_forward.14} parent=0 // pred_region
    _
  $region25: #{resnet_forward.14} parent=0 // pred_fallthru
    _

// kernel: resnet_forward.15
$region0: #{resnet_forward.15}
  #allocation0 [shape = 'u32[]', space=smem, size = 0x4, offset = 0x4, fixed_abs, tag = 'smem constant byte address 0x4 - core index']
  #allocation1 [shape = 'u32[72,128]{1,0:T(1,128)}', space=vmem, size = 0x9000, scoped, tag = 'internal scratch']
  %s0 = inlined_call_operand.vmem [shape: bf16[32,576], index: 0, kind: input, shape index: {}]
  %s1 = inlined_call_operand.vmem [shape: bf16[576,128], index: 1, kind: input, shape index: {}]
  %s2 = inlined_call_operand.vmem [shape: f32[1,128], index: 2, kind: input, shape index: {}]
  %s3 = inlined_call_operand.vmem [shape: f32[32,128], index: 3, kind: output, shape index: {}]
  %s4 = sld [smem:[#allocation0]]
  $region22: #{resnet_forward.15} parent=0
    _
  %s6 = ssub.s32 1, %s4
  %s7 = scalar_select 0, %s6, %s4
  // Predicated region
  $region2: #{resnet_forward.15} parent=0 // pred_check
    _
  $region3: #{resnet_forward.15} parent=0 // pred_check_branch
    %9 = sbr.rel (0) target = $region5
  $region4: #{resnet_forward.15} parent=0 // pred_region
    _
  $region5: #{resnet_forward.15} parent=0 // pred_fallthru
    _
  // Predicated region
  $region6: #{resnet_forward.15} parent=0 // pred_check
    _
  $region7: #{resnet_forward.15} parent=0 // pred_check_branch
    %11 = sbr.rel (0) target = $region9
  $region8: #{resnet_forward.15} parent=0 // pred_region
    _
  $region9: #{resnet_forward.15} parent=0 // pred_fallthru
    _
  // Predicated region
  $region10: #{resnet_forward.15} parent=0 // pred_check
    _
  $region11: #{resnet_forward.15} parent=0 // pred_check_branch
    %13 = sbr.rel (0) target = $region13
  $region12: #{resnet_forward.15} parent=0 // pred_region
    _
  $region13: #{resnet_forward.15} parent=0 // pred_fallthru
    _
  %v15 = vld [vmem:[%s0] sm:$0xff]
  %v16 = vld [vmem:[%s0 + $0x8] sm:$0xff]
  %v17 = vld [vmem:[%s0 + $0x10] sm:$0xf]
  %v18 = vld [vmem:[%s0 + $0x14] sm:$0xff]
  %v19 = vld [vmem:[%s0 + $0x1c] sm:$0xff]
  %v20 = vld [vmem:[%s0 + $0x24] sm:$0xf]
  %v21 = vld [vmem:[%s0 + $0x28] sm:$0xff]
  %v22 = vld [vmem:[%s0 + $0x30] sm:$0xff]
  %v23 = vld [vmem:[%s0 + $0x38] sm:$0xf]
  %v24 = vld [vmem:[%s0 + $0x3c] sm:$0xff]
  %v25 = vld [vmem:[%s0 + $0x44] sm:$0xff]
  %v26 = vld [vmem:[%s0 + $0x4c] sm:$0xf]
  %v27 = vld [vmem:[%s1] sm:$0xf]
  %v28 = vld [vmem:[%s1 + $0x4] sm:$0xf]
  %v29 = vld [vmem:[%s1 + $0x8] sm:$0xf]
  %v30 = vld [vmem:[%s1 + $0xc] sm:$0xf]
  %v31 = vld [vmem:[%s1 + $0x10] sm:$0xf]
  %v32 = vld [vmem:[%s1 + $0x14] sm:$0xf]
  %v33 = vld [vmem:[%s1 + $0x18] sm:$0xf]
  %v34 = vld [vmem:[%s1 + $0x1c] sm:$0xf]
  %v35 = vld [vmem:[%s1 + $0x20] sm:$0xf]
  %v36 = vld [vmem:[%s1 + $0x24] sm:$0xf]
  %v37 = vld [vmem:[%s1 + $0x28] sm:$0xf]
  %v38 = vld [vmem:[%s1 + $0x2c] sm:$0xf]
  %v39 = vld [vmem:[%s1 + $0x30] sm:$0xf]
  %v40 = vld [vmem:[%s1 + $0x34] sm:$0xf]
  %v41 = vld [vmem:[%s1 + $0x38] sm:$0xf]
  %v42 = vld [vmem:[%s1 + $0x3c] sm:$0xf]
  %v43 = vld [vmem:[%s1 + $0x40] sm:$0xf]
  %v44 = vld [vmem:[%s1 + $0x44] sm:$0xf]
  %v45 = vld [vmem:[%s1 + $0x48] sm:$0xf]
  %v46 = vld [vmem:[%s1 + $0x4c] sm:$0xf]
  %v47 = vld [vmem:[%s1 + $0x50] sm:$0xf]
  %v48 = vld [vmem:[%s1 + $0x54] sm:$0xf]
  %v49 = vld [vmem:[%s1 + $0x58] sm:$0xf]
  %v50 = vld [vmem:[%s1 + $0x5c] sm:$0xf]
  %v51 = vld [vmem:[%s1 + $0x60] sm:$0xf]
  %v52 = vld [vmem:[%s1 + $0x64] sm:$0xf]
  %v53 = vld [vmem:[%s1 + $0x68] sm:$0xf]
  %v54 = vld [vmem:[%s1 + $0x6c] sm:$0xf]
  %v55 = vld [vmem:[%s1 + $0x70] sm:$0xf]
  %v56 = vld [vmem:[%s1 + $0x74] sm:$0xf]
  %v57 = vld [vmem:[%s1 + $0x78] sm:$0xf]
  %v58 = vld [vmem:[%s1 + $0x7c] sm:$0xf]
  %v59 = vld [vmem:[%s1 + $0x80] sm:$0xf]
  %v60 = vld [vmem:[%s1 + $0x84] sm:$0xf]
  %v61 = vld [vmem:[%s1 + $0x88] sm:$0xf]
  %v62 = vld [vmem:[%s1 + $0x8c] sm:$0xf]
  %v63 = vld [vmem:[%s1 + $0x90] sm:$0xf]
  %v64 = vld [vmem:[%s1 + $0x94] sm:$0xf]
  %v65 = vld [vmem:[%s1 + $0x98] sm:$0xf]
  %v66 = vld [vmem:[%s1 + $0x9c] sm:$0xf]
  %v67 = vld [vmem:[%s1 + $0xa0] sm:$0xf]
  %v68 = vld [vmem:[%s1 + $0xa4] sm:$0xf]
  %v69 = vld [vmem:[%s1 + $0xa8] sm:$0xf]
  %v70 = vld [vmem:[%s1 + $0xac] sm:$0xf]
  %v71 = vld [vmem:[%s1 + $0xb0] sm:$0xf]
  %v72 = vld [vmem:[%s1 + $0xb4] sm:$0xf]
  %v73 = vld [vmem:[%s1 + $0xb8] sm:$0xf]
  %v74 = vld [vmem:[%s1 + $0xbc] sm:$0xf]
  %v75 = vld [vmem:[%s1 + $0xc0] sm:$0xf]
  %v76 = vld [vmem:[%s1 + $0xc4] sm:$0xf]
  %v77 = vld [vmem:[%s1 + $0xc8] sm:$0xf]
  %v78 = vld [vmem:[%s1 + $0xcc] sm:$0xf]
  %v79 = vld [vmem:[%s1 + $0xd0] sm:$0xf]
  %v80 = vld [vmem:[%s1 + $0xd4] sm:$0xf]
  %v81 = vld [vmem:[%s1 + $0xd8] sm:$0xf]
  %v82 = vld [vmem:[%s1 + $0xdc] sm:$0xf]
  %v83 = vld [vmem:[%s1 + $0xe0] sm:$0xf]
  %v84 = vld [vmem:[%s1 + $0xe4] sm:$0xf]
  %v85 = vld [vmem:[%s1 + $0xe8] sm:$0xf]
  %v86 = vld [vmem:[%s1 + $0xec] sm:$0xf]
  %v87 = vld [vmem:[%s1 + $0xf0] sm:$0xf]
  %v88 = vld [vmem:[%s1 + $0xf4] sm:$0xf]
  %v89 = vld [vmem:[%s1 + $0xf8] sm:$0xf]
  %v90 = vld [vmem:[%s1 + $0xfc] sm:$0xf]
  %v91 = vld [vmem:[%s1 + $0x100] sm:$0xf]
  %v92 = vld [vmem:[%s1 + $0x104] sm:$0xf]
  %v93 = vld [vmem:[%s1 + $0x108] sm:$0xf]
  %v94 = vld [vmem:[%s1 + $0x10c] sm:$0xf]
  %v95 = vld [vmem:[%s1 + $0x110] sm:$0xf]
  %v96 = vld [vmem:[%s1 + $0x114] sm:$0xf]
  %v97 = vld [vmem:[%s1 + $0x118] sm:$0xf]
  %v98 = vld [vmem:[%s1 + $0x11c] sm:$0xf]
  %v99 = vld [vmem:[%s2] sm:$0x1]
  %v101 = vperm.slane %v99, 0
  %v115 = vunpack.c.l.b16 %v15
  %v116 = vunpack.c.h.b16 %v15
  %v117 = vunpack.c.l.b16 %v16
  %v118 = vunpack.c.h.b16 %v16
  %v119 = vunpack.c.l.b16 %v17
  %v120 = vunpack.c.l.b16 %v18
  %v121 = vunpack.c.h.b16 %v18
  %v122 = vunpack.c.l.b16 %v19
  %v123 = vunpack.c.h.b16 %v19
  %v124 = vunpack.c.l.b16 %v20
  %v125 = vunpack.c.l.b16 %v21
  %v126 = vunpack.c.h.b16 %v21
  %v127 = vunpack.c.l.b16 %v22
  %v128 = vunpack.c.h.b16 %v22
  %v129 = vunpack.c.l.b16 %v23
  %v130 = vunpack.c.l.b16 %v24
  %v131 = vunpack.c.h.b16 %v24
  %v132 = vunpack.c.l.b16 %v25
  %v133 = vunpack.c.h.b16 %v25
  %v134 = vunpack.c.l.b16 %v26
  %v135 = vpack.c.b16 %v120, %v115
  %v136 = vpack.c.b16 %v121, %v116
  %v137 = vpack.c.b16 %v122, %v117
  %v138 = vpack.c.b16 %v123, %v118
  %v139 = vpack.c.b16 %v124, %v119
  %v140 = vpack.c.b16 %v130, %v125
  %v141 = vpack.c.b16 %v131, %v126
  %v142 = vpack.c.b16 %v132, %v127
  %v143 = vpack.c.b16 %v133, %v128
  %v144 = vpack.c.b16 %v134, %v129
  %v225 = vunpack.c.l.b16 %v27
  %v226 = vunpack.c.l.b16 %v28
  %v227 = vunpack.c.l.b16 %v29
  %v228 = vunpack.c.l.b16 %v30
  %v229 = vunpack.c.l.b16 %v31
  %v230 = vunpack.c.l.b16 %v32
  %v231 = vunpack.c.l.b16 %v33
  %v232 = vunpack.c.l.b16 %v34
  %v233 = vunpack.c.l.b16 %v35
  %v234 = vunpack.c.l.b16 %v36
  %v235 = vunpack.c.l.b16 %v37
  %v236 = vunpack.c.l.b16 %v38
  %v237 = vunpack.c.l.b16 %v39
  %v238 = vunpack.c.l.b16 %v40
  %v239 = vunpack.c.l.b16 %v41
  %v240 = vunpack.c.l.b16 %v42
  %v241 = vunpack.c.l.b16 %v43
  %v242 = vunpack.c.l.b16 %v44
  %v243 = vunpack.c.l.b16 %v45
  %v244 = vunpack.c.l.b16 %v46
  %v245 = vunpack.c.l.b16 %v47
  %v246 = vunpack.c.l.b16 %v48
  %v247 = vunpack.c.l.b16 %v49
  %v248 = vunpack.c.l.b16 %v50
  %v249 = vunpack.c.l.b16 %v51
  %v250 = vunpack.c.l.b16 %v52
  %v251 = vunpack.c.l.b16 %v53
  %v252 = vunpack.c.l.b16 %v54
  %v253 = vunpack.c.l.b16 %v55
  %v254 = vunpack.c.l.b16 %v56
  %v255 = vunpack.c.l.b16 %v57
  %v256 = vunpack.c.l.b16 %v58
  %v257 = vunpack.c.l.b16 %v59
  %v258 = vunpack.c.l.b16 %v60
  %v259 = vunpack.c.l.b16 %v61
  %v260 = vunpack.c.l.b16 %v62
  %v261 = vunpack.c.l.b16 %v63
  %v262 = vunpack.c.l.b16 %v64
  %v263 = vunpack.c.l.b16 %v65
  %v264 = vunpack.c.l.b16 %v66
  %v265 = vunpack.c.l.b16 %v67
  %v266 = vunpack.c.l.b16 %v68
  %v267 = vunpack.c.l.b16 %v69
  %v268 = vunpack.c.l.b16 %v70
  %v269 = vunpack.c.l.b16 %v71
  %v270 = vunpack.c.l.b16 %v72
  %v271 = vunpack.c.l.b16 %v73
  %v272 = vunpack.c.l.b16 %v74
  %v273 = vunpack.c.l.b16 %v75
  %v274 = vunpack.c.l.b16 %v76
  %v275 = vunpack.c.l.b16 %v77
  %v276 = vunpack.c.l.b16 %v78
  %v277 = vunpack.c.l.b16 %v79
  %v278 = vunpack.c.l.b16 %v80
  %v279 = vunpack.c.l.b16 %v81
  %v280 = vunpack.c.l.b16 %v82
  %v281 = vunpack.c.l.b16 %v83
  %v282 = vunpack.c.l.b16 %v84
  %v283 = vunpack.c.l.b16 %v85
  %v284 = vunpack.c.l.b16 %v86
  %v285 = vunpack.c.l.b16 %v87
  %v286 = vunpack.c.l.b16 %v88
  %v287 = vunpack.c.l.b16 %v89
  %v288 = vunpack.c.l.b16 %v90
  %v289 = vunpack.c.l.b16 %v91
  %v290 = vunpack.c.l.b16 %v92
  %v291 = vunpack.c.l.b16 %v93
  %v292 = vunpack.c.l.b16 %v94
  %v293 = vunpack.c.l.b16 %v95
  %v294 = vunpack.c.l.b16 %v96
  %v295 = vunpack.c.l.b16 %v97
  %v296 = vunpack.c.l.b16 %v98
  %v297 = vpack.c.b16 %v226, %v225
  %v298 = vpack.c.b16 %v228, %v227
  %v299 = vpack.c.b16 %v230, %v229
  %v300 = vpack.c.b16 %v232, %v231
  %v301 = vpack.c.b16 %v234, %v233
  %v302 = vpack.c.b16 %v236, %v235
  %v303 = vpack.c.b16 %v238, %v237
  %v304 = vpack.c.b16 %v240, %v239
  %v305 = vpack.c.b16 %v242, %v241
  %v306 = vpack.c.b16 %v244, %v243
  %v307 = vpack.c.b16 %v246, %v245
  %v308 = vpack.c.b16 %v248, %v247
  %v309 = vpack.c.b16 %v250, %v249
  %v310 = vpack.c.b16 %v252, %v251
  %v311 = vpack.c.b16 %v254, %v253
  %v312 = vpack.c.b16 %v256, %v255
  %v313 = vpack.c.b16 %v258, %v257
  %v314 = vpack.c.b16 %v260, %v259
  %v315 = vpack.c.b16 %v262, %v261
  %v316 = vpack.c.b16 %v264, %v263
  %v317 = vpack.c.b16 %v266, %v265
  %v318 = vpack.c.b16 %v268, %v267
  %v319 = vpack.c.b16 %v270, %v269
  %v320 = vpack.c.b16 %v272, %v271
  %v321 = vpack.c.b16 %v274, %v273
  %v322 = vpack.c.b16 %v276, %v275
  %v323 = vpack.c.b16 %v278, %v277
  %v324 = vpack.c.b16 %v280, %v279
  %v325 = vpack.c.b16 %v282, %v281
  %v326 = vpack.c.b16 %v284, %v283
  %v327 = vpack.c.b16 %v286, %v285
  %v328 = vpack.c.b16 %v288, %v287
  %v329 = vpack.c.b16 %v290, %v289
  %v330 = vpack.c.b16 %v292, %v291
  %v331 = vpack.c.b16 %v294, %v293
  %v332 = vpack.c.b16 %v296, %v295
  %vm369 = vcmask 523264
  %v371 = vsel %vm369, %v139, 0
  %v374 = vsel %vm369, %v144, 0
  %376 = vmatpush.bf16.msra.mxu0 %v304
  %377 = vmatpush.bf16.msra.mxu0 %v303
  %378 = vmatpush.bf16.msra.mxu0 %v302
  %379 = vmatpush.bf16.msra.mxu0 %v301
  %380 = vmatpush.bf16.msra.mxu0 %v300
  %381 = vmatpush.bf16.msra.mxu0 %v299
  %382 = vmatpush.bf16.msra.mxu0 %v298
  %383 = vmatpush.bf16.msra.mxu0 %v297
  %384 = vmatmul.bf16.gmra.mxu0 %v135
  %v385 = vpop.f32.mrf.mxu0
  %v386 = vadd.f32 %v101, %v385
  %v387 = vpop.f32.mrf.mxu0
  %v388 = vadd.f32 %v101, %v387
  %389 = vmatmul.bf16.gmra.mxu0 %v140
  %v390 = vpop.f32.mrf.mxu0
  %v391 = vadd.f32 %v101, %v390
  %v392 = vpop.f32.mrf.mxu0
  %v393 = vadd.f32 %v101, %v392
  %394 = vdwg.mxu0
  %395 = vmatpush.bf16.msra.mxu0 %v312
  %396 = vmatpush.bf16.msra.mxu0 %v311
  %397 = vmatpush.bf16.msra.mxu0 %v310
  %398 = vmatpush.bf16.msra.mxu0 %v309
  %399 = vmatpush.bf16.msra.mxu0 %v308
  %400 = vmatpush.bf16.msra.mxu0 %v307
  %401 = vmatpush.bf16.msra.mxu0 %v306
  %402 = vmatpush.bf16.msra.mxu0 %v305
  %403 = vmatmul.bf16.gmra.mxu0 %v136
  %v404 = vpop.f32.mrf.mxu0
  %v405 = vadd.f32 %v386, %v404
  %v406 = vpop.f32.mrf.mxu0
  %v407 = vadd.f32 %v388, %v406
  %408 = vmatmul.bf16.gmra.mxu0 %v141
  %v409 = vpop.f32.mrf.mxu0
  %v410 = vadd.f32 %v391, %v409
  %v411 = vpop.f32.mrf.mxu0
  %v412 = vadd.f32 %v393, %v411
  %413 = vdwg.mxu0
  %414 = vmatpush.bf16.msra.mxu0 %v320
  %415 = vmatpush.bf16.msra.mxu0 %v319
  %416 = vmatpush.bf16.msra.mxu0 %v318
  %417 = vmatpush.bf16.msra.mxu0 %v317
  %418 = vmatpush.bf16.msra.mxu0 %v316
  %419 = vmatpush.bf16.msra.mxu0 %v315
  %420 = vmatpush.bf16.msra.mxu0 %v314
  %421 = vmatpush.bf16.msra.mxu0 %v313
  %422 = vmatmul.bf16.gmra.mxu0 %v137
  %v423 = vpop.f32.mrf.mxu0
  %v424 = vadd.f32 %v405, %v423
  %v425 = vpop.f32.mrf.mxu0
  %v426 = vadd.f32 %v407, %v425
  %427 = vmatmul.bf16.gmra.mxu0 %v142
  %v428 = vpop.f32.mrf.mxu0
  %v429 = vadd.f32 %v410, %v428
  %v430 = vpop.f32.mrf.mxu0
  %v431 = vadd.f32 %v412, %v430
  %432 = vdwg.mxu0
  %433 = vmatpush.bf16.msra.mxu0 %v328
  %434 = vmatpush.bf16.msra.mxu0 %v327
  %435 = vmatpush.bf16.msra.mxu0 %v326
  %436 = vmatpush.bf16.msra.mxu0 %v325
  %437 = vmatpush.bf16.msra.mxu0 %v324
  %438 = vmatpush.bf16.msra.mxu0 %v323
  %439 = vmatpush.bf16.msra.mxu0 %v322
  %440 = vmatpush.bf16.msra.mxu0 %v321
  %441 = vmatmul.bf16.gmra.mxu0 %v138
  %v442 = vpop.f32.mrf.mxu0
  %v443 = vadd.f32 %v424, %v442
  %v444 = vpop.f32.mrf.mxu0
  %v445 = vadd.f32 %v426, %v444
  %446 = vmatmul.bf16.gmra.mxu0 %v143
  %v447 = vpop.f32.mrf.mxu0
  %v448 = vadd.f32 %v429, %v447
  %v449 = vpop.f32.mrf.mxu0
  %v450 = vadd.f32 %v431, %v449
  %451 = vdwg.mxu0
  %452 = vmatpush.bf16.msra.mxu0 0
  %453 = vmatpush.bf16.msra.mxu0 0
  %454 = vmatpush.bf16.msra.mxu0 0
  %455 = vmatpush.bf16.msra.mxu0 0
  %456 = vmatpush.bf16.msra.mxu0 %v332
  %457 = vmatpush.bf16.msra.mxu0 %v331
  %458 = vmatpush.bf16.msra.mxu0 %v330
  %459 = vmatpush.bf16.msra.mxu0 %v329
  %460 = vmatmul.bf16.gmra.mxu0 %v371
  %v461 = vpop.f32.mrf.mxu0
  %v462 = vadd.f32 %v443, %v461
  %v463 = vpop.f32.mrf.mxu0
  %v464 = vadd.f32 %v445, %v463
  %465 = vmatmul.bf16.gmra.mxu0 %v374
  %v466 = vpop.f32.mrf.mxu0
  %v467 = vadd.f32 %v448, %v466
  %v468 = vpop.f32.mrf.mxu0
  %v469 = vadd.f32 %v450, %v468
  %470 = vdwg.mxu0
  %v471 = vmax.f32 %v462, 0.0
  %v472 = vmax.f32 %v464, 0.0
  %v473 = vmax.f32 %v467, 0.0
  %v474 = vmax.f32 %v469, 0.0
  %475 = vst [vmem:[%s3] sm:$0xff] %v471
  %476 = vst [vmem:[%s3 + $0x8] sm:$0xff] %v472
  %477 = vst [vmem:[%s3 + $0x10] sm:$0xff] %v473
  %478 = vst [vmem:[%s3 + $0x18] sm:$0xff] %v474
  // Predicated region
  $region14: #{resnet_forward.15} parent=0 // pred_check
    _
  $region15: #{resnet_forward.15} parent=0 // pred_check_branch
    %480 = sbr.rel (0) target = $region17
  $region16: #{resnet_forward.15} parent=0 // pred_region
    _
  $region17: #{resnet_forward.15} parent=0 // pred_fallthru
    _
  // Predicated region
  $region18: #{resnet_forward.15} parent=0 // pred_check
    _
  $region19: #{resnet_forward.15} parent=0 // pred_check_branch
    %482 = sbr.rel (0) target = $region21
  $region20: #{resnet_forward.15} parent=0 // pred_region
    _
  $region21: #{resnet_forward.15} parent=0 // pred_fallthru
    _

// kernel: resnet_forward.16
$region0: #{resnet_forward.16}
  #allocation0 [shape = 'u32[]', space=smem, size = 0x4, offset = 0x4, fixed_abs, tag = 'smem constant byte address 0x4 - core index']
  #allocation1 [shape = 'u32[72,128]{1,0:T(1,128)}', space=vmem, size = 0x9000, scoped, tag = 'internal scratch']
  %s0 = inlined_call_operand.vmem [shape: bf16[32,64], index: 0, kind: input, shape index: {}]
  %s1 = inlined_call_operand.vmem [shape: bf16[64,128], index: 1, kind: input, shape index: {}]
  %s2 = inlined_call_operand.vmem [shape: f32[1,128], index: 2, kind: input, shape index: {}]
  %s3 = inlined_call_operand.vmem [shape: f32[32,128], index: 3, kind: output, shape index: {}]
  %s4 = sld [smem:[#allocation0]]
  $region22: #{resnet_forward.16} parent=0
    _
  %s6 = ssub.s32 1, %s4
  %s7 = scalar_select 0, %s6, %s4
  // Predicated region
  $region2: #{resnet_forward.16} parent=0 // pred_check
    _
  $region3: #{resnet_forward.16} parent=0 // pred_check_branch
    %9 = sbr.rel (0) target = $region5
  $region4: #{resnet_forward.16} parent=0 // pred_region
    _
  $region5: #{resnet_forward.16} parent=0 // pred_fallthru
    _
  // Predicated region
  $region6: #{resnet_forward.16} parent=0 // pred_check
    _
  $region7: #{resnet_forward.16} parent=0 // pred_check_branch
    %11 = sbr.rel (0) target = $region9
  $region8: #{resnet_forward.16} parent=0 // pred_region
    _
  $region9: #{resnet_forward.16} parent=0 // pred_fallthru
    _
  // Predicated region
  $region10: #{resnet_forward.16} parent=0 // pred_check
    _
  $region11: #{resnet_forward.16} parent=0 // pred_check_branch
    %13 = sbr.rel (0) target = $region13
  $region12: #{resnet_forward.16} parent=0 // pred_region
    _
  $region13: #{resnet_forward.16} parent=0 // pred_fallthru
    _
  %v15 = vld [vmem:[%s0] sm:$0xf]
  %v16 = vld [vmem:[%s0 + $0x4] sm:$0xf]
  %v17 = vld [vmem:[%s0 + $0x8] sm:$0xf]
  %v18 = vld [vmem:[%s0 + $0xc] sm:$0xf]
  %v19 = vld [vmem:[%s1] sm:$0xf]
  %v20 = vld [vmem:[%s1 + $0x4] sm:$0xf]
  %v21 = vld [vmem:[%s1 + $0x8] sm:$0xf]
  %v22 = vld [vmem:[%s1 + $0xc] sm:$0xf]
  %v23 = vld [vmem:[%s1 + $0x10] sm:$0xf]
  %v24 = vld [vmem:[%s1 + $0x14] sm:$0xf]
  %v25 = vld [vmem:[%s1 + $0x18] sm:$0xf]
  %v26 = vld [vmem:[%s1 + $0x1c] sm:$0xf]
  %v27 = vld [vmem:[%s2] sm:$0x1]
  %v29 = vperm.slane %v27, 0
  %v35 = vunpack.c.l.b16 %v15
  %v36 = vunpack.c.l.b16 %v16
  %v37 = vunpack.c.l.b16 %v17
  %v38 = vunpack.c.l.b16 %v18
  %v39 = vpack.c.b16 %v36, %v35
  %v40 = vpack.c.b16 %v38, %v37
  %v49 = vunpack.c.l.b16 %v19
  %v50 = vunpack.c.l.b16 %v20
  %v51 = vunpack.c.l.b16 %v21
  %v52 = vunpack.c.l.b16 %v22
  %v53 = vunpack.c.l.b16 %v23
  %v54 = vunpack.c.l.b16 %v24
  %v55 = vunpack.c.l.b16 %v25
  %v56 = vunpack.c.l.b16 %v26
  %v57 = vpack.c.b16 %v50, %v49
  %v58 = vpack.c.b16 %v52, %v51
  %v59 = vpack.c.b16 %v54, %v53
  %v60 = vpack.c.b16 %v56, %v55
  %vm65 = vcmask 523264
  %v67 = vsel %vm65, %v39, 0
  %v70 = vsel %vm65, %v40, 0
  %72 = vmatpush.bf16.msra.mxu0 0
  %73 = vmatpush.bf16.msra.mxu0 0
  %74 = vmatpush.bf16.msra.mxu0 0
  %75 = vmatpush.bf16.msra.mxu0 0
  %76 = vmatpush.bf16.msra.mxu0 %v60
  %77 = vmatpush.bf16.msra.mxu0 %v59
  %78 = vmatpush.bf16.msra.mxu0 %v58
  %79 = vmatpush.bf16.msra.mxu0 %v57
  %80 = vmatmul.bf16.gmra.mxu0 %v67
  %v81 = vpop.f32.mrf.mxu0
  %v82 = vadd.f32 %v29, %v81
  %v83 = vpop.f32.mrf.mxu0
  %v84 = vadd.f32 %v29, %v83
  %85 = vmatmul.bf16.gmra.mxu0 %v70
  %v86 = vpop.f32.mrf.mxu0
  %v87 = vadd.f32 %v29, %v86
  %v88 = vpop.f32.mrf.mxu0
  %v89 = vadd.f32 %v29, %v88
  %90 = vdwg.mxu0
  %91 = vst [vmem:[%s3] sm:$0xff] %v82
  %92 = vst [vmem:[%s3 + $0x8] sm:$0xff] %v84
  %93 = vst [vmem:[%s3 + $0x10] sm:$0xff] %v87
  %94 = vst [vmem:[%s3 + $0x18] sm:$0xff] %v89
  // Predicated region
  $region14: #{resnet_forward.16} parent=0 // pred_check
    _
  $region15: #{resnet_forward.16} parent=0 // pred_check_branch
    %96 = sbr.rel (0) target = $region17
  $region16: #{resnet_forward.16} parent=0 // pred_region
    _
  $region17: #{resnet_forward.16} parent=0 // pred_fallthru
    _
  // Predicated region
  $region18: #{resnet_forward.16} parent=0 // pred_check
    _
  $region19: #{resnet_forward.16} parent=0 // pred_check_branch
    %98 = sbr.rel (0) target = $region21
  $region20: #{resnet_forward.16} parent=0 // pred_region
    _
  $region21: #{resnet_forward.16} parent=0 // pred_fallthru
    _

// kernel: resnet_forward.17
$region0: #{resnet_forward.17}
  #allocation0 [shape = 'u32[]', space=smem, size = 0x4, offset = 0x4, fixed_abs, tag = 'smem constant byte address 0x4 - core index']
  #allocation1 [shape = 'u32[72,128]{1,0:T(1,128)}', space=vmem, size = 0x9000, scoped, tag = 'internal scratch']
  %s0 = inlined_call_operand.vmem [shape: bf16[32,1152], index: 0, kind: input, shape index: {}]
  %s1 = inlined_call_operand.vmem [shape: bf16[1152,128], index: 1, kind: input, shape index: {}]
  %s2 = inlined_call_operand.vmem [shape: f32[1,128], index: 2, kind: input, shape index: {}]
  %s3 = inlined_call_operand.vmem [shape: f32[32,128], index: 3, kind: input, shape index: {}]
  %s4 = inlined_call_operand.vmem [shape: f32[32,128], index: 4, kind: output, shape index: {}]
  %s5 = sld [smem:[#allocation0]]
  $region26: #{resnet_forward.17} parent=0
    _
  %s7 = ssub.s32 1, %s5
  %s8 = scalar_select 0, %s7, %s5
  // Predicated region
  $region2: #{resnet_forward.17} parent=0 // pred_check
    _
  $region3: #{resnet_forward.17} parent=0 // pred_check_branch
    %10 = sbr.rel (0) target = $region5
  $region4: #{resnet_forward.17} parent=0 // pred_region
    _
  $region5: #{resnet_forward.17} parent=0 // pred_fallthru
    _
  // Predicated region
  $region6: #{resnet_forward.17} parent=0 // pred_check
    _
  $region7: #{resnet_forward.17} parent=0 // pred_check_branch
    %12 = sbr.rel (0) target = $region9
  $region8: #{resnet_forward.17} parent=0 // pred_region
    _
  $region9: #{resnet_forward.17} parent=0 // pred_fallthru
    _
  // Predicated region
  $region10: #{resnet_forward.17} parent=0 // pred_check
    _
  $region11: #{resnet_forward.17} parent=0 // pred_check_branch
    %14 = sbr.rel (0) target = $region13
  $region12: #{resnet_forward.17} parent=0 // pred_region
    _
  $region13: #{resnet_forward.17} parent=0 // pred_fallthru
    _
  // Predicated region
  $region14: #{resnet_forward.17} parent=0 // pred_check
    _
  $region15: #{resnet_forward.17} parent=0 // pred_check_branch
    %16 = sbr.rel (0) target = $region17
  $region16: #{resnet_forward.17} parent=0 // pred_region
    _
  $region17: #{resnet_forward.17} parent=0 // pred_fallthru
    _
  %v17 = vld [vmem:[%s0] sm:$0xff]
  %v18 = vld [vmem:[%s0 + $0x8] sm:$0xff]
  %v19 = vld [vmem:[%s0 + $0x10] sm:$0xff]
  %v20 = vld [vmem:[%s0 + $0x18] sm:$0xff]
  %v21 = vld [vmem:[%s0 + $0x20] sm:$0xf]
  %v22 = vld [vmem:[%s0 + $0x24] sm:$0xff]
  %v23 = vld [vmem:[%s0 + $0x2c] sm:$0xff]
  %v24 = vld [vmem:[%s0 + $0x34] sm:$0xff]
  %v25 = vld [vmem:[%s0 + $0x3c] sm:$0xff]
  %v26 = vld [vmem:[%s0 + $0x44] sm:$0xf]
  %v27 = vld [vmem:[%s0 + $0x48] sm:$0xff]
  %v28 = vld [vmem:[%s0 + $0x50] sm:$0xff]
  %v29 = vld [vmem:[%s0 + $0x58] sm:$0xff]
  %v30 = vld [vmem:[%s0 + $0x60] sm:$0xff]
  %v31 = vld [vmem:[%s0 + $0x68] sm:$0xf]
  %v32 = vld [vmem:[%s0 + $0x6c] sm:$0xff]
  %v33 = vld [vmem:[%s0 + $0x74] sm:$0xff]
  %v34 = vld [vmem:[%s0 + $0x7c] sm:$0xff]
  %v35 = vld [vmem:[%s0 + $0x84] sm:$0xff]
  %v36 = vld [vmem:[%s0 + $0x8c] sm:$0xf]
  %v37 = vld [vmem:[%s1] sm:$0xf]
  %v38 = vld [vmem:[%s1 + $0x4] sm:$0xf]
  %v39 = vld [vmem:[%s1 + $0x8] sm:$0xf]
  %v40 = vld [vmem:[%s1 + $0xc] sm:$0xf]
  %v41 = vld [vmem:[%s1 + $0x10] sm:$0xf]
  %v42 = vld [vmem:[%s1 + $0x14] sm:$0xf]
  %v43 = vld [vmem:[%s1 + $0x18] sm:$0xf]
  %v44 = vld [vmem:[%s1 + $0x1c] sm:$0xf]
  %v45 = vld [vmem:[%s1 + $0x20] sm:$0xf]
  %v46 = vld [vmem:[%s1 + $0x24] sm:$0xf]
  %v47 = vld [vmem:[%s1 + $0x28] sm:$0xf]
  %v48 = vld [vmem:[%s1 + $0x2c] sm:$0xf]
  %v49 = vld [vmem:[%s1 + $0x30] sm:$0xf]
  %v50 = vld [vmem:[%s1 + $0x34] sm:$0xf]
  %v51 = vld [vmem:[%s1 + $0x38] sm:$0xf]
  %v52 = vld [vmem:[%s1 + $0x3c] sm:$0xf]
  %v53 = vld [vmem:[%s1 + $0x40] sm:$0xf]
  %v54 = vld [vmem:[%s1 + $0x44] sm:$0xf]
  %v55 = vld [vmem:[%s1 + $0x48] sm:$0xf]
  %v56 = vld [vmem:[%s1 + $0x4c] sm:$0xf]
  %v57 = vld [vmem:[%s1 + $0x50] sm:$0xf]
  %v58 = vld [vmem:[%s1 + $0x54] sm:$0xf]
  %v59 = vld [vmem:[%s1 + $0x58] sm:$0xf]
  %v60 = vld [vmem:[%s1 + $0x5c] sm:$0xf]
  %v61 = vld [vmem:[%s1 + $0x60] sm:$0xf]
  %v62 = vld [vmem:[%s1 + $0x64] sm:$0xf]
  %v63 = vld [vmem:[%s1 + $0x68] sm:$0xf]
  %v64 = vld [vmem:[%s1 + $0x6c] sm:$0xf]
  %v65 = vld [vmem:[%s1 + $0x70] sm:$0xf]
  %v66 = vld [vmem:[%s1 + $0x74] sm:$0xf]
  %v67 = vld [vmem:[%s1 + $0x78] sm:$0xf]
  %v68 = vld [vmem:[%s1 + $0x7c] sm:$0xf]
  %v69 = vld [vmem:[%s1 + $0x80] sm:$0xf]
  %v70 = vld [vmem:[%s1 + $0x84] sm:$0xf]
  %v71 = vld [vmem:[%s1 + $0x88] sm:$0xf]
  %v72 = vld [vmem:[%s1 + $0x8c] sm:$0xf]
  %v73 = vld [vmem:[%s1 + $0x90] sm:$0xf]
  %v74 = vld [vmem:[%s1 + $0x94] sm:$0xf]
  %v75 = vld [vmem:[%s1 + $0x98] sm:$0xf]
  %v76 = vld [vmem:[%s1 + $0x9c] sm:$0xf]
  %v77 = vld [vmem:[%s1 + $0xa0] sm:$0xf]
  %v78 = vld [vmem:[%s1 + $0xa4] sm:$0xf]
  %v79 = vld [vmem:[%s1 + $0xa8] sm:$0xf]
  %v80 = vld [vmem:[%s1 + $0xac] sm:$0xf]
  %v81 = vld [vmem:[%s1 + $0xb0] sm:$0xf]
  %v82 = vld [vmem:[%s1 + $0xb4] sm:$0xf]
  %v83 = vld [vmem:[%s1 + $0xb8] sm:$0xf]
  %v84 = vld [vmem:[%s1 + $0xbc] sm:$0xf]
  %v85 = vld [vmem:[%s1 + $0xc0] sm:$0xf]
  %v86 = vld [vmem:[%s1 + $0xc4] sm:$0xf]
  %v87 = vld [vmem:[%s1 + $0xc8] sm:$0xf]
  %v88 = vld [vmem:[%s1 + $0xcc] sm:$0xf]
  %v89 = vld [vmem:[%s1 + $0xd0] sm:$0xf]
  %v90 = vld [vmem:[%s1 + $0xd4] sm:$0xf]
  %v91 = vld [vmem:[%s1 + $0xd8] sm:$0xf]
  %v92 = vld [vmem:[%s1 + $0xdc] sm:$0xf]
  %v93 = vld [vmem:[%s1 + $0xe0] sm:$0xf]
  %v94 = vld [vmem:[%s1 + $0xe4] sm:$0xf]
  %v95 = vld [vmem:[%s1 + $0xe8] sm:$0xf]
  %v96 = vld [vmem:[%s1 + $0xec] sm:$0xf]
  %v97 = vld [vmem:[%s1 + $0xf0] sm:$0xf]
  %v98 = vld [vmem:[%s1 + $0xf4] sm:$0xf]
  %v99 = vld [vmem:[%s1 + $0xf8] sm:$0xf]
  %v100 = vld [vmem:[%s1 + $0xfc] sm:$0xf]
  %v101 = vld [vmem:[%s1 + $0x100] sm:$0xf]
  %v102 = vld [vmem:[%s1 + $0x104] sm:$0xf]
  %v103 = vld [vmem:[%s1 + $0x108] sm:$0xf]
  %v104 = vld [vmem:[%s1 + $0x10c] sm:$0xf]
  %v105 = vld [vmem:[%s1 + $0x110] sm:$0xf]
  %v106 = vld [vmem:[%s1 + $0x114] sm:$0xf]
  %v107 = vld [vmem:[%s1 + $0x118] sm:$0xf]
  %v108 = vld [vmem:[%s1 + $0x11c] sm:$0xf]
  %v109 = vld [vmem:[%s1 + $0x120] sm:$0xf]
  %v110 = vld [vmem:[%s1 + $0x124] sm:$0xf]
  %v111 = vld [vmem:[%s1 + $0x128] sm:$0xf]
  %v112 = vld [vmem:[%s1 + $0x12c] sm:$0xf]
  %v113 = vld [vmem:[%s1 + $0x130] sm:$0xf]
  %v114 = vld [vmem:[%s1 + $0x134] sm:$0xf]
  %v115 = vld [vmem:[%s1 + $0x138] sm:$0xf]
  %v116 = vld [vmem:[%s1 + $0x13c] sm:$0xf]
  %v117 = vld [vmem:[%s1 + $0x140] sm:$0xf]
  %v118 = vld [vmem:[%s1 + $0x144] sm:$0xf]
  %v119 = vld [vmem:[%s1 + $0x148] sm:$0xf]
  %v120 = vld [vmem:[%s1 + $0x14c] sm:$0xf]
  %v121 = vld [vmem:[%s1 + $0x150] sm:$0xf]
  %v122 = vld [vmem:[%s1 + $0x154] sm:$0xf]
  %v123 = vld [vmem:[%s1 + $0x158] sm:$0xf]
  %v124 = vld [vmem:[%s1 + $0x15c] sm:$0xf]
  %v125 = vld [vmem:[%s1 + $0x160] sm:$0xf]
  %v126 = vld [vmem:[%s1 + $0x164] sm:$0xf]
  %v127 = vld [vmem:[%s1 + $0x168] sm:$0xf]
  %v128 = vld [vmem:[%s1 + $0x16c] sm:$0xf]
  %v129 = vld [vmem:[%s1 + $0x170] sm:$0xf]
  %v130 = vld [vmem:[%s1 + $0x174] sm:$0xf]
  %v131 = vld [vmem:[%s1 + $0x178] sm:$0xf]
  %v132 = vld [vmem:[%s1 + $0x17c] sm:$0xf]
  %v133 = vld [vmem:[%s1 + $0x180] sm:$0xf]
  %v134 = vld [vmem:[%s1 + $0x184] sm:$0xf]
  %v135 = vld [vmem:[%s1 + $0x188] sm:$0xf]
  %v136 = vld [vmem:[%s1 + $0x18c] sm:$0xf]
  %v137 = vld [vmem:[%s1 + $0x190] sm:$0xf]
  %v138 = vld [vmem:[%s1 + $0x194] sm:$0xf]
  %v139 = vld [vmem:[%s1 + $0x198] sm:$0xf]
  %v140 = vld [vmem:[%s1 + $0x19c] sm:$0xf]
  %v141 = vld [vmem:[%s1 + $0x1a0] sm:$0xf]
  %v142 = vld [vmem:[%s1 + $0x1a4] sm:$0xf]
  %v143 = vld [vmem:[%s1 + $0x1a8] sm:$0xf]
  %v144 = vld [vmem:[%s1 + $0x1ac] sm:$0xf]
  %v145 = vld [vmem:[%s1 + $0x1b0] sm:$0xf]
  %v146 = vld [vmem:[%s1 + $0x1b4] sm:$0xf]
  %v147 = vld [vmem:[%s1 + $0x1b8] sm:$0xf]
  %v148 = vld [vmem:[%s1 + $0x1bc] sm:$0xf]
  %v149 = vld [vmem:[%s1 + $0x1c0] sm:$0xf]
  %v150 = vld [vmem:[%s1 + $0x1c4] sm:$0xf]
  %v151 = vld [vmem:[%s1 + $0x1c8] sm:$0xf]
  %v152 = vld [vmem:[%s1 + $0x1cc] sm:$0xf]
  %v153 = vld [vmem:[%s1 + $0x1d0] sm:$0xf]
  %v154 = vld [vmem:[%s1 + $0x1d4] sm:$0xf]
  %v155 = vld [vmem:[%s1 + $0x1d8] sm:$0xf]
  %v156 = vld [vmem:[%s1 + $0x1dc] sm:$0xf]
  %v157 = vld [vmem:[%s1 + $0x1e0] sm:$0xf]
  %v158 = vld [vmem:[%s1 + $0x1e4] sm:$0xf]
  %v159 = vld [vmem:[%s1 + $0x1e8] sm:$0xf]
  %v160 = vld [vmem:[%s1 + $0x1ec] sm:$0xf]
  %v161 = vld [vmem:[%s1 + $0x1f0] sm:$0xf]
  %v162 = vld [vmem:[%s1 + $0x1f4] sm:$0xf]
  %v163 = vld [vmem:[%s1 + $0x1f8] sm:$0xf]
  %v164 = vld [vmem:[%s1 + $0x1fc] sm:$0xf]
  %v165 = vld [vmem:[%s1 + $0x200] sm:$0xf]
  %v166 = vld [vmem:[%s1 + $0x204] sm:$0xf]
  %v167 = vld [vmem:[%s1 + $0x208] sm:$0xf]
  %v168 = vld [vmem:[%s1 + $0x20c] sm:$0xf]
  %v169 = vld [vmem:[%s1 + $0x210] sm:$0xf]
  %v170 = vld [vmem:[%s1 + $0x214] sm:$0xf]
  %v171 = vld [vmem:[%s1 + $0x218] sm:$0xf]
  %v172 = vld [vmem:[%s1 + $0x21c] sm:$0xf]
  %v173 = vld [vmem:[%s1 + $0x220] sm:$0xf]
  %v174 = vld [vmem:[%s1 + $0x224] sm:$0xf]
  %v175 = vld [vmem:[%s1 + $0x228] sm:$0xf]
  %v176 = vld [vmem:[%s1 + $0x22c] sm:$0xf]
  %v177 = vld [vmem:[%s1 + $0x230] sm:$0xf]
  %v178 = vld [vmem:[%s1 + $0x234] sm:$0xf]
  %v179 = vld [vmem:[%s1 + $0x238] sm:$0xf]
  %v180 = vld [vmem:[%s1 + $0x23c] sm:$0xf]
  %v181 = vld [vmem:[%s2] sm:$0x1]
  %v183 = vperm.slane %v181, 0
  %v205 = vunpack.c.l.b16 %v17
  %v206 = vunpack.c.h.b16 %v17
  %v207 = vunpack.c.l.b16 %v18
  %v208 = vunpack.c.h.b16 %v18
  %v209 = vunpack.c.l.b16 %v19
  %v210 = vunpack.c.h.b16 %v19
  %v211 = vunpack.c.l.b16 %v20
  %v212 = vunpack.c.h.b16 %v20
  %v213 = vunpack.c.l.b16 %v21
  %v214 = vunpack.c.l.b16 %v22
  %v215 = vunpack.c.h.b16 %v22
  %v216 = vunpack.c.l.b16 %v23
  %v217 = vunpack.c.h.b16 %v23
  %v218 = vunpack.c.l.b16 %v24
  %v219 = vunpack.c.h.b16 %v24
  %v220 = vunpack.c.l.b16 %v25
  %v221 = vunpack.c.h.b16 %v25
  %v222 = vunpack.c.l.b16 %v26
  %v223 = vunpack.c.l.b16 %v27
  %v224 = vunpack.c.h.b16 %v27
  %v225 = vunpack.c.l.b16 %v28
  %v226 = vunpack.c.h.b16 %v28
  %v227 = vunpack.c.l.b16 %v29
  %v228 = vunpack.c.h.b16 %v29
  %v229 = vunpack.c.l.b16 %v30
  %v230 = vunpack.c.h.b16 %v30
  %v231 = vunpack.c.l.b16 %v31
  %v232 = vunpack.c.l.b16 %v32
  %v233 = vunpack.c.h.b16 %v32
  %v234 = vunpack.c.l.b16 %v33
  %v235 = vunpack.c.h.b16 %v33
  %v236 = vunpack.c.l.b16 %v34
  %v237 = vunpack.c.h.b16 %v34
  %v238 = vunpack.c.l.b16 %v35
  %v239 = vunpack.c.h.b16 %v35
  %v240 = vunpack.c.l.b16 %v36
  %v241 = vpack.c.b16 %v214, %v205
  %v242 = vpack.c.b16 %v215, %v206
  %v243 = vpack.c.b16 %v216, %v207
  %v244 = vpack.c.b16 %v217, %v208
  %v245 = vpack.c.b16 %v218, %v209
  %v246 = vpack.c.b16 %v219, %v210
  %v247 = vpack.c.b16 %v220, %v211
  %v248 = vpack.c.b16 %v221, %v212
  %v249 = vpack.c.b16 %v222, %v213
  %v250 = vpack.c.b16 %v232, %v223
  %v251 = vpack.c.b16 %v233, %v224
  %v252 = vpack.c.b16 %v234, %v225
  %v253 = vpack.c.b16 %v235, %v226
  %v254 = vpack.c.b16 %v236, %v227
  %v255 = vpack.c.b16 %v237, %v228
  %v256 = vpack.c.b16 %v238, %v229
  %v257 = vpack.c.b16 %v239, %v230
  %v258 = vpack.c.b16 %v240, %v231
  %v421 = vunpack.c.l.b16 %v37
  %v422 = vunpack.c.l.b16 %v38
  %v423 = vunpack.c.l.b16 %v39
  %v424 = vunpack.c.l.b16 %v40
  %v425 = vunpack.c.l.b16 %v41
  %v426 = vunpack.c.l.b16 %v42
  %v427 = vunpack.c.l.b16 %v43
  %v428 = vunpack.c.l.b16 %v44
  %v429 = vunpack.c.l.b16 %v45
  %v430 = vunpack.c.l.b16 %v46
  %v431 = vunpack.c.l.b16 %v47
  %v432 = vunpack.c.l.b16 %v48
  %v433 = vunpack.c.l.b16 %v49
  %v434 = vunpack.c.l.b16 %v50
  %v435 = vunpack.c.l.b16 %v51
  %v436 = vunpack.c.l.b16 %v52
  %v437 = vunpack.c.l.b16 %v53
  %v438 = vunpack.c.l.b16 %v54
  %v439 = vunpack.c.l.b16 %v55
  %v440 = vunpack.c.l.b16 %v56
  %v441 = vunpack.c.l.b16 %v57
  %v442 = vunpack.c.l.b16 %v58
  %v443 = vunpack.c.l.b16 %v59
  %v444 = vunpack.c.l.b16 %v60
  %v445 = vunpack.c.l.b16 %v61
  %v446 = vunpack.c.l.b16 %v62
  %v447 = vunpack.c.l.b16 %v63
  %v448 = vunpack.c.l.b16 %v64
  %v449 = vunpack.c.l.b16 %v65
  %v450 = vunpack.c.l.b16 %v66
  %v451 = vunpack.c.l.b16 %v67
  %v452 = vunpack.c.l.b16 %v68
  %v453 = vunpack.c.l.b16 %v69
  %v454 = vunpack.c.l.b16 %v70
  %v455 = vunpack.c.l.b16 %v71
  %v456 = vunpack.c.l.b16 %v72
  %v457 = vunpack.c.l.b16 %v73
  %v458 = vunpack.c.l.b16 %v74
  %v459 = vunpack.c.l.b16 %v75
  %v460 = vunpack.c.l.b16 %v76
  %v461 = vunpack.c.l.b16 %v77
  %v462 = vunpack.c.l.b16 %v78
  %v463 = vunpack.c.l.b16 %v79
  %v464 = vunpack.c.l.b16 %v80
  %v465 = vunpack.c.l.b16 %v81
  %v466 = vunpack.c.l.b16 %v82
  %v467 = vunpack.c.l.b16 %v83
  %v468 = vunpack.c.l.b16 %v84
  %v469 = vunpack.c.l.b16 %v85
  %v470 = vunpack.c.l.b16 %v86
  %v471 = vunpack.c.l.b16 %v87
  %v472 = vunpack.c.l.b16 %v88
  %v473 = vunpack.c.l.b16 %v89
  %v474 = vunpack.c.l.b16 %v90
  %v475 = vunpack.c.l.b16 %v91
  %v476 = vunpack.c.l.b16 %v92
  %v477 = vunpack.c.l.b16 %v93
  %v478 = vunpack.c.l.b16 %v94
  %v479 = vunpack.c.l.b16 %v95
  %v480 = vunpack.c.l.b16 %v96
  %v481 = vunpack.c.l.b16 %v97
  %v482 = vunpack.c.l.b16 %v98
  %v483 = vunpack.c.l.b16 %v99
  %v484 = vunpack.c.l.b16 %v100
  %v485 = vunpack.c.l.b16 %v101
  %v486 = vunpack.c.l.b16 %v102
  %v487 = vunpack.c.l.b16 %v103
  %v488 = vunpack.c.l.b16 %v104
  %v489 = vunpack.c.l.b16 %v105
  %v490 = vunpack.c.l.b16 %v106
  %v491 = vunpack.c.l.b16 %v107
  %v492 = vunpack.c.l.b16 %v108
  %v493 = vunpack.c.l.b16 %v109
  %v494 = vunpack.c.l.b16 %v110
  %v495 = vunpack.c.l.b16 %v111
  %v496 = vunpack.c.l.b16 %v112
  %v497 = vunpack.c.l.b16 %v113
  %v498 = vunpack.c.l.b16 %v114
  %v499 = vunpack.c.l.b16 %v115
  %v500 = vunpack.c.l.b16 %v116
  %v501 = vunpack.c.l.b16 %v117
  %v502 = vunpack.c.l.b16 %v118
  %v503 = vunpack.c.l.b16 %v119
  %v504 = vunpack.c.l.b16 %v120
  %v505 = vunpack.c.l.b16 %v121
  %v506 = vunpack.c.l.b16 %v122
  %v507 = vunpack.c.l.b16 %v123
  %v508 = vunpack.c.l.b16 %v124
  %v509 = vunpack.c.l.b16 %v125
  %v510 = vunpack.c.l.b16 %v126
  %v511 = vunpack.c.l.b16 %v127
  %v512 = vunpack.c.l.b16 %v128
  %v513 = vunpack.c.l.b16 %v129
  %v514 = vunpack.c.l.b16 %v130
  %v515 = vunpack.c.l.b16 %v131
  %v516 = vunpack.c.l.b16 %v132
  %v517 = vunpack.c.l.b16 %v133
  %v518 = vunpack.c.l.b16 %v134
  %v519 = vunpack.c.l.b16 %v135
  %v520 = vunpack.c.l.b16 %v136
  %v521 = vunpack.c.l.b16 %v137
  %v522 = vunpack.c.l.b16 %v138
  %v523 = vunpack.c.l.b16 %v139
  %v524 = vunpack.c.l.b16 %v140
  %v525 = vunpack.c.l.b16 %v141
  %v526 = vunpack.c.l.b16 %v142
  %v527 = vunpack.c.l.b16 %v143
  %v528 = vunpack.c.l.b16 %v144
  %v529 = vunpack.c.l.b16 %v145
  %v530 = vunpack.c.l.b16 %v146
  %v531 = vunpack.c.l.b16 %v147
  %v532 = vunpack.c.l.b16 %v148
  %v533 = vunpack.c.l.b16 %v149
  %v534 = vunpack.c.l.b16 %v150
  %v535 = vunpack.c.l.b16 %v151
  %v536 = vunpack.c.l.b16 %v152
  %v537 = vunpack.c.l.b16 %v153
  %v538 = vunpack.c.l.b16 %v154
  %v539 = vunpack.c.l.b16 %v155
  %v540 = vunpack.c.l.b16 %v156
  %v541 = vunpack.c.l.b16 %v157
  %v542 = vunpack.c.l.b16 %v158
  %v543 = vunpack.c.l.b16 %v159
  %v544 = vunpack.c.l.b16 %v160
  %v545 = vunpack.c.l.b16 %v161
  %v546 = vunpack.c.l.b16 %v162
  %v547 = vunpack.c.l.b16 %v163
  %v548 = vunpack.c.l.b16 %v164
  %v549 = vunpack.c.l.b16 %v165
  %v550 = vunpack.c.l.b16 %v166
  %v551 = vunpack.c.l.b16 %v167
  %v552 = vunpack.c.l.b16 %v168
  %v553 = vunpack.c.l.b16 %v169
  %v554 = vunpack.c.l.b16 %v170
  %v555 = vunpack.c.l.b16 %v171
  %v556 = vunpack.c.l.b16 %v172
  %v557 = vunpack.c.l.b16 %v173
  %v558 = vunpack.c.l.b16 %v174
  %v559 = vunpack.c.l.b16 %v175
  %v560 = vunpack.c.l.b16 %v176
  %v561 = vunpack.c.l.b16 %v177
  %v562 = vunpack.c.l.b16 %v178
  %v563 = vunpack.c.l.b16 %v179
  %v564 = vunpack.c.l.b16 %v180
  %v565 = vpack.c.b16 %v422, %v421
  %v566 = vpack.c.b16 %v424, %v423
  %v567 = vpack.c.b16 %v426, %v425
  %v568 = vpack.c.b16 %v428, %v427
  %v569 = vpack.c.b16 %v430, %v429
  %v570 = vpack.c.b16 %v432, %v431
  %v571 = vpack.c.b16 %v434, %v433
  %v572 = vpack.c.b16 %v436, %v435
  %v573 = vpack.c.b16 %v438, %v437
  %v574 = vpack.c.b16 %v440, %v439
  %v575 = vpack.c.b16 %v442, %v441
  %v576 = vpack.c.b16 %v444, %v443
  %v577 = vpack.c.b16 %v446, %v445
  %v578 = vpack.c.b16 %v448, %v447
  %v579 = vpack.c.b16 %v450, %v449
  %v580 = vpack.c.b16 %v452, %v451
  %v581 = vpack.c.b16 %v454, %v453
  %v582 = vpack.c.b16 %v456, %v455
  %v583 = vpack.c.b16 %v458, %v457
  %v584 = vpack.c.b16 %v460, %v459
  %v585 = vpack.c.b16 %v462, %v461
  %v586 = vpack.c.b16 %v464, %v463
  %v587 = vpack.c.b16 %v466, %v465
  %v588 = vpack.c.b16 %v468, %v467
  %v589 = vpack.c.b16 %v470, %v469
  %v590 = vpack.c.b16 %v472, %v471
  %v591 = vpack.c.b16 %v474, %v473
  %v592 = vpack.c.b16 %v476, %v475
  %v593 = vpack.c.b16 %v478, %v477
  %v594 = vpack.c.b16 %v480, %v479
  %v595 = vpack.c.b16 %v482, %v481
  %v596 = vpack.c.b16 %v484, %v483
  %v597 = vpack.c.b16 %v486, %v485
  %v598 = vpack.c.b16 %v488, %v487
  %v599 = vpack.c.b16 %v490, %v489
  %v600 = vpack.c.b16 %v492, %v491
  %v601 = vpack.c.b16 %v494, %v493
  %v602 = vpack.c.b16 %v496, %v495
  %v603 = vpack.c.b16 %v498, %v497
  %v604 = vpack.c.b16 %v500, %v499
  %v605 = vpack.c.b16 %v502, %v501
  %v606 = vpack.c.b16 %v504, %v503
  %v607 = vpack.c.b16 %v506, %v505
  %v608 = vpack.c.b16 %v508, %v507
  %v609 = vpack.c.b16 %v510, %v509
  %v610 = vpack.c.b16 %v512, %v511
  %v611 = vpack.c.b16 %v514, %v513
  %v612 = vpack.c.b16 %v516, %v515
  %v613 = vpack.c.b16 %v518, %v517
  %v614 = vpack.c.b16 %v520, %v519
  %v615 = vpack.c.b16 %v522, %v521
  %v616 = vpack.c.b16 %v524, %v523
  %v617 = vpack.c.b16 %v526, %v525
  %v618 = vpack.c.b16 %v528, %v527
  %v619 = vpack.c.b16 %v530, %v529
  %v620 = vpack.c.b16 %v532, %v531
  %v621 = vpack.c.b16 %v534, %v533
  %v622 = vpack.c.b16 %v536, %v535
  %v623 = vpack.c.b16 %v538, %v537
  %v624 = vpack.c.b16 %v540, %v539
  %v625 = vpack.c.b16 %v542, %v541
  %v626 = vpack.c.b16 %v544, %v543
  %v627 = vpack.c.b16 %v546, %v545
  %v628 = vpack.c.b16 %v548, %v547
  %v629 = vpack.c.b16 %v550, %v549
  %v630 = vpack.c.b16 %v552, %v551
  %v631 = vpack.c.b16 %v554, %v553
  %v632 = vpack.c.b16 %v556, %v555
  %v633 = vpack.c.b16 %v558, %v557
  %v634 = vpack.c.b16 %v560, %v559
  %v635 = vpack.c.b16 %v562, %v561
  %v636 = vpack.c.b16 %v564, %v563
  %709 = vmatpush.bf16.msra.mxu0 %v572
  %710 = vmatpush.bf16.msra.mxu0 %v571
  %711 = vmatpush.bf16.msra.mxu0 %v570
  %712 = vmatpush.bf16.msra.mxu0 %v569
  %713 = vmatpush.bf16.msra.mxu0 %v568
  %714 = vmatpush.bf16.msra.mxu0 %v567
  %715 = vmatpush.bf16.msra.mxu0 %v566
  %716 = vmatpush.bf16.msra.mxu0 %v565
  %717 = vmatmul.bf16.gmra.mxu0 %v241
  %v718 = vpop.f32.mrf.mxu0
  %v719 = vadd.f32 %v183, %v718
  %v720 = vpop.f32.mrf.mxu0
  %v721 = vadd.f32 %v183, %v720
  %722 = vmatmul.bf16.gmra.mxu0 %v250
  %v723 = vpop.f32.mrf.mxu0
  %v724 = vadd.f32 %v183, %v723
  %v725 = vpop.f32.mrf.mxu0
  %v726 = vadd.f32 %v183, %v725
  %727 = vdwg.mxu0
  %728 = vmatpush.bf16.msra.mxu0 %v580
  %729 = vmatpush.bf16.msra.mxu0 %v579
  %730 = vmatpush.bf16.msra.mxu0 %v578
  %731 = vmatpush.bf16.msra.mxu0 %v577
  %732 = vmatpush.bf16.msra.mxu0 %v576
  %733 = vmatpush.bf16.msra.mxu0 %v575
  %734 = vmatpush.bf16.msra.mxu0 %v574
  %735 = vmatpush.bf16.msra.mxu0 %v573
  %736 = vmatmul.bf16.gmra.mxu0 %v242
  %v737 = vpop.f32.mrf.mxu0
  %v738 = vadd.f32 %v719, %v737
  %v739 = vpop.f32.mrf.mxu0
  %v740 = vadd.f32 %v721, %v739
  %741 = vmatmul.bf16.gmra.mxu0 %v251
  %v742 = vpop.f32.mrf.mxu0
  %v743 = vadd.f32 %v724, %v742
  %v744 = vpop.f32.mrf.mxu0
  %v745 = vadd.f32 %v726, %v744
  %746 = vdwg.mxu0
  %747 = vmatpush.bf16.msra.mxu0 %v588
  %748 = vmatpush.bf16.msra.mxu0 %v587
  %749 = vmatpush.bf16.msra.mxu0 %v586
  %750 = vmatpush.bf16.msra.mxu0 %v585
  %751 = vmatpush.bf16.msra.mxu0 %v584
  %752 = vmatpush.bf16.msra.mxu0 %v583
  %753 = vmatpush.bf16.msra.mxu0 %v582
  %754 = vmatpush.bf16.msra.mxu0 %v581
  %755 = vmatmul.bf16.gmra.mxu0 %v243
  %v756 = vpop.f32.mrf.mxu0
  %v757 = vadd.f32 %v738, %v756
  %v758 = vpop.f32.mrf.mxu0
  %v759 = vadd.f32 %v740, %v758
  %760 = vmatmul.bf16.gmra.mxu0 %v252
  %v761 = vpop.f32.mrf.mxu0
  %v762 = vadd.f32 %v743, %v761
  %v763 = vpop.f32.mrf.mxu0
  %v764 = vadd.f32 %v745, %v763
  %765 = vdwg.mxu0
  %766 = vmatpush.bf16.msra.mxu0 %v596
  %767 = vmatpush.bf16.msra.mxu0 %v595
  %768 = vmatpush.bf16.msra.mxu0 %v594
  %769 = vmatpush.bf16.msra.mxu0 %v593
  %770 = vmatpush.bf16.msra.mxu0 %v592
  %771 = vmatpush.bf16.msra.mxu0 %v591
  %772 = vmatpush.bf16.msra.mxu0 %v590
  %773 = vmatpush.bf16.msra.mxu0 %v589
  %774 = vmatmul.bf16.gmra.mxu0 %v244
  %v775 = vpop.f32.mrf.mxu0
  %v776 = vadd.f32 %v757, %v775
  %v777 = vpop.f32.mrf.mxu0
  %v778 = vadd.f32 %v759, %v777
  %779 = vmatmul.bf16.gmra.mxu0 %v253
  %v780 = vpop.f32.mrf.mxu0
  %v781 = vadd.f32 %v762, %v780
  %v782 = vpop.f32.mrf.mxu0
  %v783 = vadd.f32 %v764, %v782
  %784 = vdwg.mxu0
  %785 = vmatpush.bf16.msra.mxu0 %v604
  %786 = vmatpush.bf16.msra.mxu0 %v603
  %787 = vmatpush.bf16.msra.mxu0 %v602
  %788 = vmatpush.bf16.msra.mxu0 %v601
  %789 = vmatpush.bf16.msra.mxu0 %v600
  %790 = vmatpush.bf16.msra.mxu0 %v599
  %791 = vmatpush.bf16.msra.mxu0 %v598
  %792 = vmatpush.bf16.msra.mxu0 %v597
  %793 = vmatmul.bf16.gmra.mxu0 %v245
  %v794 = vpop.f32.mrf.mxu0
  %v795 = vadd.f32 %v776, %v794
  %v796 = vpop.f32.mrf.mxu0
  %v797 = vadd.f32 %v778, %v796
  %798 = vmatmul.bf16.gmra.mxu0 %v254
  %v799 = vpop.f32.mrf.mxu0
  %v800 = vadd.f32 %v781, %v799
  %v801 = vpop.f32.mrf.mxu0
  %v802 = vadd.f32 %v783, %v801
  %803 = vdwg.mxu0
  %804 = vmatpush.bf16.msra.mxu0 %v612
  %805 = vmatpush.bf16.msra.mxu0 %v611
  %806 = vmatpush.bf16.msra.mxu0 %v610
  %807 = vmatpush.bf16.msra.mxu0 %v609
  %808 = vmatpush.bf16.msra.mxu0 %v608
  %809 = vmatpush.bf16.msra.mxu0 %v607
  %810 = vmatpush.bf16.msra.mxu0 %v606
  %811 = vmatpush.bf16.msra.mxu0 %v605
  %812 = vmatmul.bf16.gmra.mxu0 %v246
  %v813 = vpop.f32.mrf.mxu0
  %v814 = vadd.f32 %v795, %v813
  %v815 = vpop.f32.mrf.mxu0
  %v816 = vadd.f32 %v797, %v815
  %817 = vmatmul.bf16.gmra.mxu0 %v255
  %v818 = vpop.f32.mrf.mxu0
  %v819 = vadd.f32 %v800, %v818
  %v820 = vpop.f32.mrf.mxu0
  %v821 = vadd.f32 %v802, %v820
  %822 = vdwg.mxu0
  %823 = vmatpush.bf16.msra.mxu0 %v620
  %824 = vmatpush.bf16.msra.mxu0 %v619
  %825 = vmatpush.bf16.msra.mxu0 %v618
  %826 = vmatpush.bf16.msra.mxu0 %v617
  %827 = vmatpush.bf16.msra.mxu0 %v616
  %828 = vmatpush.bf16.msra.mxu0 %v615
  %829 = vmatpush.bf16.msra.mxu0 %v614
  %830 = vmatpush.bf16.msra.mxu0 %v613
  %831 = vmatmul.bf16.gmra.mxu0 %v247
  %v832 = vpop.f32.mrf.mxu0
  %v833 = vadd.f32 %v814, %v832
  %v834 = vpop.f32.mrf.mxu0
  %v835 = vadd.f32 %v816, %v834
  %836 = vmatmul.bf16.gmra.mxu0 %v256
  %v837 = vpop.f32.mrf.mxu0
  %v838 = vadd.f32 %v819, %v837
  %v839 = vpop.f32.mrf.mxu0
  %v840 = vadd.f32 %v821, %v839
  %841 = vdwg.mxu0
  %842 = vmatpush.bf16.msra.mxu0 %v628
  %843 = vmatpush.bf16.msra.mxu0 %v627
  %844 = vmatpush.bf16.msra.mxu0 %v626
  %845 = vmatpush.bf16.msra.mxu0 %v625
  %846 = vmatpush.bf16.msra.mxu0 %v624
  %847 = vmatpush.bf16.msra.mxu0 %v623
  %848 = vmatpush.bf16.msra.mxu0 %v622
  %849 = vmatpush.bf16.msra.mxu0 %v621
  %850 = vmatmul.bf16.gmra.mxu0 %v248
  %v851 = vpop.f32.mrf.mxu0
  %v852 = vadd.f32 %v833, %v851
  %v853 = vpop.f32.mrf.mxu0
  %v854 = vadd.f32 %v835, %v853
  %855 = vmatmul.bf16.gmra.mxu0 %v257
  %v856 = vpop.f32.mrf.mxu0
  %v857 = vadd.f32 %v838, %v856
  %v858 = vpop.f32.mrf.mxu0
  %v859 = vadd.f32 %v840, %v858
  %860 = vdwg.mxu0
  %861 = vmatpush.bf16.msra.mxu0 %v636
  %862 = vmatpush.bf16.msra.mxu0 %v635
  %863 = vmatpush.bf16.msra.mxu0 %v634
  %864 = vmatpush.bf16.msra.mxu0 %v633
  %865 = vmatpush.bf16.msra.mxu0 %v632
  %866 = vmatpush.bf16.msra.mxu0 %v631
  %867 = vmatpush.bf16.msra.mxu0 %v630
  %868 = vmatpush.bf16.msra.mxu0 %v629
  %869 = vmatmul.bf16.gmra.mxu0 %v249
  %v870 = vpop.f32.mrf.mxu0
  %v871 = vadd.f32 %v852, %v870
  %v872 = vpop.f32.mrf.mxu0
  %v873 = vadd.f32 %v854, %v872
  %874 = vmatmul.bf16.gmra.mxu0 %v258
  %v875 = vpop.f32.mrf.mxu0
  %v876 = vadd.f32 %v857, %v875
  %v877 = vpop.f32.mrf.mxu0
  %v878 = vadd.f32 %v859, %v877
  %879 = vdwg.mxu0
  %v880 = vld [vmem:[%s3] sm:$0xff]
  %v881 = vld [vmem:[%s3 + $0x8] sm:$0xff]
  %v882 = vld [vmem:[%s3 + $0x10] sm:$0xff]
  %v883 = vld [vmem:[%s3 + $0x18] sm:$0xff]
  %v884 = vadd.f32 %v871, %v880
  %v885 = vadd.f32 %v873, %v881
  %v886 = vadd.f32 %v876, %v882
  %v887 = vadd.f32 %v878, %v883
  %v888 = vmax.f32 %v884, 0.0
  %v889 = vmax.f32 %v885, 0.0
  %v890 = vmax.f32 %v886, 0.0
  %v891 = vmax.f32 %v887, 0.0
  %892 = vst [vmem:[%s4] sm:$0xff] %v888
  %893 = vst [vmem:[%s4 + $0x8] sm:$0xff] %v889
  %894 = vst [vmem:[%s4 + $0x10] sm:$0xff] %v890
  %895 = vst [vmem:[%s4 + $0x18] sm:$0xff] %v891
  // Predicated region
  $region18: #{resnet_forward.17} parent=0 // pred_check
    _
  $region19: #{resnet_forward.17} parent=0 // pred_check_branch
    %897 = sbr.rel (0) target = $region21
  $region20: #{resnet_forward.17} parent=0 // pred_region
    _
  $region21: #{resnet_forward.17} parent=0 // pred_fallthru
    _
  // Predicated region
  $region22: #{resnet_forward.17} parent=0 // pred_check
    _
  $region23: #{resnet_forward.17} parent=0 // pred_check_branch
    %899 = sbr.rel (0) target = $region25
  $region24: #{resnet_forward.17} parent=0 // pred_region
    _
  $region25: #{resnet_forward.17} parent=0 // pred_fallthru
    _

// kernel: resnet_forward.19
$region0: #{resnet_forward.19}
  #allocation0 [shape = 'u32[]', space=smem, size = 0x4, offset = 0x4, fixed_abs, tag = 'smem constant byte address 0x4 - core index']
  #allocation1 [shape = 'u32[72,128]{1,0:T(1,128)}', space=vmem, size = 0x9000, scoped, tag = 'internal scratch']
  %s0 = inlined_call_operand.vmem [shape: bf16[16,128], index: 0, kind: input, shape index: {}]
  %s1 = inlined_call_operand.vmem [shape: bf16[128,256], index: 1, kind: input, shape index: {}]
  %s2 = inlined_call_operand.vmem [shape: f32[1,256], index: 2, kind: input, shape index: {}]
  %s3 = inlined_call_operand.vmem [shape: f32[16,256], index: 3, kind: output, shape index: {}]
  %s4 = sld [smem:[#allocation0]]
  $region22: #{resnet_forward.19} parent=0
    _
  %s6 = ssub.s32 1, %s4
  %s7 = scalar_select 0, %s6, %s4
  // Predicated region
  $region2: #{resnet_forward.19} parent=0 // pred_check
    _
  $region3: #{resnet_forward.19} parent=0 // pred_check_branch
    %9 = sbr.rel (0) target = $region5
  $region4: #{resnet_forward.19} parent=0 // pred_region
    _
  $region5: #{resnet_forward.19} parent=0 // pred_fallthru
    _
  // Predicated region
  $region6: #{resnet_forward.19} parent=0 // pred_check
    _
  $region7: #{resnet_forward.19} parent=0 // pred_check_branch
    %11 = sbr.rel (0) target = $region9
  $region8: #{resnet_forward.19} parent=0 // pred_region
    _
  $region9: #{resnet_forward.19} parent=0 // pred_fallthru
    _
  // Predicated region
  $region10: #{resnet_forward.19} parent=0 // pred_check
    _
  $region11: #{resnet_forward.19} parent=0 // pred_check_branch
    %13 = sbr.rel (0) target = $region13
  $region12: #{resnet_forward.19} parent=0 // pred_region
    _
  $region13: #{resnet_forward.19} parent=0 // pred_fallthru
    _
  %v14 = vld [vmem:[%s0] sm:$0xf]
  %v15 = vld [vmem:[%s0 + $0x4] sm:$0xf]
  %v16 = vld [vmem:[%s1] sm:$0xff]
  %v17 = vld [vmem:[%s1 + $0x8] sm:$0xff]
  %v18 = vld [vmem:[%s1 + $0x10] sm:$0xff]
  %v19 = vld [vmem:[%s1 + $0x18] sm:$0xff]
  %v20 = vld [vmem:[%s1 + $0x20] sm:$0xff]
  %v21 = vld [vmem:[%s1 + $0x28] sm:$0xff]
  %v22 = vld [vmem:[%s1 + $0x30] sm:$0xff]
  %v23 = vld [vmem:[%s1 + $0x38] sm:$0xff]
  %v24 = vld [vmem:[%s1 + $0x40] sm:$0xff]
  %v25 = vld [vmem:[%s1 + $0x48] sm:$0xff]
  %v26 = vld [vmem:[%s1 + $0x50] sm:$0xff]
  %v27 = vld [vmem:[%s1 + $0x58] sm:$0xff]
  %v28 = vld [vmem:[%s1 + $0x60] sm:$0xff]
  %v29 = vld [vmem:[%s1 + $0x68] sm:$0xff]
  %v30 = vld [vmem:[%s1 + $0x70] sm:$0xff]
  %v31 = vld [vmem:[%s1 + $0x78] sm:$0xff]
  %v32 = vld [vmem:[%s2] sm:$0x3]
  %v34 = vperm.slane %v32, 0
  %v35 = vperm.slane %v32, 1
  %v40 = vunpack.c.l.b16 %v14
  %v41 = vunpack.c.l.b16 %v15
  %v42 = vpack.c.b16 %v41, %v40
  %v60 = vunpack.c.l.b16 %v16
  %v61 = vunpack.c.h.b16 %v16
  %v62 = vunpack.c.l.b16 %v17
  %v63 = vunpack.c.h.b16 %v17
  %v64 = vunpack.c.l.b16 %v18
  %v65 = vunpack.c.h.b16 %v18
  %v66 = vunpack.c.l.b16 %v19
  %v67 = vunpack.c.h.b16 %v19
  %v68 = vunpack.c.l.b16 %v20
  %v69 = vunpack.c.h.b16 %v20
  %v70 = vunpack.c.l.b16 %v21
  %v71 = vunpack.c.h.b16 %v21
  %v72 = vunpack.c.l.b16 %v22
  %v73 = vunpack.c.h.b16 %v22
  %v74 = vunpack.c.l.b16 %v23
  %v75 = vunpack.c.h.b16 %v23
  %v76 = vunpack.c.l.b16 %v24
  %v77 = vunpack.c.h.b16 %v24
  %v78 = vunpack.c.l.b16 %v25
  %v79 = vunpack.c.h.b16 %v25
  %v80 = vunpack.c.l.b16 %v26
  %v81 = vunpack.c.h.b16 %v26
  %v82 = vunpack.c.l.b16 %v27
  %v83 = vunpack.c.h.b16 %v27
  %v84 = vunpack.c.l.b16 %v28
  %v85 = vunpack.c.h.b16 %v28
  %v86 = vunpack.c.l.b16 %v29
  %v87 = vunpack.c.h.b16 %v29
  %v88 = vunpack.c.l.b16 %v30
  %v89 = vunpack.c.h.b16 %v30
  %v90 = vunpack.c.l.b16 %v31
  %v91 = vunpack.c.h.b16 %v31
  %v92 = vpack.c.b16 %v62, %v60
  %v93 = vpack.c.b16 %v63, %v61
  %v94 = vpack.c.b16 %v66, %v64
  %v95 = vpack.c.b16 %v67, %v65
  %v96 = vpack.c.b16 %v70, %v68
  %v97 = vpack.c.b16 %v71, %v69
  %v98 = vpack.c.b16 %v74, %v72
  %v99 = vpack.c.b16 %v75, %v73
  %v100 = vpack.c.b16 %v78, %v76
  %v101 = vpack.c.b16 %v79, %v77
  %v102 = vpack.c.b16 %v82, %v80
  %v103 = vpack.c.b16 %v83, %v81
  %v104 = vpack.c.b16 %v86, %v84
  %v105 = vpack.c.b16 %v87, %v85
  %v106 = vpack.c.b16 %v90, %v88
  %v107 = vpack.c.b16 %v91, %v89
  %124 = vmatpush.bf16.msra.mxu0 %v106
  %125 = vmatpush.bf16.msra.mxu0 %v104
  %126 = vmatpush.bf16.msra.mxu0 %v102
  %127 = vmatpush.bf16.msra.mxu0 %v100
  %128 = vmatpush.bf16.msra.mxu0 %v98
  %129 = vmatpush.bf16.msra.mxu0 %v96
  %130 = vmatpush.bf16.msra.mxu0 %v94
  %131 = vmatpush.bf16.msra.mxu0 %v92
  %132 = vmatmul.bf16.gmra.mxu0 %v42
  %v133 = vpop.f32.mrf.mxu0
  %v134 = vadd.f32 %v34, %v133
  %v135 = vpop.f32.mrf.mxu0
  %v136 = vadd.f32 %v34, %v135
  %137 = vdwg.mxu0
  %138 = vmatpush.bf16.msra.mxu0 %v107
  %139 = vmatpush.bf16.msra.mxu0 %v105
  %140 = vmatpush.bf16.msra.mxu0 %v103
  %141 = vmatpush.bf16.msra.mxu0 %v101
  %142 = vmatpush.bf16.msra.mxu0 %v99
  %143 = vmatpush.bf16.msra.mxu0 %v97
  %144 = vmatpush.bf16.msra.mxu0 %v95
  %145 = vmatpush.bf16.msra.mxu0 %v93
  %146 = vmatmul.bf16.gmra.mxu0 %v42
  %v147 = vpop.f32.mrf.mxu0
  %v148 = vadd.f32 %v35, %v147
  %v149 = vpop.f32.mrf.mxu0
  %v150 = vadd.f32 %v35, %v149
  %151 = vdwg.mxu0
  %152 = vst [vmem:[%s3] sm:$0xff] %v134
  %153 = vst [vmem:[%s3 + $0x8] sm:$0xff] %v148
  %154 = vst [vmem:[%s3 + $0x10] sm:$0xff] %v136
  %155 = vst [vmem:[%s3 + $0x18] sm:$0xff] %v150
  // Predicated region
  $region14: #{resnet_forward.19} parent=0 // pred_check
    _
  $region15: #{resnet_forward.19} parent=0 // pred_check_branch
    %157 = sbr.rel (0) target = $region17
  $region16: #{resnet_forward.19} parent=0 // pred_region
    _
  $region17: #{resnet_forward.19} parent=0 // pred_fallthru
    _
  // Predicated region
  $region18: #{resnet_forward.19} parent=0 // pred_check
    _
  $region19: #{resnet_forward.19} parent=0 // pred_check_branch
    %159 = sbr.rel (0) target = $region21
  $region20: #{resnet_forward.19} parent=0 // pred_region
    _
  $region21: #{resnet_forward.19} parent=0 // pred_fallthru
    _

// kernel: resnet_forward.18
$region0: #{resnet_forward.18}
  #allocation0 [shape = 'u32[]', space=smem, size = 0x4, offset = 0x4, fixed_abs, tag = 'smem constant byte address 0x4 - core index']
  #allocation1 [shape = 'u32[72,128]{1,0:T(1,128)}', space=vmem, size = 0x9000, scoped, tag = 'internal scratch']
  %s0 = inlined_call_operand.vmem [shape: bf16[16,1152], index: 0, kind: input, shape index: {}]
  %s1 = inlined_call_operand.vmem [shape: bf16[1152,256], index: 1, kind: input, shape index: {}]
  %s2 = inlined_call_operand.vmem [shape: f32[1,256], index: 2, kind: input, shape index: {}]
  %s3 = inlined_call_operand.vmem [shape: f32[16,256], index: 3, kind: output, shape index: {}]
  %s4 = sld [smem:[#allocation0]]
  $region22: #{resnet_forward.18} parent=0
    _
  %s6 = ssub.s32 1, %s4
  %s7 = scalar_select 0, %s6, %s4
  // Predicated region
  $region2: #{resnet_forward.18} parent=0 // pred_check
    _
  $region3: #{resnet_forward.18} parent=0 // pred_check_branch
    %9 = sbr.rel (0) target = $region5
  $region4: #{resnet_forward.18} parent=0 // pred_region
    _
  $region5: #{resnet_forward.18} parent=0 // pred_fallthru
    _
  // Predicated region
  $region6: #{resnet_forward.18} parent=0 // pred_check
    _
  $region7: #{resnet_forward.18} parent=0 // pred_check_branch
    %11 = sbr.rel (0) target = $region9
  $region8: #{resnet_forward.18} parent=0 // pred_region
    _
  $region9: #{resnet_forward.18} parent=0 // pred_fallthru
    _
  // Predicated region
  $region10: #{resnet_forward.18} parent=0 // pred_check
    _
  $region11: #{resnet_forward.18} parent=0 // pred_check_branch
    %13 = sbr.rel (0) target = $region13
  $region12: #{resnet_forward.18} parent=0 // pred_region
    _
  $region13: #{resnet_forward.18} parent=0 // pred_fallthru
    _
  %v14 = vld [vmem:[%s0] sm:$0xff]
  %v15 = vld [vmem:[%s0 + $0x8] sm:$0xff]
  %v16 = vld [vmem:[%s0 + $0x10] sm:$0xff]
  %v17 = vld [vmem:[%s0 + $0x18] sm:$0xff]
  %v18 = vld [vmem:[%s0 + $0x20] sm:$0xf]
  %v19 = vld [vmem:[%s0 + $0x24] sm:$0xff]
  %v20 = vld [vmem:[%s0 + $0x2c] sm:$0xff]
  %v21 = vld [vmem:[%s0 + $0x34] sm:$0xff]
  %v22 = vld [vmem:[%s0 + $0x3c] sm:$0xff]
  %v23 = vld [vmem:[%s0 + $0x44] sm:$0xf]
  %v24 = vld [vmem:[%s1] sm:$0xff]
  %v25 = vld [vmem:[%s1 + $0x8] sm:$0xff]
  %v26 = vld [vmem:[%s1 + $0x10] sm:$0xff]
  %v27 = vld [vmem:[%s1 + $0x18] sm:$0xff]
  %v28 = vld [vmem:[%s1 + $0x20] sm:$0xff]
  %v29 = vld [vmem:[%s1 + $0x28] sm:$0xff]
  %v30 = vld [vmem:[%s1 + $0x30] sm:$0xff]
  %v31 = vld [vmem:[%s1 + $0x38] sm:$0xff]
  %v32 = vld [vmem:[%s1 + $0x40] sm:$0xff]
  %v33 = vld [vmem:[%s1 + $0x48] sm:$0xff]
  %v34 = vld [vmem:[%s1 + $0x50] sm:$0xff]
  %v35 = vld [vmem:[%s1 + $0x58] sm:$0xff]
  %v36 = vld [vmem:[%s1 + $0x60] sm:$0xff]
  %v37 = vld [vmem:[%s1 + $0x68] sm:$0xff]
  %v38 = vld [vmem:[%s1 + $0x70] sm:$0xff]
  %v39 = vld [vmem:[%s1 + $0x78] sm:$0xff]
  %v40 = vld [vmem:[%s1 + $0x80] sm:$0xff]
  %v41 = vld [vmem:[%s1 + $0x88] sm:$0xff]
  %v42 = vld [vmem:[%s1 + $0x90] sm:$0xff]
  %v43 = vld [vmem:[%s1 + $0x98] sm:$0xff]
  %v44 = vld [vmem:[%s1 + $0xa0] sm:$0xff]
  %v45 = vld [vmem:[%s1 + $0xa8] sm:$0xff]
  %v46 = vld [vmem:[%s1 + $0xb0] sm:$0xff]
  %v47 = vld [vmem:[%s1 + $0xb8] sm:$0xff]
  %v48 = vld [vmem:[%s1 + $0xc0] sm:$0xff]
  %v49 = vld [vmem:[%s1 + $0xc8] sm:$0xff]
  %v50 = vld [vmem:[%s1 + $0xd0] sm:$0xff]
  %v51 = vld [vmem:[%s1 + $0xd8] sm:$0xff]
  %v52 = vld [vmem:[%s1 + $0xe0] sm:$0xff]
  %v53 = vld [vmem:[%s1 + $0xe8] sm:$0xff]
  %v54 = vld [vmem:[%s1 + $0xf0] sm:$0xff]
  %v55 = vld [vmem:[%s1 + $0xf8] sm:$0xff]
  %v56 = vld [vmem:[%s1 + $0x100] sm:$0xff]
  %v57 = vld [vmem:[%s1 + $0x108] sm:$0xff]
  %v58 = vld [vmem:[%s1 + $0x110] sm:$0xff]
  %v59 = vld [vmem:[%s1 + $0x118] sm:$0xff]
  %v60 = vld [vmem:[%s1 + $0x120] sm:$0xff]
  %v61 = vld [vmem:[%s1 + $0x128] sm:$0xff]
  %v62 = vld [vmem:[%s1 + $0x130] sm:$0xff]
  %v63 = vld [vmem:[%s1 + $0x138] sm:$0xff]
  %v64 = vld [vmem:[%s1 + $0x140] sm:$0xff]
  %v65 = vld [vmem:[%s1 + $0x148] sm:$0xff]
  %v66 = vld [vmem:[%s1 + $0x150] sm:$0xff]
  %v67 = vld [vmem:[%s1 + $0x158] sm:$0xff]
  %v68 = vld [vmem:[%s1 + $0x160] sm:$0xff]
  %v69 = vld [vmem:[%s1 + $0x168] sm:$0xff]
  %v70 = vld [vmem:[%s1 + $0x170] sm:$0xff]
  %v71 = vld [vmem:[%s1 + $0x178] sm:$0xff]
  %v72 = vld [vmem:[%s1 + $0x180] sm:$0xff]
  %v73 = vld [vmem:[%s1 + $0x188] sm:$0xff]
  %v74 = vld [vmem:[%s1 + $0x190] sm:$0xff]
  %v75 = vld [vmem:[%s1 + $0x198] sm:$0xff]
  %v76 = vld [vmem:[%s1 + $0x1a0] sm:$0xff]
  %v77 = vld [vmem:[%s1 + $0x1a8] sm:$0xff]
  %v78 = vld [vmem:[%s1 + $0x1b0] sm:$0xff]
  %v79 = vld [vmem:[%s1 + $0x1b8] sm:$0xff]
  %v80 = vld [vmem:[%s1 + $0x1c0] sm:$0xff]
  %v81 = vld [vmem:[%s1 + $0x1c8] sm:$0xff]
  %v82 = vld [vmem:[%s1 + $0x1d0] sm:$0xff]
  %v83 = vld [vmem:[%s1 + $0x1d8] sm:$0xff]
  %v84 = vld [vmem:[%s1 + $0x1e0] sm:$0xff]
  %v85 = vld [vmem:[%s1 + $0x1e8] sm:$0xff]
  %v86 = vld [vmem:[%s1 + $0x1f0] sm:$0xff]
  %v87 = vld [vmem:[%s1 + $0x1f8] sm:$0xff]
  %v88 = vld [vmem:[%s1 + $0x200] sm:$0xff]
  %v89 = vld [vmem:[%s1 + $0x208] sm:$0xff]
  %v90 = vld [vmem:[%s1 + $0x210] sm:$0xff]
  %v91 = vld [vmem:[%s1 + $0x218] sm:$0xff]
  %v92 = vld [vmem:[%s1 + $0x220] sm:$0xff]
  %v93 = vld [vmem:[%s1 + $0x228] sm:$0xff]
  %v94 = vld [vmem:[%s1 + $0x230] sm:$0xff]
  %v95 = vld [vmem:[%s1 + $0x238] sm:$0xff]
  %v96 = vld [vmem:[%s1 + $0x240] sm:$0xff]
  %v97 = vld [vmem:[%s1 + $0x248] sm:$0xff]
  %v98 = vld [vmem:[%s1 + $0x250] sm:$0xff]
  %v99 = vld [vmem:[%s1 + $0x258] sm:$0xff]
  %v100 = vld [vmem:[%s1 + $0x260] sm:$0xff]
  %v101 = vld [vmem:[%s1 + $0x268] sm:$0xff]
  %v102 = vld [vmem:[%s1 + $0x270] sm:$0xff]
  %v103 = vld [vmem:[%s1 + $0x278] sm:$0xff]
  %v104 = vld [vmem:[%s1 + $0x280] sm:$0xff]
  %v105 = vld [vmem:[%s1 + $0x288] sm:$0xff]
  %v106 = vld [vmem:[%s1 + $0x290] sm:$0xff]
  %v107 = vld [vmem:[%s1 + $0x298] sm:$0xff]
  %v108 = vld [vmem:[%s1 + $0x2a0] sm:$0xff]
  %v109 = vld [vmem:[%s1 + $0x2a8] sm:$0xff]
  %v110 = vld [vmem:[%s1 + $0x2b0] sm:$0xff]
  %v111 = vld [vmem:[%s1 + $0x2b8] sm:$0xff]
  %v112 = vld [vmem:[%s1 + $0x2c0] sm:$0xff]
  %v113 = vld [vmem:[%s1 + $0x2c8] sm:$0xff]
  %v114 = vld [vmem:[%s1 + $0x2d0] sm:$0xff]
  %v115 = vld [vmem:[%s1 + $0x2d8] sm:$0xff]
  %v116 = vld [vmem:[%s1 + $0x2e0] sm:$0xff]
  %v117 = vld [vmem:[%s1 + $0x2e8] sm:$0xff]
  %v118 = vld [vmem:[%s1 + $0x2f0] sm:$0xff]
  %v119 = vld [vmem:[%s1 + $0x2f8] sm:$0xff]
  %v120 = vld [vmem:[%s1 + $0x300] sm:$0xff]
  %v121 = vld [vmem:[%s1 + $0x308] sm:$0xff]
  %v122 = vld [vmem:[%s1 + $0x310] sm:$0xff]
  %v123 = vld [vmem:[%s1 + $0x318] sm:$0xff]
  %v124 = vld [vmem:[%s1 + $0x320] sm:$0xff]
  %v125 = vld [vmem:[%s1 + $0x328] sm:$0xff]
  %v126 = vld [vmem:[%s1 + $0x330] sm:$0xff]
  %v127 = vld [vmem:[%s1 + $0x338] sm:$0xff]
  %v128 = vld [vmem:[%s1 + $0x340] sm:$0xff]
  %v129 = vld [vmem:[%s1 + $0x348] sm:$0xff]
  %v130 = vld [vmem:[%s1 + $0x350] sm:$0xff]
  %v131 = vld [vmem:[%s1 + $0x358] sm:$0xff]
  %v132 = vld [vmem:[%s1 + $0x360] sm:$0xff]
  %v133 = vld [vmem:[%s1 + $0x368] sm:$0xff]
  %v134 = vld [vmem:[%s1 + $0x370] sm:$0xff]
  %v135 = vld [vmem:[%s1 + $0x378] sm:$0xff]
  %v136 = vld [vmem:[%s1 + $0x380] sm:$0xff]
  %v137 = vld [vmem:[%s1 + $0x388] sm:$0xff]
  %v138 = vld [vmem:[%s1 + $0x390] sm:$0xff]
  %v139 = vld [vmem:[%s1 + $0x398] sm:$0xff]
  %v140 = vld [vmem:[%s1 + $0x3a0] sm:$0xff]
  %v141 = vld [vmem:[%s1 + $0x3a8] sm:$0xff]
  %v142 = vld [vmem:[%s1 + $0x3b0] sm:$0xff]
  %v143 = vld [vmem:[%s1 + $0x3b8] sm:$0xff]
  %v144 = vld [vmem:[%s1 + $0x3c0] sm:$0xff]
  %v145 = vld [vmem:[%s1 + $0x3c8] sm:$0xff]
  %v146 = vld [vmem:[%s1 + $0x3d0] sm:$0xff]
  %v147 = vld [vmem:[%s1 + $0x3d8] sm:$0xff]
  %v148 = vld [vmem:[%s1 + $0x3e0] sm:$0xff]
  %v149 = vld [vmem:[%s1 + $0x3e8] sm:$0xff]
  %v150 = vld [vmem:[%s1 + $0x3f0] sm:$0xff]
  %v151 = vld [vmem:[%s1 + $0x3f8] sm:$0xff]
  %v152 = vld [vmem:[%s1 + $0x400] sm:$0xff]
  %v153 = vld [vmem:[%s1 + $0x408] sm:$0xff]
  %v154 = vld [vmem:[%s1 + $0x410] sm:$0xff]
  %v155 = vld [vmem:[%s1 + $0x418] sm:$0xff]
  %v156 = vld [vmem:[%s1 + $0x420] sm:$0xff]
  %v157 = vld [vmem:[%s1 + $0x428] sm:$0xff]
  %v158 = vld [vmem:[%s1 + $0x430] sm:$0xff]
  %v159 = vld [vmem:[%s1 + $0x438] sm:$0xff]
  %v160 = vld [vmem:[%s1 + $0x440] sm:$0xff]
  %v161 = vld [vmem:[%s1 + $0x448] sm:$0xff]
  %v162 = vld [vmem:[%s1 + $0x450] sm:$0xff]
  %v163 = vld [vmem:[%s1 + $0x458] sm:$0xff]
  %v164 = vld [vmem:[%s1 + $0x460] sm:$0xff]
  %v165 = vld [vmem:[%s1 + $0x468] sm:$0xff]
  %v166 = vld [vmem:[%s1 + $0x470] sm:$0xff]
  %v167 = vld [vmem:[%s1 + $0x478] sm:$0xff]
  %v168 = vld [vmem:[%s2] sm:$0x3]
  %v170 = vperm.slane %v168, 0
  %v171 = vperm.slane %v168, 1
  %v184 = vunpack.c.l.b16 %v14
  %v185 = vunpack.c.h.b16 %v14
  %v186 = vunpack.c.l.b16 %v15
  %v187 = vunpack.c.h.b16 %v15
  %v188 = vunpack.c.l.b16 %v16
  %v189 = vunpack.c.h.b16 %v16
  %v190 = vunpack.c.l.b16 %v17
  %v191 = vunpack.c.h.b16 %v17
  %v192 = vunpack.c.l.b16 %v18
  %v193 = vunpack.c.l.b16 %v19
  %v194 = vunpack.c.h.b16 %v19
  %v195 = vunpack.c.l.b16 %v20
  %v196 = vunpack.c.h.b16 %v20
  %v197 = vunpack.c.l.b16 %v21
  %v198 = vunpack.c.h.b16 %v21
  %v199 = vunpack.c.l.b16 %v22
  %v200 = vunpack.c.h.b16 %v22
  %v201 = vunpack.c.l.b16 %v23
  %v202 = vpack.c.b16 %v193, %v184
  %v203 = vpack.c.b16 %v194, %v185
  %v204 = vpack.c.b16 %v195, %v186
  %v205 = vpack.c.b16 %v196, %v187
  %v206 = vpack.c.b16 %v197, %v188
  %v207 = vpack.c.b16 %v198, %v189
  %v208 = vpack.c.b16 %v199, %v190
  %v209 = vpack.c.b16 %v200, %v191
  %v210 = vpack.c.b16 %v201, %v192
  %v364 = vunpack.c.l.b16 %v24
  %v365 = vunpack.c.h.b16 %v24
  %v366 = vunpack.c.l.b16 %v25
  %v367 = vunpack.c.h.b16 %v25
  %v368 = vunpack.c.l.b16 %v26
  %v369 = vunpack.c.h.b16 %v26
  %v370 = vunpack.c.l.b16 %v27
  %v371 = vunpack.c.h.b16 %v27
  %v372 = vunpack.c.l.b16 %v28
  %v373 = vunpack.c.h.b16 %v28
  %v374 = vunpack.c.l.b16 %v29
  %v375 = vunpack.c.h.b16 %v29
  %v376 = vunpack.c.l.b16 %v30
  %v377 = vunpack.c.h.b16 %v30
  %v378 = vunpack.c.l.b16 %v31
  %v379 = vunpack.c.h.b16 %v31
  %v380 = vunpack.c.l.b16 %v32
  %v381 = vunpack.c.h.b16 %v32
  %v382 = vunpack.c.l.b16 %v33
  %v383 = vunpack.c.h.b16 %v33
  %v384 = vunpack.c.l.b16 %v34
  %v385 = vunpack.c.h.b16 %v34
  %v386 = vunpack.c.l.b16 %v35
  %v387 = vunpack.c.h.b16 %v35
  %v388 = vunpack.c.l.b16 %v36
  %v389 = vunpack.c.h.b16 %v36
  %v390 = vunpack.c.l.b16 %v37
  %v391 = vunpack.c.h.b16 %v37
  %v392 = vunpack.c.l.b16 %v38
  %v393 = vunpack.c.h.b16 %v38
  %v394 = vunpack.c.l.b16 %v39
  %v395 = vunpack.c.h.b16 %v39
  %v396 = vunpack.c.l.b16 %v40
  %v397 = vunpack.c.h.b16 %v40
  %v398 = vunpack.c.l.b16 %v41
  %v399 = vunpack.c.h.b16 %v41
  %v400 = vunpack.c.l.b16 %v42
  %v401 = vunpack.c.h.b16 %v42
  %v402 = vunpack.c.l.b16 %v43
  %v403 = vunpack.c.h.b16 %v43
  %v404 = vunpack.c.l.b16 %v44
  %v405 = vunpack.c.h.b16 %v44
  %v406 = vunpack.c.l.b16 %v45
  %v407 = vunpack.c.h.b16 %v45
  %v408 = vunpack.c.l.b16 %v46
  %v409 = vunpack.c.h.b16 %v46
  %v410 = vunpack.c.l.b16 %v47
  %v411 = vunpack.c.h.b16 %v47
  %v412 = vunpack.c.l.b16 %v48
  %v413 = vunpack.c.h.b16 %v48
  %v414 = vunpack.c.l.b16 %v49
  %v415 = vunpack.c.h.b16 %v49
  %v416 = vunpack.c.l.b16 %v50
  %v417 = vunpack.c.h.b16 %v50
  %v418 = vunpack.c.l.b16 %v51
  %v419 = vunpack.c.h.b16 %v51
  %v420 = vunpack.c.l.b16 %v52
  %v421 = vunpack.c.h.b16 %v52
  %v422 = vunpack.c.l.b16 %v53
  %v423 = vunpack.c.h.b16 %v53
  %v424 = vunpack.c.l.b16 %v54
  %v425 = vunpack.c.h.b16 %v54
  %v426 = vunpack.c.l.b16 %v55
  %v427 = vunpack.c.h.b16 %v55
  %v428 = vunpack.c.l.b16 %v56
  %v429 = vunpack.c.h.b16 %v56
  %v430 = vunpack.c.l.b16 %v57
  %v431 = vunpack.c.h.b16 %v57
  %v432 = vunpack.c.l.b16 %v58
  %v433 = vunpack.c.h.b16 %v58
  %v434 = vunpack.c.l.b16 %v59
  %v435 = vunpack.c.h.b16 %v59
  %v436 = vunpack.c.l.b16 %v60
  %v437 = vunpack.c.h.b16 %v60
  %v438 = vunpack.c.l.b16 %v61
  %v439 = vunpack.c.h.b16 %v61
  %v440 = vunpack.c.l.b16 %v62
  %v441 = vunpack.c.h.b16 %v62
  %v442 = vunpack.c.l.b16 %v63
  %v443 = vunpack.c.h.b16 %v63
  %v444 = vunpack.c.l.b16 %v64
  %v445 = vunpack.c.h.b16 %v64
  %v446 = vunpack.c.l.b16 %v65
  %v447 = vunpack.c.h.b16 %v65
  %v448 = vunpack.c.l.b16 %v66
  %v449 = vunpack.c.h.b16 %v66
  %v450 = vunpack.c.l.b16 %v67
  %v451 = vunpack.c.h.b16 %v67
  %v452 = vunpack.c.l.b16 %v68
  %v453 = vunpack.c.h.b16 %v68
  %v454 = vunpack.c.l.b16 %v69
  %v455 = vunpack.c.h.b16 %v69
  %v456 = vunpack.c.l.b16 %v70
  %v457 = vunpack.c.h.b16 %v70
  %v458 = vunpack.c.l.b16 %v71
  %v459 = vunpack.c.h.b16 %v71
  %v460 = vunpack.c.l.b16 %v72
  %v461 = vunpack.c.h.b16 %v72
  %v462 = vunpack.c.l.b16 %v73
  %v463 = vunpack.c.h.b16 %v73
  %v464 = vunpack.c.l.b16 %v74
  %v465 = vunpack.c.h.b16 %v74
  %v466 = vunpack.c.l.b16 %v75
  %v467 = vunpack.c.h.b16 %v75
  %v468 = vunpack.c.l.b16 %v76
  %v469 = vunpack.c.h.b16 %v76
  %v470 = vunpack.c.l.b16 %v77
  %v471 = vunpack.c.h.b16 %v77
  %v472 = vunpack.c.l.b16 %v78
  %v473 = vunpack.c.h.b16 %v78
  %v474 = vunpack.c.l.b16 %v79
  %v475 = vunpack.c.h.b16 %v79
  %v476 = vunpack.c.l.b16 %v80
  %v477 = vunpack.c.h.b16 %v80
  %v478 = vunpack.c.l.b16 %v81
  %v479 = vunpack.c.h.b16 %v81
  %v480 = vunpack.c.l.b16 %v82
  %v481 = vunpack.c.h.b16 %v82
  %v482 = vunpack.c.l.b16 %v83
  %v483 = vunpack.c.h.b16 %v83
  %v484 = vunpack.c.l.b16 %v84
  %v485 = vunpack.c.h.b16 %v84
  %v486 = vunpack.c.l.b16 %v85
  %v487 = vunpack.c.h.b16 %v85
  %v488 = vunpack.c.l.b16 %v86
  %v489 = vunpack.c.h.b16 %v86
  %v490 = vunpack.c.l.b16 %v87
  %v491 = vunpack.c.h.b16 %v87
  %v492 = vunpack.c.l.b16 %v88
  %v493 = vunpack.c.h.b16 %v88
  %v494 = vunpack.c.l.b16 %v89
  %v495 = vunpack.c.h.b16 %v89
  %v496 = vunpack.c.l.b16 %v90
  %v497 = vunpack.c.h.b16 %v90
  %v498 = vunpack.c.l.b16 %v91
  %v499 = vunpack.c.h.b16 %v91
  %v500 = vunpack.c.l.b16 %v92
  %v501 = vunpack.c.h.b16 %v92
  %v502 = vunpack.c.l.b16 %v93
  %v503 = vunpack.c.h.b16 %v93
  %v504 = vunpack.c.l.b16 %v94
  %v505 = vunpack.c.h.b16 %v94
  %v506 = vunpack.c.l.b16 %v95
  %v507 = vunpack.c.h.b16 %v95
  %v508 = vunpack.c.l.b16 %v96
  %v509 = vunpack.c.h.b16 %v96
  %v510 = vunpack.c.l.b16 %v97
  %v511 = vunpack.c.h.b16 %v97
  %v512 = vunpack.c.l.b16 %v98
  %v513 = vunpack.c.h.b16 %v98
  %v514 = vunpack.c.l.b16 %v99
  %v515 = vunpack.c.h.b16 %v99
  %v516 = vunpack.c.l.b16 %v100
  %v517 = vunpack.c.h.b16 %v100
  %v518 = vunpack.c.l.b16 %v101
  %v519 = vunpack.c.h.b16 %v101
  %v520 = vunpack.c.l.b16 %v102
  %v521 = vunpack.c.h.b16 %v102
  %v522 = vunpack.c.l.b16 %v103
  %v523 = vunpack.c.h.b16 %v103
  %v524 = vunpack.c.l.b16 %v104
  %v525 = vunpack.c.h.b16 %v104
  %v526 = vunpack.c.l.b16 %v105
  %v527 = vunpack.c.h.b16 %v105
  %v528 = vunpack.c.l.b16 %v106
  %v529 = vunpack.c.h.b16 %v106
  %v530 = vunpack.c.l.b16 %v107
  %v531 = vunpack.c.h.b16 %v107
  %v532 = vunpack.c.l.b16 %v108
  %v533 = vunpack.c.h.b16 %v108
  %v534 = vunpack.c.l.b16 %v109
  %v535 = vunpack.c.h.b16 %v109
  %v536 = vunpack.c.l.b16 %v110
  %v537 = vunpack.c.h.b16 %v110
  %v538 = vunpack.c.l.b16 %v111
  %v539 = vunpack.c.h.b16 %v111
  %v540 = vunpack.c.l.b16 %v112
  %v541 = vunpack.c.h.b16 %v112
  %v542 = vunpack.c.l.b16 %v113
  %v543 = vunpack.c.h.b16 %v113
  %v544 = vunpack.c.l.b16 %v114
  %v545 = vunpack.c.h.b16 %v114
  %v546 = vunpack.c.l.b16 %v115
  %v547 = vunpack.c.h.b16 %v115
  %v548 = vunpack.c.l.b16 %v116
  %v549 = vunpack.c.h.b16 %v116
  %v550 = vunpack.c.l.b16 %v117
  %v551 = vunpack.c.h.b16 %v117
  %v552 = vunpack.c.l.b16 %v118
  %v553 = vunpack.c.h.b16 %v118
  %v554 = vunpack.c.l.b16 %v119
  %v555 = vunpack.c.h.b16 %v119
  %v556 = vunpack.c.l.b16 %v120
  %v557 = vunpack.c.h.b16 %v120
  %v558 = vunpack.c.l.b16 %v121
  %v559 = vunpack.c.h.b16 %v121
  %v560 = vunpack.c.l.b16 %v122
  %v561 = vunpack.c.h.b16 %v122
  %v562 = vunpack.c.l.b16 %v123
  %v563 = vunpack.c.h.b16 %v123
  %v564 = vunpack.c.l.b16 %v124
  %v565 = vunpack.c.h.b16 %v124
  %v566 = vunpack.c.l.b16 %v125
  %v567 = vunpack.c.h.b16 %v125
  %v568 = vunpack.c.l.b16 %v126
  %v569 = vunpack.c.h.b16 %v126
  %v570 = vunpack.c.l.b16 %v127
  %v571 = vunpack.c.h.b16 %v127
  %v572 = vunpack.c.l.b16 %v128
  %v573 = vunpack.c.h.b16 %v128
  %v574 = vunpack.c.l.b16 %v129
  %v575 = vunpack.c.h.b16 %v129
  %v576 = vunpack.c.l.b16 %v130
  %v577 = vunpack.c.h.b16 %v130
  %v578 = vunpack.c.l.b16 %v131
  %v579 = vunpack.c.h.b16 %v131
  %v580 = vunpack.c.l.b16 %v132
  %v581 = vunpack.c.h.b16 %v132
  %v582 = vunpack.c.l.b16 %v133
  %v583 = vunpack.c.h.b16 %v133
  %v584 = vunpack.c.l.b16 %v134
  %v585 = vunpack.c.h.b16 %v134
  %v586 = vunpack.c.l.b16 %v135
  %v587 = vunpack.c.h.b16 %v135
  %v588 = vunpack.c.l.b16 %v136
  %v589 = vunpack.c.h.b16 %v136
  %v590 = vunpack.c.l.b16 %v137
  %v591 = vunpack.c.h.b16 %v137
  %v592 = vunpack.c.l.b16 %v138
  %v593 = vunpack.c.h.b16 %v138
  %v594 = vunpack.c.l.b16 %v139
  %v595 = vunpack.c.h.b16 %v139
  %v596 = vunpack.c.l.b16 %v140
  %v597 = vunpack.c.h.b16 %v140
  %v598 = vunpack.c.l.b16 %v141
  %v599 = vunpack.c.h.b16 %v141
  %v600 = vunpack.c.l.b16 %v142
  %v601 = vunpack.c.h.b16 %v142
  %v602 = vunpack.c.l.b16 %v143
  %v603 = vunpack.c.h.b16 %v143
  %v604 = vunpack.c.l.b16 %v144
  %v605 = vunpack.c.h.b16 %v144
  %v606 = vunpack.c.l.b16 %v145
  %v607 = vunpack.c.h.b16 %v145
  %v608 = vunpack.c.l.b16 %v146
  %v609 = vunpack.c.h.b16 %v146
  %v610 = vunpack.c.l.b16 %v147
  %v611 = vunpack.c.h.b16 %v147
  %v612 = vunpack.c.l.b16 %v148
  %v613 = vunpack.c.h.b16 %v148
  %v614 = vunpack.c.l.b16 %v149
  %v615 = vunpack.c.h.b16 %v149
  %v616 = vunpack.c.l.b16 %v150
  %v617 = vunpack.c.h.b16 %v150
  %v618 = vunpack.c.l.b16 %v151
  %v619 = vunpack.c.h.b16 %v151
  %v620 = vunpack.c.l.b16 %v152
  %v621 = vunpack.c.h.b16 %v152
  %v622 = vunpack.c.l.b16 %v153
  %v623 = vunpack.c.h.b16 %v153
  %v624 = vunpack.c.l.b16 %v154
  %v625 = vunpack.c.h.b16 %v154
  %v626 = vunpack.c.l.b16 %v155
  %v627 = vunpack.c.h.b16 %v155
  %v628 = vunpack.c.l.b16 %v156
  %v629 = vunpack.c.h.b16 %v156
  %v630 = vunpack.c.l.b16 %v157
  %v631 = vunpack.c.h.b16 %v157
  %v632 = vunpack.c.l.b16 %v158
  %v633 = vunpack.c.h.b16 %v158
  %v634 = vunpack.c.l.b16 %v159
  %v635 = vunpack.c.h.b16 %v159
  %v636 = vunpack.c.l.b16 %v160
  %v637 = vunpack.c.h.b16 %v160
  %v638 = vunpack.c.l.b16 %v161
  %v639 = vunpack.c.h.b16 %v161
  %v640 = vunpack.c.l.b16 %v162
  %v641 = vunpack.c.h.b16 %v162
  %v642 = vunpack.c.l.b16 %v163
  %v643 = vunpack.c.h.b16 %v163
  %v644 = vunpack.c.l.b16 %v164
  %v645 = vunpack.c.h.b16 %v164
  %v646 = vunpack.c.l.b16 %v165
  %v647 = vunpack.c.h.b16 %v165
  %v648 = vunpack.c.l.b16 %v166
  %v649 = vunpack.c.h.b16 %v166
  %v650 = vunpack.c.l.b16 %v167
  %v651 = vunpack.c.h.b16 %v167
  %v652 = vpack.c.b16 %v366, %v364
  %v653 = vpack.c.b16 %v367, %v365
  %v654 = vpack.c.b16 %v370, %v368
  %v655 = vpack.c.b16 %v371, %v369
  %v656 = vpack.c.b16 %v374, %v372
  %v657 = vpack.c.b16 %v375, %v373
  %v658 = vpack.c.b16 %v378, %v376
  %v659 = vpack.c.b16 %v379, %v377
  %v660 = vpack.c.b16 %v382, %v380
  %v661 = vpack.c.b16 %v383, %v381
  %v662 = vpack.c.b16 %v386, %v384
  %v663 = vpack.c.b16 %v387, %v385
  %v664 = vpack.c.b16 %v390, %v388
  %v665 = vpack.c.b16 %v391, %v389
  %v666 = vpack.c.b16 %v394, %v392
  %v667 = vpack.c.b16 %v395, %v393
  %v668 = vpack.c.b16 %v398, %v396
  %v669 = vpack.c.b16 %v399, %v397
  %v670 = vpack.c.b16 %v402, %v400
  %v671 = vpack.c.b16 %v403, %v401
  %v672 = vpack.c.b16 %v406, %v404
  %v673 = vpack.c.b16 %v407, %v405
  %v674 = vpack.c.b16 %v410, %v408
  %v675 = vpack.c.b16 %v411, %v409
  %v676 = vpack.c.b16 %v414, %v412
  %v677 = vpack.c.b16 %v415, %v413
  %v678 = vpack.c.b16 %v418, %v416
  %v679 = vpack.c.b16 %v419, %v417
  %v680 = vpack.c.b16 %v422, %v420
  %v681 = vpack.c.b16 %v423, %v421
  %v682 = vpack.c.b16 %v426, %v424
  %v683 = vpack.c.b16 %v427, %v425
  %v684 = vpack.c.b16 %v430, %v428
  %v685 = vpack.c.b16 %v431, %v429
  %v686 = vpack.c.b16 %v434, %v432
  %v687 = vpack.c.b16 %v435, %v433
  %v688 = vpack.c.b16 %v438, %v436
  %v689 = vpack.c.b16 %v439, %v437
  %v690 = vpack.c.b16 %v442, %v440
  %v691 = vpack.c.b16 %v443, %v441
  %v692 = vpack.c.b16 %v446, %v444
  %v693 = vpack.c.b16 %v447, %v445
  %v694 = vpack.c.b16 %v450, %v448
  %v695 = vpack.c.b16 %v451, %v449
  %v696 = vpack.c.b16 %v454, %v452
  %v697 = vpack.c.b16 %v455, %v453
  %v698 = vpack.c.b16 %v458, %v456
  %v699 = vpack.c.b16 %v459, %v457
  %v700 = vpack.c.b16 %v462, %v460
  %v701 = vpack.c.b16 %v463, %v461
  %v702 = vpack.c.b16 %v466, %v464
  %v703 = vpack.c.b16 %v467, %v465
  %v704 = vpack.c.b16 %v470, %v468
  %v705 = vpack.c.b16 %v471, %v469
  %v706 = vpack.c.b16 %v474, %v472
  %v707 = vpack.c.b16 %v475, %v473
  %v708 = vpack.c.b16 %v478, %v476
  %v709 = vpack.c.b16 %v479, %v477
  %v710 = vpack.c.b16 %v482, %v480
  %v711 = vpack.c.b16 %v483, %v481
  %v712 = vpack.c.b16 %v486, %v484
  %v713 = vpack.c.b16 %v487, %v485
  %v714 = vpack.c.b16 %v490, %v488
  %v715 = vpack.c.b16 %v491, %v489
  %v716 = vpack.c.b16 %v494, %v492
  %v717 = vpack.c.b16 %v495, %v493
  %v718 = vpack.c.b16 %v498, %v496
  %v719 = vpack.c.b16 %v499, %v497
  %v720 = vpack.c.b16 %v502, %v500
  %v721 = vpack.c.b16 %v503, %v501
  %v722 = vpack.c.b16 %v506, %v504
  %v723 = vpack.c.b16 %v507, %v505
  %v724 = vpack.c.b16 %v510, %v508
  %v725 = vpack.c.b16 %v511, %v509
  %v726 = vpack.c.b16 %v514, %v512
  %v727 = vpack.c.b16 %v515, %v513
  %v728 = vpack.c.b16 %v518, %v516
  %v729 = vpack.c.b16 %v519, %v517
  %v730 = vpack.c.b16 %v522, %v520
  %v731 = vpack.c.b16 %v523, %v521
  %v732 = vpack.c.b16 %v526, %v524
  %v733 = vpack.c.b16 %v527, %v525
  %v734 = vpack.c.b16 %v530, %v528
  %v735 = vpack.c.b16 %v531, %v529
  %v736 = vpack.c.b16 %v534, %v532
  %v737 = vpack.c.b16 %v535, %v533
  %v738 = vpack.c.b16 %v538, %v536
  %v739 = vpack.c.b16 %v539, %v537
  %v740 = vpack.c.b16 %v542, %v540
  %v741 = vpack.c.b16 %v543, %v541
  %v742 = vpack.c.b16 %v546, %v544
  %v743 = vpack.c.b16 %v547, %v545
  %v744 = vpack.c.b16 %v550, %v548
  %v745 = vpack.c.b16 %v551, %v549
  %v746 = vpack.c.b16 %v554, %v552
  %v747 = vpack.c.b16 %v555, %v553
  %v748 = vpack.c.b16 %v558, %v556
  %v749 = vpack.c.b16 %v559, %v557
  %v750 = vpack.c.b16 %v562, %v560
  %v751 = vpack.c.b16 %v563, %v561
  %v752 = vpack.c.b16 %v566, %v564
  %v753 = vpack.c.b16 %v567, %v565
  %v754 = vpack.c.b16 %v570, %v568
  %v755 = vpack.c.b16 %v571, %v569
  %v756 = vpack.c.b16 %v574, %v572
  %v757 = vpack.c.b16 %v575, %v573
  %v758 = vpack.c.b16 %v578, %v576
  %v759 = vpack.c.b16 %v579, %v577
  %v760 = vpack.c.b16 %v582, %v580
  %v761 = vpack.c.b16 %v583, %v581
  %v762 = vpack.c.b16 %v586, %v584
  %v763 = vpack.c.b16 %v587, %v585
  %v764 = vpack.c.b16 %v590, %v588
  %v765 = vpack.c.b16 %v591, %v589
  %v766 = vpack.c.b16 %v594, %v592
  %v767 = vpack.c.b16 %v595, %v593
  %v768 = vpack.c.b16 %v598, %v596
  %v769 = vpack.c.b16 %v599, %v597
  %v770 = vpack.c.b16 %v602, %v600
  %v771 = vpack.c.b16 %v603, %v601
  %v772 = vpack.c.b16 %v606, %v604
  %v773 = vpack.c.b16 %v607, %v605
  %v774 = vpack.c.b16 %v610, %v608
  %v775 = vpack.c.b16 %v611, %v609
  %v776 = vpack.c.b16 %v614, %v612
  %v777 = vpack.c.b16 %v615, %v613
  %v778 = vpack.c.b16 %v618, %v616
  %v779 = vpack.c.b16 %v619, %v617
  %v780 = vpack.c.b16 %v622, %v620
  %v781 = vpack.c.b16 %v623, %v621
  %v782 = vpack.c.b16 %v626, %v624
  %v783 = vpack.c.b16 %v627, %v625
  %v784 = vpack.c.b16 %v630, %v628
  %v785 = vpack.c.b16 %v631, %v629
  %v786 = vpack.c.b16 %v634, %v632
  %v787 = vpack.c.b16 %v635, %v633
  %v788 = vpack.c.b16 %v638, %v636
  %v789 = vpack.c.b16 %v639, %v637
  %v790 = vpack.c.b16 %v642, %v640
  %v791 = vpack.c.b16 %v643, %v641
  %v792 = vpack.c.b16 %v646, %v644
  %v793 = vpack.c.b16 %v647, %v645
  %v794 = vpack.c.b16 %v650, %v648
  %v795 = vpack.c.b16 %v651, %v649
  %940 = vmatpush.bf16.msra.mxu0 %v666
  %941 = vmatpush.bf16.msra.mxu0 %v664
  %942 = vmatpush.bf16.msra.mxu0 %v662
  %943 = vmatpush.bf16.msra.mxu0 %v660
  %944 = vmatpush.bf16.msra.mxu0 %v658
  %945 = vmatpush.bf16.msra.mxu0 %v656
  %946 = vmatpush.bf16.msra.mxu0 %v654
  %947 = vmatpush.bf16.msra.mxu0 %v652
  %948 = vmatmul.bf16.gmra.mxu0 %v202
  %v949 = vpop.f32.mrf.mxu0
  %v950 = vadd.f32 %v170, %v949
  %v951 = vpop.f32.mrf.mxu0
  %v952 = vadd.f32 %v170, %v951
  %953 = vdwg.mxu0
  %954 = vmatpush.bf16.msra.mxu0 %v682
  %955 = vmatpush.bf16.msra.mxu0 %v680
  %956 = vmatpush.bf16.msra.mxu0 %v678
  %957 = vmatpush.bf16.msra.mxu0 %v676
  %958 = vmatpush.bf16.msra.mxu0 %v674
  %959 = vmatpush.bf16.msra.mxu0 %v672
  %960 = vmatpush.bf16.msra.mxu0 %v670
  %961 = vmatpush.bf16.msra.mxu0 %v668
  %962 = vmatmul.bf16.gmra.mxu0 %v203
  %v963 = vpop.f32.mrf.mxu0
  %v964 = vadd.f32 %v950, %v963
  %v965 = vpop.f32.mrf.mxu0
  %v966 = vadd.f32 %v952, %v965
  %967 = vdwg.mxu0
  %968 = vmatpush.bf16.msra.mxu0 %v698
  %969 = vmatpush.bf16.msra.mxu0 %v696
  %970 = vmatpush.bf16.msra.mxu0 %v694
  %971 = vmatpush.bf16.msra.mxu0 %v692
  %972 = vmatpush.bf16.msra.mxu0 %v690
  %973 = vmatpush.bf16.msra.mxu0 %v688
  %974 = vmatpush.bf16.msra.mxu0 %v686
  %975 = vmatpush.bf16.msra.mxu0 %v684
  %976 = vmatmul.bf16.gmra.mxu0 %v204
  %v977 = vpop.f32.mrf.mxu0
  %v978 = vadd.f32 %v964, %v977
  %v979 = vpop.f32.mrf.mxu0
  %v980 = vadd.f32 %v966, %v979
  %981 = vdwg.mxu0
  %982 = vmatpush.bf16.msra.mxu0 %v714
  %983 = vmatpush.bf16.msra.mxu0 %v712
  %984 = vmatpush.bf16.msra.mxu0 %v710
  %985 = vmatpush.bf16.msra.mxu0 %v708
  %986 = vmatpush.bf16.msra.mxu0 %v706
  %987 = vmatpush.bf16.msra.mxu0 %v704
  %988 = vmatpush.bf16.msra.mxu0 %v702
  %989 = vmatpush.bf16.msra.mxu0 %v700
  %990 = vmatmul.bf16.gmra.mxu0 %v205
  %v991 = vpop.f32.mrf.mxu0
  %v992 = vadd.f32 %v978, %v991
  %v993 = vpop.f32.mrf.mxu0
  %v994 = vadd.f32 %v980, %v993
  %995 = vdwg.mxu0
  %996 = vmatpush.bf16.msra.mxu0 %v730
  %997 = vmatpush.bf16.msra.mxu0 %v728
  %998 = vmatpush.bf16.msra.mxu0 %v726
  %999 = vmatpush.bf16.msra.mxu0 %v724
  %1000 = vmatpush.bf16.msra.mxu0 %v722
  %1001 = vmatpush.bf16.msra.mxu0 %v720
  %1002 = vmatpush.bf16.msra.mxu0 %v718
  %1003 = vmatpush.bf16.msra.mxu0 %v716
  %1004 = vmatmul.bf16.gmra.mxu0 %v206
  %v1005 = vpop.f32.mrf.mxu0
  %v1006 = vadd.f32 %v992, %v1005
  %v1007 = vpop.f32.mrf.mxu0
  %v1008 = vadd.f32 %v994, %v1007
  %1009 = vdwg.mxu0
  %1010 = vmatpush.bf16.msra.mxu0 %v746
  %1011 = vmatpush.bf16.msra.mxu0 %v744
  %1012 = vmatpush.bf16.msra.mxu0 %v742
  %1013 = vmatpush.bf16.msra.mxu0 %v740
  %1014 = vmatpush.bf16.msra.mxu0 %v738
  %1015 = vmatpush.bf16.msra.mxu0 %v736
  %1016 = vmatpush.bf16.msra.mxu0 %v734
  %1017 = vmatpush.bf16.msra.mxu0 %v732
  %1018 = vmatmul.bf16.gmra.mxu0 %v207
  %v1019 = vpop.f32.mrf.mxu0
  %v1020 = vadd.f32 %v1006, %v1019
  %v1021 = vpop.f32.mrf.mxu0
  %v1022 = vadd.f32 %v1008, %v1021
  %1023 = vdwg.mxu0
  %1024 = vmatpush.bf16.msra.mxu0 %v762
  %1025 = vmatpush.bf16.msra.mxu0 %v760
  %1026 = vmatpush.bf16.msra.mxu0 %v758
  %1027 = vmatpush.bf16.msra.mxu0 %v756
  %1028 = vmatpush.bf16.msra.mxu0 %v754
  %1029 = vmatpush.bf16.msra.mxu0 %v752
  %1030 = vmatpush.bf16.msra.mxu0 %v750
  %1031 = vmatpush.bf16.msra.mxu0 %v748
  %1032 = vmatmul.bf16.gmra.mxu0 %v208
  %v1033 = vpop.f32.mrf.mxu0
  %v1034 = vadd.f32 %v1020, %v1033
  %v1035 = vpop.f32.mrf.mxu0
  %v1036 = vadd.f32 %v1022, %v1035
  %1037 = vdwg.mxu0
  %1038 = vmatpush.bf16.msra.mxu0 %v778
  %1039 = vmatpush.bf16.msra.mxu0 %v776
  %1040 = vmatpush.bf16.msra.mxu0 %v774
  %1041 = vmatpush.bf16.msra.mxu0 %v772
  %1042 = vmatpush.bf16.msra.mxu0 %v770
  %1043 = vmatpush.bf16.msra.mxu0 %v768
  %1044 = vmatpush.bf16.msra.mxu0 %v766
  %1045 = vmatpush.bf16.msra.mxu0 %v764
  %1046 = vmatmul.bf16.gmra.mxu0 %v209
  %v1047 = vpop.f32.mrf.mxu0
  %v1048 = vadd.f32 %v1034, %v1047
  %v1049 = vpop.f32.mrf.mxu0
  %v1050 = vadd.f32 %v1036, %v1049
  %1051 = vdwg.mxu0
  %1052 = vmatpush.bf16.msra.mxu0 %v794
  %1053 = vmatpush.bf16.msra.mxu0 %v792
  %1054 = vmatpush.bf16.msra.mxu0 %v790
  %1055 = vmatpush.bf16.msra.mxu0 %v788
  %1056 = vmatpush.bf16.msra.mxu0 %v786
  %1057 = vmatpush.bf16.msra.mxu0 %v784
  %1058 = vmatpush.bf16.msra.mxu0 %v782
  %1059 = vmatpush.bf16.msra.mxu0 %v780
  %1060 = vmatmul.bf16.gmra.mxu0 %v210
  %v1061 = vpop.f32.mrf.mxu0
  %v1062 = vadd.f32 %v1048, %v1061
  %v1063 = vpop.f32.mrf.mxu0
  %v1064 = vadd.f32 %v1050, %v1063
  %1065 = vdwg.mxu0
  %1066 = vmatpush.bf16.msra.mxu0 %v667
  %1067 = vmatpush.bf16.msra.mxu0 %v665
  %1068 = vmatpush.bf16.msra.mxu0 %v663
  %1069 = vmatpush.bf16.msra.mxu0 %v661
  %1070 = vmatpush.bf16.msra.mxu0 %v659
  %1071 = vmatpush.bf16.msra.mxu0 %v657
  %1072 = vmatpush.bf16.msra.mxu0 %v655
  %1073 = vmatpush.bf16.msra.mxu0 %v653
  %1074 = vmatmul.bf16.gmra.mxu0 %v202
  %v1075 = vpop.f32.mrf.mxu0
  %v1076 = vadd.f32 %v171, %v1075
  %v1077 = vpop.f32.mrf.mxu0
  %v1078 = vadd.f32 %v171, %v1077
  %1079 = vdwg.mxu0
  %1080 = vmatpush.bf16.msra.mxu0 %v683
  %1081 = vmatpush.bf16.msra.mxu0 %v681
  %1082 = vmatpush.bf16.msra.mxu0 %v679
  %1083 = vmatpush.bf16.msra.mxu0 %v677
  %1084 = vmatpush.bf16.msra.mxu0 %v675
  %1085 = vmatpush.bf16.msra.mxu0 %v673
  %1086 = vmatpush.bf16.msra.mxu0 %v671
  %1087 = vmatpush.bf16.msra.mxu0 %v669
  %1088 = vmatmul.bf16.gmra.mxu0 %v203
  %v1089 = vpop.f32.mrf.mxu0
  %v1090 = vadd.f32 %v1076, %v1089
  %v1091 = vpop.f32.mrf.mxu0
  %v1092 = vadd.f32 %v1078, %v1091
  %1093 = vdwg.mxu0
  %1094 = vmatpush.bf16.msra.mxu0 %v699
  %1095 = vmatpush.bf16.msra.mxu0 %v697
  %1096 = vmatpush.bf16.msra.mxu0 %v695
  %1097 = vmatpush.bf16.msra.mxu0 %v693
  %1098 = vmatpush.bf16.msra.mxu0 %v691
  %1099 = vmatpush.bf16.msra.mxu0 %v689
  %1100 = vmatpush.bf16.msra.mxu0 %v687
  %1101 = vmatpush.bf16.msra.mxu0 %v685
  %1102 = vmatmul.bf16.gmra.mxu0 %v204
  %v1103 = vpop.f32.mrf.mxu0
  %v1104 = vadd.f32 %v1090, %v1103
  %v1105 = vpop.f32.mrf.mxu0
  %v1106 = vadd.f32 %v1092, %v1105
  %1107 = vdwg.mxu0
  %1108 = vmatpush.bf16.msra.mxu0 %v715
  %1109 = vmatpush.bf16.msra.mxu0 %v713
  %1110 = vmatpush.bf16.msra.mxu0 %v711
  %1111 = vmatpush.bf16.msra.mxu0 %v709
  %1112 = vmatpush.bf16.msra.mxu0 %v707
  %1113 = vmatpush.bf16.msra.mxu0 %v705
  %1114 = vmatpush.bf16.msra.mxu0 %v703
  %1115 = vmatpush.bf16.msra.mxu0 %v701
  %1116 = vmatmul.bf16.gmra.mxu0 %v205
  %v1117 = vpop.f32.mrf.mxu0
  %v1118 = vadd.f32 %v1104, %v1117
  %v1119 = vpop.f32.mrf.mxu0
  %v1120 = vadd.f32 %v1106, %v1119
  %1121 = vdwg.mxu0
  %1122 = vmatpush.bf16.msra.mxu0 %v731
  %1123 = vmatpush.bf16.msra.mxu0 %v729
  %1124 = vmatpush.bf16.msra.mxu0 %v727
  %1125 = vmatpush.bf16.msra.mxu0 %v725
  %1126 = vmatpush.bf16.msra.mxu0 %v723
  %1127 = vmatpush.bf16.msra.mxu0 %v721
  %1128 = vmatpush.bf16.msra.mxu0 %v719
  %1129 = vmatpush.bf16.msra.mxu0 %v717
  %1130 = vmatmul.bf16.gmra.mxu0 %v206
  %v1131 = vpop.f32.mrf.mxu0
  %v1132 = vadd.f32 %v1118, %v1131
  %v1133 = vpop.f32.mrf.mxu0
  %v1134 = vadd.f32 %v1120, %v1133
  %1135 = vdwg.mxu0
  %1136 = vmatpush.bf16.msra.mxu0 %v747
  %1137 = vmatpush.bf16.msra.mxu0 %v745
  %1138 = vmatpush.bf16.msra.mxu0 %v743
  %1139 = vmatpush.bf16.msra.mxu0 %v741
  %1140 = vmatpush.bf16.msra.mxu0 %v739
  %1141 = vmatpush.bf16.msra.mxu0 %v737
  %1142 = vmatpush.bf16.msra.mxu0 %v735
  %1143 = vmatpush.bf16.msra.mxu0 %v733
  %1144 = vmatmul.bf16.gmra.mxu0 %v207
  %v1145 = vpop.f32.mrf.mxu0
  %v1146 = vadd.f32 %v1132, %v1145
  %v1147 = vpop.f32.mrf.mxu0
  %v1148 = vadd.f32 %v1134, %v1147
  %1149 = vdwg.mxu0
  %1150 = vmatpush.bf16.msra.mxu0 %v763
  %1151 = vmatpush.bf16.msra.mxu0 %v761
  %1152 = vmatpush.bf16.msra.mxu0 %v759
  %1153 = vmatpush.bf16.msra.mxu0 %v757
  %1154 = vmatpush.bf16.msra.mxu0 %v755
  %1155 = vmatpush.bf16.msra.mxu0 %v753
  %1156 = vmatpush.bf16.msra.mxu0 %v751
  %1157 = vmatpush.bf16.msra.mxu0 %v749
  %1158 = vmatmul.bf16.gmra.mxu0 %v208
  %v1159 = vpop.f32.mrf.mxu0
  %v1160 = vadd.f32 %v1146, %v1159
  %v1161 = vpop.f32.mrf.mxu0
  %v1162 = vadd.f32 %v1148, %v1161
  %1163 = vdwg.mxu0
  %1164 = vmatpush.bf16.msra.mxu0 %v779
  %1165 = vmatpush.bf16.msra.mxu0 %v777
  %1166 = vmatpush.bf16.msra.mxu0 %v775
  %1167 = vmatpush.bf16.msra.mxu0 %v773
  %1168 = vmatpush.bf16.msra.mxu0 %v771
  %1169 = vmatpush.bf16.msra.mxu0 %v769
  %1170 = vmatpush.bf16.msra.mxu0 %v767
  %1171 = vmatpush.bf16.msra.mxu0 %v765
  %1172 = vmatmul.bf16.gmra.mxu0 %v209
  %v1173 = vpop.f32.mrf.mxu0
  %v1174 = vadd.f32 %v1160, %v1173
  %v1175 = vpop.f32.mrf.mxu0
  %v1176 = vadd.f32 %v1162, %v1175
  %1177 = vdwg.mxu0
  %1178 = vmatpush.bf16.msra.mxu0 %v795
  %1179 = vmatpush.bf16.msra.mxu0 %v793
  %1180 = vmatpush.bf16.msra.mxu0 %v791
  %1181 = vmatpush.bf16.msra.mxu0 %v789
  %1182 = vmatpush.bf16.msra.mxu0 %v787
  %1183 = vmatpush.bf16.msra.mxu0 %v785
  %1184 = vmatpush.bf16.msra.mxu0 %v783
  %1185 = vmatpush.bf16.msra.mxu0 %v781
  %1186 = vmatmul.bf16.gmra.mxu0 %v210
  %v1187 = vpop.f32.mrf.mxu0
  %v1188 = vadd.f32 %v1174, %v1187
  %v1189 = vpop.f32.mrf.mxu0
  %v1190 = vadd.f32 %v1176, %v1189
  %1191 = vdwg.mxu0
  %v1192 = vmax.f32 %v1062, 0.0
  %v1193 = vmax.f32 %v1188, 0.0
  %v1194 = vmax.f32 %v1064, 0.0
  %v1195 = vmax.f32 %v1190, 0.0
  %1196 = vst [vmem:[%s3] sm:$0xff] %v1192
  %1197 = vst [vmem:[%s3 + $0x8] sm:$0xff] %v1193
  %1198 = vst [vmem:[%s3 + $0x10] sm:$0xff] %v1194
  %1199 = vst [vmem:[%s3 + $0x18] sm:$0xff] %v1195
  // Predicated region
  $region14: #{resnet_forward.18} parent=0 // pred_check
    _
  $region15: #{resnet_forward.18} parent=0 // pred_check_branch
    %1201 = sbr.rel (0) target = $region17
  $region16: #{resnet_forward.18} parent=0 // pred_region
    _
  $region17: #{resnet_forward.18} parent=0 // pred_fallthru
    _
  // Predicated region
  $region18: #{resnet_forward.18} parent=0 // pred_check
    _
  $region19: #{resnet_forward.18} parent=0 // pred_check_branch
    %1203 = sbr.rel (0) target = $region21
  $region20: #{resnet_forward.18} parent=0 // pred_region
    _
  $region21: #{resnet_forward.18} parent=0 // pred_fallthru
    _

// kernel: resnet_forward.23
$region0: #{resnet_forward.23}
  #allocation0 [shape = 'u32[]', space=smem, size = 0x4, offset = 0x4, fixed_abs, tag = 'smem constant byte address 0x4 - core index']
  #allocation1 [shape = 'u32[72,128]{1,0:T(1,128)}', space=vmem, size = 0x9000, scoped, tag = 'internal scratch']
  %s0 = inlined_call_operand.vmem [shape: bf16[16,256], index: 0, kind: input, shape index: {}]
  %s1 = inlined_call_operand.vmem [shape: bf16[256,16], index: 1, kind: input, shape index: {}]
  %s2 = inlined_call_operand.vmem [shape: f32[1,16], index: 2, kind: input, shape index: {}]
  %s3 = inlined_call_operand.vmem [shape: f32[16,16], index: 3, kind: output, shape index: {}]
  %s4 = sld [smem:[#allocation0]]
  $region22: #{resnet_forward.23} parent=0
    _
  %s6 = ssub.s32 1, %s4
  %s7 = scalar_select 0, %s6, %s4
  // Predicated region
  $region2: #{resnet_forward.23} parent=0 // pred_check
    _
  $region3: #{resnet_forward.23} parent=0 // pred_check_branch
    %9 = sbr.rel (0) target = $region5
  $region4: #{resnet_forward.23} parent=0 // pred_region
    _
  $region5: #{resnet_forward.23} parent=0 // pred_fallthru
    _
  // Predicated region
  $region6: #{resnet_forward.23} parent=0 // pred_check
    _
  $region7: #{resnet_forward.23} parent=0 // pred_check_branch
    %11 = sbr.rel (0) target = $region9
  $region8: #{resnet_forward.23} parent=0 // pred_region
    _
  $region9: #{resnet_forward.23} parent=0 // pred_fallthru
    _
  // Predicated region
  $region10: #{resnet_forward.23} parent=0 // pred_check
    _
  $region11: #{resnet_forward.23} parent=0 // pred_check_branch
    %13 = sbr.rel (0) target = $region13
  $region12: #{resnet_forward.23} parent=0 // pred_region
    _
  $region13: #{resnet_forward.23} parent=0 // pred_fallthru
    _
  %v14 = vld [vmem:[%s0] sm:$0xff]
  %v15 = vld [vmem:[%s0 + $0x8] sm:$0xff]
  %v16 = vld [vmem:[%s1] sm:$0xf]
  %v17 = vld [vmem:[%s1 + $0x4] sm:$0xf]
  %v18 = vld [vmem:[%s1 + $0x8] sm:$0xf]
  %v19 = vld [vmem:[%s1 + $0xc] sm:$0xf]
  %v20 = vld [vmem:[%s1 + $0x10] sm:$0xf]
  %v21 = vld [vmem:[%s1 + $0x14] sm:$0xf]
  %v22 = vld [vmem:[%s1 + $0x18] sm:$0xf]
  %v23 = vld [vmem:[%s1 + $0x1c] sm:$0xf]
  %v24 = vld [vmem:[%s1 + $0x20] sm:$0xf]
  %v25 = vld [vmem:[%s1 + $0x24] sm:$0xf]
  %v26 = vld [vmem:[%s1 + $0x28] sm:$0xf]
  %v27 = vld [vmem:[%s1 + $0x2c] sm:$0xf]
  %v28 = vld [vmem:[%s1 + $0x30] sm:$0xf]
  %v29 = vld [vmem:[%s1 + $0x34] sm:$0xf]
  %v30 = vld [vmem:[%s1 + $0x38] sm:$0xf]
  %v31 = vld [vmem:[%s1 + $0x3c] sm:$0xf]
  %v32 = vld [vmem:[%s1 + $0x40] sm:$0xf]
  %v33 = vld [vmem:[%s1 + $0x44] sm:$0xf]
  %v34 = vld [vmem:[%s1 + $0x48] sm:$0xf]
  %v35 = vld [vmem:[%s1 + $0x4c] sm:$0xf]
  %v36 = vld [vmem:[%s1 + $0x50] sm:$0xf]
  %v37 = vld [vmem:[%s1 + $0x54] sm:$0xf]
  %v38 = vld [vmem:[%s1 + $0x58] sm:$0xf]
  %v39 = vld [vmem:[%s1 + $0x5c] sm:$0xf]
  %v40 = vld [vmem:[%s1 + $0x60] sm:$0xf]
  %v41 = vld [vmem:[%s1 + $0x64] sm:$0xf]
  %v42 = vld [vmem:[%s1 + $0x68] sm:$0xf]
  %v43 = vld [vmem:[%s1 + $0x6c] sm:$0xf]
  %v44 = vld [vmem:[%s1 + $0x70] sm:$0xf]
  %v45 = vld [vmem:[%s1 + $0x74] sm:$0xf]
  %v46 = vld [vmem:[%s1 + $0x78] sm:$0xf]
  %v47 = vld [vmem:[%s1 + $0x7c] sm:$0xf]
  %v48 = vld [vmem:[%s2] sm:$0x1]
  %v50 = vperm.slane %v48, 0
  %v54 = vunpack.c.l.b16 %v14
  %v55 = vunpack.c.h.b16 %v14
  %v56 = vunpack.c.l.b16 %v15
  %v57 = vunpack.c.h.b16 %v15
  %v58 = vpack.c.b16 %v56, %v54
  %v59 = vpack.c.b16 %v57, %v55
  %v94 = vunpack.c.l.b16 %v16
  %v95 = vunpack.c.l.b16 %v17
  %v96 = vunpack.c.l.b16 %v18
  %v97 = vunpack.c.l.b16 %v19
  %v98 = vunpack.c.l.b16 %v20
  %v99 = vunpack.c.l.b16 %v21
  %v100 = vunpack.c.l.b16 %v22
  %v101 = vunpack.c.l.b16 %v23
  %v102 = vunpack.c.l.b16 %v24
  %v103 = vunpack.c.l.b16 %v25
  %v104 = vunpack.c.l.b16 %v26
  %v105 = vunpack.c.l.b16 %v27
  %v106 = vunpack.c.l.b16 %v28
  %v107 = vunpack.c.l.b16 %v29
  %v108 = vunpack.c.l.b16 %v30
  %v109 = vunpack.c.l.b16 %v31
  %v110 = vunpack.c.l.b16 %v32
  %v111 = vunpack.c.l.b16 %v33
  %v112 = vunpack.c.l.b16 %v34
  %v113 = vunpack.c.l.b16 %v35
  %v114 = vunpack.c.l.b16 %v36
  %v115 = vunpack.c.l.b16 %v37
  %v116 = vunpack.c.l.b16 %v38
  %v117 = vunpack.c.l.b16 %v39
  %v118 = vunpack.c.l.b16 %v40
  %v119 = vunpack.c.l.b16 %v41
  %v120 = vunpack.c.l.b16 %v42
  %v121 = vunpack.c.l.b16 %v43
  %v122 = vunpack.c.l.b16 %v44
  %v123 = vunpack.c.l.b16 %v45
  %v124 = vunpack.c.l.b16 %v46
  %v125 = vunpack.c.l.b16 %v47
  %v126 = vpack.c.b16 %v95, %v94
  %v127 = vpack.c.b16 %v97, %v96
  %v128 = vpack.c.b16 %v99, %v98
  %v129 = vpack.c.b16 %v101, %v100
  %v130 = vpack.c.b16 %v103, %v102
  %v131 = vpack.c.b16 %v105, %v104
  %v132 = vpack.c.b16 %v107, %v106
  %v133 = vpack.c.b16 %v109, %v108
  %v134 = vpack.c.b16 %v111, %v110
  %v135 = vpack.c.b16 %v113, %v112
  %v136 = vpack.c.b16 %v115, %v114
  %v137 = vpack.c.b16 %v117, %v116
  %v138 = vpack.c.b16 %v119, %v118
  %v139 = vpack.c.b16 %v121, %v120
  %v140 = vpack.c.b16 %v123, %v122
  %v141 = vpack.c.b16 %v125, %v124
  %158 = vmatpush.bf16.msra.mxu0 %v133
  %159 = vmatpush.bf16.msra.mxu0 %v132
  %160 = vmatpush.bf16.msra.mxu0 %v131
  %161 = vmatpush.bf16.msra.mxu0 %v130
  %162 = vmatpush.bf16.msra.mxu0 %v129
  %163 = vmatpush.bf16.msra.mxu0 %v128
  %164 = vmatpush.bf16.msra.mxu0 %v127
  %165 = vmatpush.bf16.msra.mxu0 %v126
  %166 = vmatmul.bf16.gmra.mxu0 %v58
  %v167 = vpop.f32.mrf.mxu0
  %v168 = vadd.f32 %v50, %v167
  %v169 = vpop.f32.mrf.mxu0
  %v170 = vadd.f32 %v50, %v169
  %171 = vdwg.mxu0
  %172 = vmatpush.bf16.msra.mxu0 %v141
  %173 = vmatpush.bf16.msra.mxu0 %v140
  %174 = vmatpush.bf16.msra.mxu0 %v139
  %175 = vmatpush.bf16.msra.mxu0 %v138
  %176 = vmatpush.bf16.msra.mxu0 %v137
  %177 = vmatpush.bf16.msra.mxu0 %v136
  %178 = vmatpush.bf16.msra.mxu0 %v135
  %179 = vmatpush.bf16.msra.mxu0 %v134
  %180 = vmatmul.bf16.gmra.mxu0 %v59
  %v181 = vpop.f32.mrf.mxu0
  %v182 = vadd.f32 %v168, %v181
  %v183 = vpop.f32.mrf.mxu0
  %v184 = vadd.f32 %v170, %v183
  %185 = vdwg.mxu0
  %vm186 = vcmask 130048
  %187 = vst.msk [vmem:[%s3] sm:$0xff] %vm186, %v182
  %188 = vst.msk [vmem:[%s3 + $0x8] sm:$0xff] %vm186, %v184
  // Predicated region
  $region14: #{resnet_forward.23} parent=0 // pred_check
    _
  $region15: #{resnet_forward.23} parent=0 // pred_check_branch
    %190 = sbr.rel (0) target = $region17
  $region16: #{resnet_forward.23} parent=0 // pred_region
    _
  $region17: #{resnet_forward.23} parent=0 // pred_fallthru
    _
  // Predicated region
  $region18: #{resnet_forward.23} parent=0 // pred_check
    _
  $region19: #{resnet_forward.23} parent=0 // pred_check_branch
    %192 = sbr.rel (0) target = $region21
  $region20: #{resnet_forward.23} parent=0 // pred_region
    _
  $region21: #{resnet_forward.23} parent=0 // pred_fallthru
    _

// kernel: resnet_forward.21
$region0: #{resnet_forward.21}
  #allocation0 [shape = 'u32[]', space=smem, size = 0x4, offset = 0x4, fixed_abs, tag = 'smem constant byte address 0x4 - core index']
  #allocation1 [shape = 'u32[72,128]{1,0:T(1,128)}', space=vmem, size = 0x9000, scoped, tag = 'internal scratch']
  %s0 = inlined_call_operand.vmem [shape: bf16[16,2304], index: 0, kind: input, shape index: {}]
  %s1 = inlined_call_operand.vmem [shape: bf16[2304,256], index: 1, kind: input, shape index: {}]
  %s2 = inlined_call_operand.vmem [shape: f32[1,256], index: 2, kind: input, shape index: {}]
  %s3 = inlined_call_operand.vmem [shape: f32[16,256], index: 3, kind: output, shape index: {}]
  %s4 = sld [smem:[#allocation0]]
  $region22: #{resnet_forward.21} parent=0
    _
  %s6 = ssub.s32 1, %s4
  %s7 = scalar_select 0, %s6, %s4
  // Predicated region
  $region2: #{resnet_forward.21} parent=0 // pred_check
    _
  $region3: #{resnet_forward.21} parent=0 // pred_check_branch
    %9 = sbr.rel (0) target = $region5
  $region4: #{resnet_forward.21} parent=0 // pred_region
    _
  $region5: #{resnet_forward.21} parent=0 // pred_fallthru
    _
  // Predicated region
  $region6: #{resnet_forward.21} parent=0 // pred_check
    _
  $region7: #{resnet_forward.21} parent=0 // pred_check_branch
    %11 = sbr.rel (0) target = $region9
  $region8: #{resnet_forward.21} parent=0 // pred_region
    _
  $region9: #{resnet_forward.21} parent=0 // pred_fallthru
    _
  // Predicated region
  $region10: #{resnet_forward.21} parent=0 // pred_check
    _
  $region11: #{resnet_forward.21} parent=0 // pred_check_branch
    %13 = sbr.rel (0) target = $region13
  $region12: #{resnet_forward.21} parent=0 // pred_region
    _
  $region13: #{resnet_forward.21} parent=0 // pred_fallthru
    _
  %v14 = vld [vmem:[%s0] sm:$0xff]
  %v15 = vld [vmem:[%s0 + $0x8] sm:$0xff]
  %v16 = vld [vmem:[%s0 + $0x10] sm:$0xff]
  %v17 = vld [vmem:[%s0 + $0x18] sm:$0xff]
  %v18 = vld [vmem:[%s0 + $0x20] sm:$0xff]
  %v19 = vld [vmem:[%s0 + $0x28] sm:$0xff]
  %v20 = vld [vmem:[%s0 + $0x30] sm:$0xff]
  %v21 = vld [vmem:[%s0 + $0x38] sm:$0xff]
  %v22 = vld [vmem:[%s0 + $0x40] sm:$0xff]
  %v23 = vld [vmem:[%s0 + $0x48] sm:$0xff]
  %v24 = vld [vmem:[%s0 + $0x50] sm:$0xff]
  %v25 = vld [vmem:[%s0 + $0x58] sm:$0xff]
  %v26 = vld [vmem:[%s0 + $0x60] sm:$0xff]
  %v27 = vld [vmem:[%s0 + $0x68] sm:$0xff]
  %v28 = vld [vmem:[%s0 + $0x70] sm:$0xff]
  %v29 = vld [vmem:[%s0 + $0x78] sm:$0xff]
  %v30 = vld [vmem:[%s0 + $0x80] sm:$0xff]
  %v31 = vld [vmem:[%s0 + $0x88] sm:$0xff]
  %v32 = vld [vmem:[%s1] sm:$0xff]
  %v33 = vld [vmem:[%s1 + $0x8] sm:$0xff]
  %v34 = vld [vmem:[%s1 + $0x10] sm:$0xff]
  %v35 = vld [vmem:[%s1 + $0x18] sm:$0xff]
  %v36 = vld [vmem:[%s1 + $0x20] sm:$0xff]
  %v37 = vld [vmem:[%s1 + $0x28] sm:$0xff]
  %v38 = vld [vmem:[%s1 + $0x30] sm:$0xff]
  %v39 = vld [vmem:[%s1 + $0x38] sm:$0xff]
  %v40 = vld [vmem:[%s1 + $0x40] sm:$0xff]
  %v41 = vld [vmem:[%s1 + $0x48] sm:$0xff]
  %v42 = vld [vmem:[%s1 + $0x50] sm:$0xff]
  %v43 = vld [vmem:[%s1 + $0x58] sm:$0xff]
  %v44 = vld [vmem:[%s1 + $0x60] sm:$0xff]
  %v45 = vld [vmem:[%s1 + $0x68] sm:$0xff]
  %v46 = vld [vmem:[%s1 + $0x70] sm:$0xff]
  %v47 = vld [vmem:[%s1 + $0x78] sm:$0xff]
  %v48 = vld [vmem:[%s1 + $0x80] sm:$0xff]
  %v49 = vld [vmem:[%s1 + $0x88] sm:$0xff]
  %v50 = vld [vmem:[%s1 + $0x90] sm:$0xff]
  %v51 = vld [vmem:[%s1 + $0x98] sm:$0xff]
  %v52 = vld [vmem:[%s1 + $0xa0] sm:$0xff]
  %v53 = vld [vmem:[%s1 + $0xa8] sm:$0xff]
  %v54 = vld [vmem:[%s1 + $0xb0] sm:$0xff]
  %v55 = vld [vmem:[%s1 + $0xb8] sm:$0xff]
  %v56 = vld [vmem:[%s1 + $0xc0] sm:$0xff]
  %v57 = vld [vmem:[%s1 + $0xc8] sm:$0xff]
  %v58 = vld [vmem:[%s1 + $0xd0] sm:$0xff]
  %v59 = vld [vmem:[%s1 + $0xd8] sm:$0xff]
  %v60 = vld [vmem:[%s1 + $0xe0] sm:$0xff]
  %v61 = vld [vmem:[%s1 + $0xe8] sm:$0xff]
  %v62 = vld [vmem:[%s1 + $0xf0] sm:$0xff]
  %v63 = vld [vmem:[%s1 + $0xf8] sm:$0xff]
  %v64 = vld [vmem:[%s1 + $0x100] sm:$0xff]
  %v65 = vld [vmem:[%s1 + $0x108] sm:$0xff]
  %v66 = vld [vmem:[%s1 + $0x110] sm:$0xff]
  %v67 = vld [vmem:[%s1 + $0x118] sm:$0xff]
  %v68 = vld [vmem:[%s1 + $0x120] sm:$0xff]
  %v69 = vld [vmem:[%s1 + $0x128] sm:$0xff]
  %v70 = vld [vmem:[%s1 + $0x130] sm:$0xff]
  %v71 = vld [vmem:[%s1 + $0x138] sm:$0xff]
  %v72 = vld [vmem:[%s1 + $0x140] sm:$0xff]
  %v73 = vld [vmem:[%s1 + $0x148] sm:$0xff]
  %v74 = vld [vmem:[%s1 + $0x150] sm:$0xff]
  %v75 = vld [vmem:[%s1 + $0x158] sm:$0xff]
  %v76 = vld [vmem:[%s1 + $0x160] sm:$0xff]
  %v77 = vld [vmem:[%s1 + $0x168] sm:$0xff]
  %v78 = vld [vmem:[%s1 + $0x170] sm:$0xff]
  %v79 = vld [vmem:[%s1 + $0x178] sm:$0xff]
  %v80 = vld [vmem:[%s1 + $0x180] sm:$0xff]
  %v81 = vld [vmem:[%s1 + $0x188] sm:$0xff]
  %v82 = vld [vmem:[%s1 + $0x190] sm:$0xff]
  %v83 = vld [vmem:[%s1 + $0x198] sm:$0xff]
  %v84 = vld [vmem:[%s1 + $0x1a0] sm:$0xff]
  %v85 = vld [vmem:[%s1 + $0x1a8] sm:$0xff]
  %v86 = vld [vmem:[%s1 + $0x1b0] sm:$0xff]
  %v87 = vld [vmem:[%s1 + $0x1b8] sm:$0xff]
  %v88 = vld [vmem:[%s1 + $0x1c0] sm:$0xff]
  %v89 = vld [vmem:[%s1 + $0x1c8] sm:$0xff]
  %v90 = vld [vmem:[%s1 + $0x1d0] sm:$0xff]
  %v91 = vld [vmem:[%s1 + $0x1d8] sm:$0xff]
  %v92 = vld [vmem:[%s1 + $0x1e0] sm:$0xff]
  %v93 = vld [vmem:[%s1 + $0x1e8] sm:$0xff]
  %v94 = vld [vmem:[%s1 + $0x1f0] sm:$0xff]
  %v95 = vld [vmem:[%s1 + $0x1f8] sm:$0xff]
  %v96 = vld [vmem:[%s1 + $0x200] sm:$0xff]
  %v97 = vld [vmem:[%s1 + $0x208] sm:$0xff]
  %v98 = vld [vmem:[%s1 + $0x210] sm:$0xff]
  %v99 = vld [vmem:[%s1 + $0x218] sm:$0xff]
  %v100 = vld [vmem:[%s1 + $0x220] sm:$0xff]
  %v101 = vld [vmem:[%s1 + $0x228] sm:$0xff]
  %v102 = vld [vmem:[%s1 + $0x230] sm:$0xff]
  %v103 = vld [vmem:[%s1 + $0x238] sm:$0xff]
  %v104 = vld [vmem:[%s1 + $0x240] sm:$0xff]
  %v105 = vld [vmem:[%s1 + $0x248] sm:$0xff]
  %v106 = vld [vmem:[%s1 + $0x250] sm:$0xff]
  %v107 = vld [vmem:[%s1 + $0x258] sm:$0xff]
  %v108 = vld [vmem:[%s1 + $0x260] sm:$0xff]
  %v109 = vld [vmem:[%s1 + $0x268] sm:$0xff]
  %v110 = vld [vmem:[%s1 + $0x270] sm:$0xff]
  %v111 = vld [vmem:[%s1 + $0x278] sm:$0xff]
  %v112 = vld [vmem:[%s1 + $0x280] sm:$0xff]
  %v113 = vld [vmem:[%s1 + $0x288] sm:$0xff]
  %v114 = vld [vmem:[%s1 + $0x290] sm:$0xff]
  %v115 = vld [vmem:[%s1 + $0x298] sm:$0xff]
  %v116 = vld [vmem:[%s1 + $0x2a0] sm:$0xff]
  %v117 = vld [vmem:[%s1 + $0x2a8] sm:$0xff]
  %v118 = vld [vmem:[%s1 + $0x2b0] sm:$0xff]
  %v119 = vld [vmem:[%s1 + $0x2b8] sm:$0xff]
  %v120 = vld [vmem:[%s1 + $0x2c0] sm:$0xff]
  %v121 = vld [vmem:[%s1 + $0x2c8] sm:$0xff]
  %v122 = vld [vmem:[%s1 + $0x2d0] sm:$0xff]
  %v123 = vld [vmem:[%s1 + $0x2d8] sm:$0xff]
  %v124 = vld [vmem:[%s1 + $0x2e0] sm:$0xff]
  %v125 = vld [vmem:[%s1 + $0x2e8] sm:$0xff]
  %v126 = vld [vmem:[%s1 + $0x2f0] sm:$0xff]
  %v127 = vld [vmem:[%s1 + $0x2f8] sm:$0xff]
  %v128 = vld [vmem:[%s1 + $0x300] sm:$0xff]
  %v129 = vld [vmem:[%s1 + $0x308] sm:$0xff]
  %v130 = vld [vmem:[%s1 + $0x310] sm:$0xff]
  %v131 = vld [vmem:[%s1 + $0x318] sm:$0xff]
  %v132 = vld [vmem:[%s1 + $0x320] sm:$0xff]
  %v133 = vld [vmem:[%s1 + $0x328] sm:$0xff]
  %v134 = vld [vmem:[%s1 + $0x330] sm:$0xff]
  %v135 = vld [vmem:[%s1 + $0x338] sm:$0xff]
  %v136 = vld [vmem:[%s1 + $0x340] sm:$0xff]
  %v137 = vld [vmem:[%s1 + $0x348] sm:$0xff]
  %v138 = vld [vmem:[%s1 + $0x350] sm:$0xff]
  %v139 = vld [vmem:[%s1 + $0x358] sm:$0xff]
  %v140 = vld [vmem:[%s1 + $0x360] sm:$0xff]
  %v141 = vld [vmem:[%s1 + $0x368] sm:$0xff]
  %v142 = vld [vmem:[%s1 + $0x370] sm:$0xff]
  %v143 = vld [vmem:[%s1 + $0x378] sm:$0xff]
  %v144 = vld [vmem:[%s1 + $0x380] sm:$0xff]
  %v145 = vld [vmem:[%s1 + $0x388] sm:$0xff]
  %v146 = vld [vmem:[%s1 + $0x390] sm:$0xff]
  %v147 = vld [vmem:[%s1 + $0x398] sm:$0xff]
  %v148 = vld [vmem:[%s1 + $0x3a0] sm:$0xff]
  %v149 = vld [vmem:[%s1 + $0x3a8] sm:$0xff]
  %v150 = vld [vmem:[%s1 + $0x3b0] sm:$0xff]
  %v151 = vld [vmem:[%s1 + $0x3b8] sm:$0xff]
  %v152 = vld [vmem:[%s1 + $0x3c0] sm:$0xff]
  %v153 = vld [vmem:[%s1 + $0x3c8] sm:$0xff]
  %v154 = vld [vmem:[%s1 + $0x3d0] sm:$0xff]
  %v155 = vld [vmem:[%s1 + $0x3d8] sm:$0xff]
  %v156 = vld [vmem:[%s1 + $0x3e0] sm:$0xff]
  %v157 = vld [vmem:[%s1 + $0x3e8] sm:$0xff]
  %v158 = vld [vmem:[%s1 + $0x3f0] sm:$0xff]
  %v159 = vld [vmem:[%s1 + $0x3f8] sm:$0xff]
  %v160 = vld [vmem:[%s1 + $0x400] sm:$0xff]
  %v161 = vld [vmem:[%s1 + $0x408] sm:$0xff]
  %v162 = vld [vmem:[%s1 + $0x410] sm:$0xff]
  %v163 = vld [vmem:[%s1 + $0x418] sm:$0xff]
  %v164 = vld [vmem:[%s1 + $0x420] sm:$0xff]
  %v165 = vld [vmem:[%s1 + $0x428] sm:$0xff]
  %v166 = vld [vmem:[%s1 + $0x430] sm:$0xff]
  %v167 = vld [vmem:[%s1 + $0x438] sm:$0xff]
  %v168 = vld [vmem:[%s1 + $0x440] sm:$0xff]
  %v169 = vld [vmem:[%s1 + $0x448] sm:$0xff]
  %v170 = vld [vmem:[%s1 + $0x450] sm:$0xff]
  %v171 = vld [vmem:[%s1 + $0x458] sm:$0xff]
  %v172 = vld [vmem:[%s1 + $0x460] sm:$0xff]
  %v173 = vld [vmem:[%s1 + $0x468] sm:$0xff]
  %v174 = vld [vmem:[%s1 + $0x470] sm:$0xff]
  %v175 = vld [vmem:[%s1 + $0x478] sm:$0xff]
  %v176 = vld [vmem:[%s1 + $0x480] sm:$0xff]
  %v177 = vld [vmem:[%s1 + $0x488] sm:$0xff]
  %v178 = vld [vmem:[%s1 + $0x490] sm:$0xff]
  %v179 = vld [vmem:[%s1 + $0x498] sm:$0xff]
  %v180 = vld [vmem:[%s1 + $0x4a0] sm:$0xff]
  %v181 = vld [vmem:[%s1 + $0x4a8] sm:$0xff]
  %v182 = vld [vmem:[%s1 + $0x4b0] sm:$0xff]
  %v183 = vld [vmem:[%s1 + $0x4b8] sm:$0xff]
  %v184 = vld [vmem:[%s1 + $0x4c0] sm:$0xff]
  %v185 = vld [vmem:[%s1 + $0x4c8] sm:$0xff]
  %v186 = vld [vmem:[%s1 + $0x4d0] sm:$0xff]
  %v187 = vld [vmem:[%s1 + $0x4d8] sm:$0xff]
  %v188 = vld [vmem:[%s1 + $0x4e0] sm:$0xff]
  %v189 = vld [vmem:[%s1 + $0x4e8] sm:$0xff]
  %v190 = vld [vmem:[%s1 + $0x4f0] sm:$0xff]
  %v191 = vld [vmem:[%s1 + $0x4f8] sm:$0xff]
  %v192 = vld [vmem:[%s1 + $0x500] sm:$0xff]
  %v193 = vld [vmem:[%s1 + $0x508] sm:$0xff]
  %v194 = vld [vmem:[%s1 + $0x510] sm:$0xff]
  %v195 = vld [vmem:[%s1 + $0x518] sm:$0xff]
  %v196 = vld [vmem:[%s1 + $0x520] sm:$0xff]
  %v197 = vld [vmem:[%s1 + $0x528] sm:$0xff]
  %v198 = vld [vmem:[%s1 + $0x530] sm:$0xff]
  %v199 = vld [vmem:[%s1 + $0x538] sm:$0xff]
  %v200 = vld [vmem:[%s1 + $0x540] sm:$0xff]
  %v201 = vld [vmem:[%s1 + $0x548] sm:$0xff]
  %v202 = vld [vmem:[%s1 + $0x550] sm:$0xff]
  %v203 = vld [vmem:[%s1 + $0x558] sm:$0xff]
  %v204 = vld [vmem:[%s1 + $0x560] sm:$0xff]
  %v205 = vld [vmem:[%s1 + $0x568] sm:$0xff]
  %v206 = vld [vmem:[%s1 + $0x570] sm:$0xff]
  %v207 = vld [vmem:[%s1 + $0x578] sm:$0xff]
  %v208 = vld [vmem:[%s1 + $0x580] sm:$0xff]
  %v209 = vld [vmem:[%s1 + $0x588] sm:$0xff]
  %v210 = vld [vmem:[%s1 + $0x590] sm:$0xff]
  %v211 = vld [vmem:[%s1 + $0x598] sm:$0xff]
  %v212 = vld [vmem:[%s1 + $0x5a0] sm:$0xff]
  %v213 = vld [vmem:[%s1 + $0x5a8] sm:$0xff]
  %v214 = vld [vmem:[%s1 + $0x5b0] sm:$0xff]
  %v215 = vld [vmem:[%s1 + $0x5b8] sm:$0xff]
  %v216 = vld [vmem:[%s1 + $0x5c0] sm:$0xff]
  %v217 = vld [vmem:[%s1 + $0x5c8] sm:$0xff]
  %v218 = vld [vmem:[%s1 + $0x5d0] sm:$0xff]
  %v219 = vld [vmem:[%s1 + $0x5d8] sm:$0xff]
  %v220 = vld [vmem:[%s1 + $0x5e0] sm:$0xff]
  %v221 = vld [vmem:[%s1 + $0x5e8] sm:$0xff]
  %v222 = vld [vmem:[%s1 + $0x5f0] sm:$0xff]
  %v223 = vld [vmem:[%s1 + $0x5f8] sm:$0xff]
  %v224 = vld [vmem:[%s1 + $0x600] sm:$0xff]
  %v225 = vld [vmem:[%s1 + $0x608] sm:$0xff]
  %v226 = vld [vmem:[%s1 + $0x610] sm:$0xff]
  %v227 = vld [vmem:[%s1 + $0x618] sm:$0xff]
  %v228 = vld [vmem:[%s1 + $0x620] sm:$0xff]
  %v229 = vld [vmem:[%s1 + $0x628] sm:$0xff]
  %v230 = vld [vmem:[%s1 + $0x630] sm:$0xff]
  %v231 = vld [vmem:[%s1 + $0x638] sm:$0xff]
  %v232 = vld [vmem:[%s1 + $0x640] sm:$0xff]
  %v233 = vld [vmem:[%s1 + $0x648] sm:$0xff]
  %v234 = vld [vmem:[%s1 + $0x650] sm:$0xff]
  %v235 = vld [vmem:[%s1 + $0x658] sm:$0xff]
  %v236 = vld [vmem:[%s1 + $0x660] sm:$0xff]
  %v237 = vld [vmem:[%s1 + $0x668] sm:$0xff]
  %v238 = vld [vmem:[%s1 + $0x670] sm:$0xff]
  %v239 = vld [vmem:[%s1 + $0x678] sm:$0xff]
  %v240 = vld [vmem:[%s1 + $0x680] sm:$0xff]
  %v241 = vld [vmem:[%s1 + $0x688] sm:$0xff]
  %v242 = vld [vmem:[%s1 + $0x690] sm:$0xff]
  %v243 = vld [vmem:[%s1 + $0x698] sm:$0xff]
  %v244 = vld [vmem:[%s1 + $0x6a0] sm:$0xff]
  %v245 = vld [vmem:[%s1 + $0x6a8] sm:$0xff]
  %v246 = vld [vmem:[%s1 + $0x6b0] sm:$0xff]
  %v247 = vld [vmem:[%s1 + $0x6b8] sm:$0xff]
  %v248 = vld [vmem:[%s1 + $0x6c0] sm:$0xff]
  %v249 = vld [vmem:[%s1 + $0x6c8] sm:$0xff]
  %v250 = vld [vmem:[%s1 + $0x6d0] sm:$0xff]
  %v251 = vld [vmem:[%s1 + $0x6d8] sm:$0xff]
  %v252 = vld [vmem:[%s1 + $0x6e0] sm:$0xff]
  %v253 = vld [vmem:[%s1 + $0x6e8] sm:$0xff]
  %v254 = vld [vmem:[%s1 + $0x6f0] sm:$0xff]
  %v255 = vld [vmem:[%s1 + $0x6f8] sm:$0xff]
  %v256 = vld [vmem:[%s1 + $0x700] sm:$0xff]
  %v257 = vld [vmem:[%s1 + $0x708] sm:$0xff]
  %v258 = vld [vmem:[%s1 + $0x710] sm:$0xff]
  %v259 = vld [vmem:[%s1 + $0x718] sm:$0xff]
  %v260 = vld [vmem:[%s1 + $0x720] sm:$0xff]
  %v261 = vld [vmem:[%s1 + $0x728] sm:$0xff]
  %v262 = vld [vmem:[%s1 + $0x730] sm:$0xff]
  %v263 = vld [vmem:[%s1 + $0x738] sm:$0xff]
  %v264 = vld [vmem:[%s1 + $0x740] sm:$0xff]
  %v265 = vld [vmem:[%s1 + $0x748] sm:$0xff]
  %v266 = vld [vmem:[%s1 + $0x750] sm:$0xff]
  %v267 = vld [vmem:[%s1 + $0x758] sm:$0xff]
  %v268 = vld [vmem:[%s1 + $0x760] sm:$0xff]
  %v269 = vld [vmem:[%s1 + $0x768] sm:$0xff]
  %v270 = vld [vmem:[%s1 + $0x770] sm:$0xff]
  %v271 = vld [vmem:[%s1 + $0x778] sm:$0xff]
  %v272 = vld [vmem:[%s1 + $0x780] sm:$0xff]
  %v273 = vld [vmem:[%s1 + $0x788] sm:$0xff]
  %v274 = vld [vmem:[%s1 + $0x790] sm:$0xff]
  %v275 = vld [vmem:[%s1 + $0x798] sm:$0xff]
  %v276 = vld [vmem:[%s1 + $0x7a0] sm:$0xff]
  %v277 = vld [vmem:[%s1 + $0x7a8] sm:$0xff]
  %v278 = vld [vmem:[%s1 + $0x7b0] sm:$0xff]
  %v279 = vld [vmem:[%s1 + $0x7b8] sm:$0xff]
  %v280 = vld [vmem:[%s1 + $0x7c0] sm:$0xff]
  %v281 = vld [vmem:[%s1 + $0x7c8] sm:$0xff]
  %v282 = vld [vmem:[%s1 + $0x7d0] sm:$0xff]
  %v283 = vld [vmem:[%s1 + $0x7d8] sm:$0xff]
  %v284 = vld [vmem:[%s1 + $0x7e0] sm:$0xff]
  %v285 = vld [vmem:[%s1 + $0x7e8] sm:$0xff]
  %v286 = vld [vmem:[%s1 + $0x7f0] sm:$0xff]
  %v287 = vld [vmem:[%s1 + $0x7f8] sm:$0xff]
  %v288 = vld [vmem:[%s1 + $0x800] sm:$0xff]
  %v289 = vld [vmem:[%s1 + $0x808] sm:$0xff]
  %v290 = vld [vmem:[%s1 + $0x810] sm:$0xff]
  %v291 = vld [vmem:[%s1 + $0x818] sm:$0xff]
  %v292 = vld [vmem:[%s1 + $0x820] sm:$0xff]
  %v293 = vld [vmem:[%s1 + $0x828] sm:$0xff]
  %v294 = vld [vmem:[%s1 + $0x830] sm:$0xff]
  %v295 = vld [vmem:[%s1 + $0x838] sm:$0xff]
  %v296 = vld [vmem:[%s1 + $0x840] sm:$0xff]
  %v297 = vld [vmem:[%s1 + $0x848] sm:$0xff]
  %v298 = vld [vmem:[%s1 + $0x850] sm:$0xff]
  %v299 = vld [vmem:[%s1 + $0x858] sm:$0xff]
  %v300 = vld [vmem:[%s1 + $0x860] sm:$0xff]
  %v301 = vld [vmem:[%s1 + $0x868] sm:$0xff]
  %v302 = vld [vmem:[%s1 + $0x870] sm:$0xff]
  %v303 = vld [vmem:[%s1 + $0x878] sm:$0xff]
  %v304 = vld [vmem:[%s1 + $0x880] sm:$0xff]
  %v305 = vld [vmem:[%s1 + $0x888] sm:$0xff]
  %v306 = vld [vmem:[%s1 + $0x890] sm:$0xff]
  %v307 = vld [vmem:[%s1 + $0x898] sm:$0xff]
  %v308 = vld [vmem:[%s1 + $0x8a0] sm:$0xff]
  %v309 = vld [vmem:[%s1 + $0x8a8] sm:$0xff]
  %v310 = vld [vmem:[%s1 + $0x8b0] sm:$0xff]
  %v311 = vld [vmem:[%s1 + $0x8b8] sm:$0xff]
  %v312 = vld [vmem:[%s1 + $0x8c0] sm:$0xff]
  %v313 = vld [vmem:[%s1 + $0x8c8] sm:$0xff]
  %v314 = vld [vmem:[%s1 + $0x8d0] sm:$0xff]
  %v315 = vld [vmem:[%s1 + $0x8d8] sm:$0xff]
  %v316 = vld [vmem:[%s1 + $0x8e0] sm:$0xff]
  %v317 = vld [vmem:[%s1 + $0x8e8] sm:$0xff]
  %v318 = vld [vmem:[%s1 + $0x8f0] sm:$0xff]
  %v319 = vld [vmem:[%s1 + $0x8f8] sm:$0xff]
  %v320 = vld [vmem:[%s2] sm:$0x3]
  %v322 = vperm.slane %v320, 0
  %v323 = vperm.slane %v320, 1
  %v344 = vunpack.c.l.b16 %v14
  %v345 = vunpack.c.h.b16 %v14
  %v346 = vunpack.c.l.b16 %v15
  %v347 = vunpack.c.h.b16 %v15
  %v348 = vunpack.c.l.b16 %v16
  %v349 = vunpack.c.h.b16 %v16
  %v350 = vunpack.c.l.b16 %v17
  %v351 = vunpack.c.h.b16 %v17
  %v352 = vunpack.c.l.b16 %v18
  %v353 = vunpack.c.h.b16 %v18
  %v354 = vunpack.c.l.b16 %v19
  %v355 = vunpack.c.h.b16 %v19
  %v356 = vunpack.c.l.b16 %v20
  %v357 = vunpack.c.h.b16 %v20
  %v358 = vunpack.c.l.b16 %v21
  %v359 = vunpack.c.h.b16 %v21
  %v360 = vunpack.c.l.b16 %v22
  %v361 = vunpack.c.h.b16 %v22
  %v362 = vunpack.c.l.b16 %v23
  %v363 = vunpack.c.h.b16 %v23
  %v364 = vunpack.c.l.b16 %v24
  %v365 = vunpack.c.h.b16 %v24
  %v366 = vunpack.c.l.b16 %v25
  %v367 = vunpack.c.h.b16 %v25
  %v368 = vunpack.c.l.b16 %v26
  %v369 = vunpack.c.h.b16 %v26
  %v370 = vunpack.c.l.b16 %v27
  %v371 = vunpack.c.h.b16 %v27
  %v372 = vunpack.c.l.b16 %v28
  %v373 = vunpack.c.h.b16 %v28
  %v374 = vunpack.c.l.b16 %v29
  %v375 = vunpack.c.h.b16 %v29
  %v376 = vunpack.c.l.b16 %v30
  %v377 = vunpack.c.h.b16 %v30
  %v378 = vunpack.c.l.b16 %v31
  %v379 = vunpack.c.h.b16 %v31
  %v380 = vpack.c.b16 %v362, %v344
  %v381 = vpack.c.b16 %v363, %v345
  %v382 = vpack.c.b16 %v364, %v346
  %v383 = vpack.c.b16 %v365, %v347
  %v384 = vpack.c.b16 %v366, %v348
  %v385 = vpack.c.b16 %v367, %v349
  %v386 = vpack.c.b16 %v368, %v350
  %v387 = vpack.c.b16 %v369, %v351
  %v388 = vpack.c.b16 %v370, %v352
  %v389 = vpack.c.b16 %v371, %v353
  %v390 = vpack.c.b16 %v372, %v354
  %v391 = vpack.c.b16 %v373, %v355
  %v392 = vpack.c.b16 %v374, %v356
  %v393 = vpack.c.b16 %v375, %v357
  %v394 = vpack.c.b16 %v376, %v358
  %v395 = vpack.c.b16 %v377, %v359
  %v396 = vpack.c.b16 %v378, %v360
  %v397 = vpack.c.b16 %v379, %v361
  %v704 = vunpack.c.l.b16 %v32
  %v705 = vunpack.c.h.b16 %v32
  %v706 = vunpack.c.l.b16 %v33
  %v707 = vunpack.c.h.b16 %v33
  %v708 = vunpack.c.l.b16 %v34
  %v709 = vunpack.c.h.b16 %v34
  %v710 = vunpack.c.l.b16 %v35
  %v711 = vunpack.c.h.b16 %v35
  %v712 = vunpack.c.l.b16 %v36
  %v713 = vunpack.c.h.b16 %v36
  %v714 = vunpack.c.l.b16 %v37
  %v715 = vunpack.c.h.b16 %v37
  %v716 = vunpack.c.l.b16 %v38
  %v717 = vunpack.c.h.b16 %v38
  %v718 = vunpack.c.l.b16 %v39
  %v719 = vunpack.c.h.b16 %v39
  %v720 = vunpack.c.l.b16 %v40
  %v721 = vunpack.c.h.b16 %v40
  %v722 = vunpack.c.l.b16 %v41
  %v723 = vunpack.c.h.b16 %v41
  %v724 = vunpack.c.l.b16 %v42
  %v725 = vunpack.c.h.b16 %v42
  %v726 = vunpack.c.l.b16 %v43
  %v727 = vunpack.c.h.b16 %v43
  %v728 = vunpack.c.l.b16 %v44
  %v729 = vunpack.c.h.b16 %v44
  %v730 = vunpack.c.l.b16 %v45
  %v731 = vunpack.c.h.b16 %v45
  %v732 = vunpack.c.l.b16 %v46
  %v733 = vunpack.c.h.b16 %v46
  %v734 = vunpack.c.l.b16 %v47
  %v735 = vunpack.c.h.b16 %v47
  %v736 = vunpack.c.l.b16 %v48
  %v737 = vunpack.c.h.b16 %v48
  %v738 = vunpack.c.l.b16 %v49
  %v739 = vunpack.c.h.b16 %v49
  %v740 = vunpack.c.l.b16 %v50
  %v741 = vunpack.c.h.b16 %v50
  %v742 = vunpack.c.l.b16 %v51
  %v743 = vunpack.c.h.b16 %v51
  %v744 = vunpack.c.l.b16 %v52
  %v745 = vunpack.c.h.b16 %v52
  %v746 = vunpack.c.l.b16 %v53
  %v747 = vunpack.c.h.b16 %v53
  %v748 = vunpack.c.l.b16 %v54
  %v749 = vunpack.c.h.b16 %v54
  %v750 = vunpack.c.l.b16 %v55
  %v751 = vunpack.c.h.b16 %v55
  %v752 = vunpack.c.l.b16 %v56
  %v753 = vunpack.c.h.b16 %v56
  %v754 = vunpack.c.l.b16 %v57
  %v755 = vunpack.c.h.b16 %v57
  %v756 = vunpack.c.l.b16 %v58
  %v757 = vunpack.c.h.b16 %v58
  %v758 = vunpack.c.l.b16 %v59
  %v759 = vunpack.c.h.b16 %v59
  %v760 = vunpack.c.l.b16 %v60
  %v761 = vunpack.c.h.b16 %v60
  %v762 = vunpack.c.l.b16 %v61
  %v763 = vunpack.c.h.b16 %v61
  %v764 = vunpack.c.l.b16 %v62
  %v765 = vunpack.c.h.b16 %v62
  %v766 = vunpack.c.l.b16 %v63
  %v767 = vunpack.c.h.b16 %v63
  %v768 = vunpack.c.l.b16 %v64
  %v769 = vunpack.c.h.b16 %v64
  %v770 = vunpack.c.l.b16 %v65
  %v771 = vunpack.c.h.b16 %v65
  %v772 = vunpack.c.l.b16 %v66
  %v773 = vunpack.c.h.b16 %v66
  %v774 = vunpack.c.l.b16 %v67
  %v775 = vunpack.c.h.b16 %v67
  %v776 = vunpack.c.l.b16 %v68
  %v777 = vunpack.c.h.b16 %v68
  %v778 = vunpack.c.l.b16 %v69
  %v779 = vunpack.c.h.b16 %v69
  %v780 = vunpack.c.l.b16 %v70
  %v781 = vunpack.c.h.b16 %v70
  %v782 = vunpack.c.l.b16 %v71
  %v783 = vunpack.c.h.b16 %v71
  %v784 = vunpack.c.l.b16 %v72
  %v785 = vunpack.c.h.b16 %v72
  %v786 = vunpack.c.l.b16 %v73
  %v787 = vunpack.c.h.b16 %v73
  %v788 = vunpack.c.l.b16 %v74
  %v789 = vunpack.c.h.b16 %v74
  %v790 = vunpack.c.l.b16 %v75
  %v791 = vunpack.c.h.b16 %v75
  %v792 = vunpack.c.l.b16 %v76
  %v793 = vunpack.c.h.b16 %v76
  %v794 = vunpack.c.l.b16 %v77
  %v795 = vunpack.c.h.b16 %v77
  %v796 = vunpack.c.l.b16 %v78
  %v797 = vunpack.c.h.b16 %v78
  %v798 = vunpack.c.l.b16 %v79
  %v799 = vunpack.c.h.b16 %v79
  %v800 = vunpack.c.l.b16 %v80
  %v801 = vunpack.c.h.b16 %v80
  %v802 = vunpack.c.l.b16 %v81
  %v803 = vunpack.c.h.b16 %v81
  %v804 = vunpack.c.l.b16 %v82
  %v805 = vunpack.c.h.b16 %v82
  %v806 = vunpack.c.l.b16 %v83
  %v807 = vunpack.c.h.b16 %v83
  %v808 = vunpack.c.l.b16 %v84
  %v809 = vunpack.c.h.b16 %v84
  %v810 = vunpack.c.l.b16 %v85
  %v811 = vunpack.c.h.b16 %v85
  %v812 = vunpack.c.l.b16 %v86
  %v813 = vunpack.c.h.b16 %v86
  %v814 = vunpack.c.l.b16 %v87
  %v815 = vunpack.c.h.b16 %v87
  %v816 = vunpack.c.l.b16 %v88
  %v817 = vunpack.c.h.b16 %v88
  %v818 = vunpack.c.l.b16 %v89
  %v819 = vunpack.c.h.b16 %v89
  %v820 = vunpack.c.l.b16 %v90
  %v821 = vunpack.c.h.b16 %v90
  %v822 = vunpack.c.l.b16 %v91
  %v823 = vunpack.c.h.b16 %v91
  %v824 = vunpack.c.l.b16 %v92
  %v825 = vunpack.c.h.b16 %v92
  %v826 = vunpack.c.l.b16 %v93
  %v827 = vunpack.c.h.b16 %v93
  %v828 = vunpack.c.l.b16 %v94
  %v829 = vunpack.c.h.b16 %v94
  %v830 = vunpack.c.l.b16 %v95
  %v831 = vunpack.c.h.b16 %v95
  %v832 = vunpack.c.l.b16 %v96
  %v833 = vunpack.c.h.b16 %v96
  %v834 = vunpack.c.l.b16 %v97
  %v835 = vunpack.c.h.b16 %v97
  %v836 = vunpack.c.l.b16 %v98
  %v837 = vunpack.c.h.b16 %v98
  %v838 = vunpack.c.l.b16 %v99
  %v839 = vunpack.c.h.b16 %v99
  %v840 = vunpack.c.l.b16 %v100
  %v841 = vunpack.c.h.b16 %v100
  %v842 = vunpack.c.l.b16 %v101
  %v843 = vunpack.c.h.b16 %v101
  %v844 = vunpack.c.l.b16 %v102
  %v845 = vunpack.c.h.b16 %v102
  %v846 = vunpack.c.l.b16 %v103
  %v847 = vunpack.c.h.b16 %v103
  %v848 = vunpack.c.l.b16 %v104
  %v849 = vunpack.c.h.b16 %v104
  %v850 = vunpack.c.l.b16 %v105
  %v851 = vunpack.c.h.b16 %v105
  %v852 = vunpack.c.l.b16 %v106
  %v853 = vunpack.c.h.b16 %v106
  %v854 = vunpack.c.l.b16 %v107
  %v855 = vunpack.c.h.b16 %v107
  %v856 = vunpack.c.l.b16 %v108
  %v857 = vunpack.c.h.b16 %v108
  %v858 = vunpack.c.l.b16 %v109
  %v859 = vunpack.c.h.b16 %v109
  %v860 = vunpack.c.l.b16 %v110
  %v861 = vunpack.c.h.b16 %v110
  %v862 = vunpack.c.l.b16 %v111
  %v863 = vunpack.c.h.b16 %v111
  %v864 = vunpack.c.l.b16 %v112
  %v865 = vunpack.c.h.b16 %v112
  %v866 = vunpack.c.l.b16 %v113
  %v867 = vunpack.c.h.b16 %v113
  %v868 = vunpack.c.l.b16 %v114
  %v869 = vunpack.c.h.b16 %v114
  %v870 = vunpack.c.l.b16 %v115
  %v871 = vunpack.c.h.b16 %v115
  %v872 = vunpack.c.l.b16 %v116
  %v873 = vunpack.c.h.b16 %v116
  %v874 = vunpack.c.l.b16 %v117
  %v875 = vunpack.c.h.b16 %v117
  %v876 = vunpack.c.l.b16 %v118
  %v877 = vunpack.c.h.b16 %v118
  %v878 = vunpack.c.l.b16 %v119
  %v879 = vunpack.c.h.b16 %v119
  %v880 = vunpack.c.l.b16 %v120
  %v881 = vunpack.c.h.b16 %v120
  %v882 = vunpack.c.l.b16 %v121
  %v883 = vunpack.c.h.b16 %v121
  %v884 = vunpack.c.l.b16 %v122
  %v885 = vunpack.c.h.b16 %v122
  %v886 = vunpack.c.l.b16 %v123
  %v887 = vunpack.c.h.b16 %v123
  %v888 = vunpack.c.l.b16 %v124
  %v889 = vunpack.c.h.b16 %v124
  %v890 = vunpack.c.l.b16 %v125
  %v891 = vunpack.c.h.b16 %v125
  %v892 = vunpack.c.l.b16 %v126
  %v893 = vunpack.c.h.b16 %v126
  %v894 = vunpack.c.l.b16 %v127
  %v895 = vunpack.c.h.b16 %v127
  %v896 = vunpack.c.l.b16 %v128
  %v897 = vunpack.c.h.b16 %v128
  %v898 = vunpack.c.l.b16 %v129
  %v899 = vunpack.c.h.b16 %v129
  %v900 = vunpack.c.l.b16 %v130
  %v901 = vunpack.c.h.b16 %v130
  %v902 = vunpack.c.l.b16 %v131
  %v903 = vunpack.c.h.b16 %v131
  %v904 = vunpack.c.l.b16 %v132
  %v905 = vunpack.c.h.b16 %v132
  %v906 = vunpack.c.l.b16 %v133
  %v907 = vunpack.c.h.b16 %v133
  %v908 = vunpack.c.l.b16 %v134
  %v909 = vunpack.c.h.b16 %v134
  %v910 = vunpack.c.l.b16 %v135
  %v911 = vunpack.c.h.b16 %v135
  %v912 = vunpack.c.l.b16 %v136
  %v913 = vunpack.c.h.b16 %v136
  %v914 = vunpack.c.l.b16 %v137
  %v915 = vunpack.c.h.b16 %v137
  %v916 = vunpack.c.l.b16 %v138
  %v917 = vunpack.c.h.b16 %v138
  %v918 = vunpack.c.l.b16 %v139
  %v919 = vunpack.c.h.b16 %v139
  %v920 = vunpack.c.l.b16 %v140
  %v921 = vunpack.c.h.b16 %v140
  %v922 = vunpack.c.l.b16 %v141
  %v923 = vunpack.c.h.b16 %v141
  %v924 = vunpack.c.l.b16 %v142
  %v925 = vunpack.c.h.b16 %v142
  %v926 = vunpack.c.l.b16 %v143
  %v927 = vunpack.c.h.b16 %v143
  %v928 = vunpack.c.l.b16 %v144
  %v929 = vunpack.c.h.b16 %v144
  %v930 = vunpack.c.l.b16 %v145
  %v931 = vunpack.c.h.b16 %v145
  %v932 = vunpack.c.l.b16 %v146
  %v933 = vunpack.c.h.b16 %v146
  %v934 = vunpack.c.l.b16 %v147
  %v935 = vunpack.c.h.b16 %v147
  %v936 = vunpack.c.l.b16 %v148
  %v937 = vunpack.c.h.b16 %v148
  %v938 = vunpack.c.l.b16 %v149
  %v939 = vunpack.c.h.b16 %v149
  %v940 = vunpack.c.l.b16 %v150
  %v941 = vunpack.c.h.b16 %v150
  %v942 = vunpack.c.l.b16 %v151
  %v943 = vunpack.c.h.b16 %v151
  %v944 = vunpack.c.l.b16 %v152
  %v945 = vunpack.c.h.b16 %v152
  %v946 = vunpack.c.l.b16 %v153
  %v947 = vunpack.c.h.b16 %v153
  %v948 = vunpack.c.l.b16 %v154
  %v949 = vunpack.c.h.b16 %v154
  %v950 = vunpack.c.l.b16 %v155
  %v951 = vunpack.c.h.b16 %v155
  %v952 = vunpack.c.l.b16 %v156
  %v953 = vunpack.c.h.b16 %v156
  %v954 = vunpack.c.l.b16 %v157
  %v955 = vunpack.c.h.b16 %v157
  %v956 = vunpack.c.l.b16 %v158
  %v957 = vunpack.c.h.b16 %v158
  %v958 = vunpack.c.l.b16 %v159
  %v959 = vunpack.c.h.b16 %v159
  %v960 = vunpack.c.l.b16 %v160
  %v961 = vunpack.c.h.b16 %v160
  %v962 = vunpack.c.l.b16 %v161
  %v963 = vunpack.c.h.b16 %v161
  %v964 = vunpack.c.l.b16 %v162
  %v965 = vunpack.c.h.b16 %v162
  %v966 = vunpack.c.l.b16 %v163
  %v967 = vunpack.c.h.b16 %v163
  %v968 = vunpack.c.l.b16 %v164
  %v969 = vunpack.c.h.b16 %v164
  %v970 = vunpack.c.l.b16 %v165
  %v971 = vunpack.c.h.b16 %v165
  %v972 = vunpack.c.l.b16 %v166
  %v973 = vunpack.c.h.b16 %v166
  %v974 = vunpack.c.l.b16 %v167
  %v975 = vunpack.c.h.b16 %v167
  %v976 = vunpack.c.l.b16 %v168
  %v977 = vunpack.c.h.b16 %v168
  %v978 = vunpack.c.l.b16 %v169
  %v979 = vunpack.c.h.b16 %v169
  %v980 = vunpack.c.l.b16 %v170
  %v981 = vunpack.c.h.b16 %v170
  %v982 = vunpack.c.l.b16 %v171
  %v983 = vunpack.c.h.b16 %v171
  %v984 = vunpack.c.l.b16 %v172
  %v985 = vunpack.c.h.b16 %v172
  %v986 = vunpack.c.l.b16 %v173
  %v987 = vunpack.c.h.b16 %v173
  %v988 = vunpack.c.l.b16 %v174
  %v989 = vunpack.c.h.b16 %v174
  %v990 = vunpack.c.l.b16 %v175
  %v991 = vunpack.c.h.b16 %v175
  %v992 = vunpack.c.l.b16 %v176
  %v993 = vunpack.c.h.b16 %v176
  %v994 = vunpack.c.l.b16 %v177
  %v995 = vunpack.c.h.b16 %v177
  %v996 = vunpack.c.l.b16 %v178
  %v997 = vunpack.c.h.b16 %v178
  %v998 = vunpack.c.l.b16 %v179
  %v999 = vunpack.c.h.b16 %v179
  %v1000 = vunpack.c.l.b16 %v180
  %v1001 = vunpack.c.h.b16 %v180
  %v1002 = vunpack.c.l.b16 %v181
  %v1003 = vunpack.c.h.b16 %v181
  %v1004 = vunpack.c.l.b16 %v182
  %v1005 = vunpack.c.h.b16 %v182
  %v1006 = vunpack.c.l.b16 %v183
  %v1007 = vunpack.c.h.b16 %v183
  %v1008 = vunpack.c.l.b16 %v184
  %v1009 = vunpack.c.h.b16 %v184
  %v1010 = vunpack.c.l.b16 %v185
  %v1011 = vunpack.c.h.b16 %v185
  %v1012 = vunpack.c.l.b16 %v186
  %v1013 = vunpack.c.h.b16 %v186
  %v1014 = vunpack.c.l.b16 %v187
  %v1015 = vunpack.c.h.b16 %v187
  %v1016 = vunpack.c.l.b16 %v188
  %v1017 = vunpack.c.h.b16 %v188
  %v1018 = vunpack.c.l.b16 %v189
  %v1019 = vunpack.c.h.b16 %v189
  %v1020 = vunpack.c.l.b16 %v190
  %v1021 = vunpack.c.h.b16 %v190
  %v1022 = vunpack.c.l.b16 %v191
  %v1023 = vunpack.c.h.b16 %v191
  %v1024 = vunpack.c.l.b16 %v192
  %v1025 = vunpack.c.h.b16 %v192
  %v1026 = vunpack.c.l.b16 %v193
  %v1027 = vunpack.c.h.b16 %v193
  %v1028 = vunpack.c.l.b16 %v194
  %v1029 = vunpack.c.h.b16 %v194
  %v1030 = vunpack.c.l.b16 %v195
  %v1031 = vunpack.c.h.b16 %v195
  %v1032 = vunpack.c.l.b16 %v196
  %v1033 = vunpack.c.h.b16 %v196
  %v1034 = vunpack.c.l.b16 %v197
  %v1035 = vunpack.c.h.b16 %v197
  %v1036 = vunpack.c.l.b16 %v198
  %v1037 = vunpack.c.h.b16 %v198
  %v1038 = vunpack.c.l.b16 %v199
  %v1039 = vunpack.c.h.b16 %v199
  %v1040 = vunpack.c.l.b16 %v200
  %v1041 = vunpack.c.h.b16 %v200
  %v1042 = vunpack.c.l.b16 %v201
  %v1043 = vunpack.c.h.b16 %v201
  %v1044 = vunpack.c.l.b16 %v202
  %v1045 = vunpack.c.h.b16 %v202
  %v1046 = vunpack.c.l.b16 %v203
  %v1047 = vunpack.c.h.b16 %v203
  %v1048 = vunpack.c.l.b16 %v204
  %v1049 = vunpack.c.h.b16 %v204
  %v1050 = vunpack.c.l.b16 %v205
  %v1051 = vunpack.c.h.b16 %v205
  %v1052 = vunpack.c.l.b16 %v206
  %v1053 = vunpack.c.h.b16 %v206
  %v1054 = vunpack.c.l.b16 %v207
  %v1055 = vunpack.c.h.b16 %v207
  %v1056 = vunpack.c.l.b16 %v208
  %v1057 = vunpack.c.h.b16 %v208
  %v1058 = vunpack.c.l.b16 %v209
  %v1059 = vunpack.c.h.b16 %v209
  %v1060 = vunpack.c.l.b16 %v210
  %v1061 = vunpack.c.h.b16 %v210
  %v1062 = vunpack.c.l.b16 %v211
  %v1063 = vunpack.c.h.b16 %v211
  %v1064 = vunpack.c.l.b16 %v212
  %v1065 = vunpack.c.h.b16 %v212
  %v1066 = vunpack.c.l.b16 %v213
  %v1067 = vunpack.c.h.b16 %v213
  %v1068 = vunpack.c.l.b16 %v214
  %v1069 = vunpack.c.h.b16 %v214
  %v1070 = vunpack.c.l.b16 %v215
  %v1071 = vunpack.c.h.b16 %v215
  %v1072 = vunpack.c.l.b16 %v216
  %v1073 = vunpack.c.h.b16 %v216
  %v1074 = vunpack.c.l.b16 %v217
  %v1075 = vunpack.c.h.b16 %v217
  %v1076 = vunpack.c.l.b16 %v218
  %v1077 = vunpack.c.h.b16 %v218
  %v1078 = vunpack.c.l.b16 %v219
  %v1079 = vunpack.c.h.b16 %v219
  %v1080 = vunpack.c.l.b16 %v220
  %v1081 = vunpack.c.h.b16 %v220
  %v1082 = vunpack.c.l.b16 %v221
  %v1083 = vunpack.c.h.b16 %v221
  %v1084 = vunpack.c.l.b16 %v222
  %v1085 = vunpack.c.h.b16 %v222
  %v1086 = vunpack.c.l.b16 %v223
  %v1087 = vunpack.c.h.b16 %v223
  %v1088 = vunpack.c.l.b16 %v224
  %v1089 = vunpack.c.h.b16 %v224
  %v1090 = vunpack.c.l.b16 %v225
  %v1091 = vunpack.c.h.b16 %v225
  %v1092 = vunpack.c.l.b16 %v226
  %v1093 = vunpack.c.h.b16 %v226
  %v1094 = vunpack.c.l.b16 %v227
  %v1095 = vunpack.c.h.b16 %v227
  %v1096 = vunpack.c.l.b16 %v228
  %v1097 = vunpack.c.h.b16 %v228
  %v1098 = vunpack.c.l.b16 %v229
  %v1099 = vunpack.c.h.b16 %v229
  %v1100 = vunpack.c.l.b16 %v230
  %v1101 = vunpack.c.h.b16 %v230
  %v1102 = vunpack.c.l.b16 %v231
  %v1103 = vunpack.c.h.b16 %v231
  %v1104 = vunpack.c.l.b16 %v232
  %v1105 = vunpack.c.h.b16 %v232
  %v1106 = vunpack.c.l.b16 %v233
  %v1107 = vunpack.c.h.b16 %v233
  %v1108 = vunpack.c.l.b16 %v234
  %v1109 = vunpack.c.h.b16 %v234
  %v1110 = vunpack.c.l.b16 %v235
  %v1111 = vunpack.c.h.b16 %v235
  %v1112 = vunpack.c.l.b16 %v236
  %v1113 = vunpack.c.h.b16 %v236
  %v1114 = vunpack.c.l.b16 %v237
  %v1115 = vunpack.c.h.b16 %v237
  %v1116 = vunpack.c.l.b16 %v238
  %v1117 = vunpack.c.h.b16 %v238
  %v1118 = vunpack.c.l.b16 %v239
  %v1119 = vunpack.c.h.b16 %v239
  %v1120 = vunpack.c.l.b16 %v240
  %v1121 = vunpack.c.h.b16 %v240
  %v1122 = vunpack.c.l.b16 %v241
  %v1123 = vunpack.c.h.b16 %v241
  %v1124 = vunpack.c.l.b16 %v242
  %v1125 = vunpack.c.h.b16 %v242
  %v1126 = vunpack.c.l.b16 %v243
  %v1127 = vunpack.c.h.b16 %v243
  %v1128 = vunpack.c.l.b16 %v244
  %v1129 = vunpack.c.h.b16 %v244
  %v1130 = vunpack.c.l.b16 %v245
  %v1131 = vunpack.c.h.b16 %v245
  %v1132 = vunpack.c.l.b16 %v246
  %v1133 = vunpack.c.h.b16 %v246
  %v1134 = vunpack.c.l.b16 %v247
  %v1135 = vunpack.c.h.b16 %v247
  %v1136 = vunpack.c.l.b16 %v248
  %v1137 = vunpack.c.h.b16 %v248
  %v1138 = vunpack.c.l.b16 %v249
  %v1139 = vunpack.c.h.b16 %v249
  %v1140 = vunpack.c.l.b16 %v250
  %v1141 = vunpack.c.h.b16 %v250
  %v1142 = vunpack.c.l.b16 %v251
  %v1143 = vunpack.c.h.b16 %v251
  %v1144 = vunpack.c.l.b16 %v252
  %v1145 = vunpack.c.h.b16 %v252
  %v1146 = vunpack.c.l.b16 %v253
  %v1147 = vunpack.c.h.b16 %v253
  %v1148 = vunpack.c.l.b16 %v254
  %v1149 = vunpack.c.h.b16 %v254
  %v1150 = vunpack.c.l.b16 %v255
  %v1151 = vunpack.c.h.b16 %v255
  %v1152 = vunpack.c.l.b16 %v256
  %v1153 = vunpack.c.h.b16 %v256
  %v1154 = vunpack.c.l.b16 %v257
  %v1155 = vunpack.c.h.b16 %v257
  %v1156 = vunpack.c.l.b16 %v258
  %v1157 = vunpack.c.h.b16 %v258
  %v1158 = vunpack.c.l.b16 %v259
  %v1159 = vunpack.c.h.b16 %v259
  %v1160 = vunpack.c.l.b16 %v260
  %v1161 = vunpack.c.h.b16 %v260
  %v1162 = vunpack.c.l.b16 %v261
  %v1163 = vunpack.c.h.b16 %v261
  %v1164 = vunpack.c.l.b16 %v262
  %v1165 = vunpack.c.h.b16 %v262
  %v1166 = vunpack.c.l.b16 %v263
  %v1167 = vunpack.c.h.b16 %v263
  %v1168 = vunpack.c.l.b16 %v264
  %v1169 = vunpack.c.h.b16 %v264
  %v1170 = vunpack.c.l.b16 %v265
  %v1171 = vunpack.c.h.b16 %v265
  %v1172 = vunpack.c.l.b16 %v266
  %v1173 = vunpack.c.h.b16 %v266
  %v1174 = vunpack.c.l.b16 %v267
  %v1175 = vunpack.c.h.b16 %v267
  %v1176 = vunpack.c.l.b16 %v268
  %v1177 = vunpack.c.h.b16 %v268
  %v1178 = vunpack.c.l.b16 %v269
  %v1179 = vunpack.c.h.b16 %v269
  %v1180 = vunpack.c.l.b16 %v270
  %v1181 = vunpack.c.h.b16 %v270
  %v1182 = vunpack.c.l.b16 %v271
  %v1183 = vunpack.c.h.b16 %v271
  %v1184 = vunpack.c.l.b16 %v272
  %v1185 = vunpack.c.h.b16 %v272
  %v1186 = vunpack.c.l.b16 %v273
  %v1187 = vunpack.c.h.b16 %v273
  %v1188 = vunpack.c.l.b16 %v274
  %v1189 = vunpack.c.h.b16 %v274
  %v1190 = vunpack.c.l.b16 %v275
  %v1191 = vunpack.c.h.b16 %v275
  %v1192 = vunpack.c.l.b16 %v276
  %v1193 = vunpack.c.h.b16 %v276
  %v1194 = vunpack.c.l.b16 %v277
  %v1195 = vunpack.c.h.b16 %v277
  %v1196 = vunpack.c.l.b16 %v278
  %v1197 = vunpack.c.h.b16 %v278
  %v1198 = vunpack.c.l.b16 %v279
  %v1199 = vunpack.c.h.b16 %v279
  %v1200 = vunpack.c.l.b16 %v280
  %v1201 = vunpack.c.h.b16 %v280
  %v1202 = vunpack.c.l.b16 %v281
  %v1203 = vunpack.c.h.b16 %v281
  %v1204 = vunpack.c.l.b16 %v282
  %v1205 = vunpack.c.h.b16 %v282
  %v1206 = vunpack.c.l.b16 %v283
  %v1207 = vunpack.c.h.b16 %v283
  %v1208 = vunpack.c.l.b16 %v284
  %v1209 = vunpack.c.h.b16 %v284
  %v1210 = vunpack.c.l.b16 %v285
  %v1211 = vunpack.c.h.b16 %v285
  %v1212 = vunpack.c.l.b16 %v286
  %v1213 = vunpack.c.h.b16 %v286
  %v1214 = vunpack.c.l.b16 %v287
  %v1215 = vunpack.c.h.b16 %v287
  %v1216 = vunpack.c.l.b16 %v288
  %v1217 = vunpack.c.h.b16 %v288
  %v1218 = vunpack.c.l.b16 %v289
  %v1219 = vunpack.c.h.b16 %v289
  %v1220 = vunpack.c.l.b16 %v290
  %v1221 = vunpack.c.h.b16 %v290
  %v1222 = vunpack.c.l.b16 %v291
  %v1223 = vunpack.c.h.b16 %v291
  %v1224 = vunpack.c.l.b16 %v292
  %v1225 = vunpack.c.h.b16 %v292
  %v1226 = vunpack.c.l.b16 %v293
  %v1227 = vunpack.c.h.b16 %v293
  %v1228 = vunpack.c.l.b16 %v294
  %v1229 = vunpack.c.h.b16 %v294
  %v1230 = vunpack.c.l.b16 %v295
  %v1231 = vunpack.c.h.b16 %v295
  %v1232 = vunpack.c.l.b16 %v296
  %v1233 = vunpack.c.h.b16 %v296
  %v1234 = vunpack.c.l.b16 %v297
  %v1235 = vunpack.c.h.b16 %v297
  %v1236 = vunpack.c.l.b16 %v298
  %v1237 = vunpack.c.h.b16 %v298
  %v1238 = vunpack.c.l.b16 %v299
  %v1239 = vunpack.c.h.b16 %v299
  %v1240 = vunpack.c.l.b16 %v300
  %v1241 = vunpack.c.h.b16 %v300
  %v1242 = vunpack.c.l.b16 %v301
  %v1243 = vunpack.c.h.b16 %v301
  %v1244 = vunpack.c.l.b16 %v302
  %v1245 = vunpack.c.h.b16 %v302
  %v1246 = vunpack.c.l.b16 %v303
  %v1247 = vunpack.c.h.b16 %v303
  %v1248 = vunpack.c.l.b16 %v304
  %v1249 = vunpack.c.h.b16 %v304
  %v1250 = vunpack.c.l.b16 %v305
  %v1251 = vunpack.c.h.b16 %v305
  %v1252 = vunpack.c.l.b16 %v306
  %v1253 = vunpack.c.h.b16 %v306
  %v1254 = vunpack.c.l.b16 %v307
  %v1255 = vunpack.c.h.b16 %v307
  %v1256 = vunpack.c.l.b16 %v308
  %v1257 = vunpack.c.h.b16 %v308
  %v1258 = vunpack.c.l.b16 %v309
  %v1259 = vunpack.c.h.b16 %v309
  %v1260 = vunpack.c.l.b16 %v310
  %v1261 = vunpack.c.h.b16 %v310
  %v1262 = vunpack.c.l.b16 %v311
  %v1263 = vunpack.c.h.b16 %v311
  %v1264 = vunpack.c.l.b16 %v312
  %v1265 = vunpack.c.h.b16 %v312
  %v1266 = vunpack.c.l.b16 %v313
  %v1267 = vunpack.c.h.b16 %v313
  %v1268 = vunpack.c.l.b16 %v314
  %v1269 = vunpack.c.h.b16 %v314
  %v1270 = vunpack.c.l.b16 %v315
  %v1271 = vunpack.c.h.b16 %v315
  %v1272 = vunpack.c.l.b16 %v316
  %v1273 = vunpack.c.h.b16 %v316
  %v1274 = vunpack.c.l.b16 %v317
  %v1275 = vunpack.c.h.b16 %v317
  %v1276 = vunpack.c.l.b16 %v318
  %v1277 = vunpack.c.h.b16 %v318
  %v1278 = vunpack.c.l.b16 %v319
  %v1279 = vunpack.c.h.b16 %v319
  %v1280 = vpack.c.b16 %v706, %v704
  %v1281 = vpack.c.b16 %v707, %v705
  %v1282 = vpack.c.b16 %v710, %v708
  %v1283 = vpack.c.b16 %v711, %v709
  %v1284 = vpack.c.b16 %v714, %v712
  %v1285 = vpack.c.b16 %v715, %v713
  %v1286 = vpack.c.b16 %v718, %v716
  %v1287 = vpack.c.b16 %v719, %v717
  %v1288 = vpack.c.b16 %v722, %v720
  %v1289 = vpack.c.b16 %v723, %v721
  %v1290 = vpack.c.b16 %v726, %v724
  %v1291 = vpack.c.b16 %v727, %v725
  %v1292 = vpack.c.b16 %v730, %v728
  %v1293 = vpack.c.b16 %v731, %v729
  %v1294 = vpack.c.b16 %v734, %v732
  %v1295 = vpack.c.b16 %v735, %v733
  %v1296 = vpack.c.b16 %v738, %v736
  %v1297 = vpack.c.b16 %v739, %v737
  %v1298 = vpack.c.b16 %v742, %v740
  %v1299 = vpack.c.b16 %v743, %v741
  %v1300 = vpack.c.b16 %v746, %v744
  %v1301 = vpack.c.b16 %v747, %v745
  %v1302 = vpack.c.b16 %v750, %v748
  %v1303 = vpack.c.b16 %v751, %v749
  %v1304 = vpack.c.b16 %v754, %v752
  %v1305 = vpack.c.b16 %v755, %v753
  %v1306 = vpack.c.b16 %v758, %v756
  %v1307 = vpack.c.b16 %v759, %v757
  %v1308 = vpack.c.b16 %v762, %v760
  %v1309 = vpack.c.b16 %v763, %v761
  %v1310 = vpack.c.b16 %v766, %v764
  %v1311 = vpack.c.b16 %v767, %v765
  %v1312 = vpack.c.b16 %v770, %v768
  %v1313 = vpack.c.b16 %v771, %v769
  %v1314 = vpack.c.b16 %v774, %v772
  %v1315 = vpack.c.b16 %v775, %v773
  %v1316 = vpack.c.b16 %v778, %v776
  %v1317 = vpack.c.b16 %v779, %v777
  %v1318 = vpack.c.b16 %v782, %v780
  %v1319 = vpack.c.b16 %v783, %v781
  %v1320 = vpack.c.b16 %v786, %v784
  %v1321 = vpack.c.b16 %v787, %v785
  %v1322 = vpack.c.b16 %v790, %v788
  %v1323 = vpack.c.b16 %v791, %v789
  %v1324 = vpack.c.b16 %v794, %v792
  %v1325 = vpack.c.b16 %v795, %v793
  %v1326 = vpack.c.b16 %v798, %v796
  %v1327 = vpack.c.b16 %v799, %v797
  %v1328 = vpack.c.b16 %v802, %v800
  %v1329 = vpack.c.b16 %v803, %v801
  %v1330 = vpack.c.b16 %v806, %v804
  %v1331 = vpack.c.b16 %v807, %v805
  %v1332 = vpack.c.b16 %v810, %v808
  %v1333 = vpack.c.b16 %v811, %v809
  %v1334 = vpack.c.b16 %v814, %v812
  %v1335 = vpack.c.b16 %v815, %v813
  %v1336 = vpack.c.b16 %v818, %v816
  %v1337 = vpack.c.b16 %v819, %v817
  %v1338 = vpack.c.b16 %v822, %v820
  %v1339 = vpack.c.b16 %v823, %v821
  %v1340 = vpack.c.b16 %v826, %v824
  %v1341 = vpack.c.b16 %v827, %v825
  %v1342 = vpack.c.b16 %v830, %v828
  %v1343 = vpack.c.b16 %v831, %v829
  %v1344 = vpack.c.b16 %v834, %v832
  %v1345 = vpack.c.b16 %v835, %v833
  %v1346 = vpack.c.b16 %v838, %v836
  %v1347 = vpack.c.b16 %v839, %v837
  %v1348 = vpack.c.b16 %v842, %v840
  %v1349 = vpack.c.b16 %v843, %v841
  %v1350 = vpack.c.b16 %v846, %v844
  %v1351 = vpack.c.b16 %v847, %v845
  %v1352 = vpack.c.b16 %v850, %v848
  %v1353 = vpack.c.b16 %v851, %v849
  %v1354 = vpack.c.b16 %v854, %v852
  %v1355 = vpack.c.b16 %v855, %v853
  %v1356 = vpack.c.b16 %v858, %v856
  %v1357 = vpack.c.b16 %v859, %v857
  %v1358 = vpack.c.b16 %v862, %v860
  %v1359 = vpack.c.b16 %v863, %v861
  %v1360 = vpack.c.b16 %v866, %v864
  %v1361 = vpack.c.b16 %v867, %v865
  %v1362 = vpack.c.b16 %v870, %v868
  %v1363 = vpack.c.b16 %v871, %v869
  %v1364 = vpack.c.b16 %v874, %v872
  %v1365 = vpack.c.b16 %v875, %v873
  %v1366 = vpack.c.b16 %v878, %v876
  %v1367 = vpack.c.b16 %v879, %v877
  %v1368 = vpack.c.b16 %v882, %v880
  %v1369 = vpack.c.b16 %v883, %v881
  %v1370 = vpack.c.b16 %v886, %v884
  %v1371 = vpack.c.b16 %v887, %v885
  %v1372 = vpack.c.b16 %v890, %v888
  %v1373 = vpack.c.b16 %v891, %v889
  %v1374 = vpack.c.b16 %v894, %v892
  %v1375 = vpack.c.b16 %v895, %v893
  %v1376 = vpack.c.b16 %v898, %v896
  %v1377 = vpack.c.b16 %v899, %v897
  %v1378 = vpack.c.b16 %v902, %v900
  %v1379 = vpack.c.b16 %v903, %v901
  %v1380 = vpack.c.b16 %v906, %v904
  %v1381 = vpack.c.b16 %v907, %v905
  %v1382 = vpack.c.b16 %v910, %v908
  %v1383 = vpack.c.b16 %v911, %v909
  %v1384 = vpack.c.b16 %v914, %v912
  %v1385 = vpack.c.b16 %v915, %v913
  %v1386 = vpack.c.b16 %v918, %v916
  %v1387 = vpack.c.b16 %v919, %v917
  %v1388 = vpack.c.b16 %v922, %v920
  %v1389 = vpack.c.b16 %v923, %v921
  %v1390 = vpack.c.b16 %v926, %v924
  %v1391 = vpack.c.b16 %v927, %v925
  %v1392 = vpack.c.b16 %v930, %v928
  %v1393 = vpack.c.b16 %v931, %v929
  %v1394 = vpack.c.b16 %v934, %v932
  %v1395 = vpack.c.b16 %v935, %v933
  %v1396 = vpack.c.b16 %v938, %v936
  %v1397 = vpack.c.b16 %v939, %v937
  %v1398 = vpack.c.b16 %v942, %v940
  %v1399 = vpack.c.b16 %v943, %v941
  %v1400 = vpack.c.b16 %v946, %v944
  %v1401 = vpack.c.b16 %v947, %v945
  %v1402 = vpack.c.b16 %v950, %v948
  %v1403 = vpack.c.b16 %v951, %v949
  %v1404 = vpack.c.b16 %v954, %v952
  %v1405 = vpack.c.b16 %v955, %v953
  %v1406 = vpack.c.b16 %v958, %v956
  %v1407 = vpack.c.b16 %v959, %v957
  %v1408 = vpack.c.b16 %v962, %v960
  %v1409 = vpack.c.b16 %v963, %v961
  %v1410 = vpack.c.b16 %v966, %v964
  %v1411 = vpack.c.b16 %v967, %v965
  %v1412 = vpack.c.b16 %v970, %v968
  %v1413 = vpack.c.b16 %v971, %v969
  %v1414 = vpack.c.b16 %v974, %v972
  %v1415 = vpack.c.b16 %v975, %v973
  %v1416 = vpack.c.b16 %v978, %v976
  %v1417 = vpack.c.b16 %v979, %v977
  %v1418 = vpack.c.b16 %v982, %v980
  %v1419 = vpack.c.b16 %v983, %v981
  %v1420 = vpack.c.b16 %v986, %v984
  %v1421 = vpack.c.b16 %v987, %v985
  %v1422 = vpack.c.b16 %v990, %v988
  %v1423 = vpack.c.b16 %v991, %v989
  %v1424 = vpack.c.b16 %v994, %v992
  %v1425 = vpack.c.b16 %v995, %v993
  %v1426 = vpack.c.b16 %v998, %v996
  %v1427 = vpack.c.b16 %v999, %v997
  %v1428 = vpack.c.b16 %v1002, %v1000
  %v1429 = vpack.c.b16 %v1003, %v1001
  %v1430 = vpack.c.b16 %v1006, %v1004
  %v1431 = vpack.c.b16 %v1007, %v1005
  %v1432 = vpack.c.b16 %v1010, %v1008
  %v1433 = vpack.c.b16 %v1011, %v1009
  %v1434 = vpack.c.b16 %v1014, %v1012
  %v1435 = vpack.c.b16 %v1015, %v1013
  %v1436 = vpack.c.b16 %v1018, %v1016
  %v1437 = vpack.c.b16 %v1019, %v1017
  %v1438 = vpack.c.b16 %v1022, %v1020
  %v1439 = vpack.c.b16 %v1023, %v1021
  %v1440 = vpack.c.b16 %v1026, %v1024
  %v1441 = vpack.c.b16 %v1027, %v1025
  %v1442 = vpack.c.b16 %v1030, %v1028
  %v1443 = vpack.c.b16 %v1031, %v1029
  %v1444 = vpack.c.b16 %v1034, %v1032
  %v1445 = vpack.c.b16 %v1035, %v1033
  %v1446 = vpack.c.b16 %v1038, %v1036
  %v1447 = vpack.c.b16 %v1039, %v1037
  %v1448 = vpack.c.b16 %v1042, %v1040
  %v1449 = vpack.c.b16 %v1043, %v1041
  %v1450 = vpack.c.b16 %v1046, %v1044
  %v1451 = vpack.c.b16 %v1047, %v1045
  %v1452 = vpack.c.b16 %v1050, %v1048
  %v1453 = vpack.c.b16 %v1051, %v1049
  %v1454 = vpack.c.b16 %v1054, %v1052
  %v1455 = vpack.c.b16 %v1055, %v1053
  %v1456 = vpack.c.b16 %v1058, %v1056
  %v1457 = vpack.c.b16 %v1059, %v1057
  %v1458 = vpack.c.b16 %v1062, %v1060
  %v1459 = vpack.c.b16 %v1063, %v1061
  %v1460 = vpack.c.b16 %v1066, %v1064
  %v1461 = vpack.c.b16 %v1067, %v1065
  %v1462 = vpack.c.b16 %v1070, %v1068
  %v1463 = vpack.c.b16 %v1071, %v1069
  %v1464 = vpack.c.b16 %v1074, %v1072
  %v1465 = vpack.c.b16 %v1075, %v1073
  %v1466 = vpack.c.b16 %v1078, %v1076
  %v1467 = vpack.c.b16 %v1079, %v1077
  %v1468 = vpack.c.b16 %v1082, %v1080
  %v1469 = vpack.c.b16 %v1083, %v1081
  %v1470 = vpack.c.b16 %v1086, %v1084
  %v1471 = vpack.c.b16 %v1087, %v1085
  %v1472 = vpack.c.b16 %v1090, %v1088
  %v1473 = vpack.c.b16 %v1091, %v1089
  %v1474 = vpack.c.b16 %v1094, %v1092
  %v1475 = vpack.c.b16 %v1095, %v1093
  %v1476 = vpack.c.b16 %v1098, %v1096
  %v1477 = vpack.c.b16 %v1099, %v1097
  %v1478 = vpack.c.b16 %v1102, %v1100
  %v1479 = vpack.c.b16 %v1103, %v1101
  %v1480 = vpack.c.b16 %v1106, %v1104
  %v1481 = vpack.c.b16 %v1107, %v1105
  %v1482 = vpack.c.b16 %v1110, %v1108
  %v1483 = vpack.c.b16 %v1111, %v1109
  %v1484 = vpack.c.b16 %v1114, %v1112
  %v1485 = vpack.c.b16 %v1115, %v1113
  %v1486 = vpack.c.b16 %v1118, %v1116
  %v1487 = vpack.c.b16 %v1119, %v1117
  %v1488 = vpack.c.b16 %v1122, %v1120
  %v1489 = vpack.c.b16 %v1123, %v1121
  %v1490 = vpack.c.b16 %v1126, %v1124
  %v1491 = vpack.c.b16 %v1127, %v1125
  %v1492 = vpack.c.b16 %v1130, %v1128
  %v1493 = vpack.c.b16 %v1131, %v1129
  %v1494 = vpack.c.b16 %v1134, %v1132
  %v1495 = vpack.c.b16 %v1135, %v1133
  %v1496 = vpack.c.b16 %v1138, %v1136
  %v1497 = vpack.c.b16 %v1139, %v1137
  %v1498 = vpack.c.b16 %v1142, %v1140
  %v1499 = vpack.c.b16 %v1143, %v1141
  %v1500 = vpack.c.b16 %v1146, %v1144
  %v1501 = vpack.c.b16 %v1147, %v1145
  %v1502 = vpack.c.b16 %v1150, %v1148
  %v1503 = vpack.c.b16 %v1151, %v1149
  %v1504 = vpack.c.b16 %v1154, %v1152
  %v1505 = vpack.c.b16 %v1155, %v1153
  %v1506 = vpack.c.b16 %v1158, %v1156
  %v1507 = vpack.c.b16 %v1159, %v1157
  %v1508 = vpack.c.b16 %v1162, %v1160
  %v1509 = vpack.c.b16 %v1163, %v1161
  %v1510 = vpack.c.b16 %v1166, %v1164
  %v1511 = vpack.c.b16 %v1167, %v1165
  %v1512 = vpack.c.b16 %v1170, %v1168
  %v1513 = vpack.c.b16 %v1171, %v1169
  %v1514 = vpack.c.b16 %v1174, %v1172
  %v1515 = vpack.c.b16 %v1175, %v1173
  %v1516 = vpack.c.b16 %v1178, %v1176
  %v1517 = vpack.c.b16 %v1179, %v1177
  %v1518 = vpack.c.b16 %v1182, %v1180
  %v1519 = vpack.c.b16 %v1183, %v1181
  %v1520 = vpack.c.b16 %v1186, %v1184
  %v1521 = vpack.c.b16 %v1187, %v1185
  %v1522 = vpack.c.b16 %v1190, %v1188
  %v1523 = vpack.c.b16 %v1191, %v1189
  %v1524 = vpack.c.b16 %v1194, %v1192
  %v1525 = vpack.c.b16 %v1195, %v1193
  %v1526 = vpack.c.b16 %v1198, %v1196
  %v1527 = vpack.c.b16 %v1199, %v1197
  %v1528 = vpack.c.b16 %v1202, %v1200
  %v1529 = vpack.c.b16 %v1203, %v1201
  %v1530 = vpack.c.b16 %v1206, %v1204
  %v1531 = vpack.c.b16 %v1207, %v1205
  %v1532 = vpack.c.b16 %v1210, %v1208
  %v1533 = vpack.c.b16 %v1211, %v1209
  %v1534 = vpack.c.b16 %v1214, %v1212
  %v1535 = vpack.c.b16 %v1215, %v1213
  %v1536 = vpack.c.b16 %v1218, %v1216
  %v1537 = vpack.c.b16 %v1219, %v1217
  %v1538 = vpack.c.b16 %v1222, %v1220
  %v1539 = vpack.c.b16 %v1223, %v1221
  %v1540 = vpack.c.b16 %v1226, %v1224
  %v1541 = vpack.c.b16 %v1227, %v1225
  %v1542 = vpack.c.b16 %v1230, %v1228
  %v1543 = vpack.c.b16 %v1231, %v1229
  %v1544 = vpack.c.b16 %v1234, %v1232
  %v1545 = vpack.c.b16 %v1235, %v1233
  %v1546 = vpack.c.b16 %v1238, %v1236
  %v1547 = vpack.c.b16 %v1239, %v1237
  %v1548 = vpack.c.b16 %v1242, %v1240
  %v1549 = vpack.c.b16 %v1243, %v1241
  %v1550 = vpack.c.b16 %v1246, %v1244
  %v1551 = vpack.c.b16 %v1247, %v1245
  %v1552 = vpack.c.b16 %v1250, %v1248
  %v1553 = vpack.c.b16 %v1251, %v1249
  %v1554 = vpack.c.b16 %v1254, %v1252
  %v1555 = vpack.c.b16 %v1255, %v1253
  %v1556 = vpack.c.b16 %v1258, %v1256
  %v1557 = vpack.c.b16 %v1259, %v1257
  %v1558 = vpack.c.b16 %v1262, %v1260
  %v1559 = vpack.c.b16 %v1263, %v1261
  %v1560 = vpack.c.b16 %v1266, %v1264
  %v1561 = vpack.c.b16 %v1267, %v1265
  %v1562 = vpack.c.b16 %v1270, %v1268
  %v1563 = vpack.c.b16 %v1271, %v1269
  %v1564 = vpack.c.b16 %v1274, %v1272
  %v1565 = vpack.c.b16 %v1275, %v1273
  %v1566 = vpack.c.b16 %v1278, %v1276
  %v1567 = vpack.c.b16 %v1279, %v1277
  %1856 = vmatpush.bf16.msra.mxu0 %v1294
  %1857 = vmatpush.bf16.msra.mxu0 %v1292
  %1858 = vmatpush.bf16.msra.mxu0 %v1290
  %1859 = vmatpush.bf16.msra.mxu0 %v1288
  %1860 = vmatpush.bf16.msra.mxu0 %v1286
  %1861 = vmatpush.bf16.msra.mxu0 %v1284
  %1862 = vmatpush.bf16.msra.mxu0 %v1282
  %1863 = vmatpush.bf16.msra.mxu0 %v1280
  %1864 = vmatmul.bf16.gmra.mxu0 %v380
  %v1865 = vpop.f32.mrf.mxu0
  %v1866 = vadd.f32 %v322, %v1865
  %v1867 = vpop.f32.mrf.mxu0
  %v1868 = vadd.f32 %v322, %v1867
  %1869 = vdwg.mxu0
  %1870 = vmatpush.bf16.msra.mxu0 %v1310
  %1871 = vmatpush.bf16.msra.mxu0 %v1308
  %1872 = vmatpush.bf16.msra.mxu0 %v1306
  %1873 = vmatpush.bf16.msra.mxu0 %v1304
  %1874 = vmatpush.bf16.msra.mxu0 %v1302
  %1875 = vmatpush.bf16.msra.mxu0 %v1300
  %1876 = vmatpush.bf16.msra.mxu0 %v1298
  %1877 = vmatpush.bf16.msra.mxu0 %v1296
  %1878 = vmatmul.bf16.gmra.mxu0 %v381
  %v1879 = vpop.f32.mrf.mxu0
  %v1880 = vadd.f32 %v1866, %v1879
  %v1881 = vpop.f32.mrf.mxu0
  %v1882 = vadd.f32 %v1868, %v1881
  %1883 = vdwg.mxu0
  %1884 = vmatpush.bf16.msra.mxu0 %v1326
  %1885 = vmatpush.bf16.msra.mxu0 %v1324
  %1886 = vmatpush.bf16.msra.mxu0 %v1322
  %1887 = vmatpush.bf16.msra.mxu0 %v1320
  %1888 = vmatpush.bf16.msra.mxu0 %v1318
  %1889 = vmatpush.bf16.msra.mxu0 %v1316
  %1890 = vmatpush.bf16.msra.mxu0 %v1314
  %1891 = vmatpush.bf16.msra.mxu0 %v1312
  %1892 = vmatmul.bf16.gmra.mxu0 %v382
  %v1893 = vpop.f32.mrf.mxu0
  %v1894 = vadd.f32 %v1880, %v1893
  %v1895 = vpop.f32.mrf.mxu0
  %v1896 = vadd.f32 %v1882, %v1895
  %1897 = vdwg.mxu0
  %1898 = vmatpush.bf16.msra.mxu0 %v1342
  %1899 = vmatpush.bf16.msra.mxu0 %v1340
  %1900 = vmatpush.bf16.msra.mxu0 %v1338
  %1901 = vmatpush.bf16.msra.mxu0 %v1336
  %1902 = vmatpush.bf16.msra.mxu0 %v1334
  %1903 = vmatpush.bf16.msra.mxu0 %v1332
  %1904 = vmatpush.bf16.msra.mxu0 %v1330
  %1905 = vmatpush.bf16.msra.mxu0 %v1328
  %1906 = vmatmul.bf16.gmra.mxu0 %v383
  %v1907 = vpop.f32.mrf.mxu0
  %v1908 = vadd.f32 %v1894, %v1907
  %v1909 = vpop.f32.mrf.mxu0
  %v1910 = vadd.f32 %v1896, %v1909
  %1911 = vdwg.mxu0
  %1912 = vmatpush.bf16.msra.mxu0 %v1358
  %1913 = vmatpush.bf16.msra.mxu0 %v1356
  %1914 = vmatpush.bf16.msra.mxu0 %v1354
  %1915 = vmatpush.bf16.msra.mxu0 %v1352
  %1916 = vmatpush.bf16.msra.mxu0 %v1350
  %1917 = vmatpush.bf16.msra.mxu0 %v1348
  %1918 = vmatpush.bf16.msra.mxu0 %v1346
  %1919 = vmatpush.bf16.msra.mxu0 %v1344
  %1920 = vmatmul.bf16.gmra.mxu0 %v384
  %v1921 = vpop.f32.mrf.mxu0
  %v1922 = vadd.f32 %v1908, %v1921
  %v1923 = vpop.f32.mrf.mxu0
  %v1924 = vadd.f32 %v1910, %v1923
  %1925 = vdwg.mxu0
  %1926 = vmatpush.bf16.msra.mxu0 %v1374
  %1927 = vmatpush.bf16.msra.mxu0 %v1372
  %1928 = vmatpush.bf16.msra.mxu0 %v1370
  %1929 = vmatpush.bf16.msra.mxu0 %v1368
  %1930 = vmatpush.bf16.msra.mxu0 %v1366
  %1931 = vmatpush.bf16.msra.mxu0 %v1364
  %1932 = vmatpush.bf16.msra.mxu0 %v1362
  %1933 = vmatpush.bf16.msra.mxu0 %v1360
  %1934 = vmatmul.bf16.gmra.mxu0 %v385
  %v1935 = vpop.f32.mrf.mxu0
  %v1936 = vadd.f32 %v1922, %v1935
  %v1937 = vpop.f32.mrf.mxu0
  %v1938 = vadd.f32 %v1924, %v1937
  %1939 = vdwg.mxu0
  %1940 = vmatpush.bf16.msra.mxu0 %v1390
  %1941 = vmatpush.bf16.msra.mxu0 %v1388
  %1942 = vmatpush.bf16.msra.mxu0 %v1386
  %1943 = vmatpush.bf16.msra.mxu0 %v1384
  %1944 = vmatpush.bf16.msra.mxu0 %v1382
  %1945 = vmatpush.bf16.msra.mxu0 %v1380
  %1946 = vmatpush.bf16.msra.mxu0 %v1378
  %1947 = vmatpush.bf16.msra.mxu0 %v1376
  %1948 = vmatmul.bf16.gmra.mxu0 %v386
  %v1949 = vpop.f32.mrf.mxu0
  %v1950 = vadd.f32 %v1936, %v1949
  %v1951 = vpop.f32.mrf.mxu0
  %v1952 = vadd.f32 %v1938, %v1951
  %1953 = vdwg.mxu0
  %1954 = vmatpush.bf16.msra.mxu0 %v1406
  %1955 = vmatpush.bf16.msra.mxu0 %v1404
  %1956 = vmatpush.bf16.msra.mxu0 %v1402
  %1957 = vmatpush.bf16.msra.mxu0 %v1400
  %1958 = vmatpush.bf16.msra.mxu0 %v1398
  %1959 = vmatpush.bf16.msra.mxu0 %v1396
  %1960 = vmatpush.bf16.msra.mxu0 %v1394
  %1961 = vmatpush.bf16.msra.mxu0 %v1392
  %1962 = vmatmul.bf16.gmra.mxu0 %v387
  %v1963 = vpop.f32.mrf.mxu0
  %v1964 = vadd.f32 %v1950, %v1963
  %v1965 = vpop.f32.mrf.mxu0
  %v1966 = vadd.f32 %v1952, %v1965
  %1967 = vdwg.mxu0
  %1968 = vmatpush.bf16.msra.mxu0 %v1422
  %1969 = vmatpush.bf16.msra.mxu0 %v1420
  %1970 = vmatpush.bf16.msra.mxu0 %v1418
  %1971 = vmatpush.bf16.msra.mxu0 %v1416
  %1972 = vmatpush.bf16.msra.mxu0 %v1414
  %1973 = vmatpush.bf16.msra.mxu0 %v1412
  %1974 = vmatpush.bf16.msra.mxu0 %v1410
  %1975 = vmatpush.bf16.msra.mxu0 %v1408
  %1976 = vmatmul.bf16.gmra.mxu0 %v388
  %v1977 = vpop.f32.mrf.mxu0
  %v1978 = vadd.f32 %v1964, %v1977
  %v1979 = vpop.f32.mrf.mxu0
  %v1980 = vadd.f32 %v1966, %v1979
  %1981 = vdwg.mxu0
  %1982 = vmatpush.bf16.msra.mxu0 %v1438
  %1983 = vmatpush.bf16.msra.mxu0 %v1436
  %1984 = vmatpush.bf16.msra.mxu0 %v1434
  %1985 = vmatpush.bf16.msra.mxu0 %v1432
  %1986 = vmatpush.bf16.msra.mxu0 %v1430
  %1987 = vmatpush.bf16.msra.mxu0 %v1428
  %1988 = vmatpush.bf16.msra.mxu0 %v1426
  %1989 = vmatpush.bf16.msra.mxu0 %v1424
  %1990 = vmatmul.bf16.gmra.mxu0 %v389
  %v1991 = vpop.f32.mrf.mxu0
  %v1992 = vadd.f32 %v1978, %v1991
  %v1993 = vpop.f32.mrf.mxu0
  %v1994 = vadd.f32 %v1980, %v1993
  %1995 = vdwg.mxu0
  %1996 = vmatpush.bf16.msra.mxu0 %v1454
  %1997 = vmatpush.bf16.msra.mxu0 %v1452
  %1998 = vmatpush.bf16.msra.mxu0 %v1450
  %1999 = vmatpush.bf16.msra.mxu0 %v1448
  %2000 = vmatpush.bf16.msra.mxu0 %v1446
  %2001 = vmatpush.bf16.msra.mxu0 %v1444
  %2002 = vmatpush.bf16.msra.mxu0 %v1442
  %2003 = vmatpush.bf16.msra.mxu0 %v1440
  %2004 = vmatmul.bf16.gmra.mxu0 %v390
  %v2005 = vpop.f32.mrf.mxu0
  %v2006 = vadd.f32 %v1992, %v2005
  %v2007 = vpop.f32.mrf.mxu0
  %v2008 = vadd.f32 %v1994, %v2007
  %2009 = vdwg.mxu0
  %2010 = vmatpush.bf16.msra.mxu0 %v1470
  %2011 = vmatpush.bf16.msra.mxu0 %v1468
  %2012 = vmatpush.bf16.msra.mxu0 %v1466
  %2013 = vmatpush.bf16.msra.mxu0 %v1464
  %2014 = vmatpush.bf16.msra.mxu0 %v1462
  %2015 = vmatpush.bf16.msra.mxu0 %v1460
  %2016 = vmatpush.bf16.msra.mxu0 %v1458
  %2017 = vmatpush.bf16.msra.mxu0 %v1456
  %2018 = vmatmul.bf16.gmra.mxu0 %v391
  %v2019 = vpop.f32.mrf.mxu0
  %v2020 = vadd.f32 %v2006, %v2019
  %v2021 = vpop.f32.mrf.mxu0
  %v2022 = vadd.f32 %v2008, %v2021
  %2023 = vdwg.mxu0
  %2024 = vmatpush.bf16.msra.mxu0 %v1486
  %2025 = vmatpush.bf16.msra.mxu0 %v1484
  %2026 = vmatpush.bf16.msra.mxu0 %v1482
  %2027 = vmatpush.bf16.msra.mxu0 %v1480
  %2028 = vmatpush.bf16.msra.mxu0 %v1478
  %2029 = vmatpush.bf16.msra.mxu0 %v1476
  %2030 = vmatpush.bf16.msra.mxu0 %v1474
  %2031 = vmatpush.bf16.msra.mxu0 %v1472
  %2032 = vmatmul.bf16.gmra.mxu0 %v392
  %v2033 = vpop.f32.mrf.mxu0
  %v2034 = vadd.f32 %v2020, %v2033
  %v2035 = vpop.f32.mrf.mxu0
  %v2036 = vadd.f32 %v2022, %v2035
  %2037 = vdwg.mxu0
  %2038 = vmatpush.bf16.msra.mxu0 %v1502
  %2039 = vmatpush.bf16.msra.mxu0 %v1500
  %2040 = vmatpush.bf16.msra.mxu0 %v1498
  %2041 = vmatpush.bf16.msra.mxu0 %v1496
  %2042 = vmatpush.bf16.msra.mxu0 %v1494
  %2043 = vmatpush.bf16.msra.mxu0 %v1492
  %2044 = vmatpush.bf16.msra.mxu0 %v1490
  %2045 = vmatpush.bf16.msra.mxu0 %v1488
  %2046 = vmatmul.bf16.gmra.mxu0 %v393
  %v2047 = vpop.f32.mrf.mxu0
  %v2048 = vadd.f32 %v2034, %v2047
  %v2049 = vpop.f32.mrf.mxu0
  %v2050 = vadd.f32 %v2036, %v2049
  %2051 = vdwg.mxu0
  %2052 = vmatpush.bf16.msra.mxu0 %v1518
  %2053 = vmatpush.bf16.msra.mxu0 %v1516
  %2054 = vmatpush.bf16.msra.mxu0 %v1514
  %2055 = vmatpush.bf16.msra.mxu0 %v1512
  %2056 = vmatpush.bf16.msra.mxu0 %v1510
  %2057 = vmatpush.bf16.msra.mxu0 %v1508
  %2058 = vmatpush.bf16.msra.mxu0 %v1506
  %2059 = vmatpush.bf16.msra.mxu0 %v1504
  %2060 = vmatmul.bf16.gmra.mxu0 %v394
  %v2061 = vpop.f32.mrf.mxu0
  %v2062 = vadd.f32 %v2048, %v2061
  %v2063 = vpop.f32.mrf.mxu0
  %v2064 = vadd.f32 %v2050, %v2063
  %2065 = vdwg.mxu0
  %2066 = vmatpush.bf16.msra.mxu0 %v1534
  %2067 = vmatpush.bf16.msra.mxu0 %v1532
  %2068 = vmatpush.bf16.msra.mxu0 %v1530
  %2069 = vmatpush.bf16.msra.mxu0 %v1528
  %2070 = vmatpush.bf16.msra.mxu0 %v1526
  %2071 = vmatpush.bf16.msra.mxu0 %v1524
  %2072 = vmatpush.bf16.msra.mxu0 %v1522
  %2073 = vmatpush.bf16.msra.mxu0 %v1520
  %2074 = vmatmul.bf16.gmra.mxu0 %v395
  %v2075 = vpop.f32.mrf.mxu0
  %v2076 = vadd.f32 %v2062, %v2075
  %v2077 = vpop.f32.mrf.mxu0
  %v2078 = vadd.f32 %v2064, %v2077
  %2079 = vdwg.mxu0
  %2080 = vmatpush.bf16.msra.mxu0 %v1550
  %2081 = vmatpush.bf16.msra.mxu0 %v1548
  %2082 = vmatpush.bf16.msra.mxu0 %v1546
  %2083 = vmatpush.bf16.msra.mxu0 %v1544
  %2084 = vmatpush.bf16.msra.mxu0 %v1542
  %2085 = vmatpush.bf16.msra.mxu0 %v1540
  %2086 = vmatpush.bf16.msra.mxu0 %v1538
  %2087 = vmatpush.bf16.msra.mxu0 %v1536
  %2088 = vmatmul.bf16.gmra.mxu0 %v396
  %v2089 = vpop.f32.mrf.mxu0
  %v2090 = vadd.f32 %v2076, %v2089
  %v2091 = vpop.f32.mrf.mxu0
  %v2092 = vadd.f32 %v2078, %v2091
  %2093 = vdwg.mxu0
  %2094 = vmatpush.bf16.msra.mxu0 %v1566
  %2095 = vmatpush.bf16.msra.mxu0 %v1564
  %2096 = vmatpush.bf16.msra.mxu0 %v1562
  %2097 = vmatpush.bf16.msra.mxu0 %v1560
  %2098 = vmatpush.bf16.msra.mxu0 %v1558
  %2099 = vmatpush.bf16.msra.mxu0 %v1556
  %2100 = vmatpush.bf16.msra.mxu0 %v1554
  %2101 = vmatpush.bf16.msra.mxu0 %v1552
  %2102 = vmatmul.bf16.gmra.mxu0 %v397
  %v2103 = vpop.f32.mrf.mxu0
  %v2104 = vadd.f32 %v2090, %v2103
  %v2105 = vpop.f32.mrf.mxu0
  %v2106 = vadd.f32 %v2092, %v2105
  %2107 = vdwg.mxu0
  %2108 = vmatpush.bf16.msra.mxu0 %v1295
  %2109 = vmatpush.bf16.msra.mxu0 %v1293
  %2110 = vmatpush.bf16.msra.mxu0 %v1291
  %2111 = vmatpush.bf16.msra.mxu0 %v1289
  %2112 = vmatpush.bf16.msra.mxu0 %v1287
  %2113 = vmatpush.bf16.msra.mxu0 %v1285
  %2114 = vmatpush.bf16.msra.mxu0 %v1283
  %2115 = vmatpush.bf16.msra.mxu0 %v1281
  %2116 = vmatmul.bf16.gmra.mxu0 %v380
  %v2117 = vpop.f32.mrf.mxu0
  %v2118 = vadd.f32 %v323, %v2117
  %v2119 = vpop.f32.mrf.mxu0
  %v2120 = vadd.f32 %v323, %v2119
  %2121 = vdwg.mxu0
  %2122 = vmatpush.bf16.msra.mxu0 %v1311
  %2123 = vmatpush.bf16.msra.mxu0 %v1309
  %2124 = vmatpush.bf16.msra.mxu0 %v1307
  %2125 = vmatpush.bf16.msra.mxu0 %v1305
  %2126 = vmatpush.bf16.msra.mxu0 %v1303
  %2127 = vmatpush.bf16.msra.mxu0 %v1301
  %2128 = vmatpush.bf16.msra.mxu0 %v1299
  %2129 = vmatpush.bf16.msra.mxu0 %v1297
  %2130 = vmatmul.bf16.gmra.mxu0 %v381
  %v2131 = vpop.f32.mrf.mxu0
  %v2132 = vadd.f32 %v2118, %v2131
  %v2133 = vpop.f32.mrf.mxu0
  %v2134 = vadd.f32 %v2120, %v2133
  %2135 = vdwg.mxu0
  %2136 = vmatpush.bf16.msra.mxu0 %v1327
  %2137 = vmatpush.bf16.msra.mxu0 %v1325
  %2138 = vmatpush.bf16.msra.mxu0 %v1323
  %2139 = vmatpush.bf16.msra.mxu0 %v1321
  %2140 = vmatpush.bf16.msra.mxu0 %v1319
  %2141 = vmatpush.bf16.msra.mxu0 %v1317
  %2142 = vmatpush.bf16.msra.mxu0 %v1315
  %2143 = vmatpush.bf16.msra.mxu0 %v1313
  %2144 = vmatmul.bf16.gmra.mxu0 %v382
  %v2145 = vpop.f32.mrf.mxu0
  %v2146 = vadd.f32 %v2132, %v2145
  %v2147 = vpop.f32.mrf.mxu0
  %v2148 = vadd.f32 %v2134, %v2147
  %2149 = vdwg.mxu0
  %2150 = vmatpush.bf16.msra.mxu0 %v1343
  %2151 = vmatpush.bf16.msra.mxu0 %v1341
  %2152 = vmatpush.bf16.msra.mxu0 %v1339
  %2153 = vmatpush.bf16.msra.mxu0 %v1337
  %2154 = vmatpush.bf16.msra.mxu0 %v1335
  %2155 = vmatpush.bf16.msra.mxu0 %v1333
  %2156 = vmatpush.bf16.msra.mxu0 %v1331
  %2157 = vmatpush.bf16.msra.mxu0 %v1329
  %2158 = vmatmul.bf16.gmra.mxu0 %v383
  %v2159 = vpop.f32.mrf.mxu0
  %v2160 = vadd.f32 %v2146, %v2159
  %v2161 = vpop.f32.mrf.mxu0
  %v2162 = vadd.f32 %v2148, %v2161
  %2163 = vdwg.mxu0
  %2164 = vmatpush.bf16.msra.mxu0 %v1359
  %2165 = vmatpush.bf16.msra.mxu0 %v1357
  %2166 = vmatpush.bf16.msra.mxu0 %v1355
  %2167 = vmatpush.bf16.msra.mxu0 %v1353
  %2168 = vmatpush.bf16.msra.mxu0 %v1351
  %2169 = vmatpush.bf16.msra.mxu0 %v1349
  %2170 = vmatpush.bf16.msra.mxu0 %v1347
  %2171 = vmatpush.bf16.msra.mxu0 %v1345
  %2172 = vmatmul.bf16.gmra.mxu0 %v384
  %v2173 = vpop.f32.mrf.mxu0
  %v2174 = vadd.f32 %v2160, %v2173
  %v2175 = vpop.f32.mrf.mxu0
  %v2176 = vadd.f32 %v2162, %v2175
  %2177 = vdwg.mxu0
  %2178 = vmatpush.bf16.msra.mxu0 %v1375
  %2179 = vmatpush.bf16.msra.mxu0 %v1373
  %2180 = vmatpush.bf16.msra.mxu0 %v1371
  %2181 = vmatpush.bf16.msra.mxu0 %v1369
  %2182 = vmatpush.bf16.msra.mxu0 %v1367
  %2183 = vmatpush.bf16.msra.mxu0 %v1365
  %2184 = vmatpush.bf16.msra.mxu0 %v1363
  %2185 = vmatpush.bf16.msra.mxu0 %v1361
  %2186 = vmatmul.bf16.gmra.mxu0 %v385
  %v2187 = vpop.f32.mrf.mxu0
  %v2188 = vadd.f32 %v2174, %v2187
  %v2189 = vpop.f32.mrf.mxu0
  %v2190 = vadd.f32 %v2176, %v2189
  %2191 = vdwg.mxu0
  %2192 = vmatpush.bf16.msra.mxu0 %v1391
  %2193 = vmatpush.bf16.msra.mxu0 %v1389
  %2194 = vmatpush.bf16.msra.mxu0 %v1387
  %2195 = vmatpush.bf16.msra.mxu0 %v1385
  %2196 = vmatpush.bf16.msra.mxu0 %v1383
  %2197 = vmatpush.bf16.msra.mxu0 %v1381
  %2198 = vmatpush.bf16.msra.mxu0 %v1379
  %2199 = vmatpush.bf16.msra.mxu0 %v1377
  %2200 = vmatmul.bf16.gmra.mxu0 %v386
  %v2201 = vpop.f32.mrf.mxu0
  %v2202 = vadd.f32 %v2188, %v2201
  %v2203 = vpop.f32.mrf.mxu0
  %v2204 = vadd.f32 %v2190, %v2203
  %2205 = vdwg.mxu0
  %2206 = vmatpush.bf16.msra.mxu0 %v1407
  %2207 = vmatpush.bf16.msra.mxu0 %v1405
  %2208 = vmatpush.bf16.msra.mxu0 %v1403
  %2209 = vmatpush.bf16.msra.mxu0 %v1401
  %2210 = vmatpush.bf16.msra.mxu0 %v1399
  %2211 = vmatpush.bf16.msra.mxu0 %v1397
  %2212 = vmatpush.bf16.msra.mxu0 %v1395
  %2213 = vmatpush.bf16.msra.mxu0 %v1393
  %2214 = vmatmul.bf16.gmra.mxu0 %v387
  %v2215 = vpop.f32.mrf.mxu0
  %v2216 = vadd.f32 %v2202, %v2215
  %v2217 = vpop.f32.mrf.mxu0
  %v2218 = vadd.f32 %v2204, %v2217
  %2219 = vdwg.mxu0
  %2220 = vmatpush.bf16.msra.mxu0 %v1423
  %2221 = vmatpush.bf16.msra.mxu0 %v1421
  %2222 = vmatpush.bf16.msra.mxu0 %v1419
  %2223 = vmatpush.bf16.msra.mxu0 %v1417
  %2224 = vmatpush.bf16.msra.mxu0 %v1415
  %2225 = vmatpush.bf16.msra.mxu0 %v1413
  %2226 = vmatpush.bf16.msra.mxu0 %v1411
  %2227 = vmatpush.bf16.msra.mxu0 %v1409
  %2228 = vmatmul.bf16.gmra.mxu0 %v388
  %v2229 = vpop.f32.mrf.mxu0
  %v2230 = vadd.f32 %v2216, %v2229
  %v2231 = vpop.f32.mrf.mxu0
  %v2232 = vadd.f32 %v2218, %v2231
  %2233 = vdwg.mxu0
  %2234 = vmatpush.bf16.msra.mxu0 %v1439
  %2235 = vmatpush.bf16.msra.mxu0 %v1437
  %2236 = vmatpush.bf16.msra.mxu0 %v1435
  %2237 = vmatpush.bf16.msra.mxu0 %v1433
  %2238 = vmatpush.bf16.msra.mxu0 %v1431
  %2239 = vmatpush.bf16.msra.mxu0 %v1429
  %2240 = vmatpush.bf16.msra.mxu0 %v1427
  %2241 = vmatpush.bf16.msra.mxu0 %v1425
  %2242 = vmatmul.bf16.gmra.mxu0 %v389
  %v2243 = vpop.f32.mrf.mxu0
  %v2244 = vadd.f32 %v2230, %v2243
  %v2245 = vpop.f32.mrf.mxu0
  %v2246 = vadd.f32 %v2232, %v2245
  %2247 = vdwg.mxu0
  %2248 = vmatpush.bf16.msra.mxu0 %v1455
  %2249 = vmatpush.bf16.msra.mxu0 %v1453
  %2250 = vmatpush.bf16.msra.mxu0 %v1451
  %2251 = vmatpush.bf16.msra.mxu0 %v1449
  %2252 = vmatpush.bf16.msra.mxu0 %v1447
  %2253 = vmatpush.bf16.msra.mxu0 %v1445
  %2254 = vmatpush.bf16.msra.mxu0 %v1443
  %2255 = vmatpush.bf16.msra.mxu0 %v1441
  %2256 = vmatmul.bf16.gmra.mxu0 %v390
  %v2257 = vpop.f32.mrf.mxu0
  %v2258 = vadd.f32 %v2244, %v2257
  %v2259 = vpop.f32.mrf.mxu0
  %v2260 = vadd.f32 %v2246, %v2259
  %2261 = vdwg.mxu0
  %2262 = vmatpush.bf16.msra.mxu0 %v1471
  %2263 = vmatpush.bf16.msra.mxu0 %v1469
  %2264 = vmatpush.bf16.msra.mxu0 %v1467
  %2265 = vmatpush.bf16.msra.mxu0 %v1465
  %2266 = vmatpush.bf16.msra.mxu0 %v1463
  %2267 = vmatpush.bf16.msra.mxu0 %v1461
  %2268 = vmatpush.bf16.msra.mxu0 %v1459
  %2269 = vmatpush.bf16.msra.mxu0 %v1457
  %2270 = vmatmul.bf16.gmra.mxu0 %v391
  %v2271 = vpop.f32.mrf.mxu0
  %v2272 = vadd.f32 %v2258, %v2271
  %v2273 = vpop.f32.mrf.mxu0
  %v2274 = vadd.f32 %v2260, %v2273
  %2275 = vdwg.mxu0
  %2276 = vmatpush.bf16.msra.mxu0 %v1487
  %2277 = vmatpush.bf16.msra.mxu0 %v1485
  %2278 = vmatpush.bf16.msra.mxu0 %v1483
  %2279 = vmatpush.bf16.msra.mxu0 %v1481
  %2280 = vmatpush.bf16.msra.mxu0 %v1479
  %2281 = vmatpush.bf16.msra.mxu0 %v1477
  %2282 = vmatpush.bf16.msra.mxu0 %v1475
  %2283 = vmatpush.bf16.msra.mxu0 %v1473
  %2284 = vmatmul.bf16.gmra.mxu0 %v392
  %v2285 = vpop.f32.mrf.mxu0
  %v2286 = vadd.f32 %v2272, %v2285
  %v2287 = vpop.f32.mrf.mxu0
  %v2288 = vadd.f32 %v2274, %v2287
  %2289 = vdwg.mxu0
  %2290 = vmatpush.bf16.msra.mxu0 %v1503
  %2291 = vmatpush.bf16.msra.mxu0 %v1501
  %2292 = vmatpush.bf16.msra.mxu0 %v1499
  %2293 = vmatpush.bf16.msra.mxu0 %v1497
  %2294 = vmatpush.bf16.msra.mxu0 %v1495
  %2295 = vmatpush.bf16.msra.mxu0 %v1493
  %2296 = vmatpush.bf16.msra.mxu0 %v1491
  %2297 = vmatpush.bf16.msra.mxu0 %v1489
  %2298 = vmatmul.bf16.gmra.mxu0 %v393
  %v2299 = vpop.f32.mrf.mxu0
  %v2300 = vadd.f32 %v2286, %v2299
  %v2301 = vpop.f32.mrf.mxu0
  %v2302 = vadd.f32 %v2288, %v2301
  %2303 = vdwg.mxu0
  %2304 = vmatpush.bf16.msra.mxu0 %v1519
  %2305 = vmatpush.bf16.msra.mxu0 %v1517
  %2306 = vmatpush.bf16.msra.mxu0 %v1515
  %2307 = vmatpush.bf16.msra.mxu0 %v1513
  %2308 = vmatpush.bf16.msra.mxu0 %v1511
  %2309 = vmatpush.bf16.msra.mxu0 %v1509
  %2310 = vmatpush.bf16.msra.mxu0 %v1507
  %2311 = vmatpush.bf16.msra.mxu0 %v1505
  %2312 = vmatmul.bf16.gmra.mxu0 %v394
  %v2313 = vpop.f32.mrf.mxu0
  %v2314 = vadd.f32 %v2300, %v2313
  %v2315 = vpop.f32.mrf.mxu0
  %v2316 = vadd.f32 %v2302, %v2315
  %2317 = vdwg.mxu0
  %2318 = vmatpush.bf16.msra.mxu0 %v1535
  %2319 = vmatpush.bf16.msra.mxu0 %v1533
  %2320 = vmatpush.bf16.msra.mxu0 %v1531
  %2321 = vmatpush.bf16.msra.mxu0 %v1529
  %2322 = vmatpush.bf16.msra.mxu0 %v1527
  %2323 = vmatpush.bf16.msra.mxu0 %v1525
  %2324 = vmatpush.bf16.msra.mxu0 %v1523
  %2325 = vmatpush.bf16.msra.mxu0 %v1521
  %2326 = vmatmul.bf16.gmra.mxu0 %v395
  %v2327 = vpop.f32.mrf.mxu0
  %v2328 = vadd.f32 %v2314, %v2327
  %v2329 = vpop.f32.mrf.mxu0
  %v2330 = vadd.f32 %v2316, %v2329
  %2331 = vdwg.mxu0
  %2332 = vmatpush.bf16.msra.mxu0 %v1551
  %2333 = vmatpush.bf16.msra.mxu0 %v1549
  %2334 = vmatpush.bf16.msra.mxu0 %v1547
  %2335 = vmatpush.bf16.msra.mxu0 %v1545
  %2336 = vmatpush.bf16.msra.mxu0 %v1543
  %2337 = vmatpush.bf16.msra.mxu0 %v1541
  %2338 = vmatpush.bf16.msra.mxu0 %v1539
  %2339 = vmatpush.bf16.msra.mxu0 %v1537
  %2340 = vmatmul.bf16.gmra.mxu0 %v396
  %v2341 = vpop.f32.mrf.mxu0
  %v2342 = vadd.f32 %v2328, %v2341
  %v2343 = vpop.f32.mrf.mxu0
  %v2344 = vadd.f32 %v2330, %v2343
  %2345 = vdwg.mxu0
  %2346 = vmatpush.bf16.msra.mxu0 %v1567
  %2347 = vmatpush.bf16.msra.mxu0 %v1565
  %2348 = vmatpush.bf16.msra.mxu0 %v1563
  %2349 = vmatpush.bf16.msra.mxu0 %v1561
  %2350 = vmatpush.bf16.msra.mxu0 %v1559
  %2351 = vmatpush.bf16.msra.mxu0 %v1557
  %2352 = vmatpush.bf16.msra.mxu0 %v1555
  %2353 = vmatpush.bf16.msra.mxu0 %v1553
  %2354 = vmatmul.bf16.gmra.mxu0 %v397
  %v2355 = vpop.f32.mrf.mxu0
  %v2356 = vadd.f32 %v2342, %v2355
  %v2357 = vpop.f32.mrf.mxu0
  %v2358 = vadd.f32 %v2344, %v2357
  %2359 = vdwg.mxu0
  %v2360 = vmax.f32 %v2104, 0.0
  %v2361 = vmax.f32 %v2356, 0.0
  %v2362 = vmax.f32 %v2106, 0.0
  %v2363 = vmax.f32 %v2358, 0.0
  %2364 = vst [vmem:[%s3] sm:$0xff] %v2360
  %2365 = vst [vmem:[%s3 + $0x8] sm:$0xff] %v2361
  %2366 = vst [vmem:[%s3 + $0x10] sm:$0xff] %v2362
  %2367 = vst [vmem:[%s3 + $0x18] sm:$0xff] %v2363
  // Predicated region
  $region14: #{resnet_forward.21} parent=0 // pred_check
    _
  $region15: #{resnet_forward.21} parent=0 // pred_check_branch
    %2369 = sbr.rel (0) target = $region17
  $region16: #{resnet_forward.21} parent=0 // pred_region
    _
  $region17: #{resnet_forward.21} parent=0 // pred_fallthru
    _
  // Predicated region
  $region18: #{resnet_forward.21} parent=0 // pred_check
    _
  $region19: #{resnet_forward.21} parent=0 // pred_check_branch
    %2371 = sbr.rel (0) target = $region21
  $region20: #{resnet_forward.21} parent=0 // pred_region
    _
  $region21: #{resnet_forward.21} parent=0 // pred_fallthru
    _

// kernel: resnet_forward.20
$region0: #{resnet_forward.20}
  #allocation0 [shape = 'u32[]', space=smem, size = 0x4, offset = 0x4, fixed_abs, tag = 'smem constant byte address 0x4 - core index']
  #allocation1 [shape = 'u32[72,128]{1,0:T(1,128)}', space=vmem, size = 0x9000, scoped, tag = 'internal scratch']
  %s0 = inlined_call_operand.vmem [shape: bf16[16,2304], index: 0, kind: input, shape index: {}]
  %s1 = inlined_call_operand.vmem [shape: bf16[2304,256], index: 1, kind: input, shape index: {}]
  %s2 = inlined_call_operand.vmem [shape: f32[1,256], index: 2, kind: input, shape index: {}]
  %s3 = inlined_call_operand.vmem [shape: f32[16,256], index: 3, kind: input, shape index: {}]
  %s4 = inlined_call_operand.vmem [shape: f32[16,256], index: 4, kind: output, shape index: {}]
  %s5 = sld [smem:[#allocation0]]
  $region26: #{resnet_forward.20} parent=0
    _
  %s7 = ssub.s32 1, %s5
  %s8 = scalar_select 0, %s7, %s5
  // Predicated region
  $region2: #{resnet_forward.20} parent=0 // pred_check
    _
  $region3: #{resnet_forward.20} parent=0 // pred_check_branch
    %10 = sbr.rel (0) target = $region5
  $region4: #{resnet_forward.20} parent=0 // pred_region
    _
  $region5: #{resnet_forward.20} parent=0 // pred_fallthru
    _
  // Predicated region
  $region6: #{resnet_forward.20} parent=0 // pred_check
    _
  $region7: #{resnet_forward.20} parent=0 // pred_check_branch
    %12 = sbr.rel (0) target = $region9
  $region8: #{resnet_forward.20} parent=0 // pred_region
    _
  $region9: #{resnet_forward.20} parent=0 // pred_fallthru
    _
  // Predicated region
  $region10: #{resnet_forward.20} parent=0 // pred_check
    _
  $region11: #{resnet_forward.20} parent=0 // pred_check_branch
    %14 = sbr.rel (0) target = $region13
  $region12: #{resnet_forward.20} parent=0 // pred_region
    _
  $region13: #{resnet_forward.20} parent=0 // pred_fallthru
    _
  // Predicated region
  $region14: #{resnet_forward.20} parent=0 // pred_check
    _
  $region15: #{resnet_forward.20} parent=0 // pred_check_branch
    %16 = sbr.rel (0) target = $region17
  $region16: #{resnet_forward.20} parent=0 // pred_region
    _
  $region17: #{resnet_forward.20} parent=0 // pred_fallthru
    _
  %v17 = vld [vmem:[%s0] sm:$0xff]
  %v18 = vld [vmem:[%s0 + $0x8] sm:$0xff]
  %v19 = vld [vmem:[%s0 + $0x10] sm:$0xff]
  %v20 = vld [vmem:[%s0 + $0x18] sm:$0xff]
  %v21 = vld [vmem:[%s0 + $0x20] sm:$0xff]
  %v22 = vld [vmem:[%s0 + $0x28] sm:$0xff]
  %v23 = vld [vmem:[%s0 + $0x30] sm:$0xff]
  %v24 = vld [vmem:[%s0 + $0x38] sm:$0xff]
  %v25 = vld [vmem:[%s0 + $0x40] sm:$0xff]
  %v26 = vld [vmem:[%s0 + $0x48] sm:$0xff]
  %v27 = vld [vmem:[%s0 + $0x50] sm:$0xff]
  %v28 = vld [vmem:[%s0 + $0x58] sm:$0xff]
  %v29 = vld [vmem:[%s0 + $0x60] sm:$0xff]
  %v30 = vld [vmem:[%s0 + $0x68] sm:$0xff]
  %v31 = vld [vmem:[%s0 + $0x70] sm:$0xff]
  %v32 = vld [vmem:[%s0 + $0x78] sm:$0xff]
  %v33 = vld [vmem:[%s0 + $0x80] sm:$0xff]
  %v34 = vld [vmem:[%s0 + $0x88] sm:$0xff]
  %v35 = vld [vmem:[%s1] sm:$0xff]
  %v36 = vld [vmem:[%s1 + $0x8] sm:$0xff]
  %v37 = vld [vmem:[%s1 + $0x10] sm:$0xff]
  %v38 = vld [vmem:[%s1 + $0x18] sm:$0xff]
  %v39 = vld [vmem:[%s1 + $0x20] sm:$0xff]
  %v40 = vld [vmem:[%s1 + $0x28] sm:$0xff]
  %v41 = vld [vmem:[%s1 + $0x30] sm:$0xff]
  %v42 = vld [vmem:[%s1 + $0x38] sm:$0xff]
  %v43 = vld [vmem:[%s1 + $0x40] sm:$0xff]
  %v44 = vld [vmem:[%s1 + $0x48] sm:$0xff]
  %v45 = vld [vmem:[%s1 + $0x50] sm:$0xff]
  %v46 = vld [vmem:[%s1 + $0x58] sm:$0xff]
  %v47 = vld [vmem:[%s1 + $0x60] sm:$0xff]
  %v48 = vld [vmem:[%s1 + $0x68] sm:$0xff]
  %v49 = vld [vmem:[%s1 + $0x70] sm:$0xff]
  %v50 = vld [vmem:[%s1 + $0x78] sm:$0xff]
  %v51 = vld [vmem:[%s1 + $0x80] sm:$0xff]
  %v52 = vld [vmem:[%s1 + $0x88] sm:$0xff]
  %v53 = vld [vmem:[%s1 + $0x90] sm:$0xff]
  %v54 = vld [vmem:[%s1 + $0x98] sm:$0xff]
  %v55 = vld [vmem:[%s1 + $0xa0] sm:$0xff]
  %v56 = vld [vmem:[%s1 + $0xa8] sm:$0xff]
  %v57 = vld [vmem:[%s1 + $0xb0] sm:$0xff]
  %v58 = vld [vmem:[%s1 + $0xb8] sm:$0xff]
  %v59 = vld [vmem:[%s1 + $0xc0] sm:$0xff]
  %v60 = vld [vmem:[%s1 + $0xc8] sm:$0xff]
  %v61 = vld [vmem:[%s1 + $0xd0] sm:$0xff]
  %v62 = vld [vmem:[%s1 + $0xd8] sm:$0xff]
  %v63 = vld [vmem:[%s1 + $0xe0] sm:$0xff]
  %v64 = vld [vmem:[%s1 + $0xe8] sm:$0xff]
  %v65 = vld [vmem:[%s1 + $0xf0] sm:$0xff]
  %v66 = vld [vmem:[%s1 + $0xf8] sm:$0xff]
  %v67 = vld [vmem:[%s1 + $0x100] sm:$0xff]
  %v68 = vld [vmem:[%s1 + $0x108] sm:$0xff]
  %v69 = vld [vmem:[%s1 + $0x110] sm:$0xff]
  %v70 = vld [vmem:[%s1 + $0x118] sm:$0xff]
  %v71 = vld [vmem:[%s1 + $0x120] sm:$0xff]
  %v72 = vld [vmem:[%s1 + $0x128] sm:$0xff]
  %v73 = vld [vmem:[%s1 + $0x130] sm:$0xff]
  %v74 = vld [vmem:[%s1 + $0x138] sm:$0xff]
  %v75 = vld [vmem:[%s1 + $0x140] sm:$0xff]
  %v76 = vld [vmem:[%s1 + $0x148] sm:$0xff]
  %v77 = vld [vmem:[%s1 + $0x150] sm:$0xff]
  %v78 = vld [vmem:[%s1 + $0x158] sm:$0xff]
  %v79 = vld [vmem:[%s1 + $0x160] sm:$0xff]
  %v80 = vld [vmem:[%s1 + $0x168] sm:$0xff]
  %v81 = vld [vmem:[%s1 + $0x170] sm:$0xff]
  %v82 = vld [vmem:[%s1 + $0x178] sm:$0xff]
  %v83 = vld [vmem:[%s1 + $0x180] sm:$0xff]
  %v84 = vld [vmem:[%s1 + $0x188] sm:$0xff]
  %v85 = vld [vmem:[%s1 + $0x190] sm:$0xff]
  %v86 = vld [vmem:[%s1 + $0x198] sm:$0xff]
  %v87 = vld [vmem:[%s1 + $0x1a0] sm:$0xff]
  %v88 = vld [vmem:[%s1 + $0x1a8] sm:$0xff]
  %v89 = vld [vmem:[%s1 + $0x1b0] sm:$0xff]
  %v90 = vld [vmem:[%s1 + $0x1b8] sm:$0xff]
  %v91 = vld [vmem:[%s1 + $0x1c0] sm:$0xff]
  %v92 = vld [vmem:[%s1 + $0x1c8] sm:$0xff]
  %v93 = vld [vmem:[%s1 + $0x1d0] sm:$0xff]
  %v94 = vld [vmem:[%s1 + $0x1d8] sm:$0xff]
  %v95 = vld [vmem:[%s1 + $0x1e0] sm:$0xff]
  %v96 = vld [vmem:[%s1 + $0x1e8] sm:$0xff]
  %v97 = vld [vmem:[%s1 + $0x1f0] sm:$0xff]
  %v98 = vld [vmem:[%s1 + $0x1f8] sm:$0xff]
  %v99 = vld [vmem:[%s1 + $0x200] sm:$0xff]
  %v100 = vld [vmem:[%s1 + $0x208] sm:$0xff]
  %v101 = vld [vmem:[%s1 + $0x210] sm:$0xff]
  %v102 = vld [vmem:[%s1 + $0x218] sm:$0xff]
  %v103 = vld [vmem:[%s1 + $0x220] sm:$0xff]
  %v104 = vld [vmem:[%s1 + $0x228] sm:$0xff]
  %v105 = vld [vmem:[%s1 + $0x230] sm:$0xff]
  %v106 = vld [vmem:[%s1 + $0x238] sm:$0xff]
  %v107 = vld [vmem:[%s1 + $0x240] sm:$0xff]
  %v108 = vld [vmem:[%s1 + $0x248] sm:$0xff]
  %v109 = vld [vmem:[%s1 + $0x250] sm:$0xff]
  %v110 = vld [vmem:[%s1 + $0x258] sm:$0xff]
  %v111 = vld [vmem:[%s1 + $0x260] sm:$0xff]
  %v112 = vld [vmem:[%s1 + $0x268] sm:$0xff]
  %v113 = vld [vmem:[%s1 + $0x270] sm:$0xff]
  %v114 = vld [vmem:[%s1 + $0x278] sm:$0xff]
  %v115 = vld [vmem:[%s1 + $0x280] sm:$0xff]
  %v116 = vld [vmem:[%s1 + $0x288] sm:$0xff]
  %v117 = vld [vmem:[%s1 + $0x290] sm:$0xff]
  %v118 = vld [vmem:[%s1 + $0x298] sm:$0xff]
  %v119 = vld [vmem:[%s1 + $0x2a0] sm:$0xff]
  %v120 = vld [vmem:[%s1 + $0x2a8] sm:$0xff]
  %v121 = vld [vmem:[%s1 + $0x2b0] sm:$0xff]
  %v122 = vld [vmem:[%s1 + $0x2b8] sm:$0xff]
  %v123 = vld [vmem:[%s1 + $0x2c0] sm:$0xff]
  %v124 = vld [vmem:[%s1 + $0x2c8] sm:$0xff]
  %v125 = vld [vmem:[%s1 + $0x2d0] sm:$0xff]
  %v126 = vld [vmem:[%s1 + $0x2d8] sm:$0xff]
  %v127 = vld [vmem:[%s1 + $0x2e0] sm:$0xff]
  %v128 = vld [vmem:[%s1 + $0x2e8] sm:$0xff]
  %v129 = vld [vmem:[%s1 + $0x2f0] sm:$0xff]
  %v130 = vld [vmem:[%s1 + $0x2f8] sm:$0xff]
  %v131 = vld [vmem:[%s1 + $0x300] sm:$0xff]
  %v132 = vld [vmem:[%s1 + $0x308] sm:$0xff]
  %v133 = vld [vmem:[%s1 + $0x310] sm:$0xff]
  %v134 = vld [vmem:[%s1 + $0x318] sm:$0xff]
  %v135 = vld [vmem:[%s1 + $0x320] sm:$0xff]
  %v136 = vld [vmem:[%s1 + $0x328] sm:$0xff]
  %v137 = vld [vmem:[%s1 + $0x330] sm:$0xff]
  %v138 = vld [vmem:[%s1 + $0x338] sm:$0xff]
  %v139 = vld [vmem:[%s1 + $0x340] sm:$0xff]
  %v140 = vld [vmem:[%s1 + $0x348] sm:$0xff]
  %v141 = vld [vmem:[%s1 + $0x350] sm:$0xff]
  %v142 = vld [vmem:[%s1 + $0x358] sm:$0xff]
  %v143 = vld [vmem:[%s1 + $0x360] sm:$0xff]
  %v144 = vld [vmem:[%s1 + $0x368] sm:$0xff]
  %v145 = vld [vmem:[%s1 + $0x370] sm:$0xff]
  %v146 = vld [vmem:[%s1 + $0x378] sm:$0xff]
  %v147 = vld [vmem:[%s1 + $0x380] sm:$0xff]
  %v148 = vld [vmem:[%s1 + $0x388] sm:$0xff]
  %v149 = vld [vmem:[%s1 + $0x390] sm:$0xff]
  %v150 = vld [vmem:[%s1 + $0x398] sm:$0xff]
  %v151 = vld [vmem:[%s1 + $0x3a0] sm:$0xff]
  %v152 = vld [vmem:[%s1 + $0x3a8] sm:$0xff]
  %v153 = vld [vmem:[%s1 + $0x3b0] sm:$0xff]
  %v154 = vld [vmem:[%s1 + $0x3b8] sm:$0xff]
  %v155 = vld [vmem:[%s1 + $0x3c0] sm:$0xff]
  %v156 = vld [vmem:[%s1 + $0x3c8] sm:$0xff]
  %v157 = vld [vmem:[%s1 + $0x3d0] sm:$0xff]
  %v158 = vld [vmem:[%s1 + $0x3d8] sm:$0xff]
  %v159 = vld [vmem:[%s1 + $0x3e0] sm:$0xff]
  %v160 = vld [vmem:[%s1 + $0x3e8] sm:$0xff]
  %v161 = vld [vmem:[%s1 + $0x3f0] sm:$0xff]
  %v162 = vld [vmem:[%s1 + $0x3f8] sm:$0xff]
  %v163 = vld [vmem:[%s1 + $0x400] sm:$0xff]
  %v164 = vld [vmem:[%s1 + $0x408] sm:$0xff]
  %v165 = vld [vmem:[%s1 + $0x410] sm:$0xff]
  %v166 = vld [vmem:[%s1 + $0x418] sm:$0xff]
  %v167 = vld [vmem:[%s1 + $0x420] sm:$0xff]
  %v168 = vld [vmem:[%s1 + $0x428] sm:$0xff]
  %v169 = vld [vmem:[%s1 + $0x430] sm:$0xff]
  %v170 = vld [vmem:[%s1 + $0x438] sm:$0xff]
  %v171 = vld [vmem:[%s1 + $0x440] sm:$0xff]
  %v172 = vld [vmem:[%s1 + $0x448] sm:$0xff]
  %v173 = vld [vmem:[%s1 + $0x450] sm:$0xff]
  %v174 = vld [vmem:[%s1 + $0x458] sm:$0xff]
  %v175 = vld [vmem:[%s1 + $0x460] sm:$0xff]
  %v176 = vld [vmem:[%s1 + $0x468] sm:$0xff]
  %v177 = vld [vmem:[%s1 + $0x470] sm:$0xff]
  %v178 = vld [vmem:[%s1 + $0x478] sm:$0xff]
  %v179 = vld [vmem:[%s1 + $0x480] sm:$0xff]
  %v180 = vld [vmem:[%s1 + $0x488] sm:$0xff]
  %v181 = vld [vmem:[%s1 + $0x490] sm:$0xff]
  %v182 = vld [vmem:[%s1 + $0x498] sm:$0xff]
  %v183 = vld [vmem:[%s1 + $0x4a0] sm:$0xff]
  %v184 = vld [vmem:[%s1 + $0x4a8] sm:$0xff]
  %v185 = vld [vmem:[%s1 + $0x4b0] sm:$0xff]
  %v186 = vld [vmem:[%s1 + $0x4b8] sm:$0xff]
  %v187 = vld [vmem:[%s1 + $0x4c0] sm:$0xff]
  %v188 = vld [vmem:[%s1 + $0x4c8] sm:$0xff]
  %v189 = vld [vmem:[%s1 + $0x4d0] sm:$0xff]
  %v190 = vld [vmem:[%s1 + $0x4d8] sm:$0xff]
  %v191 = vld [vmem:[%s1 + $0x4e0] sm:$0xff]
  %v192 = vld [vmem:[%s1 + $0x4e8] sm:$0xff]
  %v193 = vld [vmem:[%s1 + $0x4f0] sm:$0xff]
  %v194 = vld [vmem:[%s1 + $0x4f8] sm:$0xff]
  %v195 = vld [vmem:[%s1 + $0x500] sm:$0xff]
  %v196 = vld [vmem:[%s1 + $0x508] sm:$0xff]
  %v197 = vld [vmem:[%s1 + $0x510] sm:$0xff]
  %v198 = vld [vmem:[%s1 + $0x518] sm:$0xff]
  %v199 = vld [vmem:[%s1 + $0x520] sm:$0xff]
  %v200 = vld [vmem:[%s1 + $0x528] sm:$0xff]
  %v201 = vld [vmem:[%s1 + $0x530] sm:$0xff]
  %v202 = vld [vmem:[%s1 + $0x538] sm:$0xff]
  %v203 = vld [vmem:[%s1 + $0x540] sm:$0xff]
  %v204 = vld [vmem:[%s1 + $0x548] sm:$0xff]
  %v205 = vld [vmem:[%s1 + $0x550] sm:$0xff]
  %v206 = vld [vmem:[%s1 + $0x558] sm:$0xff]
  %v207 = vld [vmem:[%s1 + $0x560] sm:$0xff]
  %v208 = vld [vmem:[%s1 + $0x568] sm:$0xff]
  %v209 = vld [vmem:[%s1 + $0x570] sm:$0xff]
  %v210 = vld [vmem:[%s1 + $0x578] sm:$0xff]
  %v211 = vld [vmem:[%s1 + $0x580] sm:$0xff]
  %v212 = vld [vmem:[%s1 + $0x588] sm:$0xff]
  %v213 = vld [vmem:[%s1 + $0x590] sm:$0xff]
  %v214 = vld [vmem:[%s1 + $0x598] sm:$0xff]
  %v215 = vld [vmem:[%s1 + $0x5a0] sm:$0xff]
  %v216 = vld [vmem:[%s1 + $0x5a8] sm:$0xff]
  %v217 = vld [vmem:[%s1 + $0x5b0] sm:$0xff]
  %v218 = vld [vmem:[%s1 + $0x5b8] sm:$0xff]
  %v219 = vld [vmem:[%s1 + $0x5c0] sm:$0xff]
  %v220 = vld [vmem:[%s1 + $0x5c8] sm:$0xff]
  %v221 = vld [vmem:[%s1 + $0x5d0] sm:$0xff]
  %v222 = vld [vmem:[%s1 + $0x5d8] sm:$0xff]
  %v223 = vld [vmem:[%s1 + $0x5e0] sm:$0xff]
  %v224 = vld [vmem:[%s1 + $0x5e8] sm:$0xff]
  %v225 = vld [vmem:[%s1 + $0x5f0] sm:$0xff]
  %v226 = vld [vmem:[%s1 + $0x5f8] sm:$0xff]
  %v227 = vld [vmem:[%s1 + $0x600] sm:$0xff]
  %v228 = vld [vmem:[%s1 + $0x608] sm:$0xff]
  %v229 = vld [vmem:[%s1 + $0x610] sm:$0xff]
  %v230 = vld [vmem:[%s1 + $0x618] sm:$0xff]
  %v231 = vld [vmem:[%s1 + $0x620] sm:$0xff]
  %v232 = vld [vmem:[%s1 + $0x628] sm:$0xff]
  %v233 = vld [vmem:[%s1 + $0x630] sm:$0xff]
  %v234 = vld [vmem:[%s1 + $0x638] sm:$0xff]
  %v235 = vld [vmem:[%s1 + $0x640] sm:$0xff]
  %v236 = vld [vmem:[%s1 + $0x648] sm:$0xff]
  %v237 = vld [vmem:[%s1 + $0x650] sm:$0xff]
  %v238 = vld [vmem:[%s1 + $0x658] sm:$0xff]
  %v239 = vld [vmem:[%s1 + $0x660] sm:$0xff]
  %v240 = vld [vmem:[%s1 + $0x668] sm:$0xff]
  %v241 = vld [vmem:[%s1 + $0x670] sm:$0xff]
  %v242 = vld [vmem:[%s1 + $0x678] sm:$0xff]
  %v243 = vld [vmem:[%s1 + $0x680] sm:$0xff]
  %v244 = vld [vmem:[%s1 + $0x688] sm:$0xff]
  %v245 = vld [vmem:[%s1 + $0x690] sm:$0xff]
  %v246 = vld [vmem:[%s1 + $0x698] sm:$0xff]
  %v247 = vld [vmem:[%s1 + $0x6a0] sm:$0xff]
  %v248 = vld [vmem:[%s1 + $0x6a8] sm:$0xff]
  %v249 = vld [vmem:[%s1 + $0x6b0] sm:$0xff]
  %v250 = vld [vmem:[%s1 + $0x6b8] sm:$0xff]
  %v251 = vld [vmem:[%s1 + $0x6c0] sm:$0xff]
  %v252 = vld [vmem:[%s1 + $0x6c8] sm:$0xff]
  %v253 = vld [vmem:[%s1 + $0x6d0] sm:$0xff]
  %v254 = vld [vmem:[%s1 + $0x6d8] sm:$0xff]
  %v255 = vld [vmem:[%s1 + $0x6e0] sm:$0xff]
  %v256 = vld [vmem:[%s1 + $0x6e8] sm:$0xff]
  %v257 = vld [vmem:[%s1 + $0x6f0] sm:$0xff]
  %v258 = vld [vmem:[%s1 + $0x6f8] sm:$0xff]
  %v259 = vld [vmem:[%s1 + $0x700] sm:$0xff]
  %v260 = vld [vmem:[%s1 + $0x708] sm:$0xff]
  %v261 = vld [vmem:[%s1 + $0x710] sm:$0xff]
  %v262 = vld [vmem:[%s1 + $0x718] sm:$0xff]
  %v263 = vld [vmem:[%s1 + $0x720] sm:$0xff]
  %v264 = vld [vmem:[%s1 + $0x728] sm:$0xff]
  %v265 = vld [vmem:[%s1 + $0x730] sm:$0xff]
  %v266 = vld [vmem:[%s1 + $0x738] sm:$0xff]
  %v267 = vld [vmem:[%s1 + $0x740] sm:$0xff]
  %v268 = vld [vmem:[%s1 + $0x748] sm:$0xff]
  %v269 = vld [vmem:[%s1 + $0x750] sm:$0xff]
  %v270 = vld [vmem:[%s1 + $0x758] sm:$0xff]
  %v271 = vld [vmem:[%s1 + $0x760] sm:$0xff]
  %v272 = vld [vmem:[%s1 + $0x768] sm:$0xff]
  %v273 = vld [vmem:[%s1 + $0x770] sm:$0xff]
  %v274 = vld [vmem:[%s1 + $0x778] sm:$0xff]
  %v275 = vld [vmem:[%s1 + $0x780] sm:$0xff]
  %v276 = vld [vmem:[%s1 + $0x788] sm:$0xff]
  %v277 = vld [vmem:[%s1 + $0x790] sm:$0xff]
  %v278 = vld [vmem:[%s1 + $0x798] sm:$0xff]
  %v279 = vld [vmem:[%s1 + $0x7a0] sm:$0xff]
  %v280 = vld [vmem:[%s1 + $0x7a8] sm:$0xff]
  %v281 = vld [vmem:[%s1 + $0x7b0] sm:$0xff]
  %v282 = vld [vmem:[%s1 + $0x7b8] sm:$0xff]
  %v283 = vld [vmem:[%s1 + $0x7c0] sm:$0xff]
  %v284 = vld [vmem:[%s1 + $0x7c8] sm:$0xff]
  %v285 = vld [vmem:[%s1 + $0x7d0] sm:$0xff]
  %v286 = vld [vmem:[%s1 + $0x7d8] sm:$0xff]
  %v287 = vld [vmem:[%s1 + $0x7e0] sm:$0xff]
  %v288 = vld [vmem:[%s1 + $0x7e8] sm:$0xff]
  %v289 = vld [vmem:[%s1 + $0x7f0] sm:$0xff]
  %v290 = vld [vmem:[%s1 + $0x7f8] sm:$0xff]
  %v291 = vld [vmem:[%s1 + $0x800] sm:$0xff]
  %v292 = vld [vmem:[%s1 + $0x808] sm:$0xff]
  %v293 = vld [vmem:[%s1 + $0x810] sm:$0xff]
  %v294 = vld [vmem:[%s1 + $0x818] sm:$0xff]
  %v295 = vld [vmem:[%s1 + $0x820] sm:$0xff]
  %v296 = vld [vmem:[%s1 + $0x828] sm:$0xff]
  %v297 = vld [vmem:[%s1 + $0x830] sm:$0xff]
  %v298 = vld [vmem:[%s1 + $0x838] sm:$0xff]
  %v299 = vld [vmem:[%s1 + $0x840] sm:$0xff]
  %v300 = vld [vmem:[%s1 + $0x848] sm:$0xff]
  %v301 = vld [vmem:[%s1 + $0x850] sm:$0xff]
  %v302 = vld [vmem:[%s1 + $0x858] sm:$0xff]
  %v303 = vld [vmem:[%s1 + $0x860] sm:$0xff]
  %v304 = vld [vmem:[%s1 + $0x868] sm:$0xff]
  %v305 = vld [vmem:[%s1 + $0x870] sm:$0xff]
  %v306 = vld [vmem:[%s1 + $0x878] sm:$0xff]
  %v307 = vld [vmem:[%s1 + $0x880] sm:$0xff]
  %v308 = vld [vmem:[%s1 + $0x888] sm:$0xff]
  %v309 = vld [vmem:[%s1 + $0x890] sm:$0xff]
  %v310 = vld [vmem:[%s1 + $0x898] sm:$0xff]
  %v311 = vld [vmem:[%s1 + $0x8a0] sm:$0xff]
  %v312 = vld [vmem:[%s1 + $0x8a8] sm:$0xff]
  %v313 = vld [vmem:[%s1 + $0x8b0] sm:$0xff]
  %v314 = vld [vmem:[%s1 + $0x8b8] sm:$0xff]
  %v315 = vld [vmem:[%s1 + $0x8c0] sm:$0xff]
  %v316 = vld [vmem:[%s1 + $0x8c8] sm:$0xff]
  %v317 = vld [vmem:[%s1 + $0x8d0] sm:$0xff]
  %v318 = vld [vmem:[%s1 + $0x8d8] sm:$0xff]
  %v319 = vld [vmem:[%s1 + $0x8e0] sm:$0xff]
  %v320 = vld [vmem:[%s1 + $0x8e8] sm:$0xff]
  %v321 = vld [vmem:[%s1 + $0x8f0] sm:$0xff]
  %v322 = vld [vmem:[%s1 + $0x8f8] sm:$0xff]
  %v323 = vld [vmem:[%s2] sm:$0x3]
  %v325 = vperm.slane %v323, 0
  %v326 = vperm.slane %v323, 1
  %v347 = vunpack.c.l.b16 %v17
  %v348 = vunpack.c.h.b16 %v17
  %v349 = vunpack.c.l.b16 %v18
  %v350 = vunpack.c.h.b16 %v18
  %v351 = vunpack.c.l.b16 %v19
  %v352 = vunpack.c.h.b16 %v19
  %v353 = vunpack.c.l.b16 %v20
  %v354 = vunpack.c.h.b16 %v20
  %v355 = vunpack.c.l.b16 %v21
  %v356 = vunpack.c.h.b16 %v21
  %v357 = vunpack.c.l.b16 %v22
  %v358 = vunpack.c.h.b16 %v22
  %v359 = vunpack.c.l.b16 %v23
  %v360 = vunpack.c.h.b16 %v23
  %v361 = vunpack.c.l.b16 %v24
  %v362 = vunpack.c.h.b16 %v24
  %v363 = vunpack.c.l.b16 %v25
  %v364 = vunpack.c.h.b16 %v25
  %v365 = vunpack.c.l.b16 %v26
  %v366 = vunpack.c.h.b16 %v26
  %v367 = vunpack.c.l.b16 %v27
  %v368 = vunpack.c.h.b16 %v27
  %v369 = vunpack.c.l.b16 %v28
  %v370 = vunpack.c.h.b16 %v28
  %v371 = vunpack.c.l.b16 %v29
  %v372 = vunpack.c.h.b16 %v29
  %v373 = vunpack.c.l.b16 %v30
  %v374 = vunpack.c.h.b16 %v30
  %v375 = vunpack.c.l.b16 %v31
  %v376 = vunpack.c.h.b16 %v31
  %v377 = vunpack.c.l.b16 %v32
  %v378 = vunpack.c.h.b16 %v32
  %v379 = vunpack.c.l.b16 %v33
  %v380 = vunpack.c.h.b16 %v33
  %v381 = vunpack.c.l.b16 %v34
  %v382 = vunpack.c.h.b16 %v34
  %v383 = vpack.c.b16 %v365, %v347
  %v384 = vpack.c.b16 %v366, %v348
  %v385 = vpack.c.b16 %v367, %v349
  %v386 = vpack.c.b16 %v368, %v350
  %v387 = vpack.c.b16 %v369, %v351
  %v388 = vpack.c.b16 %v370, %v352
  %v389 = vpack.c.b16 %v371, %v353
  %v390 = vpack.c.b16 %v372, %v354
  %v391 = vpack.c.b16 %v373, %v355
  %v392 = vpack.c.b16 %v374, %v356
  %v393 = vpack.c.b16 %v375, %v357
  %v394 = vpack.c.b16 %v376, %v358
  %v395 = vpack.c.b16 %v377, %v359
  %v396 = vpack.c.b16 %v378, %v360
  %v397 = vpack.c.b16 %v379, %v361
  %v398 = vpack.c.b16 %v380, %v362
  %v399 = vpack.c.b16 %v381, %v363
  %v400 = vpack.c.b16 %v382, %v364
  %v707 = vunpack.c.l.b16 %v35
  %v708 = vunpack.c.h.b16 %v35
  %v709 = vunpack.c.l.b16 %v36
  %v710 = vunpack.c.h.b16 %v36
  %v711 = vunpack.c.l.b16 %v37
  %v712 = vunpack.c.h.b16 %v37
  %v713 = vunpack.c.l.b16 %v38
  %v714 = vunpack.c.h.b16 %v38
  %v715 = vunpack.c.l.b16 %v39
  %v716 = vunpack.c.h.b16 %v39
  %v717 = vunpack.c.l.b16 %v40
  %v718 = vunpack.c.h.b16 %v40
  %v719 = vunpack.c.l.b16 %v41
  %v720 = vunpack.c.h.b16 %v41
  %v721 = vunpack.c.l.b16 %v42
  %v722 = vunpack.c.h.b16 %v42
  %v723 = vunpack.c.l.b16 %v43
  %v724 = vunpack.c.h.b16 %v43
  %v725 = vunpack.c.l.b16 %v44
  %v726 = vunpack.c.h.b16 %v44
  %v727 = vunpack.c.l.b16 %v45
  %v728 = vunpack.c.h.b16 %v45
  %v729 = vunpack.c.l.b16 %v46
  %v730 = vunpack.c.h.b16 %v46
  %v731 = vunpack.c.l.b16 %v47
  %v732 = vunpack.c.h.b16 %v47
  %v733 = vunpack.c.l.b16 %v48
  %v734 = vunpack.c.h.b16 %v48
  %v735 = vunpack.c.l.b16 %v49
  %v736 = vunpack.c.h.b16 %v49
  %v737 = vunpack.c.l.b16 %v50
  %v738 = vunpack.c.h.b16 %v50
  %v739 = vunpack.c.l.b16 %v51
  %v740 = vunpack.c.h.b16 %v51
  %v741 = vunpack.c.l.b16 %v52
  %v742 = vunpack.c.h.b16 %v52
  %v743 = vunpack.c.l.b16 %v53
  %v744 = vunpack.c.h.b16 %v53
  %v745 = vunpack.c.l.b16 %v54
  %v746 = vunpack.c.h.b16 %v54
  %v747 = vunpack.c.l.b16 %v55
  %v748 = vunpack.c.h.b16 %v55
  %v749 = vunpack.c.l.b16 %v56
  %v750 = vunpack.c.h.b16 %v56
  %v751 = vunpack.c.l.b16 %v57
  %v752 = vunpack.c.h.b16 %v57
  %v753 = vunpack.c.l.b16 %v58
  %v754 = vunpack.c.h.b16 %v58
  %v755 = vunpack.c.l.b16 %v59
  %v756 = vunpack.c.h.b16 %v59
  %v757 = vunpack.c.l.b16 %v60
  %v758 = vunpack.c.h.b16 %v60
  %v759 = vunpack.c.l.b16 %v61
  %v760 = vunpack.c.h.b16 %v61
  %v761 = vunpack.c.l.b16 %v62
  %v762 = vunpack.c.h.b16 %v62
  %v763 = vunpack.c.l.b16 %v63
  %v764 = vunpack.c.h.b16 %v63
  %v765 = vunpack.c.l.b16 %v64
  %v766 = vunpack.c.h.b16 %v64
  %v767 = vunpack.c.l.b16 %v65
  %v768 = vunpack.c.h.b16 %v65
  %v769 = vunpack.c.l.b16 %v66
  %v770 = vunpack.c.h.b16 %v66
  %v771 = vunpack.c.l.b16 %v67
  %v772 = vunpack.c.h.b16 %v67
  %v773 = vunpack.c.l.b16 %v68
  %v774 = vunpack.c.h.b16 %v68
  %v775 = vunpack.c.l.b16 %v69
  %v776 = vunpack.c.h.b16 %v69
  %v777 = vunpack.c.l.b16 %v70
  %v778 = vunpack.c.h.b16 %v70
  %v779 = vunpack.c.l.b16 %v71
  %v780 = vunpack.c.h.b16 %v71
  %v781 = vunpack.c.l.b16 %v72
  %v782 = vunpack.c.h.b16 %v72
  %v783 = vunpack.c.l.b16 %v73
  %v784 = vunpack.c.h.b16 %v73
  %v785 = vunpack.c.l.b16 %v74
  %v786 = vunpack.c.h.b16 %v74
  %v787 = vunpack.c.l.b16 %v75
  %v788 = vunpack.c.h.b16 %v75
  %v789 = vunpack.c.l.b16 %v76
  %v790 = vunpack.c.h.b16 %v76
  %v791 = vunpack.c.l.b16 %v77
  %v792 = vunpack.c.h.b16 %v77
  %v793 = vunpack.c.l.b16 %v78
  %v794 = vunpack.c.h.b16 %v78
  %v795 = vunpack.c.l.b16 %v79
  %v796 = vunpack.c.h.b16 %v79
  %v797 = vunpack.c.l.b16 %v80
  %v798 = vunpack.c.h.b16 %v80
  %v799 = vunpack.c.l.b16 %v81
  %v800 = vunpack.c.h.b16 %v81
  %v801 = vunpack.c.l.b16 %v82
  %v802 = vunpack.c.h.b16 %v82
  %v803 = vunpack.c.l.b16 %v83
  %v804 = vunpack.c.h.b16 %v83
  %v805 = vunpack.c.l.b16 %v84
  %v806 = vunpack.c.h.b16 %v84
  %v807 = vunpack.c.l.b16 %v85
  %v808 = vunpack.c.h.b16 %v85
  %v809 = vunpack.c.l.b16 %v86
  %v810 = vunpack.c.h.b16 %v86
  %v811 = vunpack.c.l.b16 %v87
  %v812 = vunpack.c.h.b16 %v87
  %v813 = vunpack.c.l.b16 %v88
  %v814 = vunpack.c.h.b16 %v88
  %v815 = vunpack.c.l.b16 %v89
  %v816 = vunpack.c.h.b16 %v89
  %v817 = vunpack.c.l.b16 %v90
  %v818 = vunpack.c.h.b16 %v90
  %v819 = vunpack.c.l.b16 %v91
  %v820 = vunpack.c.h.b16 %v91
  %v821 = vunpack.c.l.b16 %v92
  %v822 = vunpack.c.h.b16 %v92
  %v823 = vunpack.c.l.b16 %v93
  %v824 = vunpack.c.h.b16 %v93
  %v825 = vunpack.c.l.b16 %v94
  %v826 = vunpack.c.h.b16 %v94
  %v827 = vunpack.c.l.b16 %v95
  %v828 = vunpack.c.h.b16 %v95
  %v829 = vunpack.c.l.b16 %v96
  %v830 = vunpack.c.h.b16 %v96
  %v831 = vunpack.c.l.b16 %v97
  %v832 = vunpack.c.h.b16 %v97
  %v833 = vunpack.c.l.b16 %v98
  %v834 = vunpack.c.h.b16 %v98
  %v835 = vunpack.c.l.b16 %v99
  %v836 = vunpack.c.h.b16 %v99
  %v837 = vunpack.c.l.b16 %v100
  %v838 = vunpack.c.h.b16 %v100
  %v839 = vunpack.c.l.b16 %v101
  %v840 = vunpack.c.h.b16 %v101
  %v841 = vunpack.c.l.b16 %v102
  %v842 = vunpack.c.h.b16 %v102
  %v843 = vunpack.c.l.b16 %v103
  %v844 = vunpack.c.h.b16 %v103
  %v845 = vunpack.c.l.b16 %v104
  %v846 = vunpack.c.h.b16 %v104
  %v847 = vunpack.c.l.b16 %v105
  %v848 = vunpack.c.h.b16 %v105
  %v849 = vunpack.c.l.b16 %v106
  %v850 = vunpack.c.h.b16 %v106
  %v851 = vunpack.c.l.b16 %v107
  %v852 = vunpack.c.h.b16 %v107
  %v853 = vunpack.c.l.b16 %v108
  %v854 = vunpack.c.h.b16 %v108
  %v855 = vunpack.c.l.b16 %v109
  %v856 = vunpack.c.h.b16 %v109
  %v857 = vunpack.c.l.b16 %v110
  %v858 = vunpack.c.h.b16 %v110
  %v859 = vunpack.c.l.b16 %v111
  %v860 = vunpack.c.h.b16 %v111
  %v861 = vunpack.c.l.b16 %v112
  %v862 = vunpack.c.h.b16 %v112
  %v863 = vunpack.c.l.b16 %v113
  %v864 = vunpack.c.h.b16 %v113
  %v865 = vunpack.c.l.b16 %v114
  %v866 = vunpack.c.h.b16 %v114
  %v867 = vunpack.c.l.b16 %v115
  %v868 = vunpack.c.h.b16 %v115
  %v869 = vunpack.c.l.b16 %v116
  %v870 = vunpack.c.h.b16 %v116
  %v871 = vunpack.c.l.b16 %v117
  %v872 = vunpack.c.h.b16 %v117
  %v873 = vunpack.c.l.b16 %v118
  %v874 = vunpack.c.h.b16 %v118
  %v875 = vunpack.c.l.b16 %v119
  %v876 = vunpack.c.h.b16 %v119
  %v877 = vunpack.c.l.b16 %v120
  %v878 = vunpack.c.h.b16 %v120
  %v879 = vunpack.c.l.b16 %v121
  %v880 = vunpack.c.h.b16 %v121
  %v881 = vunpack.c.l.b16 %v122
  %v882 = vunpack.c.h.b16 %v122
  %v883 = vunpack.c.l.b16 %v123
  %v884 = vunpack.c.h.b16 %v123
  %v885 = vunpack.c.l.b16 %v124
  %v886 = vunpack.c.h.b16 %v124
  %v887 = vunpack.c.l.b16 %v125
  %v888 = vunpack.c.h.b16 %v125
  %v889 = vunpack.c.l.b16 %v126
  %v890 = vunpack.c.h.b16 %v126
  %v891 = vunpack.c.l.b16 %v127
  %v892 = vunpack.c.h.b16 %v127
  %v893 = vunpack.c.l.b16 %v128
  %v894 = vunpack.c.h.b16 %v128
  %v895 = vunpack.c.l.b16 %v129
  %v896 = vunpack.c.h.b16 %v129
  %v897 = vunpack.c.l.b16 %v130
  %v898 = vunpack.c.h.b16 %v130
  %v899 = vunpack.c.l.b16 %v131
  %v900 = vunpack.c.h.b16 %v131
  %v901 = vunpack.c.l.b16 %v132
  %v902 = vunpack.c.h.b16 %v132
  %v903 = vunpack.c.l.b16 %v133
  %v904 = vunpack.c.h.b16 %v133
  %v905 = vunpack.c.l.b16 %v134
  %v906 = vunpack.c.h.b16 %v134
  %v907 = vunpack.c.l.b16 %v135
  %v908 = vunpack.c.h.b16 %v135
  %v909 = vunpack.c.l.b16 %v136
  %v910 = vunpack.c.h.b16 %v136
  %v911 = vunpack.c.l.b16 %v137
  %v912 = vunpack.c.h.b16 %v137
  %v913 = vunpack.c.l.b16 %v138
  %v914 = vunpack.c.h.b16 %v138
  %v915 = vunpack.c.l.b16 %v139
  %v916 = vunpack.c.h.b16 %v139
  %v917 = vunpack.c.l.b16 %v140
  %v918 = vunpack.c.h.b16 %v140
  %v919 = vunpack.c.l.b16 %v141
  %v920 = vunpack.c.h.b16 %v141
  %v921 = vunpack.c.l.b16 %v142
  %v922 = vunpack.c.h.b16 %v142
  %v923 = vunpack.c.l.b16 %v143
  %v924 = vunpack.c.h.b16 %v143
  %v925 = vunpack.c.l.b16 %v144
  %v926 = vunpack.c.h.b16 %v144
  %v927 = vunpack.c.l.b16 %v145
  %v928 = vunpack.c.h.b16 %v145
  %v929 = vunpack.c.l.b16 %v146
  %v930 = vunpack.c.h.b16 %v146
  %v931 = vunpack.c.l.b16 %v147
  %v932 = vunpack.c.h.b16 %v147
  %v933 = vunpack.c.l.b16 %v148
  %v934 = vunpack.c.h.b16 %v148
  %v935 = vunpack.c.l.b16 %v149
  %v936 = vunpack.c.h.b16 %v149
  %v937 = vunpack.c.l.b16 %v150
  %v938 = vunpack.c.h.b16 %v150
  %v939 = vunpack.c.l.b16 %v151
  %v940 = vunpack.c.h.b16 %v151
  %v941 = vunpack.c.l.b16 %v152
  %v942 = vunpack.c.h.b16 %v152
  %v943 = vunpack.c.l.b16 %v153
  %v944 = vunpack.c.h.b16 %v153
  %v945 = vunpack.c.l.b16 %v154
  %v946 = vunpack.c.h.b16 %v154
  %v947 = vunpack.c.l.b16 %v155
  %v948 = vunpack.c.h.b16 %v155
  %v949 = vunpack.c.l.b16 %v156
  %v950 = vunpack.c.h.b16 %v156
  %v951 = vunpack.c.l.b16 %v157
  %v952 = vunpack.c.h.b16 %v157
  %v953 = vunpack.c.l.b16 %v158
  %v954 = vunpack.c.h.b16 %v158
  %v955 = vunpack.c.l.b16 %v159
  %v956 = vunpack.c.h.b16 %v159
  %v957 = vunpack.c.l.b16 %v160
  %v958 = vunpack.c.h.b16 %v160
  %v959 = vunpack.c.l.b16 %v161
  %v960 = vunpack.c.h.b16 %v161
  %v961 = vunpack.c.l.b16 %v162
  %v962 = vunpack.c.h.b16 %v162
  %v963 = vunpack.c.l.b16 %v163
  %v964 = vunpack.c.h.b16 %v163
  %v965 = vunpack.c.l.b16 %v164
  %v966 = vunpack.c.h.b16 %v164
  %v967 = vunpack.c.l.b16 %v165
  %v968 = vunpack.c.h.b16 %v165
  %v969 = vunpack.c.l.b16 %v166
  %v970 = vunpack.c.h.b16 %v166
  %v971 = vunpack.c.l.b16 %v167
  %v972 = vunpack.c.h.b16 %v167
  %v973 = vunpack.c.l.b16 %v168
  %v974 = vunpack.c.h.b16 %v168
  %v975 = vunpack.c.l.b16 %v169
  %v976 = vunpack.c.h.b16 %v169
  %v977 = vunpack.c.l.b16 %v170
  %v978 = vunpack.c.h.b16 %v170
  %v979 = vunpack.c.l.b16 %v171
  %v980 = vunpack.c.h.b16 %v171
  %v981 = vunpack.c.l.b16 %v172
  %v982 = vunpack.c.h.b16 %v172
  %v983 = vunpack.c.l.b16 %v173
  %v984 = vunpack.c.h.b16 %v173
  %v985 = vunpack.c.l.b16 %v174
  %v986 = vunpack.c.h.b16 %v174
  %v987 = vunpack.c.l.b16 %v175
  %v988 = vunpack.c.h.b16 %v175
  %v989 = vunpack.c.l.b16 %v176
  %v990 = vunpack.c.h.b16 %v176
  %v991 = vunpack.c.l.b16 %v177
  %v992 = vunpack.c.h.b16 %v177
  %v993 = vunpack.c.l.b16 %v178
  %v994 = vunpack.c.h.b16 %v178
  %v995 = vunpack.c.l.b16 %v179
  %v996 = vunpack.c.h.b16 %v179
  %v997 = vunpack.c.l.b16 %v180
  %v998 = vunpack.c.h.b16 %v180
  %v999 = vunpack.c.l.b16 %v181
  %v1000 = vunpack.c.h.b16 %v181
  %v1001 = vunpack.c.l.b16 %v182
  %v1002 = vunpack.c.h.b16 %v182
  %v1003 = vunpack.c.l.b16 %v183
  %v1004 = vunpack.c.h.b16 %v183
  %v1005 = vunpack.c.l.b16 %v184
  %v1006 = vunpack.c.h.b16 %v184
  %v1007 = vunpack.c.l.b16 %v185
  %v1008 = vunpack.c.h.b16 %v185
  %v1009 = vunpack.c.l.b16 %v186
  %v1010 = vunpack.c.h.b16 %v186
  %v1011 = vunpack.c.l.b16 %v187
  %v1012 = vunpack.c.h.b16 %v187
  %v1013 = vunpack.c.l.b16 %v188
  %v1014 = vunpack.c.h.b16 %v188
  %v1015 = vunpack.c.l.b16 %v189
  %v1016 = vunpack.c.h.b16 %v189
  %v1017 = vunpack.c.l.b16 %v190
  %v1018 = vunpack.c.h.b16 %v190
  %v1019 = vunpack.c.l.b16 %v191
  %v1020 = vunpack.c.h.b16 %v191
  %v1021 = vunpack.c.l.b16 %v192
  %v1022 = vunpack.c.h.b16 %v192
  %v1023 = vunpack.c.l.b16 %v193
  %v1024 = vunpack.c.h.b16 %v193
  %v1025 = vunpack.c.l.b16 %v194
  %v1026 = vunpack.c.h.b16 %v194
  %v1027 = vunpack.c.l.b16 %v195
  %v1028 = vunpack.c.h.b16 %v195
  %v1029 = vunpack.c.l.b16 %v196
  %v1030 = vunpack.c.h.b16 %v196
  %v1031 = vunpack.c.l.b16 %v197
  %v1032 = vunpack.c.h.b16 %v197
  %v1033 = vunpack.c.l.b16 %v198
  %v1034 = vunpack.c.h.b16 %v198
  %v1035 = vunpack.c.l.b16 %v199
  %v1036 = vunpack.c.h.b16 %v199
  %v1037 = vunpack.c.l.b16 %v200
  %v1038 = vunpack.c.h.b16 %v200
  %v1039 = vunpack.c.l.b16 %v201
  %v1040 = vunpack.c.h.b16 %v201
  %v1041 = vunpack.c.l.b16 %v202
  %v1042 = vunpack.c.h.b16 %v202
  %v1043 = vunpack.c.l.b16 %v203
  %v1044 = vunpack.c.h.b16 %v203
  %v1045 = vunpack.c.l.b16 %v204
  %v1046 = vunpack.c.h.b16 %v204
  %v1047 = vunpack.c.l.b16 %v205
  %v1048 = vunpack.c.h.b16 %v205
  %v1049 = vunpack.c.l.b16 %v206
  %v1050 = vunpack.c.h.b16 %v206
  %v1051 = vunpack.c.l.b16 %v207
  %v1052 = vunpack.c.h.b16 %v207
  %v1053 = vunpack.c.l.b16 %v208
  %v1054 = vunpack.c.h.b16 %v208
  %v1055 = vunpack.c.l.b16 %v209
  %v1056 = vunpack.c.h.b16 %v209
  %v1057 = vunpack.c.l.b16 %v210
  %v1058 = vunpack.c.h.b16 %v210
  %v1059 = vunpack.c.l.b16 %v211
  %v1060 = vunpack.c.h.b16 %v211
  %v1061 = vunpack.c.l.b16 %v212
  %v1062 = vunpack.c.h.b16 %v212
  %v1063 = vunpack.c.l.b16 %v213
  %v1064 = vunpack.c.h.b16 %v213
  %v1065 = vunpack.c.l.b16 %v214
  %v1066 = vunpack.c.h.b16 %v214
  %v1067 = vunpack.c.l.b16 %v215
  %v1068 = vunpack.c.h.b16 %v215
  %v1069 = vunpack.c.l.b16 %v216
  %v1070 = vunpack.c.h.b16 %v216
  %v1071 = vunpack.c.l.b16 %v217
  %v1072 = vunpack.c.h.b16 %v217
  %v1073 = vunpack.c.l.b16 %v218
  %v1074 = vunpack.c.h.b16 %v218
  %v1075 = vunpack.c.l.b16 %v219
  %v1076 = vunpack.c.h.b16 %v219
  %v1077 = vunpack.c.l.b16 %v220
  %v1078 = vunpack.c.h.b16 %v220
  %v1079 = vunpack.c.l.b16 %v221
  %v1080 = vunpack.c.h.b16 %v221
  %v1081 = vunpack.c.l.b16 %v222
  %v1082 = vunpack.c.h.b16 %v222
  %v1083 = vunpack.c.l.b16 %v223
  %v1084 = vunpack.c.h.b16 %v223
  %v1085 = vunpack.c.l.b16 %v224
  %v1086 = vunpack.c.h.b16 %v224
  %v1087 = vunpack.c.l.b16 %v225
  %v1088 = vunpack.c.h.b16 %v225
  %v1089 = vunpack.c.l.b16 %v226
  %v1090 = vunpack.c.h.b16 %v226
  %v1091 = vunpack.c.l.b16 %v227
  %v1092 = vunpack.c.h.b16 %v227
  %v1093 = vunpack.c.l.b16 %v228
  %v1094 = vunpack.c.h.b16 %v228
  %v1095 = vunpack.c.l.b16 %v229
  %v1096 = vunpack.c.h.b16 %v229
  %v1097 = vunpack.c.l.b16 %v230
  %v1098 = vunpack.c.h.b16 %v230
  %v1099 = vunpack.c.l.b16 %v231
  %v1100 = vunpack.c.h.b16 %v231
  %v1101 = vunpack.c.l.b16 %v232
  %v1102 = vunpack.c.h.b16 %v232
  %v1103 = vunpack.c.l.b16 %v233
  %v1104 = vunpack.c.h.b16 %v233
  %v1105 = vunpack.c.l.b16 %v234
  %v1106 = vunpack.c.h.b16 %v234
  %v1107 = vunpack.c.l.b16 %v235
  %v1108 = vunpack.c.h.b16 %v235
  %v1109 = vunpack.c.l.b16 %v236
  %v1110 = vunpack.c.h.b16 %v236
  %v1111 = vunpack.c.l.b16 %v237
  %v1112 = vunpack.c.h.b16 %v237
  %v1113 = vunpack.c.l.b16 %v238
  %v1114 = vunpack.c.h.b16 %v238
  %v1115 = vunpack.c.l.b16 %v239
  %v1116 = vunpack.c.h.b16 %v239
  %v1117 = vunpack.c.l.b16 %v240
  %v1118 = vunpack.c.h.b16 %v240
  %v1119 = vunpack.c.l.b16 %v241
  %v1120 = vunpack.c.h.b16 %v241
  %v1121 = vunpack.c.l.b16 %v242
  %v1122 = vunpack.c.h.b16 %v242
  %v1123 = vunpack.c.l.b16 %v243
  %v1124 = vunpack.c.h.b16 %v243
  %v1125 = vunpack.c.l.b16 %v244
  %v1126 = vunpack.c.h.b16 %v244
  %v1127 = vunpack.c.l.b16 %v245
  %v1128 = vunpack.c.h.b16 %v245
  %v1129 = vunpack.c.l.b16 %v246
  %v1130 = vunpack.c.h.b16 %v246
  %v1131 = vunpack.c.l.b16 %v247
  %v1132 = vunpack.c.h.b16 %v247
  %v1133 = vunpack.c.l.b16 %v248
  %v1134 = vunpack.c.h.b16 %v248
  %v1135 = vunpack.c.l.b16 %v249
  %v1136 = vunpack.c.h.b16 %v249
  %v1137 = vunpack.c.l.b16 %v250
  %v1138 = vunpack.c.h.b16 %v250
  %v1139 = vunpack.c.l.b16 %v251
  %v1140 = vunpack.c.h.b16 %v251
  %v1141 = vunpack.c.l.b16 %v252
  %v1142 = vunpack.c.h.b16 %v252
  %v1143 = vunpack.c.l.b16 %v253
  %v1144 = vunpack.c.h.b16 %v253
  %v1145 = vunpack.c.l.b16 %v254
  %v1146 = vunpack.c.h.b16 %v254
  %v1147 = vunpack.c.l.b16 %v255
  %v1148 = vunpack.c.h.b16 %v255
  %v1149 = vunpack.c.l.b16 %v256
  %v1150 = vunpack.c.h.b16 %v256
  %v1151 = vunpack.c.l.b16 %v257
  %v1152 = vunpack.c.h.b16 %v257
  %v1153 = vunpack.c.l.b16 %v258
  %v1154 = vunpack.c.h.b16 %v258
  %v1155 = vunpack.c.l.b16 %v259
  %v1156 = vunpack.c.h.b16 %v259
  %v1157 = vunpack.c.l.b16 %v260
  %v1158 = vunpack.c.h.b16 %v260
  %v1159 = vunpack.c.l.b16 %v261
  %v1160 = vunpack.c.h.b16 %v261
  %v1161 = vunpack.c.l.b16 %v262
  %v1162 = vunpack.c.h.b16 %v262
  %v1163 = vunpack.c.l.b16 %v263
  %v1164 = vunpack.c.h.b16 %v263
  %v1165 = vunpack.c.l.b16 %v264
  %v1166 = vunpack.c.h.b16 %v264
  %v1167 = vunpack.c.l.b16 %v265
  %v1168 = vunpack.c.h.b16 %v265
  %v1169 = vunpack.c.l.b16 %v266
  %v1170 = vunpack.c.h.b16 %v266
  %v1171 = vunpack.c.l.b16 %v267
  %v1172 = vunpack.c.h.b16 %v267
  %v1173 = vunpack.c.l.b16 %v268
  %v1174 = vunpack.c.h.b16 %v268
  %v1175 = vunpack.c.l.b16 %v269
  %v1176 = vunpack.c.h.b16 %v269
  %v1177 = vunpack.c.l.b16 %v270
  %v1178 = vunpack.c.h.b16 %v270
  %v1179 = vunpack.c.l.b16 %v271
  %v1180 = vunpack.c.h.b16 %v271
  %v1181 = vunpack.c.l.b16 %v272
  %v1182 = vunpack.c.h.b16 %v272
  %v1183 = vunpack.c.l.b16 %v273
  %v1184 = vunpack.c.h.b16 %v273
  %v1185 = vunpack.c.l.b16 %v274
  %v1186 = vunpack.c.h.b16 %v274
  %v1187 = vunpack.c.l.b16 %v275
  %v1188 = vunpack.c.h.b16 %v275
  %v1189 = vunpack.c.l.b16 %v276
  %v1190 = vunpack.c.h.b16 %v276
  %v1191 = vunpack.c.l.b16 %v277
  %v1192 = vunpack.c.h.b16 %v277
  %v1193 = vunpack.c.l.b16 %v278
  %v1194 = vunpack.c.h.b16 %v278
  %v1195 = vunpack.c.l.b16 %v279
  %v1196 = vunpack.c.h.b16 %v279
  %v1197 = vunpack.c.l.b16 %v280
  %v1198 = vunpack.c.h.b16 %v280
  %v1199 = vunpack.c.l.b16 %v281
  %v1200 = vunpack.c.h.b16 %v281
  %v1201 = vunpack.c.l.b16 %v282
  %v1202 = vunpack.c.h.b16 %v282
  %v1203 = vunpack.c.l.b16 %v283
  %v1204 = vunpack.c.h.b16 %v283
  %v1205 = vunpack.c.l.b16 %v284
  %v1206 = vunpack.c.h.b16 %v284
  %v1207 = vunpack.c.l.b16 %v285
  %v1208 = vunpack.c.h.b16 %v285
  %v1209 = vunpack.c.l.b16 %v286
  %v1210 = vunpack.c.h.b16 %v286
  %v1211 = vunpack.c.l.b16 %v287
  %v1212 = vunpack.c.h.b16 %v287
  %v1213 = vunpack.c.l.b16 %v288
  %v1214 = vunpack.c.h.b16 %v288
  %v1215 = vunpack.c.l.b16 %v289
  %v1216 = vunpack.c.h.b16 %v289
  %v1217 = vunpack.c.l.b16 %v290
  %v1218 = vunpack.c.h.b16 %v290
  %v1219 = vunpack.c.l.b16 %v291
  %v1220 = vunpack.c.h.b16 %v291
  %v1221 = vunpack.c.l.b16 %v292
  %v1222 = vunpack.c.h.b16 %v292
  %v1223 = vunpack.c.l.b16 %v293
  %v1224 = vunpack.c.h.b16 %v293
  %v1225 = vunpack.c.l.b16 %v294
  %v1226 = vunpack.c.h.b16 %v294
  %v1227 = vunpack.c.l.b16 %v295
  %v1228 = vunpack.c.h.b16 %v295
  %v1229 = vunpack.c.l.b16 %v296
  %v1230 = vunpack.c.h.b16 %v296
  %v1231 = vunpack.c.l.b16 %v297
  %v1232 = vunpack.c.h.b16 %v297
  %v1233 = vunpack.c.l.b16 %v298
  %v1234 = vunpack.c.h.b16 %v298
  %v1235 = vunpack.c.l.b16 %v299
  %v1236 = vunpack.c.h.b16 %v299
  %v1237 = vunpack.c.l.b16 %v300
  %v1238 = vunpack.c.h.b16 %v300
  %v1239 = vunpack.c.l.b16 %v301
  %v1240 = vunpack.c.h.b16 %v301
  %v1241 = vunpack.c.l.b16 %v302
  %v1242 = vunpack.c.h.b16 %v302
  %v1243 = vunpack.c.l.b16 %v303
  %v1244 = vunpack.c.h.b16 %v303
  %v1245 = vunpack.c.l.b16 %v304
  %v1246 = vunpack.c.h.b16 %v304
  %v1247 = vunpack.c.l.b16 %v305
  %v1248 = vunpack.c.h.b16 %v305
  %v1249 = vunpack.c.l.b16 %v306
  %v1250 = vunpack.c.h.b16 %v306
  %v1251 = vunpack.c.l.b16 %v307
  %v1252 = vunpack.c.h.b16 %v307
  %v1253 = vunpack.c.l.b16 %v308
  %v1254 = vunpack.c.h.b16 %v308
  %v1255 = vunpack.c.l.b16 %v309
  %v1256 = vunpack.c.h.b16 %v309
  %v1257 = vunpack.c.l.b16 %v310
  %v1258 = vunpack.c.h.b16 %v310
  %v1259 = vunpack.c.l.b16 %v311
  %v1260 = vunpack.c.h.b16 %v311
  %v1261 = vunpack.c.l.b16 %v312
  %v1262 = vunpack.c.h.b16 %v312
  %v1263 = vunpack.c.l.b16 %v313
  %v1264 = vunpack.c.h.b16 %v313
  %v1265 = vunpack.c.l.b16 %v314
  %v1266 = vunpack.c.h.b16 %v314
  %v1267 = vunpack.c.l.b16 %v315
  %v1268 = vunpack.c.h.b16 %v315
  %v1269 = vunpack.c.l.b16 %v316
  %v1270 = vunpack.c.h.b16 %v316
  %v1271 = vunpack.c.l.b16 %v317
  %v1272 = vunpack.c.h.b16 %v317
  %v1273 = vunpack.c.l.b16 %v318
  %v1274 = vunpack.c.h.b16 %v318
  %v1275 = vunpack.c.l.b16 %v319
  %v1276 = vunpack.c.h.b16 %v319
  %v1277 = vunpack.c.l.b16 %v320
  %v1278 = vunpack.c.h.b16 %v320
  %v1279 = vunpack.c.l.b16 %v321
  %v1280 = vunpack.c.h.b16 %v321
  %v1281 = vunpack.c.l.b16 %v322
  %v1282 = vunpack.c.h.b16 %v322
  %v1283 = vpack.c.b16 %v709, %v707
  %v1284 = vpack.c.b16 %v710, %v708
  %v1285 = vpack.c.b16 %v713, %v711
  %v1286 = vpack.c.b16 %v714, %v712
  %v1287 = vpack.c.b16 %v717, %v715
  %v1288 = vpack.c.b16 %v718, %v716
  %v1289 = vpack.c.b16 %v721, %v719
  %v1290 = vpack.c.b16 %v722, %v720
  %v1291 = vpack.c.b16 %v725, %v723
  %v1292 = vpack.c.b16 %v726, %v724
  %v1293 = vpack.c.b16 %v729, %v727
  %v1294 = vpack.c.b16 %v730, %v728
  %v1295 = vpack.c.b16 %v733, %v731
  %v1296 = vpack.c.b16 %v734, %v732
  %v1297 = vpack.c.b16 %v737, %v735
  %v1298 = vpack.c.b16 %v738, %v736
  %v1299 = vpack.c.b16 %v741, %v739
  %v1300 = vpack.c.b16 %v742, %v740
  %v1301 = vpack.c.b16 %v745, %v743
  %v1302 = vpack.c.b16 %v746, %v744
  %v1303 = vpack.c.b16 %v749, %v747
  %v1304 = vpack.c.b16 %v750, %v748
  %v1305 = vpack.c.b16 %v753, %v751
  %v1306 = vpack.c.b16 %v754, %v752
  %v1307 = vpack.c.b16 %v757, %v755
  %v1308 = vpack.c.b16 %v758, %v756
  %v1309 = vpack.c.b16 %v761, %v759
  %v1310 = vpack.c.b16 %v762, %v760
  %v1311 = vpack.c.b16 %v765, %v763
  %v1312 = vpack.c.b16 %v766, %v764
  %v1313 = vpack.c.b16 %v769, %v767
  %v1314 = vpack.c.b16 %v770, %v768
  %v1315 = vpack.c.b16 %v773, %v771
  %v1316 = vpack.c.b16 %v774, %v772
  %v1317 = vpack.c.b16 %v777, %v775
  %v1318 = vpack.c.b16 %v778, %v776
  %v1319 = vpack.c.b16 %v781, %v779
  %v1320 = vpack.c.b16 %v782, %v780
  %v1321 = vpack.c.b16 %v785, %v783
  %v1322 = vpack.c.b16 %v786, %v784
  %v1323 = vpack.c.b16 %v789, %v787
  %v1324 = vpack.c.b16 %v790, %v788
  %v1325 = vpack.c.b16 %v793, %v791
  %v1326 = vpack.c.b16 %v794, %v792
  %v1327 = vpack.c.b16 %v797, %v795
  %v1328 = vpack.c.b16 %v798, %v796
  %v1329 = vpack.c.b16 %v801, %v799
  %v1330 = vpack.c.b16 %v802, %v800
  %v1331 = vpack.c.b16 %v805, %v803
  %v1332 = vpack.c.b16 %v806, %v804
  %v1333 = vpack.c.b16 %v809, %v807
  %v1334 = vpack.c.b16 %v810, %v808
  %v1335 = vpack.c.b16 %v813, %v811
  %v1336 = vpack.c.b16 %v814, %v812
  %v1337 = vpack.c.b16 %v817, %v815
  %v1338 = vpack.c.b16 %v818, %v816
  %v1339 = vpack.c.b16 %v821, %v819
  %v1340 = vpack.c.b16 %v822, %v820
  %v1341 = vpack.c.b16 %v825, %v823
  %v1342 = vpack.c.b16 %v826, %v824
  %v1343 = vpack.c.b16 %v829, %v827
  %v1344 = vpack.c.b16 %v830, %v828
  %v1345 = vpack.c.b16 %v833, %v831
  %v1346 = vpack.c.b16 %v834, %v832
  %v1347 = vpack.c.b16 %v837, %v835
  %v1348 = vpack.c.b16 %v838, %v836
  %v1349 = vpack.c.b16 %v841, %v839
  %v1350 = vpack.c.b16 %v842, %v840
  %v1351 = vpack.c.b16 %v845, %v843
  %v1352 = vpack.c.b16 %v846, %v844
  %v1353 = vpack.c.b16 %v849, %v847
  %v1354 = vpack.c.b16 %v850, %v848
  %v1355 = vpack.c.b16 %v853, %v851
  %v1356 = vpack.c.b16 %v854, %v852
  %v1357 = vpack.c.b16 %v857, %v855
  %v1358 = vpack.c.b16 %v858, %v856
  %v1359 = vpack.c.b16 %v861, %v859
  %v1360 = vpack.c.b16 %v862, %v860
  %v1361 = vpack.c.b16 %v865, %v863
  %v1362 = vpack.c.b16 %v866, %v864
  %v1363 = vpack.c.b16 %v869, %v867
  %v1364 = vpack.c.b16 %v870, %v868
  %v1365 = vpack.c.b16 %v873, %v871
  %v1366 = vpack.c.b16 %v874, %v872
  %v1367 = vpack.c.b16 %v877, %v875
  %v1368 = vpack.c.b16 %v878, %v876
  %v1369 = vpack.c.b16 %v881, %v879
  %v1370 = vpack.c.b16 %v882, %v880
  %v1371 = vpack.c.b16 %v885, %v883
  %v1372 = vpack.c.b16 %v886, %v884
  %v1373 = vpack.c.b16 %v889, %v887
  %v1374 = vpack.c.b16 %v890, %v888
  %v1375 = vpack.c.b16 %v893, %v891
  %v1376 = vpack.c.b16 %v894, %v892
  %v1377 = vpack.c.b16 %v897, %v895
  %v1378 = vpack.c.b16 %v898, %v896
  %v1379 = vpack.c.b16 %v901, %v899
  %v1380 = vpack.c.b16 %v902, %v900
  %v1381 = vpack.c.b16 %v905, %v903
  %v1382 = vpack.c.b16 %v906, %v904
  %v1383 = vpack.c.b16 %v909, %v907
  %v1384 = vpack.c.b16 %v910, %v908
  %v1385 = vpack.c.b16 %v913, %v911
  %v1386 = vpack.c.b16 %v914, %v912
  %v1387 = vpack.c.b16 %v917, %v915
  %v1388 = vpack.c.b16 %v918, %v916
  %v1389 = vpack.c.b16 %v921, %v919
  %v1390 = vpack.c.b16 %v922, %v920
  %v1391 = vpack.c.b16 %v925, %v923
  %v1392 = vpack.c.b16 %v926, %v924
  %v1393 = vpack.c.b16 %v929, %v927
  %v1394 = vpack.c.b16 %v930, %v928
  %v1395 = vpack.c.b16 %v933, %v931
  %v1396 = vpack.c.b16 %v934, %v932
  %v1397 = vpack.c.b16 %v937, %v935
  %v1398 = vpack.c.b16 %v938, %v936
  %v1399 = vpack.c.b16 %v941, %v939
  %v1400 = vpack.c.b16 %v942, %v940
  %v1401 = vpack.c.b16 %v945, %v943
  %v1402 = vpack.c.b16 %v946, %v944
  %v1403 = vpack.c.b16 %v949, %v947
  %v1404 = vpack.c.b16 %v950, %v948
  %v1405 = vpack.c.b16 %v953, %v951
  %v1406 = vpack.c.b16 %v954, %v952
  %v1407 = vpack.c.b16 %v957, %v955
  %v1408 = vpack.c.b16 %v958, %v956
  %v1409 = vpack.c.b16 %v961, %v959
  %v1410 = vpack.c.b16 %v962, %v960
  %v1411 = vpack.c.b16 %v965, %v963
  %v1412 = vpack.c.b16 %v966, %v964
  %v1413 = vpack.c.b16 %v969, %v967
  %v1414 = vpack.c.b16 %v970, %v968
  %v1415 = vpack.c.b16 %v973, %v971
  %v1416 = vpack.c.b16 %v974, %v972
  %v1417 = vpack.c.b16 %v977, %v975
  %v1418 = vpack.c.b16 %v978, %v976
  %v1419 = vpack.c.b16 %v981, %v979
  %v1420 = vpack.c.b16 %v982, %v980
  %v1421 = vpack.c.b16 %v985, %v983
  %v1422 = vpack.c.b16 %v986, %v984
  %v1423 = vpack.c.b16 %v989, %v987
  %v1424 = vpack.c.b16 %v990, %v988
  %v1425 = vpack.c.b16 %v993, %v991
  %v1426 = vpack.c.b16 %v994, %v992
  %v1427 = vpack.c.b16 %v997, %v995
  %v1428 = vpack.c.b16 %v998, %v996
  %v1429 = vpack.c.b16 %v1001, %v999
  %v1430 = vpack.c.b16 %v1002, %v1000
  %v1431 = vpack.c.b16 %v1005, %v1003
  %v1432 = vpack.c.b16 %v1006, %v1004
  %v1433 = vpack.c.b16 %v1009, %v1007
  %v1434 = vpack.c.b16 %v1010, %v1008
  %v1435 = vpack.c.b16 %v1013, %v1011
  %v1436 = vpack.c.b16 %v1014, %v1012
  %v1437 = vpack.c.b16 %v1017, %v1015
  %v1438 = vpack.c.b16 %v1018, %v1016
  %v1439 = vpack.c.b16 %v1021, %v1019
  %v1440 = vpack.c.b16 %v1022, %v1020
  %v1441 = vpack.c.b16 %v1025, %v1023
  %v1442 = vpack.c.b16 %v1026, %v1024
  %v1443 = vpack.c.b16 %v1029, %v1027
  %v1444 = vpack.c.b16 %v1030, %v1028
  %v1445 = vpack.c.b16 %v1033, %v1031
  %v1446 = vpack.c.b16 %v1034, %v1032
  %v1447 = vpack.c.b16 %v1037, %v1035
  %v1448 = vpack.c.b16 %v1038, %v1036
  %v1449 = vpack.c.b16 %v1041, %v1039
  %v1450 = vpack.c.b16 %v1042, %v1040
  %v1451 = vpack.c.b16 %v1045, %v1043
  %v1452 = vpack.c.b16 %v1046, %v1044
  %v1453 = vpack.c.b16 %v1049, %v1047
  %v1454 = vpack.c.b16 %v1050, %v1048
  %v1455 = vpack.c.b16 %v1053, %v1051
  %v1456 = vpack.c.b16 %v1054, %v1052
  %v1457 = vpack.c.b16 %v1057, %v1055
  %v1458 = vpack.c.b16 %v1058, %v1056
  %v1459 = vpack.c.b16 %v1061, %v1059
  %v1460 = vpack.c.b16 %v1062, %v1060
  %v1461 = vpack.c.b16 %v1065, %v1063
  %v1462 = vpack.c.b16 %v1066, %v1064
  %v1463 = vpack.c.b16 %v1069, %v1067
  %v1464 = vpack.c.b16 %v1070, %v1068
  %v1465 = vpack.c.b16 %v1073, %v1071
  %v1466 = vpack.c.b16 %v1074, %v1072
  %v1467 = vpack.c.b16 %v1077, %v1075
  %v1468 = vpack.c.b16 %v1078, %v1076
  %v1469 = vpack.c.b16 %v1081, %v1079
  %v1470 = vpack.c.b16 %v1082, %v1080
  %v1471 = vpack.c.b16 %v1085, %v1083
  %v1472 = vpack.c.b16 %v1086, %v1084
  %v1473 = vpack.c.b16 %v1089, %v1087
  %v1474 = vpack.c.b16 %v1090, %v1088
  %v1475 = vpack.c.b16 %v1093, %v1091
  %v1476 = vpack.c.b16 %v1094, %v1092
  %v1477 = vpack.c.b16 %v1097, %v1095
  %v1478 = vpack.c.b16 %v1098, %v1096
  %v1479 = vpack.c.b16 %v1101, %v1099
  %v1480 = vpack.c.b16 %v1102, %v1100
  %v1481 = vpack.c.b16 %v1105, %v1103
  %v1482 = vpack.c.b16 %v1106, %v1104
  %v1483 = vpack.c.b16 %v1109, %v1107
  %v1484 = vpack.c.b16 %v1110, %v1108
  %v1485 = vpack.c.b16 %v1113, %v1111
  %v1486 = vpack.c.b16 %v1114, %v1112
  %v1487 = vpack.c.b16 %v1117, %v1115
  %v1488 = vpack.c.b16 %v1118, %v1116
  %v1489 = vpack.c.b16 %v1121, %v1119
  %v1490 = vpack.c.b16 %v1122, %v1120
  %v1491 = vpack.c.b16 %v1125, %v1123
  %v1492 = vpack.c.b16 %v1126, %v1124
  %v1493 = vpack.c.b16 %v1129, %v1127
  %v1494 = vpack.c.b16 %v1130, %v1128
  %v1495 = vpack.c.b16 %v1133, %v1131
  %v1496 = vpack.c.b16 %v1134, %v1132
  %v1497 = vpack.c.b16 %v1137, %v1135
  %v1498 = vpack.c.b16 %v1138, %v1136
  %v1499 = vpack.c.b16 %v1141, %v1139
  %v1500 = vpack.c.b16 %v1142, %v1140
  %v1501 = vpack.c.b16 %v1145, %v1143
  %v1502 = vpack.c.b16 %v1146, %v1144
  %v1503 = vpack.c.b16 %v1149, %v1147
  %v1504 = vpack.c.b16 %v1150, %v1148
  %v1505 = vpack.c.b16 %v1153, %v1151
  %v1506 = vpack.c.b16 %v1154, %v1152
  %v1507 = vpack.c.b16 %v1157, %v1155
  %v1508 = vpack.c.b16 %v1158, %v1156
  %v1509 = vpack.c.b16 %v1161, %v1159
  %v1510 = vpack.c.b16 %v1162, %v1160
  %v1511 = vpack.c.b16 %v1165, %v1163
  %v1512 = vpack.c.b16 %v1166, %v1164
  %v1513 = vpack.c.b16 %v1169, %v1167
  %v1514 = vpack.c.b16 %v1170, %v1168
  %v1515 = vpack.c.b16 %v1173, %v1171
  %v1516 = vpack.c.b16 %v1174, %v1172
  %v1517 = vpack.c.b16 %v1177, %v1175
  %v1518 = vpack.c.b16 %v1178, %v1176
  %v1519 = vpack.c.b16 %v1181, %v1179
  %v1520 = vpack.c.b16 %v1182, %v1180
  %v1521 = vpack.c.b16 %v1185, %v1183
  %v1522 = vpack.c.b16 %v1186, %v1184
  %v1523 = vpack.c.b16 %v1189, %v1187
  %v1524 = vpack.c.b16 %v1190, %v1188
  %v1525 = vpack.c.b16 %v1193, %v1191
  %v1526 = vpack.c.b16 %v1194, %v1192
  %v1527 = vpack.c.b16 %v1197, %v1195
  %v1528 = vpack.c.b16 %v1198, %v1196
  %v1529 = vpack.c.b16 %v1201, %v1199
  %v1530 = vpack.c.b16 %v1202, %v1200
  %v1531 = vpack.c.b16 %v1205, %v1203
  %v1532 = vpack.c.b16 %v1206, %v1204
  %v1533 = vpack.c.b16 %v1209, %v1207
  %v1534 = vpack.c.b16 %v1210, %v1208
  %v1535 = vpack.c.b16 %v1213, %v1211
  %v1536 = vpack.c.b16 %v1214, %v1212
  %v1537 = vpack.c.b16 %v1217, %v1215
  %v1538 = vpack.c.b16 %v1218, %v1216
  %v1539 = vpack.c.b16 %v1221, %v1219
  %v1540 = vpack.c.b16 %v1222, %v1220
  %v1541 = vpack.c.b16 %v1225, %v1223
  %v1542 = vpack.c.b16 %v1226, %v1224
  %v1543 = vpack.c.b16 %v1229, %v1227
  %v1544 = vpack.c.b16 %v1230, %v1228
  %v1545 = vpack.c.b16 %v1233, %v1231
  %v1546 = vpack.c.b16 %v1234, %v1232
  %v1547 = vpack.c.b16 %v1237, %v1235
  %v1548 = vpack.c.b16 %v1238, %v1236
  %v1549 = vpack.c.b16 %v1241, %v1239
  %v1550 = vpack.c.b16 %v1242, %v1240
  %v1551 = vpack.c.b16 %v1245, %v1243
  %v1552 = vpack.c.b16 %v1246, %v1244
  %v1553 = vpack.c.b16 %v1249, %v1247
  %v1554 = vpack.c.b16 %v1250, %v1248
  %v1555 = vpack.c.b16 %v1253, %v1251
  %v1556 = vpack.c.b16 %v1254, %v1252
  %v1557 = vpack.c.b16 %v1257, %v1255
  %v1558 = vpack.c.b16 %v1258, %v1256
  %v1559 = vpack.c.b16 %v1261, %v1259
  %v1560 = vpack.c.b16 %v1262, %v1260
  %v1561 = vpack.c.b16 %v1265, %v1263
  %v1562 = vpack.c.b16 %v1266, %v1264
  %v1563 = vpack.c.b16 %v1269, %v1267
  %v1564 = vpack.c.b16 %v1270, %v1268
  %v1565 = vpack.c.b16 %v1273, %v1271
  %v1566 = vpack.c.b16 %v1274, %v1272
  %v1567 = vpack.c.b16 %v1277, %v1275
  %v1568 = vpack.c.b16 %v1278, %v1276
  %v1569 = vpack.c.b16 %v1281, %v1279
  %v1570 = vpack.c.b16 %v1282, %v1280
  %1859 = vmatpush.bf16.msra.mxu0 %v1297
  %1860 = vmatpush.bf16.msra.mxu0 %v1295
  %1861 = vmatpush.bf16.msra.mxu0 %v1293
  %1862 = vmatpush.bf16.msra.mxu0 %v1291
  %1863 = vmatpush.bf16.msra.mxu0 %v1289
  %1864 = vmatpush.bf16.msra.mxu0 %v1287
  %1865 = vmatpush.bf16.msra.mxu0 %v1285
  %1866 = vmatpush.bf16.msra.mxu0 %v1283
  %1867 = vmatmul.bf16.gmra.mxu0 %v383
  %v1868 = vpop.f32.mrf.mxu0
  %v1869 = vadd.f32 %v325, %v1868
  %v1870 = vpop.f32.mrf.mxu0
  %v1871 = vadd.f32 %v325, %v1870
  %1872 = vdwg.mxu0
  %1873 = vmatpush.bf16.msra.mxu0 %v1313
  %1874 = vmatpush.bf16.msra.mxu0 %v1311
  %1875 = vmatpush.bf16.msra.mxu0 %v1309
  %1876 = vmatpush.bf16.msra.mxu0 %v1307
  %1877 = vmatpush.bf16.msra.mxu0 %v1305
  %1878 = vmatpush.bf16.msra.mxu0 %v1303
  %1879 = vmatpush.bf16.msra.mxu0 %v1301
  %1880 = vmatpush.bf16.msra.mxu0 %v1299
  %1881 = vmatmul.bf16.gmra.mxu0 %v384
  %v1882 = vpop.f32.mrf.mxu0
  %v1883 = vadd.f32 %v1869, %v1882
  %v1884 = vpop.f32.mrf.mxu0
  %v1885 = vadd.f32 %v1871, %v1884
  %1886 = vdwg.mxu0
  %1887 = vmatpush.bf16.msra.mxu0 %v1329
  %1888 = vmatpush.bf16.msra.mxu0 %v1327
  %1889 = vmatpush.bf16.msra.mxu0 %v1325
  %1890 = vmatpush.bf16.msra.mxu0 %v1323
  %1891 = vmatpush.bf16.msra.mxu0 %v1321
  %1892 = vmatpush.bf16.msra.mxu0 %v1319
  %1893 = vmatpush.bf16.msra.mxu0 %v1317
  %1894 = vmatpush.bf16.msra.mxu0 %v1315
  %1895 = vmatmul.bf16.gmra.mxu0 %v385
  %v1896 = vpop.f32.mrf.mxu0
  %v1897 = vadd.f32 %v1883, %v1896
  %v1898 = vpop.f32.mrf.mxu0
  %v1899 = vadd.f32 %v1885, %v1898
  %1900 = vdwg.mxu0
  %1901 = vmatpush.bf16.msra.mxu0 %v1345
  %1902 = vmatpush.bf16.msra.mxu0 %v1343
  %1903 = vmatpush.bf16.msra.mxu0 %v1341
  %1904 = vmatpush.bf16.msra.mxu0 %v1339
  %1905 = vmatpush.bf16.msra.mxu0 %v1337
  %1906 = vmatpush.bf16.msra.mxu0 %v1335
  %1907 = vmatpush.bf16.msra.mxu0 %v1333
  %1908 = vmatpush.bf16.msra.mxu0 %v1331
  %1909 = vmatmul.bf16.gmra.mxu0 %v386
  %v1910 = vpop.f32.mrf.mxu0
  %v1911 = vadd.f32 %v1897, %v1910
  %v1912 = vpop.f32.mrf.mxu0
  %v1913 = vadd.f32 %v1899, %v1912
  %1914 = vdwg.mxu0
  %1915 = vmatpush.bf16.msra.mxu0 %v1361
  %1916 = vmatpush.bf16.msra.mxu0 %v1359
  %1917 = vmatpush.bf16.msra.mxu0 %v1357
  %1918 = vmatpush.bf16.msra.mxu0 %v1355
  %1919 = vmatpush.bf16.msra.mxu0 %v1353
  %1920 = vmatpush.bf16.msra.mxu0 %v1351
  %1921 = vmatpush.bf16.msra.mxu0 %v1349
  %1922 = vmatpush.bf16.msra.mxu0 %v1347
  %1923 = vmatmul.bf16.gmra.mxu0 %v387
  %v1924 = vpop.f32.mrf.mxu0
  %v1925 = vadd.f32 %v1911, %v1924
  %v1926 = vpop.f32.mrf.mxu0
  %v1927 = vadd.f32 %v1913, %v1926
  %1928 = vdwg.mxu0
  %1929 = vmatpush.bf16.msra.mxu0 %v1377
  %1930 = vmatpush.bf16.msra.mxu0 %v1375
  %1931 = vmatpush.bf16.msra.mxu0 %v1373
  %1932 = vmatpush.bf16.msra.mxu0 %v1371
  %1933 = vmatpush.bf16.msra.mxu0 %v1369
  %1934 = vmatpush.bf16.msra.mxu0 %v1367
  %1935 = vmatpush.bf16.msra.mxu0 %v1365
  %1936 = vmatpush.bf16.msra.mxu0 %v1363
  %1937 = vmatmul.bf16.gmra.mxu0 %v388
  %v1938 = vpop.f32.mrf.mxu0
  %v1939 = vadd.f32 %v1925, %v1938
  %v1940 = vpop.f32.mrf.mxu0
  %v1941 = vadd.f32 %v1927, %v1940
  %1942 = vdwg.mxu0
  %1943 = vmatpush.bf16.msra.mxu0 %v1393
  %1944 = vmatpush.bf16.msra.mxu0 %v1391
  %1945 = vmatpush.bf16.msra.mxu0 %v1389
  %1946 = vmatpush.bf16.msra.mxu0 %v1387
  %1947 = vmatpush.bf16.msra.mxu0 %v1385
  %1948 = vmatpush.bf16.msra.mxu0 %v1383
  %1949 = vmatpush.bf16.msra.mxu0 %v1381
  %1950 = vmatpush.bf16.msra.mxu0 %v1379
  %1951 = vmatmul.bf16.gmra.mxu0 %v389
  %v1952 = vpop.f32.mrf.mxu0
  %v1953 = vadd.f32 %v1939, %v1952
  %v1954 = vpop.f32.mrf.mxu0
  %v1955 = vadd.f32 %v1941, %v1954
  %1956 = vdwg.mxu0
  %1957 = vmatpush.bf16.msra.mxu0 %v1409
  %1958 = vmatpush.bf16.msra.mxu0 %v1407
  %1959 = vmatpush.bf16.msra.mxu0 %v1405
  %1960 = vmatpush.bf16.msra.mxu0 %v1403
  %1961 = vmatpush.bf16.msra.mxu0 %v1401
  %1962 = vmatpush.bf16.msra.mxu0 %v1399
  %1963 = vmatpush.bf16.msra.mxu0 %v1397
  %1964 = vmatpush.bf16.msra.mxu0 %v1395
  %1965 = vmatmul.bf16.gmra.mxu0 %v390
  %v1966 = vpop.f32.mrf.mxu0
  %v1967 = vadd.f32 %v1953, %v1966
  %v1968 = vpop.f32.mrf.mxu0
  %v1969 = vadd.f32 %v1955, %v1968
  %1970 = vdwg.mxu0
  %1971 = vmatpush.bf16.msra.mxu0 %v1425
  %1972 = vmatpush.bf16.msra.mxu0 %v1423
  %1973 = vmatpush.bf16.msra.mxu0 %v1421
  %1974 = vmatpush.bf16.msra.mxu0 %v1419
  %1975 = vmatpush.bf16.msra.mxu0 %v1417
  %1976 = vmatpush.bf16.msra.mxu0 %v1415
  %1977 = vmatpush.bf16.msra.mxu0 %v1413
  %1978 = vmatpush.bf16.msra.mxu0 %v1411
  %1979 = vmatmul.bf16.gmra.mxu0 %v391
  %v1980 = vpop.f32.mrf.mxu0
  %v1981 = vadd.f32 %v1967, %v1980
  %v1982 = vpop.f32.mrf.mxu0
  %v1983 = vadd.f32 %v1969, %v1982
  %1984 = vdwg.mxu0
  %1985 = vmatpush.bf16.msra.mxu0 %v1441
  %1986 = vmatpush.bf16.msra.mxu0 %v1439
  %1987 = vmatpush.bf16.msra.mxu0 %v1437
  %1988 = vmatpush.bf16.msra.mxu0 %v1435
  %1989 = vmatpush.bf16.msra.mxu0 %v1433
  %1990 = vmatpush.bf16.msra.mxu0 %v1431
  %1991 = vmatpush.bf16.msra.mxu0 %v1429
  %1992 = vmatpush.bf16.msra.mxu0 %v1427
  %1993 = vmatmul.bf16.gmra.mxu0 %v392
  %v1994 = vpop.f32.mrf.mxu0
  %v1995 = vadd.f32 %v1981, %v1994
  %v1996 = vpop.f32.mrf.mxu0
  %v1997 = vadd.f32 %v1983, %v1996
  %1998 = vdwg.mxu0
  %1999 = vmatpush.bf16.msra.mxu0 %v1457
  %2000 = vmatpush.bf16.msra.mxu0 %v1455
  %2001 = vmatpush.bf16.msra.mxu0 %v1453
  %2002 = vmatpush.bf16.msra.mxu0 %v1451
  %2003 = vmatpush.bf16.msra.mxu0 %v1449
  %2004 = vmatpush.bf16.msra.mxu0 %v1447
  %2005 = vmatpush.bf16.msra.mxu0 %v1445
  %2006 = vmatpush.bf16.msra.mxu0 %v1443
  %2007 = vmatmul.bf16.gmra.mxu0 %v393
  %v2008 = vpop.f32.mrf.mxu0
  %v2009 = vadd.f32 %v1995, %v2008
  %v2010 = vpop.f32.mrf.mxu0
  %v2011 = vadd.f32 %v1997, %v2010
  %2012 = vdwg.mxu0
  %2013 = vmatpush.bf16.msra.mxu0 %v1473
  %2014 = vmatpush.bf16.msra.mxu0 %v1471
  %2015 = vmatpush.bf16.msra.mxu0 %v1469
  %2016 = vmatpush.bf16.msra.mxu0 %v1467
  %2017 = vmatpush.bf16.msra.mxu0 %v1465
  %2018 = vmatpush.bf16.msra.mxu0 %v1463
  %2019 = vmatpush.bf16.msra.mxu0 %v1461
  %2020 = vmatpush.bf16.msra.mxu0 %v1459
  %2021 = vmatmul.bf16.gmra.mxu0 %v394
  %v2022 = vpop.f32.mrf.mxu0
  %v2023 = vadd.f32 %v2009, %v2022
  %v2024 = vpop.f32.mrf.mxu0
  %v2025 = vadd.f32 %v2011, %v2024
  %2026 = vdwg.mxu0
  %2027 = vmatpush.bf16.msra.mxu0 %v1489
  %2028 = vmatpush.bf16.msra.mxu0 %v1487
  %2029 = vmatpush.bf16.msra.mxu0 %v1485
  %2030 = vmatpush.bf16.msra.mxu0 %v1483
  %2031 = vmatpush.bf16.msra.mxu0 %v1481
  %2032 = vmatpush.bf16.msra.mxu0 %v1479
  %2033 = vmatpush.bf16.msra.mxu0 %v1477
  %2034 = vmatpush.bf16.msra.mxu0 %v1475
  %2035 = vmatmul.bf16.gmra.mxu0 %v395
  %v2036 = vpop.f32.mrf.mxu0
  %v2037 = vadd.f32 %v2023, %v2036
  %v2038 = vpop.f32.mrf.mxu0
  %v2039 = vadd.f32 %v2025, %v2038
  %2040 = vdwg.mxu0
  %2041 = vmatpush.bf16.msra.mxu0 %v1505
  %2042 = vmatpush.bf16.msra.mxu0 %v1503
  %2043 = vmatpush.bf16.msra.mxu0 %v1501
  %2044 = vmatpush.bf16.msra.mxu0 %v1499
  %2045 = vmatpush.bf16.msra.mxu0 %v1497
  %2046 = vmatpush.bf16.msra.mxu0 %v1495
  %2047 = vmatpush.bf16.msra.mxu0 %v1493
  %2048 = vmatpush.bf16.msra.mxu0 %v1491
  %2049 = vmatmul.bf16.gmra.mxu0 %v396
  %v2050 = vpop.f32.mrf.mxu0
  %v2051 = vadd.f32 %v2037, %v2050
  %v2052 = vpop.f32.mrf.mxu0
  %v2053 = vadd.f32 %v2039, %v2052
  %2054 = vdwg.mxu0
  %2055 = vmatpush.bf16.msra.mxu0 %v1521
  %2056 = vmatpush.bf16.msra.mxu0 %v1519
  %2057 = vmatpush.bf16.msra.mxu0 %v1517
  %2058 = vmatpush.bf16.msra.mxu0 %v1515
  %2059 = vmatpush.bf16.msra.mxu0 %v1513
  %2060 = vmatpush.bf16.msra.mxu0 %v1511
  %2061 = vmatpush.bf16.msra.mxu0 %v1509
  %2062 = vmatpush.bf16.msra.mxu0 %v1507
  %2063 = vmatmul.bf16.gmra.mxu0 %v397
  %v2064 = vpop.f32.mrf.mxu0
  %v2065 = vadd.f32 %v2051, %v2064
  %v2066 = vpop.f32.mrf.mxu0
  %v2067 = vadd.f32 %v2053, %v2066
  %2068 = vdwg.mxu0
  %2069 = vmatpush.bf16.msra.mxu0 %v1537
  %2070 = vmatpush.bf16.msra.mxu0 %v1535
  %2071 = vmatpush.bf16.msra.mxu0 %v1533
  %2072 = vmatpush.bf16.msra.mxu0 %v1531
  %2073 = vmatpush.bf16.msra.mxu0 %v1529
  %2074 = vmatpush.bf16.msra.mxu0 %v1527
  %2075 = vmatpush.bf16.msra.mxu0 %v1525
  %2076 = vmatpush.bf16.msra.mxu0 %v1523
  %2077 = vmatmul.bf16.gmra.mxu0 %v398
  %v2078 = vpop.f32.mrf.mxu0
  %v2079 = vadd.f32 %v2065, %v2078
  %v2080 = vpop.f32.mrf.mxu0
  %v2081 = vadd.f32 %v2067, %v2080
  %2082 = vdwg.mxu0
  %2083 = vmatpush.bf16.msra.mxu0 %v1553
  %2084 = vmatpush.bf16.msra.mxu0 %v1551
  %2085 = vmatpush.bf16.msra.mxu0 %v1549
  %2086 = vmatpush.bf16.msra.mxu0 %v1547
  %2087 = vmatpush.bf16.msra.mxu0 %v1545
  %2088 = vmatpush.bf16.msra.mxu0 %v1543
  %2089 = vmatpush.bf16.msra.mxu0 %v1541
  %2090 = vmatpush.bf16.msra.mxu0 %v1539
  %2091 = vmatmul.bf16.gmra.mxu0 %v399
  %v2092 = vpop.f32.mrf.mxu0
  %v2093 = vadd.f32 %v2079, %v2092
  %v2094 = vpop.f32.mrf.mxu0
  %v2095 = vadd.f32 %v2081, %v2094
  %2096 = vdwg.mxu0
  %2097 = vmatpush.bf16.msra.mxu0 %v1569
  %2098 = vmatpush.bf16.msra.mxu0 %v1567
  %2099 = vmatpush.bf16.msra.mxu0 %v1565
  %2100 = vmatpush.bf16.msra.mxu0 %v1563
  %2101 = vmatpush.bf16.msra.mxu0 %v1561
  %2102 = vmatpush.bf16.msra.mxu0 %v1559
  %2103 = vmatpush.bf16.msra.mxu0 %v1557
  %2104 = vmatpush.bf16.msra.mxu0 %v1555
  %2105 = vmatmul.bf16.gmra.mxu0 %v400
  %v2106 = vpop.f32.mrf.mxu0
  %v2107 = vadd.f32 %v2093, %v2106
  %v2108 = vpop.f32.mrf.mxu0
  %v2109 = vadd.f32 %v2095, %v2108
  %2110 = vdwg.mxu0
  %2111 = vmatpush.bf16.msra.mxu0 %v1298
  %2112 = vmatpush.bf16.msra.mxu0 %v1296
  %2113 = vmatpush.bf16.msra.mxu0 %v1294
  %2114 = vmatpush.bf16.msra.mxu0 %v1292
  %2115 = vmatpush.bf16.msra.mxu0 %v1290
  %2116 = vmatpush.bf16.msra.mxu0 %v1288
  %2117 = vmatpush.bf16.msra.mxu0 %v1286
  %2118 = vmatpush.bf16.msra.mxu0 %v1284
  %2119 = vmatmul.bf16.gmra.mxu0 %v383
  %v2120 = vpop.f32.mrf.mxu0
  %v2121 = vadd.f32 %v326, %v2120
  %v2122 = vpop.f32.mrf.mxu0
  %v2123 = vadd.f32 %v326, %v2122
  %2124 = vdwg.mxu0
  %2125 = vmatpush.bf16.msra.mxu0 %v1314
  %2126 = vmatpush.bf16.msra.mxu0 %v1312
  %2127 = vmatpush.bf16.msra.mxu0 %v1310
  %2128 = vmatpush.bf16.msra.mxu0 %v1308
  %2129 = vmatpush.bf16.msra.mxu0 %v1306
  %2130 = vmatpush.bf16.msra.mxu0 %v1304
  %2131 = vmatpush.bf16.msra.mxu0 %v1302
  %2132 = vmatpush.bf16.msra.mxu0 %v1300
  %2133 = vmatmul.bf16.gmra.mxu0 %v384
  %v2134 = vpop.f32.mrf.mxu0
  %v2135 = vadd.f32 %v2121, %v2134
  %v2136 = vpop.f32.mrf.mxu0
  %v2137 = vadd.f32 %v2123, %v2136
  %2138 = vdwg.mxu0
  %2139 = vmatpush.bf16.msra.mxu0 %v1330
  %2140 = vmatpush.bf16.msra.mxu0 %v1328
  %2141 = vmatpush.bf16.msra.mxu0 %v1326
  %2142 = vmatpush.bf16.msra.mxu0 %v1324
  %2143 = vmatpush.bf16.msra.mxu0 %v1322
  %2144 = vmatpush.bf16.msra.mxu0 %v1320
  %2145 = vmatpush.bf16.msra.mxu0 %v1318
  %2146 = vmatpush.bf16.msra.mxu0 %v1316
  %2147 = vmatmul.bf16.gmra.mxu0 %v385
  %v2148 = vpop.f32.mrf.mxu0
  %v2149 = vadd.f32 %v2135, %v2148
  %v2150 = vpop.f32.mrf.mxu0
  %v2151 = vadd.f32 %v2137, %v2150
  %2152 = vdwg.mxu0
  %2153 = vmatpush.bf16.msra.mxu0 %v1346
  %2154 = vmatpush.bf16.msra.mxu0 %v1344
  %2155 = vmatpush.bf16.msra.mxu0 %v1342
  %2156 = vmatpush.bf16.msra.mxu0 %v1340
  %2157 = vmatpush.bf16.msra.mxu0 %v1338
  %2158 = vmatpush.bf16.msra.mxu0 %v1336
  %2159 = vmatpush.bf16.msra.mxu0 %v1334
  %2160 = vmatpush.bf16.msra.mxu0 %v1332
  %2161 = vmatmul.bf16.gmra.mxu0 %v386
  %v2162 = vpop.f32.mrf.mxu0
  %v2163 = vadd.f32 %v2149, %v2162
  %v2164 = vpop.f32.mrf.mxu0
  %v2165 = vadd.f32 %v2151, %v2164
  %2166 = vdwg.mxu0
  %2167 = vmatpush.bf16.msra.mxu0 %v1362
  %2168 = vmatpush.bf16.msra.mxu0 %v1360
  %2169 = vmatpush.bf16.msra.mxu0 %v1358
  %2170 = vmatpush.bf16.msra.mxu0 %v1356
  %2171 = vmatpush.bf16.msra.mxu0 %v1354
  %2172 = vmatpush.bf16.msra.mxu0 %v1352
  %2173 = vmatpush.bf16.msra.mxu0 %v1350
  %2174 = vmatpush.bf16.msra.mxu0 %v1348
  %2175 = vmatmul.bf16.gmra.mxu0 %v387
  %v2176 = vpop.f32.mrf.mxu0
  %v2177 = vadd.f32 %v2163, %v2176
  %v2178 = vpop.f32.mrf.mxu0
  %v2179 = vadd.f32 %v2165, %v2178
  %2180 = vdwg.mxu0
  %2181 = vmatpush.bf16.msra.mxu0 %v1378
  %2182 = vmatpush.bf16.msra.mxu0 %v1376
  %2183 = vmatpush.bf16.msra.mxu0 %v1374
  %2184 = vmatpush.bf16.msra.mxu0 %v1372
  %2185 = vmatpush.bf16.msra.mxu0 %v1370
  %2186 = vmatpush.bf16.msra.mxu0 %v1368
  %2187 = vmatpush.bf16.msra.mxu0 %v1366
  %2188 = vmatpush.bf16.msra.mxu0 %v1364
  %2189 = vmatmul.bf16.gmra.mxu0 %v388
  %v2190 = vpop.f32.mrf.mxu0
  %v2191 = vadd.f32 %v2177, %v2190
  %v2192 = vpop.f32.mrf.mxu0
  %v2193 = vadd.f32 %v2179, %v2192
  %2194 = vdwg.mxu0
  %2195 = vmatpush.bf16.msra.mxu0 %v1394
  %2196 = vmatpush.bf16.msra.mxu0 %v1392
  %2197 = vmatpush.bf16.msra.mxu0 %v1390
  %2198 = vmatpush.bf16.msra.mxu0 %v1388
  %2199 = vmatpush.bf16.msra.mxu0 %v1386
  %2200 = vmatpush.bf16.msra.mxu0 %v1384
  %2201 = vmatpush.bf16.msra.mxu0 %v1382
  %2202 = vmatpush.bf16.msra.mxu0 %v1380
  %2203 = vmatmul.bf16.gmra.mxu0 %v389
  %v2204 = vpop.f32.mrf.mxu0
  %v2205 = vadd.f32 %v2191, %v2204
  %v2206 = vpop.f32.mrf.mxu0
  %v2207 = vadd.f32 %v2193, %v2206
  %2208 = vdwg.mxu0
  %2209 = vmatpush.bf16.msra.mxu0 %v1410
  %2210 = vmatpush.bf16.msra.mxu0 %v1408
  %2211 = vmatpush.bf16.msra.mxu0 %v1406
  %2212 = vmatpush.bf16.msra.mxu0 %v1404
  %2213 = vmatpush.bf16.msra.mxu0 %v1402
  %2214 = vmatpush.bf16.msra.mxu0 %v1400
  %2215 = vmatpush.bf16.msra.mxu0 %v1398
  %2216 = vmatpush.bf16.msra.mxu0 %v1396
  %2217 = vmatmul.bf16.gmra.mxu0 %v390
  %v2218 = vpop.f32.mrf.mxu0
  %v2219 = vadd.f32 %v2205, %v2218
  %v2220 = vpop.f32.mrf.mxu0
  %v2221 = vadd.f32 %v2207, %v2220
  %2222 = vdwg.mxu0
  %2223 = vmatpush.bf16.msra.mxu0 %v1426
  %2224 = vmatpush.bf16.msra.mxu0 %v1424
  %2225 = vmatpush.bf16.msra.mxu0 %v1422
  %2226 = vmatpush.bf16.msra.mxu0 %v1420
  %2227 = vmatpush.bf16.msra.mxu0 %v1418
  %2228 = vmatpush.bf16.msra.mxu0 %v1416
  %2229 = vmatpush.bf16.msra.mxu0 %v1414
  %2230 = vmatpush.bf16.msra.mxu0 %v1412
  %2231 = vmatmul.bf16.gmra.mxu0 %v391
  %v2232 = vpop.f32.mrf.mxu0
  %v2233 = vadd.f32 %v2219, %v2232
  %v2234 = vpop.f32.mrf.mxu0
  %v2235 = vadd.f32 %v2221, %v2234
  %2236 = vdwg.mxu0
  %2237 = vmatpush.bf16.msra.mxu0 %v1442
  %2238 = vmatpush.bf16.msra.mxu0 %v1440
  %2239 = vmatpush.bf16.msra.mxu0 %v1438
  %2240 = vmatpush.bf16.msra.mxu0 %v1436
  %2241 = vmatpush.bf16.msra.mxu0 %v1434
  %2242 = vmatpush.bf16.msra.mxu0 %v1432
  %2243 = vmatpush.bf16.msra.mxu0 %v1430
  %2244 = vmatpush.bf16.msra.mxu0 %v1428
  %2245 = vmatmul.bf16.gmra.mxu0 %v392
  %v2246 = vpop.f32.mrf.mxu0
  %v2247 = vadd.f32 %v2233, %v2246
  %v2248 = vpop.f32.mrf.mxu0
  %v2249 = vadd.f32 %v2235, %v2248
  %2250 = vdwg.mxu0
  %2251 = vmatpush.bf16.msra.mxu0 %v1458
  %2252 = vmatpush.bf16.msra.mxu0 %v1456
  %2253 = vmatpush.bf16.msra.mxu0 %v1454
  %2254 = vmatpush.bf16.msra.mxu0 %v1452
  %2255 = vmatpush.bf16.msra.mxu0 %v1450
  %2256 = vmatpush.bf16.msra.mxu0 %v1448
  %2257 = vmatpush.bf16.msra.mxu0 %v1446
  %2258 = vmatpush.bf16.msra.mxu0 %v1444
  %2259 = vmatmul.bf16.gmra.mxu0 %v393
  %v2260 = vpop.f32.mrf.mxu0
  %v2261 = vadd.f32 %v2247, %v2260
  %v2262 = vpop.f32.mrf.mxu0
  %v2263 = vadd.f32 %v2249, %v2262
  %2264 = vdwg.mxu0
  %2265 = vmatpush.bf16.msra.mxu0 %v1474
  %2266 = vmatpush.bf16.msra.mxu0 %v1472
  %2267 = vmatpush.bf16.msra.mxu0 %v1470
  %2268 = vmatpush.bf16.msra.mxu0 %v1468
  %2269 = vmatpush.bf16.msra.mxu0 %v1466
  %2270 = vmatpush.bf16.msra.mxu0 %v1464
  %2271 = vmatpush.bf16.msra.mxu0 %v1462
  %2272 = vmatpush.bf16.msra.mxu0 %v1460
  %2273 = vmatmul.bf16.gmra.mxu0 %v394
  %v2274 = vpop.f32.mrf.mxu0
  %v2275 = vadd.f32 %v2261, %v2274
  %v2276 = vpop.f32.mrf.mxu0
  %v2277 = vadd.f32 %v2263, %v2276
  %2278 = vdwg.mxu0
  %2279 = vmatpush.bf16.msra.mxu0 %v1490
  %2280 = vmatpush.bf16.msra.mxu0 %v1488
  %2281 = vmatpush.bf16.msra.mxu0 %v1486
  %2282 = vmatpush.bf16.msra.mxu0 %v1484
  %2283 = vmatpush.bf16.msra.mxu0 %v1482
  %2284 = vmatpush.bf16.msra.mxu0 %v1480
  %2285 = vmatpush.bf16.msra.mxu0 %v1478
  %2286 = vmatpush.bf16.msra.mxu0 %v1476
  %2287 = vmatmul.bf16.gmra.mxu0 %v395
  %v2288 = vpop.f32.mrf.mxu0
  %v2289 = vadd.f32 %v2275, %v2288
  %v2290 = vpop.f32.mrf.mxu0
  %v2291 = vadd.f32 %v2277, %v2290
  %2292 = vdwg.mxu0
  %2293 = vmatpush.bf16.msra.mxu0 %v1506
  %2294 = vmatpush.bf16.msra.mxu0 %v1504
  %2295 = vmatpush.bf16.msra.mxu0 %v1502
  %2296 = vmatpush.bf16.msra.mxu0 %v1500
  %2297 = vmatpush.bf16.msra.mxu0 %v1498
  %2298 = vmatpush.bf16.msra.mxu0 %v1496
  %2299 = vmatpush.bf16.msra.mxu0 %v1494
  %2300 = vmatpush.bf16.msra.mxu0 %v1492
  %2301 = vmatmul.bf16.gmra.mxu0 %v396
  %v2302 = vpop.f32.mrf.mxu0
  %v2303 = vadd.f32 %v2289, %v2302
  %v2304 = vpop.f32.mrf.mxu0
  %v2305 = vadd.f32 %v2291, %v2304
  %2306 = vdwg.mxu0
  %2307 = vmatpush.bf16.msra.mxu0 %v1522
  %2308 = vmatpush.bf16.msra.mxu0 %v1520
  %2309 = vmatpush.bf16.msra.mxu0 %v1518
  %2310 = vmatpush.bf16.msra.mxu0 %v1516
  %2311 = vmatpush.bf16.msra.mxu0 %v1514
  %2312 = vmatpush.bf16.msra.mxu0 %v1512
  %2313 = vmatpush.bf16.msra.mxu0 %v1510
  %2314 = vmatpush.bf16.msra.mxu0 %v1508
  %2315 = vmatmul.bf16.gmra.mxu0 %v397
  %v2316 = vpop.f32.mrf.mxu0
  %v2317 = vadd.f32 %v2303, %v2316
  %v2318 = vpop.f32.mrf.mxu0
  %v2319 = vadd.f32 %v2305, %v2318
  %2320 = vdwg.mxu0
  %2321 = vmatpush.bf16.msra.mxu0 %v1538
  %2322 = vmatpush.bf16.msra.mxu0 %v1536
  %2323 = vmatpush.bf16.msra.mxu0 %v1534
  %2324 = vmatpush.bf16.msra.mxu0 %v1532
  %2325 = vmatpush.bf16.msra.mxu0 %v1530
  %2326 = vmatpush.bf16.msra.mxu0 %v1528
  %2327 = vmatpush.bf16.msra.mxu0 %v1526
  %2328 = vmatpush.bf16.msra.mxu0 %v1524
  %2329 = vmatmul.bf16.gmra.mxu0 %v398
  %v2330 = vpop.f32.mrf.mxu0
  %v2331 = vadd.f32 %v2317, %v2330
  %v2332 = vpop.f32.mrf.mxu0
  %v2333 = vadd.f32 %v2319, %v2332
  %2334 = vdwg.mxu0
  %2335 = vmatpush.bf16.msra.mxu0 %v1554
  %2336 = vmatpush.bf16.msra.mxu0 %v1552
  %2337 = vmatpush.bf16.msra.mxu0 %v1550
  %2338 = vmatpush.bf16.msra.mxu0 %v1548
  %2339 = vmatpush.bf16.msra.mxu0 %v1546
  %2340 = vmatpush.bf16.msra.mxu0 %v1544
  %2341 = vmatpush.bf16.msra.mxu0 %v1542
  %2342 = vmatpush.bf16.msra.mxu0 %v1540
  %2343 = vmatmul.bf16.gmra.mxu0 %v399
  %v2344 = vpop.f32.mrf.mxu0
  %v2345 = vadd.f32 %v2331, %v2344
  %v2346 = vpop.f32.mrf.mxu0
  %v2347 = vadd.f32 %v2333, %v2346
  %2348 = vdwg.mxu0
  %2349 = vmatpush.bf16.msra.mxu0 %v1570
  %2350 = vmatpush.bf16.msra.mxu0 %v1568
  %2351 = vmatpush.bf16.msra.mxu0 %v1566
  %2352 = vmatpush.bf16.msra.mxu0 %v1564
  %2353 = vmatpush.bf16.msra.mxu0 %v1562
  %2354 = vmatpush.bf16.msra.mxu0 %v1560
  %2355 = vmatpush.bf16.msra.mxu0 %v1558
  %2356 = vmatpush.bf16.msra.mxu0 %v1556
  %2357 = vmatmul.bf16.gmra.mxu0 %v400
  %v2358 = vpop.f32.mrf.mxu0
  %v2359 = vadd.f32 %v2345, %v2358
  %v2360 = vpop.f32.mrf.mxu0
  %v2361 = vadd.f32 %v2347, %v2360
  %2362 = vdwg.mxu0
  %v2363 = vld [vmem:[%s3] sm:$0xff]
  %v2364 = vld [vmem:[%s3 + $0x8] sm:$0xff]
  %v2365 = vld [vmem:[%s3 + $0x10] sm:$0xff]
  %v2366 = vld [vmem:[%s3 + $0x18] sm:$0xff]
  %v2367 = vadd.f32 %v2107, %v2363
  %v2368 = vadd.f32 %v2359, %v2364
  %v2369 = vadd.f32 %v2109, %v2365
  %v2370 = vadd.f32 %v2361, %v2366
  %v2371 = vmax.f32 %v2367, 0.0
  %v2372 = vmax.f32 %v2368, 0.0
  %v2373 = vmax.f32 %v2369, 0.0
  %v2374 = vmax.f32 %v2370, 0.0
  %2375 = vst [vmem:[%s4] sm:$0xff] %v2371
  %2376 = vst [vmem:[%s4 + $0x8] sm:$0xff] %v2372
  %2377 = vst [vmem:[%s4 + $0x10] sm:$0xff] %v2373
  %2378 = vst [vmem:[%s4 + $0x18] sm:$0xff] %v2374
  // Predicated region
  $region18: #{resnet_forward.20} parent=0 // pred_check
    _
  $region19: #{resnet_forward.20} parent=0 // pred_check_branch
    %2380 = sbr.rel (0) target = $region21
  $region20: #{resnet_forward.20} parent=0 // pred_region
    _
  $region21: #{resnet_forward.20} parent=0 // pred_fallthru
    _
  // Predicated region
  $region22: #{resnet_forward.20} parent=0 // pred_check
    _
  $region23: #{resnet_forward.20} parent=0 // pred_check_branch
    %2382 = sbr.rel (0) target = $region25
  $region24: #{resnet_forward.20} parent=0 // pred_region
    _
  $region25: #{resnet_forward.20} parent=0 // pred_fallthru
    _

</llo_original>
